<compile_context>
chip_gen: v7x
topology: tpu7x:2x2x1
jax: 0.10.0
libtpu: 0.0.40
codegen_flags: <defaults>
</compile_context>

<pallas_src>
import functools

import jax
import jax.numpy as jnp
from jax.experimental import pallas as pl
from jax.experimental.pallas import tpu as pltpu


def _round_up(v, m):
    return ((v + m - 1) // m) * m


def _vmem_capacity_bytes():
    """Physical VMEM of the current chip; conservative 64 MiB fallback."""
    try:
        cap = int(pltpu.get_tpu_info().vmem_capacity_bytes)
        if cap >= 32 * 2 ** 20:
            return cap
    except Exception:
        pass
    return 64 * 2 ** 20


# --------------------------------------------------------------------------
# Kernel bodies
# --------------------------------------------------------------------------

def _fill_padded_image(x_ref, xflat_ref, *, H, W, Wp, pad, Cin):
    """Zero-pad + row-flatten the input image into VMEM (compute dtype)."""
    xflat_ref[...] = jnp.zeros(xflat_ref.shape, xflat_ref.dtype)
    for h in range(H):                          # static: H row stores
        start = (h + pad) * Wp + pad
        xflat_ref[0:Cin, start:start + W] = x_ref[:, h, :].astype(xflat_ref.dtype)


def _inception_im2col_kernel(x_ref, w_ref, b_ref, o_ref, xflat_ref, col_ref,
                             *, H, W, K, Wp, pad, Cin):
    """Small-Cin path: one full-K im2col slab (built once per batch element),
    one fat MXU matmul per (batch, Cout-tile).

    x_ref:     (Cin, H, W)
    w_ref:     (TCout, K*K*Cin_pad)   contraction idx = (kh*K + kw)*Cin_pad + ci
    b_ref:     (TCout, 1)             f32
    o_ref:     (TCout, H, W)          un-padded output
    xflat_ref: (Cin_pad, Hp*Wp+K-1)   zero-padded, row-flattened image
    col_ref:   (K*K*Cin_pad, H*Wp)    full im2col slab
    """
    Cin_pad = xflat_ref.shape[0]
    L = H * Wp

    @pl.when(pl.program_id(1) == 0)            # once per batch element
    def _build():
        _fill_padded_image(x_ref, xflat_ref, H=H, W=W, Wp=Wp, pad=pad, Cin=Cin)
        for kh in range(K):
            for kw in range(K):
                r = (kh * K + kw) * Cin_pad    # sublane-aligned (Cin_pad | 8/16)
                s = kh * Wp + kw               # contiguous lane slice
                col_ref[r:r + Cin_pad, :] = xflat_ref[:, s:s + L]

    y = jax.lax.dot_general(
        w_ref[...], col_ref[...],
        dimension_numbers=(((1,), (0,)), ((), ())),
        preferred_element_type=jnp.float32)    # (TCout, L) f32

    bvec = b_ref[...]
    for h in range(H):                         # un-padded, row-by-row store
        p = h * Wp
        o_ref[:, h, :] = (y[:, p:p + W] + bvec).astype(o_ref.dtype)


def _inception_direct_kernel(x_ref, w_ref, b_ref, o_ref, xflat_ref, acc_ref,
                             *, H, W, K, Wp, pad, Cin):
    """Large-Cin path: no im2col copy.  121 direct MXU dots (contraction = Cin)
    on contiguous lane slices of the flat padded image, f32 VMEM accumulator.

    x_ref:     (Cin, H, W)
    w_ref:     (K*K, Cout_tile, Cin_pad)
    b_ref:     (Cout_tile, 1)   f32
    o_ref:     (Cout_tile, H, W)
    xflat_ref: (Cin_pad, Hp*Wp+K-1)
    acc_ref:   (Cout_tile, H*Wp) f32
    """
    L = H * Wp

    @pl.when(pl.program_id(1) == 0)            # once per batch element
    def _build():
        _fill_padded_image(x_ref, xflat_ref, H=H, W=W, Wp=Wp, pad=pad, Cin=Cin)

    for kh in range(K):                        # statically unrolled (K = 11)
        for kw in range(K):
            s = kh * Wp + kw
            contrib = jax.lax.dot_general(
                w_ref[kh * K + kw], xflat_ref[:, s:s + L],
                dimension_numbers=(((1,), (0,)), ((), ())),
                preferred_element_type=jnp.float32)          # (TCout, L)
            if kh == 0 and kw == 0:
                acc_ref[...] = contrib
            else:
                acc_ref[...] += contrib

    bvec = b_ref[...]
    for h in range(H):                         # un-padded, row-by-row store
        p = h * Wp
        o_ref[:, h, :] = (acc_ref[:, p:p + W] + bvec).astype(o_ref.dtype)


# --------------------------------------------------------------------------
# Wrapper
# --------------------------------------------------------------------------

def inception_block_v1_forward(x_nchw, weights, biases, *,
                               compute_dtype=jnp.bfloat16,
                               cout_tile=None, force_path=None):
    """Forward pass of Inception_Block_V1.

    x_nchw:     (N, Cin, H, W)
    weights[i]: (Cout, Cin, 2i+1, 2i+1)   (PyTorch OIHW)
    biases[i]:  (Cout,)
    compute_dtype: dtype of the MXU operands (accumulation is always f32).
                   bfloat16 (default) ~2x MXU throughput on v6e/v7x.
    force_path: None (auto) | "im2col" | "direct".
    """
    assert force_path in (None, "im2col", "direct")
    num_kernels = len(weights)
    K = max(int(w.shape[-1]) for w in weights)            # largest kernel (= 11)
    pad = (K - 1) // 2
    Cout, Cin = int(weights[0].shape[0]), int(weights[0].shape[1])
    N, _, H, W = map(int, x_nchw.shape)

    # --- parameter glue (plain JAX): fold the branches into one KxK kernel ---
    combined = jnp.zeros((Cout, Cin, K, K), jnp.float32)
    for w in weights:
        k = int(w.shape[-1])
        p = (K - k) // 2
        combined = combined + jnp.pad(w.astype(jnp.float32),
                                      ((0, 0), (0, 0), (p, p), (p, p)))
    combined = combined / num_kernels
    bias = (sum(b.astype(jnp.float32) for b in biases) / num_kernels)
    bias = bias.reshape(Cout, 1)

    # --- pad/flatten along the LARGER spatial axis (minimize Wp/W waste) ---
    swap = H > W
    x = x_nchw
    if swap:
        x = jnp.transpose(x, (0, 1, 3, 2))
        combined = jnp.transpose(combined, (0, 1, 3, 2))
        H, W = W, H

    itemsize = jnp.dtype(compute_dtype).itemsize
    sub = 32 // itemsize                       # sublane packing: 8 f32 / 16 bf16
    Cin_pad = _round_up(Cin, sub)
    Wp = W + 2 * pad
    Hp = H + 2 * pad
    L = H * Wp
    Lin = Hp * Wp + (K - 1)                    # slack so every slice is in-bounds
    x_isz = jnp.dtype(x.dtype).itemsize

    # --- VMEM budget from the actual chip (v7x: ~48 MiB, v5e/v6e: ~96 MiB) ---
    budget = min(int(_vmem_capacity_bytes() * 0.75), 112 * 2 ** 20)
    fit_cap = budget - 4 * 2 ** 20

    col_bytes = K * K * Cin_pad * L * itemsize
    if force_path is None:
        path = "im2col" if (Cin_pad < 128 and
                            col_bytes <= min(16 * 2 ** 20, budget // 3)) else "direct"
    else:
        path = force_path

    def _vmem_need(ct):                        # rough, double-buffered blocks
        need = 2 * Cin * H * W * x_isz                      # input block
        need += 2 * ct * K * K * Cin_pad * itemsize         # weight block
        need += 2 * ct * 128 * 4                            # bias block (lane-padded)
        need += 2 * ct * H * W * x_isz                      # output block
        need += Cin_pad * Lin * itemsize                    # flat padded image
        if path == "im2col":
            need += col_bytes                               # im2col slab
        else:
            need += ct * L * 4                              # f32 accumulator
        return need

    if cout_tile is None:
        cands = [d for d in range(min(Cout, 256), 0, -1)
                 if Cout % d == 0 and (d % 8 == 0 or d == Cout)]
        if not cands:
            cands = [Cout]
        cout_tile = next((d for d in cands if _vmem_need(d) <= fit_cap), cands[-1])
    else:
        assert Cout % cout_tile == 0, (Cout, cout_tile)

    # --- weight layouts (pad Cin to the sublane multiple with zero channels) ---
    cp = combined
    if Cin_pad > Cin:
        cp = jnp.pad(cp, ((0, 0), (0, Cin_pad - Cin), (0, 0), (0, 0)))

    if path == "im2col":
        # (Cout, Cin_pad, K, K) -> (Cout, K, K, Cin_pad) -> (Cout, K*K*Cin_pad)
        w_arr = (jnp.transpose(cp, (0, 2, 3, 1))
                 .reshape(Cout, K * K * Cin_pad).astype(compute_dtype))
        w_spec = pl.BlockSpec((cout_tile, K * K * Cin_pad), lambda n, c: (c, 0))
        scratch = [pltpu.VMEM((Cin_pad, Lin), compute_dtype),
                   pltpu.VMEM((K * K * Cin_pad, L), compute_dtype)]
        kern = functools.partial(_inception_im2col_kernel,
                                 H=H, W=W, K=K, Wp=Wp, pad=pad, Cin=Cin)
    else:
        # (Cout, Cin_pad, K, K) -> (K, K, Cout, Cin_pad) -> (K*K, Cout, Cin_pad)
        w_arr = (jnp.transpose(cp, (2, 3, 0, 1))
                 .reshape(K * K, Cout, Cin_pad).astype(compute_dtype))
        w_spec = pl.BlockSpec((K * K, cout_tile, Cin_pad), lambda n, c: (0, c, 0))
        scratch = [pltpu.VMEM((Cin_pad, Lin), compute_dtype),
                   pltpu.VMEM((cout_tile, L), jnp.float32)]
        kern = functools.partial(_inception_direct_kernel,
                                 H=H, W=W, K=K, Wp=Wp, pad=pad, Cin=Cin)

    out = pl.pallas_call(
        kern,
        out_shape=jax.ShapeDtypeStruct((N, Cout, H, W), x.dtype),
        grid_spec=pltpu.PrefetchScalarGridSpec(
            num_scalar_prefetch=0,
            grid=(N, Cout // cout_tile),
            in_specs=[
                # unpadded image of batch n; re-DMAed only when n changes
                pl.BlockSpec((None, Cin, H, W), lambda n, c: (n, 0, 0, 0)),
                w_spec,
                pl.BlockSpec((cout_tile, 1), lambda n, c: (c, 0)),
            ],
            out_specs=pl.BlockSpec((None, cout_tile, H, W),
                                   lambda n, c: (n, c, 0, 0)),
            scratch_shapes=scratch,
        ),
        compiler_params=pltpu.CompilerParams(
            # NOTE: the Cout-tile axis must stay sequential ("arbitrary"):
            # the padded-image / im2col build is gated on program_id(1) == 0.
            dimension_semantics=("parallel", "arbitrary"),
            vmem_limit_bytes=int(budget),
        ),
    )(x, w_arr, bias)

    if swap:
        out = jnp.transpose(out, (0, 1, 3, 2))
    return out


# --------------------------------------------------------------------------
# Self-test
# --------------------------------------------------------------------------

if __name__ == "__main__":
    key = jax.random.PRNGKey(0)
    N, Cin, Cout = 2, 4, 8
    num_kernels = 6

    kx, kx2, *kws = jax.random.split(key, 2 + num_kernels)
    x = jax.random.normal(kx, (N, Cin, 16, 16), jnp.float32)
    x_rect = jax.random.normal(kx2, (N, Cin, 16, 8), jnp.float32)   # H > W

    # deterministic kaiming_normal_(mode='fan_out', nonlinearity='relu'), bias=0
    weights, biases = [], []
    for i in range(num_kernels):
        k = 2 * i + 1
        fan_out = Cout * k * k
        std = (2.0 / fan_out) ** 0.5
        weights.append(std * jax.random.normal(kws[i], (Cout, Cin, k, k), jnp.float32))
        biases.append(jnp.zeros((Cout,), jnp.float32))

    def reference(inp):
        outs = []
        for i in range(num_kernels):
            r = jax.lax.conv_general_dilated(
                inp, weights[i], window_strides=(1, 1), padding=[(i, i), (i, i)],
                dimension_numbers=("NCHW", "OIHW", "NCHW"))
            outs.append(r + biases[i][None, :, None, None])
        return jnp.mean(jnp.stack(outs, axis=-1), axis=-1)

    ref = reference(x)
    ref_rect = reference(x_rect)

    # 1) f32 operands, small-Cin (single fat matmul / im2col) path: tight check
    out = jax.block_until_ready(
        inception_block_v1_forward(x, weights, biases, compute_dtype=jnp.float32))
    assert out.shape == ref.shape, out.shape
    err = float(jnp.max(jnp.abs(out - ref)))
    assert err < 1e-3, f"im2col f32 max abs err {err}"

    # 2) f32 operands, large-Cin (direct, copy-free) path forced: tight check
    out_d = jax.block_until_ready(
        inception_block_v1_forward(x, weights, biases, compute_dtype=jnp.float32,
                                   force_path="direct"))
    err_d = float(jnp.max(jnp.abs(out_d - ref)))
    assert err_d < 1e-3, f"direct f32 max abs err {err_d}"

    # 3) non-square input (H > W): exercises the pad-along-larger-axis transpose
    out_r = jax.block_until_ready(
        inception_block_v1_forward(x_rect, weights, biases,
                                   compute_dtype=jnp.float32))
    assert out_r.shape == ref_rect.shape, out_r.shape
    err_r = float(jnp.max(jnp.abs(out_r - ref_rect)))
    assert err_r < 1e-3, f"rect f32 max abs err {err_r}"

    # 4) default bf16 operands / f32 accumulation (the TPU fast path)
    out_bf = jax.block_until_ready(
        inception_block_v1_forward(x, weights, biases))
    err_bf = float(jnp.max(jnp.abs(out_bf - ref)))
    assert err_bf < 5e-2, f"bf16 max abs err {err_bf}"

    print("KERNEL_OK")
</pallas_src>

<mosaic_0001>
module attributes {stable_mosaic.version = 11 : i64} {
  func.func @_inception_im2col_kernel(%arg0: i32, %arg1: i32, %arg2: memref<1x4x16x16xf32, #tpu.memory_space<vmem>>, %arg3: memref<8x968xf32, #tpu.memory_space<vmem>>, %arg4: memref<8x1xf32, #tpu.memory_space<vmem>>, %arg5: memref<1x8x16x16xf32, #tpu.memory_space<vmem>>, %arg6: memref<8x686xf32, #tpu.memory_space<vmem>>, %arg7: memref<968x416xf32, #tpu.memory_space<vmem>>) attributes {dimension_semantics = [#tpu.dimension_semantics<parallel>, #tpu.dimension_semantics<arbitrary>], iteration_bounds = array<i64: 2, 1>, scalar_prefetch = 0 : i64, scratch_operands = 2 : i64, tpu.core_type = #tpu.core_type<tc>, window_params = [{transform_indices = @transform_0, window_bounds = array<i64: 1, 4, 16, 16>}, {transform_indices = @transform_1, window_bounds = array<i64: 8, 968>}, {transform_indices = @transform_2, window_bounds = array<i64: 8, 1>}, {transform_indices = @transform_3, window_bounds = array<i64: 1, 8, 16, 16>}]} {
    %c0_i32 = arith.constant 0 : i32
    %0 = arith.cmpi eq, %arg1, %c0_i32 : i32
    %1 = arith.extui %0 : i1 to i32
    %c0_i32_0 = arith.constant 0 : i32
    %2 = arith.cmpi ne, %1, %c0_i32_0 : i32
    scf.if %2 {
      %cst_55 = arith.constant 0.000000e+00 : f32
      %103 = vector.broadcast %cst_55 : f32 to vector<8x686xf32>
      %c0_56 = arith.constant 0 : index
      %c0_57 = arith.constant 0 : index
      %104 = vector.load %arg6[%c0_56, %c0_57] : memref<8x686xf32, #tpu.memory_space<vmem>>, vector<8x686xf32>
      tpu.vector_store %arg6[%c0_56, %c0_57], %103 {strides = array<i32>} : memref<8x686xf32, #tpu.memory_space<vmem>>, vector<8x686xf32>,
      %c0_58 = arith.constant 0 : index
      %c0_59 = arith.constant 0 : index
      %c0_60 = arith.constant 0 : index
      %c0_61 = arith.constant 0 : index
      %105 = vector.load %arg2[%c0_58, %c0_59, %c0_60, %c0_61] : memref<1x4x16x16xf32, #tpu.memory_space<vmem>>, vector<1x4x1x16xf32>
      %106 = vector.shape_cast %105 : vector<1x4x1x16xf32> to vector<4x16xf32>
      %c0_62 = arith.constant 0 : index
      %c135 = arith.constant 135 : index
      %107 = vector.load %arg6[%c0_62, %c135] : memref<8x686xf32, #tpu.memory_space<vmem>>, vector<4x16xf32>
      tpu.vector_store %arg6[%c0_62, %c135], %106 {strides = array<i32>} : memref<8x686xf32, #tpu.memory_space<vmem>>, vector<4x16xf32>,
      %c0_63 = arith.constant 0 : index
      %c0_64 = arith.constant 0 : index
      %c1_65 = arith.constant 1 : index
      %c0_66 = arith.constant 0 : index
      %108 = vector.load %arg2[%c0_63, %c0_64, %c1_65, %c0_66] : memref<1x4x16x16xf32, #tpu.memory_space<vmem>>, vector<1x4x1x16xf32>
      %109 = vector.shape_cast %108 : vector<1x4x1x16xf32> to vector<4x16xf32>
      %c0_67 = arith.constant 0 : index
      %c161 = arith.constant 161 : index
      %110 = vector.load %arg6[%c0_67, %c161] : memref<8x686xf32, #tpu.memory_space<vmem>>, vector<4x16xf32>
      tpu.vector_store %arg6[%c0_67, %c161], %109 {strides = array<i32>} : memref<8x686xf32, #tpu.memory_space<vmem>>, vector<4x16xf32>,
      %c0_68 = arith.constant 0 : index
      %c0_69 = arith.constant 0 : index
      %c2_70 = arith.constant 2 : index
      %c0_71 = arith.constant 0 : index
      %111 = vector.load %arg2[%c0_68, %c0_69, %c2_70, %c0_71] : memref<1x4x16x16xf32, #tpu.memory_space<vmem>>, vector<1x4x1x16xf32>
      %112 = vector.shape_cast %111 : vector<1x4x1x16xf32> to vector<4x16xf32>
      %c0_72 = arith.constant 0 : index
      %c187 = arith.constant 187 : index
      %113 = vector.load %arg6[%c0_72, %c187] : memref<8x686xf32, #tpu.memory_space<vmem>>, vector<4x16xf32>
      tpu.vector_store %arg6[%c0_72, %c187], %112 {strides = array<i32>} : memref<8x686xf32, #tpu.memory_space<vmem>>, vector<4x16xf32>,
      %c0_73 = arith.constant 0 : index
      %c0_74 = arith.constant 0 : index
      %c3_75 = arith.constant 3 : index
      %c0_76 = arith.constant 0 : index
      %114 = vector.load %arg2[%c0_73, %c0_74, %c3_75, %c0_76] : memref<1x4x16x16xf32, #tpu.memory_space<vmem>>, vector<1x4x1x16xf32>
      %115 = vector.shape_cast %114 : vector<1x4x1x16xf32> to vector<4x16xf32>
      %c0_77 = arith.constant 0 : index
      %c213 = arith.constant 213 : index
      %116 = vector.load %arg6[%c0_77, %c213] : memref<8x686xf32, #tpu.memory_space<vmem>>, vector<4x16xf32>
      tpu.vector_store %arg6[%c0_77, %c213], %115 {strides = array<i32>} : memref<8x686xf32, #tpu.memory_space<vmem>>, vector<4x16xf32>,
      %c0_78 = arith.constant 0 : index
      %c0_79 = arith.constant 0 : index
      %c4_80 = arith.constant 4 : index
      %c0_81 = arith.constant 0 : index
      %117 = vector.load %arg2[%c0_78, %c0_79, %c4_80, %c0_81] : memref<1x4x16x16xf32, #tpu.memory_space<vmem>>, vector<1x4x1x16xf32>
      %118 = vector.shape_cast %117 : vector<1x4x1x16xf32> to vector<4x16xf32>
      %c0_82 = arith.constant 0 : index
      %c239 = arith.constant 239 : index
      %119 = vector.load %arg6[%c0_82, %c239] : memref<8x686xf32, #tpu.memory_space<vmem>>, vector<4x16xf32>
      tpu.vector_store %arg6[%c0_82, %c239], %118 {strides = array<i32>} : memref<8x686xf32, #tpu.memory_space<vmem>>, vector<4x16xf32>,
      %c0_83 = arith.constant 0 : index
      %c0_84 = arith.constant 0 : index
      %c5_85 = arith.constant 5 : index
      %c0_86 = arith.constant 0 : index
      %120 = vector.load %arg2[%c0_83, %c0_84, %c5_85, %c0_86] : memref<1x4x16x16xf32, #tpu.memory_space<vmem>>, vector<1x4x1x16xf32>
      %121 = vector.shape_cast %120 : vector<1x4x1x16xf32> to vector<4x16xf32>
      %c0_87 = arith.constant 0 : index
      %c265 = arith.constant 265 : index
      %122 = vector.load %arg6[%c0_87, %c265] : memref<8x686xf32, #tpu.memory_space<vmem>>, vector<4x16xf32>
      tpu.vector_store %arg6[%c0_87, %c265], %121 {strides = array<i32>} : memref<8x686xf32, #tpu.memory_space<vmem>>, vector<4x16xf32>,
      %c0_88 = arith.constant 0 : index
      %c0_89 = arith.constant 0 : index
      %c6_90 = arith.constant 6 : index
      %c0_91 = arith.constant 0 : index
      %123 = vector.load %arg2[%c0_88, %c0_89, %c6_90, %c0_91] : memref<1x4x16x16xf32, #tpu.memory_space<vmem>>, vector<1x4x1x16xf32>
      %124 = vector.shape_cast %123 : vector<1x4x1x16xf32> to vector<4x16xf32>
      %c0_92 = arith.constant 0 : index
      %c291 = arith.constant 291 : index
      %125 = vector.load %arg6[%c0_92, %c291] : memref<8x686xf32, #tpu.memory_space<vmem>>, vector<4x16xf32>
      tpu.vector_store %arg6[%c0_92, %c291], %124 {strides = array<i32>} : memref<8x686xf32, #tpu.memory_space<vmem>>, vector<4x16xf32>,
      %c0_93 = arith.constant 0 : index
      %c0_94 = arith.constant 0 : index
      %c7_95 = arith.constant 7 : index
      %c0_96 = arith.constant 0 : index
      %126 = vector.load %arg2[%c0_93, %c0_94, %c7_95, %c0_96] : memref<1x4x16x16xf32, #tpu.memory_space<vmem>>, vector<1x4x1x16xf32>
      %127 = vector.shape_cast %126 : vector<1x4x1x16xf32> to vector<4x16xf32>
      %c0_97 = arith.constant 0 : index
      %c317 = arith.constant 317 : index
      %128 = vector.load %arg6[%c0_97, %c317] : memref<8x686xf32, #tpu.memory_space<vmem>>, vector<4x16xf32>
      tpu.vector_store %arg6[%c0_97, %c317], %127 {strides = array<i32>} : memref<8x686xf32, #tpu.memory_space<vmem>>, vector<4x16xf32>,
      %c0_98 = arith.constant 0 : index
      %c0_99 = arith.constant 0 : index
      %c8_100 = arith.constant 8 : index
      %c0_101 = arith.constant 0 : index
      %129 = vector.load %arg2[%c0_98, %c0_99, %c8_100, %c0_101] : memref<1x4x16x16xf32, #tpu.memory_space<vmem>>, vector<1x4x1x16xf32>
      %130 = vector.shape_cast %129 : vector<1x4x1x16xf32> to vector<4x16xf32>
      %c0_102 = arith.constant 0 : index
      %c343 = arith.constant 343 : index
      %131 = vector.load %arg6[%c0_102, %c343] : memref<8x686xf32, #tpu.memory_space<vmem>>, vector<4x16xf32>
      tpu.vector_store %arg6[%c0_102, %c343], %130 {strides = array<i32>} : memref<8x686xf32, #tpu.memory_space<vmem>>, vector<4x16xf32>,
      %c0_103 = arith.constant 0 : index
      %c0_104 = arith.constant 0 : index
      %c9_105 = arith.constant 9 : index
      %c0_106 = arith.constant 0 : index
      %132 = vector.load %arg2[%c0_103, %c0_104, %c9_105, %c0_106] : memref<1x4x16x16xf32, #tpu.memory_space<vmem>>, vector<1x4x1x16xf32>
      %133 = vector.shape_cast %132 : vector<1x4x1x16xf32> to vector<4x16xf32>
      %c0_107 = arith.constant 0 : index
      %c369 = arith.constant 369 : index
      %134 = vector.load %arg6[%c0_107, %c369] : memref<8x686xf32, #tpu.memory_space<vmem>>, vector<4x16xf32>
      tpu.vector_store %arg6[%c0_107, %c369], %133 {strides = array<i32>} : memref<8x686xf32, #tpu.memory_space<vmem>>, vector<4x16xf32>,
      %c0_108 = arith.constant 0 : index
      %c0_109 = arith.constant 0 : index
      %c10_110 = arith.constant 10 : index
      %c0_111 = arith.constant 0 : index
      %135 = vector.load %arg2[%c0_108, %c0_109, %c10_110, %c0_111] : memref<1x4x16x16xf32, #tpu.memory_space<vmem>>, vector<1x4x1x16xf32>
      %136 = vector.shape_cast %135 : vector<1x4x1x16xf32> to vector<4x16xf32>
      %c0_112 = arith.constant 0 : index
      %c395 = arith.constant 395 : index
      %137 = vector.load %arg6[%c0_112, %c395] : memref<8x686xf32, #tpu.memory_space<vmem>>, vector<4x16xf32>
      tpu.vector_store %arg6[%c0_112, %c395], %136 {strides = array<i32>} : memref<8x686xf32, #tpu.memory_space<vmem>>, vector<4x16xf32>,
      %c0_113 = arith.constant 0 : index
      %c0_114 = arith.constant 0 : index
      %c11_115 = arith.constant 11 : index
      %c0_116 = arith.constant 0 : index
      %138 = vector.load %arg2[%c0_113, %c0_114, %c11_115, %c0_116] : memref<1x4x16x16xf32, #tpu.memory_space<vmem>>, vector<1x4x1x16xf32>
      %139 = vector.shape_cast %138 : vector<1x4x1x16xf32> to vector<4x16xf32>
      %c0_117 = arith.constant 0 : index
      %c421 = arith.constant 421 : index
      %140 = vector.load %arg6[%c0_117, %c421] : memref<8x686xf32, #tpu.memory_space<vmem>>, vector<4x16xf32>
      tpu.vector_store %arg6[%c0_117, %c421], %139 {strides = array<i32>} : memref<8x686xf32, #tpu.memory_space<vmem>>, vector<4x16xf32>,
      %c0_118 = arith.constant 0 : index
      %c0_119 = arith.constant 0 : index
      %c12_120 = arith.constant 12 : index
      %c0_121 = arith.constant 0 : index
      %141 = vector.load %arg2[%c0_118, %c0_119, %c12_120, %c0_121] : memref<1x4x16x16xf32, #tpu.memory_space<vmem>>, vector<1x4x1x16xf32>
      %142 = vector.shape_cast %141 : vector<1x4x1x16xf32> to vector<4x16xf32>
      %c0_122 = arith.constant 0 : index
      %c447 = arith.constant 447 : index
      %143 = vector.load %arg6[%c0_122, %c447] : memref<8x686xf32, #tpu.memory_space<vmem>>, vector<4x16xf32>
      tpu.vector_store %arg6[%c0_122, %c447], %142 {strides = array<i32>} : memref<8x686xf32, #tpu.memory_space<vmem>>, vector<4x16xf32>,
      %c0_123 = arith.constant 0 : index
      %c0_124 = arith.constant 0 : index
      %c13_125 = arith.constant 13 : index
      %c0_126 = arith.constant 0 : index
      %144 = vector.load %arg2[%c0_123, %c0_124, %c13_125, %c0_126] : memref<1x4x16x16xf32, #tpu.memory_space<vmem>>, vector<1x4x1x16xf32>
      %145 = vector.shape_cast %144 : vector<1x4x1x16xf32> to vector<4x16xf32>
      %c0_127 = arith.constant 0 : index
      %c473 = arith.constant 473 : index
      %146 = vector.load %arg6[%c0_127, %c473] : memref<8x686xf32, #tpu.memory_space<vmem>>, vector<4x16xf32>
      tpu.vector_store %arg6[%c0_127, %c473], %145 {strides = array<i32>} : memref<8x686xf32, #tpu.memory_space<vmem>>, vector<4x16xf32>,
      %c0_128 = arith.constant 0 : index
      %c0_129 = arith.constant 0 : index
      %c14_130 = arith.constant 14 : index
      %c0_131 = arith.constant 0 : index
      %147 = vector.load %arg2[%c0_128, %c0_129, %c14_130, %c0_131] : memref<1x4x16x16xf32, #tpu.memory_space<vmem>>, vector<1x4x1x16xf32>
      %148 = vector.shape_cast %147 : vector<1x4x1x16xf32> to vector<4x16xf32>
      %c0_132 = arith.constant 0 : index
      %c499 = arith.constant 499 : index
      %149 = vector.load %arg6[%c0_132, %c499] : memref<8x686xf32, #tpu.memory_space<vmem>>, vector<4x16xf32>
      tpu.vector_store %arg6[%c0_132, %c499], %148 {strides = array<i32>} : memref<8x686xf32, #tpu.memory_space<vmem>>, vector<4x16xf32>,
      %c0_133 = arith.constant 0 : index
      %c0_134 = arith.constant 0 : index
      %c15_135 = arith.constant 15 : index
      %c0_136 = arith.constant 0 : index
      %150 = vector.load %arg2[%c0_133, %c0_134, %c15_135, %c0_136] : memref<1x4x16x16xf32, #tpu.memory_space<vmem>>, vector<1x4x1x16xf32>
      %151 = vector.shape_cast %150 : vector<1x4x1x16xf32> to vector<4x16xf32>
      %c0_137 = arith.constant 0 : index
      %c525 = arith.constant 525 : index
      %152 = vector.load %arg6[%c0_137, %c525] : memref<8x686xf32, #tpu.memory_space<vmem>>, vector<4x16xf32>
      tpu.vector_store %arg6[%c0_137, %c525], %151 {strides = array<i32>} : memref<8x686xf32, #tpu.memory_space<vmem>>, vector<4x16xf32>,
      %c0_138 = arith.constant 0 : index
      %c0_139 = arith.constant 0 : index
      %153 = vector.load %arg6[%c0_138, %c0_139] : memref<8x686xf32, #tpu.memory_space<vmem>>, vector<8x416xf32>
      %c0_140 = arith.constant 0 : index
      %c0_141 = arith.constant 0 : index
      %154 = vector.load %arg7[%c0_140, %c0_141] : memref<968x416xf32, #tpu.memory_space<vmem>>, vector<8x416xf32>
      tpu.vector_store %arg7[%c0_140, %c0_141], %153 {strides = array<i32>} : memref<968x416xf32, #tpu.memory_space<vmem>>, vector<8x416xf32>,
      %c0_142 = arith.constant 0 : index
      %c1_143 = arith.constant 1 : index
      %155 = vector.load %arg6[%c0_142, %c1_143] : memref<8x686xf32, #tpu.memory_space<vmem>>, vector<8x416xf32>
      %c8_144 = arith.constant 8 : index
      %c0_145 = arith.constant 0 : index
      %156 = vector.load %arg7[%c8_144, %c0_145] : memref<968x416xf32, #tpu.memory_space<vmem>>, vector<8x416xf32>
      tpu.vector_store %arg7[%c8_144, %c0_145], %155 {strides = array<i32>} : memref<968x416xf32, #tpu.memory_space<vmem>>, vector<8x416xf32>,
      %c0_146 = arith.constant 0 : index
      %c2_147 = arith.constant 2 : index
      %157 = vector.load %arg6[%c0_146, %c2_147] : memref<8x686xf32, #tpu.memory_space<vmem>>, vector<8x416xf32>
      %c16 = arith.constant 16 : index
      %c0_148 = arith.constant 0 : index
      %158 = vector.load %arg7[%c16, %c0_148] : memref<968x416xf32, #tpu.memory_space<vmem>>, vector<8x416xf32>
      tpu.vector_store %arg7[%c16, %c0_148], %157 {strides = array<i32>} : memref<968x416xf32, #tpu.memory_space<vmem>>, vector<8x416xf32>,
      %c0_149 = arith.constant 0 : index
      %c3_150 = arith.constant 3 : index
      %159 = vector.load %arg6[%c0_149, %c3_150] : memref<8x686xf32, #tpu.memory_space<vmem>>, vector<8x416xf32>
      %c24 = arith.constant 24 : index
      %c0_151 = arith.constant 0 : index
      %160 = vector.load %arg7[%c24, %c0_151] : memref<968x416xf32, #tpu.memory_space<vmem>>, vector<8x416xf32>
      tpu.vector_store %arg7[%c24, %c0_151], %159 {strides = array<i32>} : memref<968x416xf32, #tpu.memory_space<vmem>>, vector<8x416xf32>,
      %c0_152 = arith.constant 0 : index
      %c4_153 = arith.constant 4 : index
      %161 = vector.load %arg6[%c0_152, %c4_153] : memref<8x686xf32, #tpu.memory_space<vmem>>, vector<8x416xf32>
      %c32 = arith.constant 32 : index
      %c0_154 = arith.constant 0 : index
      %162 = vector.load %arg7[%c32, %c0_154] : memref<968x416xf32, #tpu.memory_space<vmem>>, vector<8x416xf32>
      tpu.vector_store %arg7[%c32, %c0_154], %161 {strides = array<i32>} : memref<968x416xf32, #tpu.memory_space<vmem>>, vector<8x416xf32>,
      %c0_155 = arith.constant 0 : index
      %c5_156 = arith.constant 5 : index
      %163 = vector.load %arg6[%c0_155, %c5_156] : memref<8x686xf32, #tpu.memory_space<vmem>>, vector<8x416xf32>
      %c40 = arith.constant 40 : index
      %c0_157 = arith.constant 0 : index
      %164 = vector.load %arg7[%c40, %c0_157] : memref<968x416xf32, #tpu.memory_space<vmem>>, vector<8x416xf32>
      tpu.vector_store %arg7[%c40, %c0_157], %163 {strides = array<i32>} : memref<968x416xf32, #tpu.memory_space<vmem>>, vector<8x416xf32>,
      %c0_158 = arith.constant 0 : index
      %c6_159 = arith.constant 6 : index
      %165 = vector.load %arg6[%c0_158, %c6_159] : memref<8x686xf32, #tpu.memory_space<vmem>>, vector<8x416xf32>
      %c48 = arith.constant 48 : index
      %c0_160 = arith.constant 0 : index
      %166 = vector.load %arg7[%c48, %c0_160] : memref<968x416xf32, #tpu.memory_space<vmem>>, vector<8x416xf32>
      tpu.vector_store %arg7[%c48, %c0_160], %165 {strides = array<i32>} : memref<968x416xf32, #tpu.memory_space<vmem>>, vector<8x416xf32>,
      %c0_161 = arith.constant 0 : index
      %c7_162 = arith.constant 7 : index
      %167 = vector.load %arg6[%c0_161, %c7_162] : memref<8x686xf32, #tpu.memory_space<vmem>>, vector<8x416xf32>
      %c56 = arith.constant 56 : index
      %c0_163 = arith.constant 0 : index
      %168 = vector.load %arg7[%c56, %c0_163] : memref<968x416xf32, #tpu.memory_space<vmem>>, vector<8x416xf32>
      tpu.vector_store %arg7[%c56, %c0_163], %167 {strides = array<i32>} : memref<968x416xf32, #tpu.memory_space<vmem>>, vector<8x416xf32>,
      %c0_164 = arith.constant 0 : index
      %c8_165 = arith.constant 8 : index
      %169 = vector.load %arg6[%c0_164, %c8_165] : memref<8x686xf32, #tpu.memory_space<vmem>>, vector<8x416xf32>
      %c64 = arith.constant 64 : index
      %c0_166 = arith.constant 0 : index
      %170 = vector.load %arg7[%c64, %c0_166] : memref<968x416xf32, #tpu.memory_space<vmem>>, vector<8x416xf32>
      tpu.vector_store %arg7[%c64, %c0_166], %169 {strides = array<i32>} : memref<968x416xf32, #tpu.memory_space<vmem>>, vector<8x416xf32>,
      %c0_167 = arith.constant 0 : index
      %c9_168 = arith.constant 9 : index
      %171 = vector.load %arg6[%c0_167, %c9_168] : memref<8x686xf32, #tpu.memory_space<vmem>>, vector<8x416xf32>
      %c72 = arith.constant 72 : index
      %c0_169 = arith.constant 0 : index
      %172 = vector.load %arg7[%c72, %c0_169] : memref<968x416xf32, #tpu.memory_space<vmem>>, vector<8x416xf32>
      tpu.vector_store %arg7[%c72, %c0_169], %171 {strides = array<i32>} : memref<968x416xf32, #tpu.memory_space<vmem>>, vector<8x416xf32>,
      %c0_170 = arith.constant 0 : index
      %c10_171 = arith.constant 10 : index
      %173 = vector.load %arg6[%c0_170, %c10_171] : memref<8x686xf32, #tpu.memory_space<vmem>>, vector<8x416xf32>
      %c80 = arith.constant 80 : index
      %c0_172 = arith.constant 0 : index
      %174 = vector.load %arg7[%c80, %c0_172] : memref<968x416xf32, #tpu.memory_space<vmem>>, vector<8x416xf32>
      tpu.vector_store %arg7[%c80, %c0_172], %173 {strides = array<i32>} : memref<968x416xf32, #tpu.memory_space<vmem>>, vector<8x416xf32>,
      %c0_173 = arith.constant 0 : index
      %c26 = arith.constant 26 : index
      %175 = vector.load %arg6[%c0_173, %c26] : memref<8x686xf32, #tpu.memory_space<vmem>>, vector<8x416xf32>
      %c88 = arith.constant 88 : index
      %c0_174 = arith.constant 0 : index
      %176 = vector.load %arg7[%c88, %c0_174] : memref<968x416xf32, #tpu.memory_space<vmem>>, vector<8x416xf32>
      tpu.vector_store %arg7[%c88, %c0_174], %175 {strides = array<i32>} : memref<968x416xf32, #tpu.memory_space<vmem>>, vector<8x416xf32>,
      %c0_175 = arith.constant 0 : index
      %c27 = arith.constant 27 : index
      %177 = vector.load %arg6[%c0_175, %c27] : memref<8x686xf32, #tpu.memory_space<vmem>>, vector<8x416xf32>
      %c96 = arith.constant 96 : index
      %c0_176 = arith.constant 0 : index
      %178 = vector.load %arg7[%c96, %c0_176] : memref<968x416xf32, #tpu.memory_space<vmem>>, vector<8x416xf32>
      tpu.vector_store %arg7[%c96, %c0_176], %177 {strides = array<i32>} : memref<968x416xf32, #tpu.memory_space<vmem>>, vector<8x416xf32>,
      %c0_177 = arith.constant 0 : index
      %c28 = arith.constant 28 : index
      %179 = vector.load %arg6[%c0_177, %c28] : memref<8x686xf32, #tpu.memory_space<vmem>>, vector<8x416xf32>
      %c104 = arith.constant 104 : index
      %c0_178 = arith.constant 0 : index
      %180 = vector.load %arg7[%c104, %c0_178] : memref<968x416xf32, #tpu.memory_space<vmem>>, vector<8x416xf32>
      tpu.vector_store %arg7[%c104, %c0_178], %179 {strides = array<i32>} : memref<968x416xf32, #tpu.memory_space<vmem>>, vector<8x416xf32>,
      %c0_179 = arith.constant 0 : index
      %c29 = arith.constant 29 : index
      %181 = vector.load %arg6[%c0_179, %c29] : memref<8x686xf32, #tpu.memory_space<vmem>>, vector<8x416xf32>
      %c112 = arith.constant 112 : index
      %c0_180 = arith.constant 0 : index
      %182 = vector.load %arg7[%c112, %c0_180] : memref<968x416xf32, #tpu.memory_space<vmem>>, vector<8x416xf32>
      tpu.vector_store %arg7[%c112, %c0_180], %181 {strides = array<i32>} : memref<968x416xf32, #tpu.memory_space<vmem>>, vector<8x416xf32>,
      %c0_181 = arith.constant 0 : index
      %c30 = arith.constant 30 : index
      %183 = vector.load %arg6[%c0_181, %c30] : memref<8x686xf32, #tpu.memory_space<vmem>>, vector<8x416xf32>
      %c120 = arith.constant 120 : index
      %c0_182 = arith.constant 0 : index
      %184 = vector.load %arg7[%c120, %c0_182] : memref<968x416xf32, #tpu.memory_space<vmem>>, vector<8x416xf32>
      tpu.vector_store %arg7[%c120, %c0_182], %183 {strides = array<i32>} : memref<968x416xf32, #tpu.memory_space<vmem>>, vector<8x416xf32>,
      %c0_183 = arith.constant 0 : index
      %c31 = arith.constant 31 : index
      %185 = vector.load %arg6[%c0_183, %c31] : memref<8x686xf32, #tpu.memory_space<vmem>>, vector<8x416xf32>
      %c128 = arith.constant 128 : index
      %c0_184 = arith.constant 0 : index
      %186 = vector.load %arg7[%c128, %c0_184] : memref<968x416xf32, #tpu.memory_space<vmem>>, vector<8x416xf32>
      tpu.vector_store %arg7[%c128, %c0_184], %185 {strides = array<i32>} : memref<968x416xf32, #tpu.memory_space<vmem>>, vector<8x416xf32>,
      %c0_185 = arith.constant 0 : index
      %c32_186 = arith.constant 32 : index
      %187 = vector.load %arg6[%c0_185, %c32_186] : memref<8x686xf32, #tpu.memory_space<vmem>>, vector<8x416xf32>
      %c136 = arith.constant 136 : index
      %c0_187 = arith.constant 0 : index
      %188 = vector.load %arg7[%c136, %c0_187] : memref<968x416xf32, #tpu.memory_space<vmem>>, vector<8x416xf32>
      tpu.vector_store %arg7[%c136, %c0_187], %187 {strides = array<i32>} : memref<968x416xf32, #tpu.memory_space<vmem>>, vector<8x416xf32>,
      %c0_188 = arith.constant 0 : index
      %c33 = arith.constant 33 : index
      %189 = vector.load %arg6[%c0_188, %c33] : memref<8x686xf32, #tpu.memory_space<vmem>>, vector<8x416xf32>
      %c144 = arith.constant 144 : index
      %c0_189 = arith.constant 0 : index
      %190 = vector.load %arg7[%c144, %c0_189] : memref<968x416xf32, #tpu.memory_space<vmem>>, vector<8x416xf32>
      tpu.vector_store %arg7[%c144, %c0_189], %189 {strides = array<i32>} : memref<968x416xf32, #tpu.memory_space<vmem>>, vector<8x416xf32>,
      %c0_190 = arith.constant 0 : index
      %c34 = arith.constant 34 : index
      %191 = vector.load %arg6[%c0_190, %c34] : memref<8x686xf32, #tpu.memory_space<vmem>>, vector<8x416xf32>
      %c152 = arith.constant 152 : index
      %c0_191 = arith.constant 0 : index
      %192 = vector.load %arg7[%c152, %c0_191] : memref<968x416xf32, #tpu.memory_space<vmem>>, vector<8x416xf32>
      tpu.vector_store %arg7[%c152, %c0_191], %191 {strides = array<i32>} : memref<968x416xf32, #tpu.memory_space<vmem>>, vector<8x416xf32>,
      %c0_192 = arith.constant 0 : index
      %c35 = arith.constant 35 : index
      %193 = vector.load %arg6[%c0_192, %c35] : memref<8x686xf32, #tpu.memory_space<vmem>>, vector<8x416xf32>
      %c160 = arith.constant 160 : index
      %c0_193 = arith.constant 0 : index
      %194 = vector.load %arg7[%c160, %c0_193] : memref<968x416xf32, #tpu.memory_space<vmem>>, vector<8x416xf32>
      tpu.vector_store %arg7[%c160, %c0_193], %193 {strides = array<i32>} : memref<968x416xf32, #tpu.memory_space<vmem>>, vector<8x416xf32>,
      %c0_194 = arith.constant 0 : index
      %c36 = arith.constant 36 : index
      %195 = vector.load %arg6[%c0_194, %c36] : memref<8x686xf32, #tpu.memory_space<vmem>>, vector<8x416xf32>
      %c168 = arith.constant 168 : index
      %c0_195 = arith.constant 0 : index
      %196 = vector.load %arg7[%c168, %c0_195] : memref<968x416xf32, #tpu.memory_space<vmem>>, vector<8x416xf32>
      tpu.vector_store %arg7[%c168, %c0_195], %195 {strides = array<i32>} : memref<968x416xf32, #tpu.memory_space<vmem>>, vector<8x416xf32>,
      %c0_196 = arith.constant 0 : index
      %c52 = arith.constant 52 : index
      %197 = vector.load %arg6[%c0_196, %c52] : memref<8x686xf32, #tpu.memory_space<vmem>>, vector<8x416xf32>
      %c176 = arith.constant 176 : index
      %c0_197 = arith.constant 0 : index
      %198 = vector.load %arg7[%c176, %c0_197] : memref<968x416xf32, #tpu.memory_space<vmem>>, vector<8x416xf32>
      tpu.vector_store %arg7[%c176, %c0_197], %197 {strides = array<i32>} : memref<968x416xf32, #tpu.memory_space<vmem>>, vector<8x416xf32>,
      %c0_198 = arith.constant 0 : index
      %c53 = arith.constant 53 : index
      %199 = vector.load %arg6[%c0_198, %c53] : memref<8x686xf32, #tpu.memory_space<vmem>>, vector<8x416xf32>
      %c184 = arith.constant 184 : index
      %c0_199 = arith.constant 0 : index
      %200 = vector.load %arg7[%c184, %c0_199] : memref<968x416xf32, #tpu.memory_space<vmem>>, vector<8x416xf32>
      tpu.vector_store %arg7[%c184, %c0_199], %199 {strides = array<i32>} : memref<968x416xf32, #tpu.memory_space<vmem>>, vector<8x416xf32>,
      %c0_200 = arith.constant 0 : index
      %c54 = arith.constant 54 : index
      %201 = vector.load %arg6[%c0_200, %c54] : memref<8x686xf32, #tpu.memory_space<vmem>>, vector<8x416xf32>
      %c192 = arith.constant 192 : index
      %c0_201 = arith.constant 0 : index
      %202 = vector.load %arg7[%c192, %c0_201] : memref<968x416xf32, #tpu.memory_space<vmem>>, vector<8x416xf32>
      tpu.vector_store %arg7[%c192, %c0_201], %201 {strides = array<i32>} : memref<968x416xf32, #tpu.memory_space<vmem>>, vector<8x416xf32>,
      %c0_202 = arith.constant 0 : index
      %c55 = arith.constant 55 : index
      %203 = vector.load %arg6[%c0_202, %c55] : memref<8x686xf32, #tpu.memory_space<vmem>>, vector<8x416xf32>
      %c200 = arith.constant 200 : index
      %c0_203 = arith.constant 0 : index
      %204 = vector.load %arg7[%c200, %c0_203] : memref<968x416xf32, #tpu.memory_space<vmem>>, vector<8x416xf32>
      tpu.vector_store %arg7[%c200, %c0_203], %203 {strides = array<i32>} : memref<968x416xf32, #tpu.memory_space<vmem>>, vector<8x416xf32>,
      %c0_204 = arith.constant 0 : index
      %c56_205 = arith.constant 56 : index
      %205 = vector.load %arg6[%c0_204, %c56_205] : memref<8x686xf32, #tpu.memory_space<vmem>>, vector<8x416xf32>
      %c208 = arith.constant 208 : index
      %c0_206 = arith.constant 0 : index
      %206 = vector.load %arg7[%c208, %c0_206] : memref<968x416xf32, #tpu.memory_space<vmem>>, vector<8x416xf32>
      tpu.vector_store %arg7[%c208, %c0_206], %205 {strides = array<i32>} : memref<968x416xf32, #tpu.memory_space<vmem>>, vector<8x416xf32>,
      %c0_207 = arith.constant 0 : index
      %c57 = arith.constant 57 : index
      %207 = vector.load %arg6[%c0_207, %c57] : memref<8x686xf32, #tpu.memory_space<vmem>>, vector<8x416xf32>
      %c216 = arith.constant 216 : index
      %c0_208 = arith.constant 0 : index
      %208 = vector.load %arg7[%c216, %c0_208] : memref<968x416xf32, #tpu.memory_space<vmem>>, vector<8x416xf32>
      tpu.vector_store %arg7[%c216, %c0_208], %207 {strides = array<i32>} : memref<968x416xf32, #tpu.memory_space<vmem>>, vector<8x416xf32>,
      %c0_209 = arith.constant 0 : index
      %c58 = arith.constant 58 : index
      %209 = vector.load %arg6[%c0_209, %c58] : memref<8x686xf32, #tpu.memory_space<vmem>>, vector<8x416xf32>
      %c224 = arith.constant 224 : index
      %c0_210 = arith.constant 0 : index
      %210 = vector.load %arg7[%c224, %c0_210] : memref<968x416xf32, #tpu.memory_space<vmem>>, vector<8x416xf32>
      tpu.vector_store %arg7[%c224, %c0_210], %209 {strides = array<i32>} : memref<968x416xf32, #tpu.memory_space<vmem>>, vector<8x416xf32>,
      %c0_211 = arith.constant 0 : index
      %c59 = arith.constant 59 : index
      %211 = vector.load %arg6[%c0_211, %c59] : memref<8x686xf32, #tpu.memory_space<vmem>>, vector<8x416xf32>
      %c232 = arith.constant 232 : index
      %c0_212 = arith.constant 0 : index
      %212 = vector.load %arg7[%c232, %c0_212] : memref<968x416xf32, #tpu.memory_space<vmem>>, vector<8x416xf32>
      tpu.vector_store %arg7[%c232, %c0_212], %211 {strides = array<i32>} : memref<968x416xf32, #tpu.memory_space<vmem>>, vector<8x416xf32>,
      %c0_213 = arith.constant 0 : index
      %c60 = arith.constant 60 : index
      %213 = vector.load %arg6[%c0_213, %c60] : memref<8x686xf32, #tpu.memory_space<vmem>>, vector<8x416xf32>
      %c240 = arith.constant 240 : index
      %c0_214 = arith.constant 0 : index
      %214 = vector.load %arg7[%c240, %c0_214] : memref<968x416xf32, #tpu.memory_space<vmem>>, vector<8x416xf32>
      tpu.vector_store %arg7[%c240, %c0_214], %213 {strides = array<i32>} : memref<968x416xf32, #tpu.memory_space<vmem>>, vector<8x416xf32>,
      %c0_215 = arith.constant 0 : index
      %c61 = arith.constant 61 : index
      %215 = vector.load %arg6[%c0_215, %c61] : memref<8x686xf32, #tpu.memory_space<vmem>>, vector<8x416xf32>
      %c248 = arith.constant 248 : index
      %c0_216 = arith.constant 0 : index
      %216 = vector.load %arg7[%c248, %c0_216] : memref<968x416xf32, #tpu.memory_space<vmem>>, vector<8x416xf32>
      tpu.vector_store %arg7[%c248, %c0_216], %215 {strides = array<i32>} : memref<968x416xf32, #tpu.memory_space<vmem>>, vector<8x416xf32>,
      %c0_217 = arith.constant 0 : index
      %c62 = arith.constant 62 : index
      %217 = vector.load %arg6[%c0_217, %c62] : memref<8x686xf32, #tpu.memory_space<vmem>>, vector<8x416xf32>
      %c256 = arith.constant 256 : index
      %c0_218 = arith.constant 0 : index
      %218 = vector.load %arg7[%c256, %c0_218] : memref<968x416xf32, #tpu.memory_space<vmem>>, vector<8x416xf32>
      tpu.vector_store %arg7[%c256, %c0_218], %217 {strides = array<i32>} : memref<968x416xf32, #tpu.memory_space<vmem>>, vector<8x416xf32>,
      %c0_219 = arith.constant 0 : index
      %c78 = arith.constant 78 : index
      %219 = vector.load %arg6[%c0_219, %c78] : memref<8x686xf32, #tpu.memory_space<vmem>>, vector<8x416xf32>
      %c264 = arith.constant 264 : index
      %c0_220 = arith.constant 0 : index
      %220 = vector.load %arg7[%c264, %c0_220] : memref<968x416xf32, #tpu.memory_space<vmem>>, vector<8x416xf32>
      tpu.vector_store %arg7[%c264, %c0_220], %219 {strides = array<i32>} : memref<968x416xf32, #tpu.memory_space<vmem>>, vector<8x416xf32>,
      %c0_221 = arith.constant 0 : index
      %c79 = arith.constant 79 : index
      %221 = vector.load %arg6[%c0_221, %c79] : memref<8x686xf32, #tpu.memory_space<vmem>>, vector<8x416xf32>
      %c272 = arith.constant 272 : index
      %c0_222 = arith.constant 0 : index
      %222 = vector.load %arg7[%c272, %c0_222] : memref<968x416xf32, #tpu.memory_space<vmem>>, vector<8x416xf32>
      tpu.vector_store %arg7[%c272, %c0_222], %221 {strides = array<i32>} : memref<968x416xf32, #tpu.memory_space<vmem>>, vector<8x416xf32>,
      %c0_223 = arith.constant 0 : index
      %c80_224 = arith.constant 80 : index
      %223 = vector.load %arg6[%c0_223, %c80_224] : memref<8x686xf32, #tpu.memory_space<vmem>>, vector<8x416xf32>
      %c280 = arith.constant 280 : index
      %c0_225 = arith.constant 0 : index
      %224 = vector.load %arg7[%c280, %c0_225] : memref<968x416xf32, #tpu.memory_space<vmem>>, vector<8x416xf32>
      tpu.vector_store %arg7[%c280, %c0_225], %223 {strides = array<i32>} : memref<968x416xf32, #tpu.memory_space<vmem>>, vector<8x416xf32>,
      %c0_226 = arith.constant 0 : index
      %c81 = arith.constant 81 : index
      %225 = vector.load %arg6[%c0_226, %c81] : memref<8x686xf32, #tpu.memory_space<vmem>>, vector<8x416xf32>
      %c288 = arith.constant 288 : index
      %c0_227 = arith.constant 0 : index
      %226 = vector.load %arg7[%c288, %c0_227] : memref<968x416xf32, #tpu.memory_space<vmem>>, vector<8x416xf32>
      tpu.vector_store %arg7[%c288, %c0_227], %225 {strides = array<i32>} : memref<968x416xf32, #tpu.memory_space<vmem>>, vector<8x416xf32>,
      %c0_228 = arith.constant 0 : index
      %c82 = arith.constant 82 : index
      %227 = vector.load %arg6[%c0_228, %c82] : memref<8x686xf32, #tpu.memory_space<vmem>>, vector<8x416xf32>
      %c296 = arith.constant 296 : index
      %c0_229 = arith.constant 0 : index
      %228 = vector.load %arg7[%c296, %c0_229] : memref<968x416xf32, #tpu.memory_space<vmem>>, vector<8x416xf32>
      tpu.vector_store %arg7[%c296, %c0_229], %227 {strides = array<i32>} : memref<968x416xf32, #tpu.memory_space<vmem>>, vector<8x416xf32>,
      %c0_230 = arith.constant 0 : index
      %c83 = arith.constant 83 : index
      %229 = vector.load %arg6[%c0_230, %c83] : memref<8x686xf32, #tpu.memory_space<vmem>>, vector<8x416xf32>
      %c304 = arith.constant 304 : index
      %c0_231 = arith.constant 0 : index
      %230 = vector.load %arg7[%c304, %c0_231] : memref<968x416xf32, #tpu.memory_space<vmem>>, vector<8x416xf32>
      tpu.vector_store %arg7[%c304, %c0_231], %229 {strides = array<i32>} : memref<968x416xf32, #tpu.memory_space<vmem>>, vector<8x416xf32>,
      %c0_232 = arith.constant 0 : index
      %c84 = arith.constant 84 : index
      %231 = vector.load %arg6[%c0_232, %c84] : memref<8x686xf32, #tpu.memory_space<vmem>>, vector<8x416xf32>
      %c312 = arith.constant 312 : index
      %c0_233 = arith.constant 0 : index
      %232 = vector.load %arg7[%c312, %c0_233] : memref<968x416xf32, #tpu.memory_space<vmem>>, vector<8x416xf32>
      tpu.vector_store %arg7[%c312, %c0_233], %231 {strides = array<i32>} : memref<968x416xf32, #tpu.memory_space<vmem>>, vector<8x416xf32>,
      %c0_234 = arith.constant 0 : index
      %c85 = arith.constant 85 : index
      %233 = vector.load %arg6[%c0_234, %c85] : memref<8x686xf32, #tpu.memory_space<vmem>>, vector<8x416xf32>
      %c320 = arith.constant 320 : index
      %c0_235 = arith.constant 0 : index
      %234 = vector.load %arg7[%c320, %c0_235] : memref<968x416xf32, #tpu.memory_space<vmem>>, vector<8x416xf32>
      tpu.vector_store %arg7[%c320, %c0_235], %233 {strides = array<i32>} : memref<968x416xf32, #tpu.memory_space<vmem>>, vector<8x416xf32>,
      %c0_236 = arith.constant 0 : index
      %c86 = arith.constant 86 : index
      %235 = vector.load %arg6[%c0_236, %c86] : memref<8x686xf32, #tpu.memory_space<vmem>>, vector<8x416xf32>
      %c328 = arith.constant 328 : index
      %c0_237 = arith.constant 0 : index
      %236 = vector.load %arg7[%c328, %c0_237] : memref<968x416xf32, #tpu.memory_space<vmem>>, vector<8x416xf32>
      tpu.vector_store %arg7[%c328, %c0_237], %235 {strides = array<i32>} : memref<968x416xf32, #tpu.memory_space<vmem>>, vector<8x416xf32>,
      %c0_238 = arith.constant 0 : index
      %c87 = arith.constant 87 : index
      %237 = vector.load %arg6[%c0_238, %c87] : memref<8x686xf32, #tpu.memory_space<vmem>>, vector<8x416xf32>
      %c336 = arith.constant 336 : index
      %c0_239 = arith.constant 0 : index
      %238 = vector.load %arg7[%c336, %c0_239] : memref<968x416xf32, #tpu.memory_space<vmem>>, vector<8x416xf32>
      tpu.vector_store %arg7[%c336, %c0_239], %237 {strides = array<i32>} : memref<968x416xf32, #tpu.memory_space<vmem>>, vector<8x416xf32>,
      %c0_240 = arith.constant 0 : index
      %c88_241 = arith.constant 88 : index
      %239 = vector.load %arg6[%c0_240, %c88_241] : memref<8x686xf32, #tpu.memory_space<vmem>>, vector<8x416xf32>
      %c344 = arith.constant 344 : index
      %c0_242 = arith.constant 0 : index
      %240 = vector.load %arg7[%c344, %c0_242] : memref<968x416xf32, #tpu.memory_space<vmem>>, vector<8x416xf32>
      tpu.vector_store %arg7[%c344, %c0_242], %239 {strides = array<i32>} : memref<968x416xf32, #tpu.memory_space<vmem>>, vector<8x416xf32>,
      %c0_243 = arith.constant 0 : index
      %c104_244 = arith.constant 104 : index
      %241 = vector.load %arg6[%c0_243, %c104_244] : memref<8x686xf32, #tpu.memory_space<vmem>>, vector<8x416xf32>
      %c352 = arith.constant 352 : index
      %c0_245 = arith.constant 0 : index
      %242 = vector.load %arg7[%c352, %c0_245] : memref<968x416xf32, #tpu.memory_space<vmem>>, vector<8x416xf32>
      tpu.vector_store %arg7[%c352, %c0_245], %241 {strides = array<i32>} : memref<968x416xf32, #tpu.memory_space<vmem>>, vector<8x416xf32>,
      %c0_246 = arith.constant 0 : index
      %c105 = arith.constant 105 : index
      %243 = vector.load %arg6[%c0_246, %c105] : memref<8x686xf32, #tpu.memory_space<vmem>>, vector<8x416xf32>
      %c360 = arith.constant 360 : index
      %c0_247 = arith.constant 0 : index
      %244 = vector.load %arg7[%c360, %c0_247] : memref<968x416xf32, #tpu.memory_space<vmem>>, vector<8x416xf32>
      tpu.vector_store %arg7[%c360, %c0_247], %243 {strides = array<i32>} : memref<968x416xf32, #tpu.memory_space<vmem>>, vector<8x416xf32>,
      %c0_248 = arith.constant 0 : index
      %c106 = arith.constant 106 : index
      %245 = vector.load %arg6[%c0_248, %c106] : memref<8x686xf32, #tpu.memory_space<vmem>>, vector<8x416xf32>
      %c368 = arith.constant 368 : index
      %c0_249 = arith.constant 0 : index
      %246 = vector.load %arg7[%c368, %c0_249] : memref<968x416xf32, #tpu.memory_space<vmem>>, vector<8x416xf32>
      tpu.vector_store %arg7[%c368, %c0_249], %245 {strides = array<i32>} : memref<968x416xf32, #tpu.memory_space<vmem>>, vector<8x416xf32>,
      %c0_250 = arith.constant 0 : index
      %c107 = arith.constant 107 : index
      %247 = vector.load %arg6[%c0_250, %c107] : memref<8x686xf32, #tpu.memory_space<vmem>>, vector<8x416xf32>
      %c376 = arith.constant 376 : index
      %c0_251 = arith.constant 0 : index
      %248 = vector.load %arg7[%c376, %c0_251] : memref<968x416xf32, #tpu.memory_space<vmem>>, vector<8x416xf32>
      tpu.vector_store %arg7[%c376, %c0_251], %247 {strides = array<i32>} : memref<968x416xf32, #tpu.memory_space<vmem>>, vector<8x416xf32>,
      %c0_252 = arith.constant 0 : index
      %c108 = arith.constant 108 : index
      %249 = vector.load %arg6[%c0_252, %c108] : memref<8x686xf32, #tpu.memory_space<vmem>>, vector<8x416xf32>
      %c384 = arith.constant 384 : index
      %c0_253 = arith.constant 0 : index
      %250 = vector.load %arg7[%c384, %c0_253] : memref<968x416xf32, #tpu.memory_space<vmem>>, vector<8x416xf32>
      tpu.vector_store %arg7[%c384, %c0_253], %249 {strides = array<i32>} : memref<968x416xf32, #tpu.memory_space<vmem>>, vector<8x416xf32>,
      %c0_254 = arith.constant 0 : index
      %c109 = arith.constant 109 : index
      %251 = vector.load %arg6[%c0_254, %c109] : memref<8x686xf32, #tpu.memory_space<vmem>>, vector<8x416xf32>
      %c392 = arith.constant 392 : index
      %c0_255 = arith.constant 0 : index
      %252 = vector.load %arg7[%c392, %c0_255] : memref<968x416xf32, #tpu.memory_space<vmem>>, vector<8x416xf32>
      tpu.vector_store %arg7[%c392, %c0_255], %251 {strides = array<i32>} : memref<968x416xf32, #tpu.memory_space<vmem>>, vector<8x416xf32>,
      %c0_256 = arith.constant 0 : index
      %c110 = arith.constant 110 : index
      %253 = vector.load %arg6[%c0_256, %c110] : memref<8x686xf32, #tpu.memory_space<vmem>>, vector<8x416xf32>
      %c400 = arith.constant 400 : index
      %c0_257 = arith.constant 0 : index
      %254 = vector.load %arg7[%c400, %c0_257] : memref<968x416xf32, #tpu.memory_space<vmem>>, vector<8x416xf32>
      tpu.vector_store %arg7[%c400, %c0_257], %253 {strides = array<i32>} : memref<968x416xf32, #tpu.memory_space<vmem>>, vector<8x416xf32>,
      %c0_258 = arith.constant 0 : index
      %c111 = arith.constant 111 : index
      %255 = vector.load %arg6[%c0_258, %c111] : memref<8x686xf32, #tpu.memory_space<vmem>>, vector<8x416xf32>
      %c408 = arith.constant 408 : index
      %c0_259 = arith.constant 0 : index
      %256 = vector.load %arg7[%c408, %c0_259] : memref<968x416xf32, #tpu.memory_space<vmem>>, vector<8x416xf32>
      tpu.vector_store %arg7[%c408, %c0_259], %255 {strides = array<i32>} : memref<968x416xf32, #tpu.memory_space<vmem>>, vector<8x416xf32>,
      %c0_260 = arith.constant 0 : index
      %c112_261 = arith.constant 112 : index
      %257 = vector.load %arg6[%c0_260, %c112_261] : memref<8x686xf32, #tpu.memory_space<vmem>>, vector<8x416xf32>
      %c416 = arith.constant 416 : index
      %c0_262 = arith.constant 0 : index
      %258 = vector.load %arg7[%c416, %c0_262] : memref<968x416xf32, #tpu.memory_space<vmem>>, vector<8x416xf32>
      tpu.vector_store %arg7[%c416, %c0_262], %257 {strides = array<i32>} : memref<968x416xf32, #tpu.memory_space<vmem>>, vector<8x416xf32>,
      %c0_263 = arith.constant 0 : index
      %c113 = arith.constant 113 : index
      %259 = vector.load %arg6[%c0_263, %c113] : memref<8x686xf32, #tpu.memory_space<vmem>>, vector<8x416xf32>
      %c424 = arith.constant 424 : index
      %c0_264 = arith.constant 0 : index
      %260 = vector.load %arg7[%c424, %c0_264] : memref<968x416xf32, #tpu.memory_space<vmem>>, vector<8x416xf32>
      tpu.vector_store %arg7[%c424, %c0_264], %259 {strides = array<i32>} : memref<968x416xf32, #tpu.memory_space<vmem>>, vector<8x416xf32>,
      %c0_265 = arith.constant 0 : index
      %c114 = arith.constant 114 : index
      %261 = vector.load %arg6[%c0_265, %c114] : memref<8x686xf32, #tpu.memory_space<vmem>>, vector<8x416xf32>
      %c432 = arith.constant 432 : index
      %c0_266 = arith.constant 0 : index
      %262 = vector.load %arg7[%c432, %c0_266] : memref<968x416xf32, #tpu.memory_space<vmem>>, vector<8x416xf32>
      tpu.vector_store %arg7[%c432, %c0_266], %261 {strides = array<i32>} : memref<968x416xf32, #tpu.memory_space<vmem>>, vector<8x416xf32>,
      %c0_267 = arith.constant 0 : index
      %c130 = arith.constant 130 : index
      %263 = vector.load %arg6[%c0_267, %c130] : memref<8x686xf32, #tpu.memory_space<vmem>>, vector<8x416xf32>
      %c440 = arith.constant 440 : index
      %c0_268 = arith.constant 0 : index
      %264 = vector.load %arg7[%c440, %c0_268] : memref<968x416xf32, #tpu.memory_space<vmem>>, vector<8x416xf32>
      tpu.vector_store %arg7[%c440, %c0_268], %263 {strides = array<i32>} : memref<968x416xf32, #tpu.memory_space<vmem>>, vector<8x416xf32>,
      %c0_269 = arith.constant 0 : index
      %c131 = arith.constant 131 : index
      %265 = vector.load %arg6[%c0_269, %c131] : memref<8x686xf32, #tpu.memory_space<vmem>>, vector<8x416xf32>
      %c448 = arith.constant 448 : index
      %c0_270 = arith.constant 0 : index
      %266 = vector.load %arg7[%c448, %c0_270] : memref<968x416xf32, #tpu.memory_space<vmem>>, vector<8x416xf32>
      tpu.vector_store %arg7[%c448, %c0_270], %265 {strides = array<i32>} : memref<968x416xf32, #tpu.memory_space<vmem>>, vector<8x416xf32>,
      %c0_271 = arith.constant 0 : index
      %c132 = arith.constant 132 : index
      %267 = vector.load %arg6[%c0_271, %c132] : memref<8x686xf32, #tpu.memory_space<vmem>>, vector<8x416xf32>
      %c456 = arith.constant 456 : index
      %c0_272 = arith.constant 0 : index
      %268 = vector.load %arg7[%c456, %c0_272] : memref<968x416xf32, #tpu.memory_space<vmem>>, vector<8x416xf32>
      tpu.vector_store %arg7[%c456, %c0_272], %267 {strides = array<i32>} : memref<968x416xf32, #tpu.memory_space<vmem>>, vector<8x416xf32>,
      %c0_273 = arith.constant 0 : index
      %c133 = arith.constant 133 : index
      %269 = vector.load %arg6[%c0_273, %c133] : memref<8x686xf32, #tpu.memory_space<vmem>>, vector<8x416xf32>
      %c464 = arith.constant 464 : index
      %c0_274 = arith.constant 0 : index
      %270 = vector.load %arg7[%c464, %c0_274] : memref<968x416xf32, #tpu.memory_space<vmem>>, vector<8x416xf32>
      tpu.vector_store %arg7[%c464, %c0_274], %269 {strides = array<i32>} : memref<968x416xf32, #tpu.memory_space<vmem>>, vector<8x416xf32>,
      %c0_275 = arith.constant 0 : index
      %c134 = arith.constant 134 : index
      %271 = vector.load %arg6[%c0_275, %c134] : memref<8x686xf32, #tpu.memory_space<vmem>>, vector<8x416xf32>
      %c472 = arith.constant 472 : index
      %c0_276 = arith.constant 0 : index
      %272 = vector.load %arg7[%c472, %c0_276] : memref<968x416xf32, #tpu.memory_space<vmem>>, vector<8x416xf32>
      tpu.vector_store %arg7[%c472, %c0_276], %271 {strides = array<i32>} : memref<968x416xf32, #tpu.memory_space<vmem>>, vector<8x416xf32>,
      %c0_277 = arith.constant 0 : index
      %c135_278 = arith.constant 135 : index
      %273 = vector.load %arg6[%c0_277, %c135_278] : memref<8x686xf32, #tpu.memory_space<vmem>>, vector<8x416xf32>
      %c480 = arith.constant 480 : index
      %c0_279 = arith.constant 0 : index
      %274 = vector.load %arg7[%c480, %c0_279] : memref<968x416xf32, #tpu.memory_space<vmem>>, vector<8x416xf32>
      tpu.vector_store %arg7[%c480, %c0_279], %273 {strides = array<i32>} : memref<968x416xf32, #tpu.memory_space<vmem>>, vector<8x416xf32>,
      %c0_280 = arith.constant 0 : index
      %c136_281 = arith.constant 136 : index
      %275 = vector.load %arg6[%c0_280, %c136_281] : memref<8x686xf32, #tpu.memory_space<vmem>>, vector<8x416xf32>
      %c488 = arith.constant 488 : index
      %c0_282 = arith.constant 0 : index
      %276 = vector.load %arg7[%c488, %c0_282] : memref<968x416xf32, #tpu.memory_space<vmem>>, vector<8x416xf32>
      tpu.vector_store %arg7[%c488, %c0_282], %275 {strides = array<i32>} : memref<968x416xf32, #tpu.memory_space<vmem>>, vector<8x416xf32>,
      %c0_283 = arith.constant 0 : index
      %c137 = arith.constant 137 : index
      %277 = vector.load %arg6[%c0_283, %c137] : memref<8x686xf32, #tpu.memory_space<vmem>>, vector<8x416xf32>
      %c496 = arith.constant 496 : index
      %c0_284 = arith.constant 0 : index
      %278 = vector.load %arg7[%c496, %c0_284] : memref<968x416xf32, #tpu.memory_space<vmem>>, vector<8x416xf32>
      tpu.vector_store %arg7[%c496, %c0_284], %277 {strides = array<i32>} : memref<968x416xf32, #tpu.memory_space<vmem>>, vector<8x416xf32>,
      %c0_285 = arith.constant 0 : index
      %c138 = arith.constant 138 : index
      %279 = vector.load %arg6[%c0_285, %c138] : memref<8x686xf32, #tpu.memory_space<vmem>>, vector<8x416xf32>
      %c504 = arith.constant 504 : index
      %c0_286 = arith.constant 0 : index
      %280 = vector.load %arg7[%c504, %c0_286] : memref<968x416xf32, #tpu.memory_space<vmem>>, vector<8x416xf32>
      tpu.vector_store %arg7[%c504, %c0_286], %279 {strides = array<i32>} : memref<968x416xf32, #tpu.memory_space<vmem>>, vector<8x416xf32>,
      %c0_287 = arith.constant 0 : index
      %c139 = arith.constant 139 : index
      %281 = vector.load %arg6[%c0_287, %c139] : memref<8x686xf32, #tpu.memory_space<vmem>>, vector<8x416xf32>
      %c512 = arith.constant 512 : index
      %c0_288 = arith.constant 0 : index
      %282 = vector.load %arg7[%c512, %c0_288] : memref<968x416xf32, #tpu.memory_space<vmem>>, vector<8x416xf32>
      tpu.vector_store %arg7[%c512, %c0_288], %281 {strides = array<i32>} : memref<968x416xf32, #tpu.memory_space<vmem>>, vector<8x416xf32>,
      %c0_289 = arith.constant 0 : index
      %c140 = arith.constant 140 : index
      %283 = vector.load %arg6[%c0_289, %c140] : memref<8x686xf32, #tpu.memory_space<vmem>>, vector<8x416xf32>
      %c520 = arith.constant 520 : index
      %c0_290 = arith.constant 0 : index
      %284 = vector.load %arg7[%c520, %c0_290] : memref<968x416xf32, #tpu.memory_space<vmem>>, vector<8x416xf32>
      tpu.vector_store %arg7[%c520, %c0_290], %283 {strides = array<i32>} : memref<968x416xf32, #tpu.memory_space<vmem>>, vector<8x416xf32>,
      %c0_291 = arith.constant 0 : index
      %c156 = arith.constant 156 : index
      %285 = vector.load %arg6[%c0_291, %c156] : memref<8x686xf32, #tpu.memory_space<vmem>>, vector<8x416xf32>
      %c528 = arith.constant 528 : index
      %c0_292 = arith.constant 0 : index
      %286 = vector.load %arg7[%c528, %c0_292] : memref<968x416xf32, #tpu.memory_space<vmem>>, vector<8x416xf32>
      tpu.vector_store %arg7[%c528, %c0_292], %285 {strides = array<i32>} : memref<968x416xf32, #tpu.memory_space<vmem>>, vector<8x416xf32>,
      %c0_293 = arith.constant 0 : index
      %c157 = arith.constant 157 : index
      %287 = vector.load %arg6[%c0_293, %c157] : memref<8x686xf32, #tpu.memory_space<vmem>>, vector<8x416xf32>
      %c536 = arith.constant 536 : index
      %c0_294 = arith.constant 0 : index
      %288 = vector.load %arg7[%c536, %c0_294] : memref<968x416xf32, #tpu.memory_space<vmem>>, vector<8x416xf32>
      tpu.vector_store %arg7[%c536, %c0_294], %287 {strides = array<i32>} : memref<968x416xf32, #tpu.memory_space<vmem>>, vector<8x416xf32>,
      %c0_295 = arith.constant 0 : index
      %c158 = arith.constant 158 : index
      %289 = vector.load %arg6[%c0_295, %c158] : memref<8x686xf32, #tpu.memory_space<vmem>>, vector<8x416xf32>
      %c544 = arith.constant 544 : index
      %c0_296 = arith.constant 0 : index
      %290 = vector.load %arg7[%c544, %c0_296] : memref<968x416xf32, #tpu.memory_space<vmem>>, vector<8x416xf32>
      tpu.vector_store %arg7[%c544, %c0_296], %289 {strides = array<i32>} : memref<968x416xf32, #tpu.memory_space<vmem>>, vector<8x416xf32>,
      %c0_297 = arith.constant 0 : index
      %c159 = arith.constant 159 : index
      %291 = vector.load %arg6[%c0_297, %c159] : memref<8x686xf32, #tpu.memory_space<vmem>>, vector<8x416xf32>
      %c552 = arith.constant 552 : index
      %c0_298 = arith.constant 0 : index
      %292 = vector.load %arg7[%c552, %c0_298] : memref<968x416xf32, #tpu.memory_space<vmem>>, vector<8x416xf32>
      tpu.vector_store %arg7[%c552, %c0_298], %291 {strides = array<i32>} : memref<968x416xf32, #tpu.memory_space<vmem>>, vector<8x416xf32>,
      %c0_299 = arith.constant 0 : index
      %c160_300 = arith.constant 160 : index
      %293 = vector.load %arg6[%c0_299, %c160_300] : memref<8x686xf32, #tpu.memory_space<vmem>>, vector<8x416xf32>
      %c560 = arith.constant 560 : index
      %c0_301 = arith.constant 0 : index
      %294 = vector.load %arg7[%c560, %c0_301] : memref<968x416xf32, #tpu.memory_space<vmem>>, vector<8x416xf32>
      tpu.vector_store %arg7[%c560, %c0_301], %293 {strides = array<i32>} : memref<968x416xf32, #tpu.memory_space<vmem>>, vector<8x416xf32>,
      %c0_302 = arith.constant 0 : index
      %c161_303 = arith.constant 161 : index
      %295 = vector.load %arg6[%c0_302, %c161_303] : memref<8x686xf32, #tpu.memory_space<vmem>>, vector<8x416xf32>
      %c568 = arith.constant 568 : index
      %c0_304 = arith.constant 0 : index
      %296 = vector.load %arg7[%c568, %c0_304] : memref<968x416xf32, #tpu.memory_space<vmem>>, vector<8x416xf32>
      tpu.vector_store %arg7[%c568, %c0_304], %295 {strides = array<i32>} : memref<968x416xf32, #tpu.memory_space<vmem>>, vector<8x416xf32>,
      %c0_305 = arith.constant 0 : index
      %c162 = arith.constant 162 : index
      %297 = vector.load %arg6[%c0_305, %c162] : memref<8x686xf32, #tpu.memory_space<vmem>>, vector<8x416xf32>
      %c576 = arith.constant 576 : index
      %c0_306 = arith.constant 0 : index
      %298 = vector.load %arg7[%c576, %c0_306] : memref<968x416xf32, #tpu.memory_space<vmem>>, vector<8x416xf32>
      tpu.vector_store %arg7[%c576, %c0_306], %297 {strides = array<i32>} : memref<968x416xf32, #tpu.memory_space<vmem>>, vector<8x416xf32>,
      %c0_307 = arith.constant 0 : index
      %c163 = arith.constant 163 : index
      %299 = vector.load %arg6[%c0_307, %c163] : memref<8x686xf32, #tpu.memory_space<vmem>>, vector<8x416xf32>
      %c584 = arith.constant 584 : index
      %c0_308 = arith.constant 0 : index
      %300 = vector.load %arg7[%c584, %c0_308] : memref<968x416xf32, #tpu.memory_space<vmem>>, vector<8x416xf32>
      tpu.vector_store %arg7[%c584, %c0_308], %299 {strides = array<i32>} : memref<968x416xf32, #tpu.memory_space<vmem>>, vector<8x416xf32>,
      %c0_309 = arith.constant 0 : index
      %c164 = arith.constant 164 : index
      %301 = vector.load %arg6[%c0_309, %c164] : memref<8x686xf32, #tpu.memory_space<vmem>>, vector<8x416xf32>
      %c592 = arith.constant 592 : index
      %c0_310 = arith.constant 0 : index
      %302 = vector.load %arg7[%c592, %c0_310] : memref<968x416xf32, #tpu.memory_space<vmem>>, vector<8x416xf32>
      tpu.vector_store %arg7[%c592, %c0_310], %301 {strides = array<i32>} : memref<968x416xf32, #tpu.memory_space<vmem>>, vector<8x416xf32>,
      %c0_311 = arith.constant 0 : index
      %c165 = arith.constant 165 : index
      %303 = vector.load %arg6[%c0_311, %c165] : memref<8x686xf32, #tpu.memory_space<vmem>>, vector<8x416xf32>
      %c600 = arith.constant 600 : index
      %c0_312 = arith.constant 0 : index
      %304 = vector.load %arg7[%c600, %c0_312] : memref<968x416xf32, #tpu.memory_space<vmem>>, vector<8x416xf32>
      tpu.vector_store %arg7[%c600, %c0_312], %303 {strides = array<i32>} : memref<968x416xf32, #tpu.memory_space<vmem>>, vector<8x416xf32>,
      %c0_313 = arith.constant 0 : index
      %c166 = arith.constant 166 : index
      %305 = vector.load %arg6[%c0_313, %c166] : memref<8x686xf32, #tpu.memory_space<vmem>>, vector<8x416xf32>
      %c608 = arith.constant 608 : index
      %c0_314 = arith.constant 0 : index
      %306 = vector.load %arg7[%c608, %c0_314] : memref<968x416xf32, #tpu.memory_space<vmem>>, vector<8x416xf32>
      tpu.vector_store %arg7[%c608, %c0_314], %305 {strides = array<i32>} : memref<968x416xf32, #tpu.memory_space<vmem>>, vector<8x416xf32>,
      %c0_315 = arith.constant 0 : index
      %c182 = arith.constant 182 : index
      %307 = vector.load %arg6[%c0_315, %c182] : memref<8x686xf32, #tpu.memory_space<vmem>>, vector<8x416xf32>
      %c616 = arith.constant 616 : index
      %c0_316 = arith.constant 0 : index
      %308 = vector.load %arg7[%c616, %c0_316] : memref<968x416xf32, #tpu.memory_space<vmem>>, vector<8x416xf32>
      tpu.vector_store %arg7[%c616, %c0_316], %307 {strides = array<i32>} : memref<968x416xf32, #tpu.memory_space<vmem>>, vector<8x416xf32>,
      %c0_317 = arith.constant 0 : index
      %c183 = arith.constant 183 : index
      %309 = vector.load %arg6[%c0_317, %c183] : memref<8x686xf32, #tpu.memory_space<vmem>>, vector<8x416xf32>
      %c624 = arith.constant 624 : index
      %c0_318 = arith.constant 0 : index
      %310 = vector.load %arg7[%c624, %c0_318] : memref<968x416xf32, #tpu.memory_space<vmem>>, vector<8x416xf32>
      tpu.vector_store %arg7[%c624, %c0_318], %309 {strides = array<i32>} : memref<968x416xf32, #tpu.memory_space<vmem>>, vector<8x416xf32>,
      %c0_319 = arith.constant 0 : index
      %c184_320 = arith.constant 184 : index
      %311 = vector.load %arg6[%c0_319, %c184_320] : memref<8x686xf32, #tpu.memory_space<vmem>>, vector<8x416xf32>
      %c632 = arith.constant 632 : index
      %c0_321 = arith.constant 0 : index
      %312 = vector.load %arg7[%c632, %c0_321] : memref<968x416xf32, #tpu.memory_space<vmem>>, vector<8x416xf32>
      tpu.vector_store %arg7[%c632, %c0_321], %311 {strides = array<i32>} : memref<968x416xf32, #tpu.memory_space<vmem>>, vector<8x416xf32>,
      %c0_322 = arith.constant 0 : index
      %c185 = arith.constant 185 : index
      %313 = vector.load %arg6[%c0_322, %c185] : memref<8x686xf32, #tpu.memory_space<vmem>>, vector<8x416xf32>
      %c640 = arith.constant 640 : index
      %c0_323 = arith.constant 0 : index
      %314 = vector.load %arg7[%c640, %c0_323] : memref<968x416xf32, #tpu.memory_space<vmem>>, vector<8x416xf32>
      tpu.vector_store %arg7[%c640, %c0_323], %313 {strides = array<i32>} : memref<968x416xf32, #tpu.memory_space<vmem>>, vector<8x416xf32>,
      %c0_324 = arith.constant 0 : index
      %c186 = arith.constant 186 : index
      %315 = vector.load %arg6[%c0_324, %c186] : memref<8x686xf32, #tpu.memory_space<vmem>>, vector<8x416xf32>
      %c648 = arith.constant 648 : index
      %c0_325 = arith.constant 0 : index
      %316 = vector.load %arg7[%c648, %c0_325] : memref<968x416xf32, #tpu.memory_space<vmem>>, vector<8x416xf32>
      tpu.vector_store %arg7[%c648, %c0_325], %315 {strides = array<i32>} : memref<968x416xf32, #tpu.memory_space<vmem>>, vector<8x416xf32>,
      %c0_326 = arith.constant 0 : index
      %c187_327 = arith.constant 187 : index
      %317 = vector.load %arg6[%c0_326, %c187_327] : memref<8x686xf32, #tpu.memory_space<vmem>>, vector<8x416xf32>
      %c656 = arith.constant 656 : index
      %c0_328 = arith.constant 0 : index
      %318 = vector.load %arg7[%c656, %c0_328] : memref<968x416xf32, #tpu.memory_space<vmem>>, vector<8x416xf32>
      tpu.vector_store %arg7[%c656, %c0_328], %317 {strides = array<i32>} : memref<968x416xf32, #tpu.memory_space<vmem>>, vector<8x416xf32>,
      %c0_329 = arith.constant 0 : index
      %c188 = arith.constant 188 : index
      %319 = vector.load %arg6[%c0_329, %c188] : memref<8x686xf32, #tpu.memory_space<vmem>>, vector<8x416xf32>
      %c664 = arith.constant 664 : index
      %c0_330 = arith.constant 0 : index
      %320 = vector.load %arg7[%c664, %c0_330] : memref<968x416xf32, #tpu.memory_space<vmem>>, vector<8x416xf32>
      tpu.vector_store %arg7[%c664, %c0_330], %319 {strides = array<i32>} : memref<968x416xf32, #tpu.memory_space<vmem>>, vector<8x416xf32>,
      %c0_331 = arith.constant 0 : index
      %c189 = arith.constant 189 : index
      %321 = vector.load %arg6[%c0_331, %c189] : memref<8x686xf32, #tpu.memory_space<vmem>>, vector<8x416xf32>
      %c672 = arith.constant 672 : index
      %c0_332 = arith.constant 0 : index
      %322 = vector.load %arg7[%c672, %c0_332] : memref<968x416xf32, #tpu.memory_space<vmem>>, vector<8x416xf32>
      tpu.vector_store %arg7[%c672, %c0_332], %321 {strides = array<i32>} : memref<968x416xf32, #tpu.memory_space<vmem>>, vector<8x416xf32>,
      %c0_333 = arith.constant 0 : index
      %c190 = arith.constant 190 : index
      %323 = vector.load %arg6[%c0_333, %c190] : memref<8x686xf32, #tpu.memory_space<vmem>>, vector<8x416xf32>
      %c680 = arith.constant 680 : index
      %c0_334 = arith.constant 0 : index
      %324 = vector.load %arg7[%c680, %c0_334] : memref<968x416xf32, #tpu.memory_space<vmem>>, vector<8x416xf32>
      tpu.vector_store %arg7[%c680, %c0_334], %323 {strides = array<i32>} : memref<968x416xf32, #tpu.memory_space<vmem>>, vector<8x416xf32>,
      %c0_335 = arith.constant 0 : index
      %c191 = arith.constant 191 : index
      %325 = vector.load %arg6[%c0_335, %c191] : memref<8x686xf32, #tpu.memory_space<vmem>>, vector<8x416xf32>
      %c688 = arith.constant 688 : index
      %c0_336 = arith.constant 0 : index
      %326 = vector.load %arg7[%c688, %c0_336] : memref<968x416xf32, #tpu.memory_space<vmem>>, vector<8x416xf32>
      tpu.vector_store %arg7[%c688, %c0_336], %325 {strides = array<i32>} : memref<968x416xf32, #tpu.memory_space<vmem>>, vector<8x416xf32>,
      %c0_337 = arith.constant 0 : index
      %c192_338 = arith.constant 192 : index
      %327 = vector.load %arg6[%c0_337, %c192_338] : memref<8x686xf32, #tpu.memory_space<vmem>>, vector<8x416xf32>
      %c696 = arith.constant 696 : index
      %c0_339 = arith.constant 0 : index
      %328 = vector.load %arg7[%c696, %c0_339] : memref<968x416xf32, #tpu.memory_space<vmem>>, vector<8x416xf32>
      tpu.vector_store %arg7[%c696, %c0_339], %327 {strides = array<i32>} : memref<968x416xf32, #tpu.memory_space<vmem>>, vector<8x416xf32>,
      %c0_340 = arith.constant 0 : index
      %c208_341 = arith.constant 208 : index
      %329 = vector.load %arg6[%c0_340, %c208_341] : memref<8x686xf32, #tpu.memory_space<vmem>>, vector<8x416xf32>
      %c704 = arith.constant 704 : index
      %c0_342 = arith.constant 0 : index
      %330 = vector.load %arg7[%c704, %c0_342] : memref<968x416xf32, #tpu.memory_space<vmem>>, vector<8x416xf32>
      tpu.vector_store %arg7[%c704, %c0_342], %329 {strides = array<i32>} : memref<968x416xf32, #tpu.memory_space<vmem>>, vector<8x416xf32>,
      %c0_343 = arith.constant 0 : index
      %c209 = arith.constant 209 : index
      %331 = vector.load %arg6[%c0_343, %c209] : memref<8x686xf32, #tpu.memory_space<vmem>>, vector<8x416xf32>
      %c712 = arith.constant 712 : index
      %c0_344 = arith.constant 0 : index
      %332 = vector.load %arg7[%c712, %c0_344] : memref<968x416xf32, #tpu.memory_space<vmem>>, vector<8x416xf32>
      tpu.vector_store %arg7[%c712, %c0_344], %331 {strides = array<i32>} : memref<968x416xf32, #tpu.memory_space<vmem>>, vector<8x416xf32>,
      %c0_345 = arith.constant 0 : index
      %c210 = arith.constant 210 : index
      %333 = vector.load %arg6[%c0_345, %c210] : memref<8x686xf32, #tpu.memory_space<vmem>>, vector<8x416xf32>
      %c720 = arith.constant 720 : index
      %c0_346 = arith.constant 0 : index
      %334 = vector.load %arg7[%c720, %c0_346] : memref<968x416xf32, #tpu.memory_space<vmem>>, vector<8x416xf32>
      tpu.vector_store %arg7[%c720, %c0_346], %333 {strides = array<i32>} : memref<968x416xf32, #tpu.memory_space<vmem>>, vector<8x416xf32>,
      %c0_347 = arith.constant 0 : index
      %c211 = arith.constant 211 : index
      %335 = vector.load %arg6[%c0_347, %c211] : memref<8x686xf32, #tpu.memory_space<vmem>>, vector<8x416xf32>
      %c728 = arith.constant 728 : index
      %c0_348 = arith.constant 0 : index
      %336 = vector.load %arg7[%c728, %c0_348] : memref<968x416xf32, #tpu.memory_space<vmem>>, vector<8x416xf32>
      tpu.vector_store %arg7[%c728, %c0_348], %335 {strides = array<i32>} : memref<968x416xf32, #tpu.memory_space<vmem>>, vector<8x416xf32>,
      %c0_349 = arith.constant 0 : index
      %c212 = arith.constant 212 : index
      %337 = vector.load %arg6[%c0_349, %c212] : memref<8x686xf32, #tpu.memory_space<vmem>>, vector<8x416xf32>
      %c736 = arith.constant 736 : index
      %c0_350 = arith.constant 0 : index
      %338 = vector.load %arg7[%c736, %c0_350] : memref<968x416xf32, #tpu.memory_space<vmem>>, vector<8x416xf32>
      tpu.vector_store %arg7[%c736, %c0_350], %337 {strides = array<i32>} : memref<968x416xf32, #tpu.memory_space<vmem>>, vector<8x416xf32>,
      %c0_351 = arith.constant 0 : index
      %c213_352 = arith.constant 213 : index
      %339 = vector.load %arg6[%c0_351, %c213_352] : memref<8x686xf32, #tpu.memory_space<vmem>>, vector<8x416xf32>
      %c744 = arith.constant 744 : index
      %c0_353 = arith.constant 0 : index
      %340 = vector.load %arg7[%c744, %c0_353] : memref<968x416xf32, #tpu.memory_space<vmem>>, vector<8x416xf32>
      tpu.vector_store %arg7[%c744, %c0_353], %339 {strides = array<i32>} : memref<968x416xf32, #tpu.memory_space<vmem>>, vector<8x416xf32>,
      %c0_354 = arith.constant 0 : index
      %c214 = arith.constant 214 : index
      %341 = vector.load %arg6[%c0_354, %c214] : memref<8x686xf32, #tpu.memory_space<vmem>>, vector<8x416xf32>
      %c752 = arith.constant 752 : index
      %c0_355 = arith.constant 0 : index
      %342 = vector.load %arg7[%c752, %c0_355] : memref<968x416xf32, #tpu.memory_space<vmem>>, vector<8x416xf32>
      tpu.vector_store %arg7[%c752, %c0_355], %341 {strides = array<i32>} : memref<968x416xf32, #tpu.memory_space<vmem>>, vector<8x416xf32>,
      %c0_356 = arith.constant 0 : index
      %c215 = arith.constant 215 : index
      %343 = vector.load %arg6[%c0_356, %c215] : memref<8x686xf32, #tpu.memory_space<vmem>>, vector<8x416xf32>
      %c760 = arith.constant 760 : index
      %c0_357 = arith.constant 0 : index
      %344 = vector.load %arg7[%c760, %c0_357] : memref<968x416xf32, #tpu.memory_space<vmem>>, vector<8x416xf32>
      tpu.vector_store %arg7[%c760, %c0_357], %343 {strides = array<i32>} : memref<968x416xf32, #tpu.memory_space<vmem>>, vector<8x416xf32>,
      %c0_358 = arith.constant 0 : index
      %c216_359 = arith.constant 216 : index
      %345 = vector.load %arg6[%c0_358, %c216_359] : memref<8x686xf32, #tpu.memory_space<vmem>>, vector<8x416xf32>
      %c768 = arith.constant 768 : index
      %c0_360 = arith.constant 0 : index
      %346 = vector.load %arg7[%c768, %c0_360] : memref<968x416xf32, #tpu.memory_space<vmem>>, vector<8x416xf32>
      tpu.vector_store %arg7[%c768, %c0_360], %345 {strides = array<i32>} : memref<968x416xf32, #tpu.memory_space<vmem>>, vector<8x416xf32>,
      %c0_361 = arith.constant 0 : index
      %c217 = arith.constant 217 : index
      %347 = vector.load %arg6[%c0_361, %c217] : memref<8x686xf32, #tpu.memory_space<vmem>>, vector<8x416xf32>
      %c776 = arith.constant 776 : index
      %c0_362 = arith.constant 0 : index
      %348 = vector.load %arg7[%c776, %c0_362] : memref<968x416xf32, #tpu.memory_space<vmem>>, vector<8x416xf32>
      tpu.vector_store %arg7[%c776, %c0_362], %347 {strides = array<i32>} : memref<968x416xf32, #tpu.memory_space<vmem>>, vector<8x416xf32>,
      %c0_363 = arith.constant 0 : index
      %c218 = arith.constant 218 : index
      %349 = vector.load %arg6[%c0_363, %c218] : memref<8x686xf32, #tpu.memory_space<vmem>>, vector<8x416xf32>
      %c784 = arith.constant 784 : index
      %c0_364 = arith.constant 0 : index
      %350 = vector.load %arg7[%c784, %c0_364] : memref<968x416xf32, #tpu.memory_space<vmem>>, vector<8x416xf32>
      tpu.vector_store %arg7[%c784, %c0_364], %349 {strides = array<i32>} : memref<968x416xf32, #tpu.memory_space<vmem>>, vector<8x416xf32>,
      %c0_365 = arith.constant 0 : index
      %c234 = arith.constant 234 : index
      %351 = vector.load %arg6[%c0_365, %c234] : memref<8x686xf32, #tpu.memory_space<vmem>>, vector<8x416xf32>
      %c792 = arith.constant 792 : index
      %c0_366 = arith.constant 0 : index
      %352 = vector.load %arg7[%c792, %c0_366] : memref<968x416xf32, #tpu.memory_space<vmem>>, vector<8x416xf32>
      tpu.vector_store %arg7[%c792, %c0_366], %351 {strides = array<i32>} : memref<968x416xf32, #tpu.memory_space<vmem>>, vector<8x416xf32>,
      %c0_367 = arith.constant 0 : index
      %c235 = arith.constant 235 : index
      %353 = vector.load %arg6[%c0_367, %c235] : memref<8x686xf32, #tpu.memory_space<vmem>>, vector<8x416xf32>
      %c800 = arith.constant 800 : index
      %c0_368 = arith.constant 0 : index
      %354 = vector.load %arg7[%c800, %c0_368] : memref<968x416xf32, #tpu.memory_space<vmem>>, vector<8x416xf32>
      tpu.vector_store %arg7[%c800, %c0_368], %353 {strides = array<i32>} : memref<968x416xf32, #tpu.memory_space<vmem>>, vector<8x416xf32>,
      %c0_369 = arith.constant 0 : index
      %c236 = arith.constant 236 : index
      %355 = vector.load %arg6[%c0_369, %c236] : memref<8x686xf32, #tpu.memory_space<vmem>>, vector<8x416xf32>
      %c808 = arith.constant 808 : index
      %c0_370 = arith.constant 0 : index
      %356 = vector.load %arg7[%c808, %c0_370] : memref<968x416xf32, #tpu.memory_space<vmem>>, vector<8x416xf32>
      tpu.vector_store %arg7[%c808, %c0_370], %355 {strides = array<i32>} : memref<968x416xf32, #tpu.memory_space<vmem>>, vector<8x416xf32>,
      %c0_371 = arith.constant 0 : index
      %c237 = arith.constant 237 : index
      %357 = vector.load %arg6[%c0_371, %c237] : memref<8x686xf32, #tpu.memory_space<vmem>>, vector<8x416xf32>
      %c816 = arith.constant 816 : index
      %c0_372 = arith.constant 0 : index
      %358 = vector.load %arg7[%c816, %c0_372] : memref<968x416xf32, #tpu.memory_space<vmem>>, vector<8x416xf32>
      tpu.vector_store %arg7[%c816, %c0_372], %357 {strides = array<i32>} : memref<968x416xf32, #tpu.memory_space<vmem>>, vector<8x416xf32>,
      %c0_373 = arith.constant 0 : index
      %c238 = arith.constant 238 : index
      %359 = vector.load %arg6[%c0_373, %c238] : memref<8x686xf32, #tpu.memory_space<vmem>>, vector<8x416xf32>
      %c824 = arith.constant 824 : index
      %c0_374 = arith.constant 0 : index
      %360 = vector.load %arg7[%c824, %c0_374] : memref<968x416xf32, #tpu.memory_space<vmem>>, vector<8x416xf32>
      tpu.vector_store %arg7[%c824, %c0_374], %359 {strides = array<i32>} : memref<968x416xf32, #tpu.memory_space<vmem>>, vector<8x416xf32>,
      %c0_375 = arith.constant 0 : index
      %c239_376 = arith.constant 239 : index
      %361 = vector.load %arg6[%c0_375, %c239_376] : memref<8x686xf32, #tpu.memory_space<vmem>>, vector<8x416xf32>
      %c832 = arith.constant 832 : index
      %c0_377 = arith.constant 0 : index
      %362 = vector.load %arg7[%c832, %c0_377] : memref<968x416xf32, #tpu.memory_space<vmem>>, vector<8x416xf32>
      tpu.vector_store %arg7[%c832, %c0_377], %361 {strides = array<i32>} : memref<968x416xf32, #tpu.memory_space<vmem>>, vector<8x416xf32>,
      %c0_378 = arith.constant 0 : index
      %c240_379 = arith.constant 240 : index
      %363 = vector.load %arg6[%c0_378, %c240_379] : memref<8x686xf32, #tpu.memory_space<vmem>>, vector<8x416xf32>
      %c840 = arith.constant 840 : index
      %c0_380 = arith.constant 0 : index
      %364 = vector.load %arg7[%c840, %c0_380] : memref<968x416xf32, #tpu.memory_space<vmem>>, vector<8x416xf32>
      tpu.vector_store %arg7[%c840, %c0_380], %363 {strides = array<i32>} : memref<968x416xf32, #tpu.memory_space<vmem>>, vector<8x416xf32>,
      %c0_381 = arith.constant 0 : index
      %c241 = arith.constant 241 : index
      %365 = vector.load %arg6[%c0_381, %c241] : memref<8x686xf32, #tpu.memory_space<vmem>>, vector<8x416xf32>
      %c848 = arith.constant 848 : index
      %c0_382 = arith.constant 0 : index
      %366 = vector.load %arg7[%c848, %c0_382] : memref<968x416xf32, #tpu.memory_space<vmem>>, vector<8x416xf32>
      tpu.vector_store %arg7[%c848, %c0_382], %365 {strides = array<i32>} : memref<968x416xf32, #tpu.memory_space<vmem>>, vector<8x416xf32>,
      %c0_383 = arith.constant 0 : index
      %c242 = arith.constant 242 : index
      %367 = vector.load %arg6[%c0_383, %c242] : memref<8x686xf32, #tpu.memory_space<vmem>>, vector<8x416xf32>
      %c856 = arith.constant 856 : index
      %c0_384 = arith.constant 0 : index
      %368 = vector.load %arg7[%c856, %c0_384] : memref<968x416xf32, #tpu.memory_space<vmem>>, vector<8x416xf32>
      tpu.vector_store %arg7[%c856, %c0_384], %367 {strides = array<i32>} : memref<968x416xf32, #tpu.memory_space<vmem>>, vector<8x416xf32>,
      %c0_385 = arith.constant 0 : index
      %c243 = arith.constant 243 : index
      %369 = vector.load %arg6[%c0_385, %c243] : memref<8x686xf32, #tpu.memory_space<vmem>>, vector<8x416xf32>
      %c864 = arith.constant 864 : index
      %c0_386 = arith.constant 0 : index
      %370 = vector.load %arg7[%c864, %c0_386] : memref<968x416xf32, #tpu.memory_space<vmem>>, vector<8x416xf32>
      tpu.vector_store %arg7[%c864, %c0_386], %369 {strides = array<i32>} : memref<968x416xf32, #tpu.memory_space<vmem>>, vector<8x416xf32>,
      %c0_387 = arith.constant 0 : index
      %c244 = arith.constant 244 : index
      %371 = vector.load %arg6[%c0_387, %c244] : memref<8x686xf32, #tpu.memory_space<vmem>>, vector<8x416xf32>
      %c872 = arith.constant 872 : index
      %c0_388 = arith.constant 0 : index
      %372 = vector.load %arg7[%c872, %c0_388] : memref<968x416xf32, #tpu.memory_space<vmem>>, vector<8x416xf32>
      tpu.vector_store %arg7[%c872, %c0_388], %371 {strides = array<i32>} : memref<968x416xf32, #tpu.memory_space<vmem>>, vector<8x416xf32>,
      %c0_389 = arith.constant 0 : index
      %c260 = arith.constant 260 : index
      %373 = vector.load %arg6[%c0_389, %c260] : memref<8x686xf32, #tpu.memory_space<vmem>>, vector<8x416xf32>
      %c880 = arith.constant 880 : index
      %c0_390 = arith.constant 0 : index
      %374 = vector.load %arg7[%c880, %c0_390] : memref<968x416xf32, #tpu.memory_space<vmem>>, vector<8x416xf32>
      tpu.vector_store %arg7[%c880, %c0_390], %373 {strides = array<i32>} : memref<968x416xf32, #tpu.memory_space<vmem>>, vector<8x416xf32>,
      %c0_391 = arith.constant 0 : index
      %c261 = arith.constant 261 : index
      %375 = vector.load %arg6[%c0_391, %c261] : memref<8x686xf32, #tpu.memory_space<vmem>>, vector<8x416xf32>
      %c888 = arith.constant 888 : index
      %c0_392 = arith.constant 0 : index
      %376 = vector.load %arg7[%c888, %c0_392] : memref<968x416xf32, #tpu.memory_space<vmem>>, vector<8x416xf32>
      tpu.vector_store %arg7[%c888, %c0_392], %375 {strides = array<i32>} : memref<968x416xf32, #tpu.memory_space<vmem>>, vector<8x416xf32>,
      %c0_393 = arith.constant 0 : index
      %c262 = arith.constant 262 : index
      %377 = vector.load %arg6[%c0_393, %c262] : memref<8x686xf32, #tpu.memory_space<vmem>>, vector<8x416xf32>
      %c896 = arith.constant 896 : index
      %c0_394 = arith.constant 0 : index
      %378 = vector.load %arg7[%c896, %c0_394] : memref<968x416xf32, #tpu.memory_space<vmem>>, vector<8x416xf32>
      tpu.vector_store %arg7[%c896, %c0_394], %377 {strides = array<i32>} : memref<968x416xf32, #tpu.memory_space<vmem>>, vector<8x416xf32>,
      %c0_395 = arith.constant 0 : index
      %c263 = arith.constant 263 : index
      %379 = vector.load %arg6[%c0_395, %c263] : memref<8x686xf32, #tpu.memory_space<vmem>>, vector<8x416xf32>
      %c904 = arith.constant 904 : index
      %c0_396 = arith.constant 0 : index
      %380 = vector.load %arg7[%c904, %c0_396] : memref<968x416xf32, #tpu.memory_space<vmem>>, vector<8x416xf32>
      tpu.vector_store %arg7[%c904, %c0_396], %379 {strides = array<i32>} : memref<968x416xf32, #tpu.memory_space<vmem>>, vector<8x416xf32>,
      %c0_397 = arith.constant 0 : index
      %c264_398 = arith.constant 264 : index
      %381 = vector.load %arg6[%c0_397, %c264_398] : memref<8x686xf32, #tpu.memory_space<vmem>>, vector<8x416xf32>
      %c912 = arith.constant 912 : index
      %c0_399 = arith.constant 0 : index
      %382 = vector.load %arg7[%c912, %c0_399] : memref<968x416xf32, #tpu.memory_space<vmem>>, vector<8x416xf32>
      tpu.vector_store %arg7[%c912, %c0_399], %381 {strides = array<i32>} : memref<968x416xf32, #tpu.memory_space<vmem>>, vector<8x416xf32>,
      %c0_400 = arith.constant 0 : index
      %c265_401 = arith.constant 265 : index
      %383 = vector.load %arg6[%c0_400, %c265_401] : memref<8x686xf32, #tpu.memory_space<vmem>>, vector<8x416xf32>
      %c920 = arith.constant 920 : index
      %c0_402 = arith.constant 0 : index
      %384 = vector.load %arg7[%c920, %c0_402] : memref<968x416xf32, #tpu.memory_space<vmem>>, vector<8x416xf32>
      tpu.vector_store %arg7[%c920, %c0_402], %383 {strides = array<i32>} : memref<968x416xf32, #tpu.memory_space<vmem>>, vector<8x416xf32>,
      %c0_403 = arith.constant 0 : index
      %c266 = arith.constant 266 : index
      %385 = vector.load %arg6[%c0_403, %c266] : memref<8x686xf32, #tpu.memory_space<vmem>>, vector<8x416xf32>
      %c928 = arith.constant 928 : index
      %c0_404 = arith.constant 0 : index
      %386 = vector.load %arg7[%c928, %c0_404] : memref<968x416xf32, #tpu.memory_space<vmem>>, vector<8x416xf32>
      tpu.vector_store %arg7[%c928, %c0_404], %385 {strides = array<i32>} : memref<968x416xf32, #tpu.memory_space<vmem>>, vector<8x416xf32>,
      %c0_405 = arith.constant 0 : index
      %c267 = arith.constant 267 : index
      %387 = vector.load %arg6[%c0_405, %c267] : memref<8x686xf32, #tpu.memory_space<vmem>>, vector<8x416xf32>
      %c936 = arith.constant 936 : index
      %c0_406 = arith.constant 0 : index
      %388 = vector.load %arg7[%c936, %c0_406] : memref<968x416xf32, #tpu.memory_space<vmem>>, vector<8x416xf32>
      tpu.vector_store %arg7[%c936, %c0_406], %387 {strides = array<i32>} : memref<968x416xf32, #tpu.memory_space<vmem>>, vector<8x416xf32>,
      %c0_407 = arith.constant 0 : index
      %c268 = arith.constant 268 : index
      %389 = vector.load %arg6[%c0_407, %c268] : memref<8x686xf32, #tpu.memory_space<vmem>>, vector<8x416xf32>
      %c944 = arith.constant 944 : index
      %c0_408 = arith.constant 0 : index
      %390 = vector.load %arg7[%c944, %c0_408] : memref<968x416xf32, #tpu.memory_space<vmem>>, vector<8x416xf32>
      tpu.vector_store %arg7[%c944, %c0_408], %389 {strides = array<i32>} : memref<968x416xf32, #tpu.memory_space<vmem>>, vector<8x416xf32>,
      %c0_409 = arith.constant 0 : index
      %c269 = arith.constant 269 : index
      %391 = vector.load %arg6[%c0_409, %c269] : memref<8x686xf32, #tpu.memory_space<vmem>>, vector<8x416xf32>
      %c952 = arith.constant 952 : index
      %c0_410 = arith.constant 0 : index
      %392 = vector.load %arg7[%c952, %c0_410] : memref<968x416xf32, #tpu.memory_space<vmem>>, vector<8x416xf32>
      tpu.vector_store %arg7[%c952, %c0_410], %391 {strides = array<i32>} : memref<968x416xf32, #tpu.memory_space<vmem>>, vector<8x416xf32>,
      %c0_411 = arith.constant 0 : index
      %c270 = arith.constant 270 : index
      %393 = vector.load %arg6[%c0_411, %c270] : memref<8x686xf32, #tpu.memory_space<vmem>>, vector<8x416xf32>
      %c960 = arith.constant 960 : index
      %c0_412 = arith.constant 0 : index
      %394 = vector.load %arg7[%c960, %c0_412] : memref<968x416xf32, #tpu.memory_space<vmem>>, vector<8x416xf32>
      tpu.vector_store %arg7[%c960, %c0_412], %393 {strides = array<i32>} : memref<968x416xf32, #tpu.memory_space<vmem>>, vector<8x416xf32>,
    } else {
    }
    %c0 = arith.constant 0 : index
    %c0_1 = arith.constant 0 : index
    %3 = vector.load %arg3[%c0, %c0_1] : memref<8x968xf32, #tpu.memory_space<vmem>>, vector<8x968xf32>
    %c0_2 = arith.constant 0 : index
    %c0_3 = arith.constant 0 : index
    %4 = vector.load %arg7[%c0_2, %c0_3] : memref<968x416xf32, #tpu.memory_space<vmem>>, vector<968x416xf32>
    %cst = arith.constant dense<0.000000e+00> : vector<8x416xf32>
    %5 = tpu.matmul %3, %4, %cst {dimension_numbers = #tpu.dot_dimension_numbers<[1], [0], [0], [1], [0, 0, 1, 1], [], []>} : vector<8x968xf32>, vector<968x416xf32>, vector<8x416xf32> -> vector<8x416xf32>
    %c0_4 = arith.constant 0 : index
    %c0_5 = arith.constant 0 : index
    %6 = vector.load %arg4[%c0_4, %c0_5] : memref<8x1xf32, #tpu.memory_space<vmem>>, vector<8x1xf32>
    %7 = vector.extract_strided_slice %5 {offsets = [0, 0], sizes = [8, 16], strides = [1, 1]} : vector<8x416xf32> to vector<8x16xf32>
    %8 = vector.broadcast %6 : vector<8x1xf32> to vector<8x16xf32>
    %9 = arith.addf %7, %8 : vector<8x16xf32>
    %c0_6 = arith.constant 0 : index
    %c0_7 = arith.constant 0 : index
    %c0_8 = arith.constant 0 : index
    %c0_9 = arith.constant 0 : index
    %10 = vector.load %arg5[%c0_6, %c0_7, %c0_8, %c0_9] : memref<1x8x16x16xf32, #tpu.memory_space<vmem>>, vector<1x8x1x16xf32>
    %11 = vector.shape_cast %10 : vector<1x8x1x16xf32> to vector<8x16xf32>
    %12 = vector.shape_cast %9 : vector<8x16xf32> to vector<1x8x1x16xf32>
    tpu.vector_store %arg5[%c0_6, %c0_7, %c0_8, %c0_9], %12 {strides = array<i32>} : memref<1x8x16x16xf32, #tpu.memory_space<vmem>>, vector<1x8x1x16xf32>,
    %13 = vector.extract_strided_slice %5 {offsets = [0, 26], sizes = [8, 16], strides = [1, 1]} : vector<8x416xf32> to vector<8x16xf32>
    %14 = vector.broadcast %6 : vector<8x1xf32> to vector<8x16xf32>
    %15 = arith.addf %13, %14 : vector<8x16xf32>
    %c0_10 = arith.constant 0 : index
    %c0_11 = arith.constant 0 : index
    %c1 = arith.constant 1 : index
    %c0_12 = arith.constant 0 : index
    %16 = vector.load %arg5[%c0_10, %c0_11, %c1, %c0_12] : memref<1x8x16x16xf32, #tpu.memory_space<vmem>>, vector<1x8x1x16xf32>
    %17 = vector.shape_cast %16 : vector<1x8x1x16xf32> to vector<8x16xf32>
    %18 = vector.shape_cast %15 : vector<8x16xf32> to vector<1x8x1x16xf32>
    tpu.vector_store %arg5[%c0_10, %c0_11, %c1, %c0_12], %18 {strides = array<i32>} : memref<1x8x16x16xf32, #tpu.memory_space<vmem>>, vector<1x8x1x16xf32>,
    %19 = vector.extract_strided_slice %5 {offsets = [0, 52], sizes = [8, 16], strides = [1, 1]} : vector<8x416xf32> to vector<8x16xf32>
    %20 = vector.broadcast %6 : vector<8x1xf32> to vector<8x16xf32>
    %21 = arith.addf %19, %20 : vector<8x16xf32>
    %c0_13 = arith.constant 0 : index
    %c0_14 = arith.constant 0 : index
    %c2 = arith.constant 2 : index
    %c0_15 = arith.constant 0 : index
    %22 = vector.load %arg5[%c0_13, %c0_14, %c2, %c0_15] : memref<1x8x16x16xf32, #tpu.memory_space<vmem>>, vector<1x8x1x16xf32>
    %23 = vector.shape_cast %22 : vector<1x8x1x16xf32> to vector<8x16xf32>
    %24 = vector.shape_cast %21 : vector<8x16xf32> to vector<1x8x1x16xf32>
    tpu.vector_store %arg5[%c0_13, %c0_14, %c2, %c0_15], %24 {strides = array<i32>} : memref<1x8x16x16xf32, #tpu.memory_space<vmem>>, vector<1x8x1x16xf32>,
    %25 = vector.extract_strided_slice %5 {offsets = [0, 78], sizes = [8, 16], strides = [1, 1]} : vector<8x416xf32> to vector<8x16xf32>
    %26 = vector.broadcast %6 : vector<8x1xf32> to vector<8x16xf32>
    %27 = arith.addf %25, %26 : vector<8x16xf32>
    %c0_16 = arith.constant 0 : index
    %c0_17 = arith.constant 0 : index
    %c3 = arith.constant 3 : index
    %c0_18 = arith.constant 0 : index
    %28 = vector.load %arg5[%c0_16, %c0_17, %c3, %c0_18] : memref<1x8x16x16xf32, #tpu.memory_space<vmem>>, vector<1x8x1x16xf32>
    %29 = vector.shape_cast %28 : vector<1x8x1x16xf32> to vector<8x16xf32>
    %30 = vector.shape_cast %27 : vector<8x16xf32> to vector<1x8x1x16xf32>
    tpu.vector_store %arg5[%c0_16, %c0_17, %c3, %c0_18], %30 {strides = array<i32>} : memref<1x8x16x16xf32, #tpu.memory_space<vmem>>, vector<1x8x1x16xf32>,
    %31 = vector.extract_strided_slice %5 {offsets = [0, 104], sizes = [8, 16], strides = [1, 1]} : vector<8x416xf32> to vector<8x16xf32>
    %32 = vector.broadcast %6 : vector<8x1xf32> to vector<8x16xf32>
    %33 = arith.addf %31, %32 : vector<8x16xf32>
    %c0_19 = arith.constant 0 : index
    %c0_20 = arith.constant 0 : index
    %c4 = arith.constant 4 : index
    %c0_21 = arith.constant 0 : index
    %34 = vector.load %arg5[%c0_19, %c0_20, %c4, %c0_21] : memref<1x8x16x16xf32, #tpu.memory_space<vmem>>, vector<1x8x1x16xf32>
    %35 = vector.shape_cast %34 : vector<1x8x1x16xf32> to vector<8x16xf32>
    %36 = vector.shape_cast %33 : vector<8x16xf32> to vector<1x8x1x16xf32>
    tpu.vector_store %arg5[%c0_19, %c0_20, %c4, %c0_21], %36 {strides = array<i32>} : memref<1x8x16x16xf32, #tpu.memory_space<vmem>>, vector<1x8x1x16xf32>,
    %37 = vector.extract_strided_slice %5 {offsets = [0, 130], sizes = [8, 16], strides = [1, 1]} : vector<8x416xf32> to vector<8x16xf32>
    %38 = vector.broadcast %6 : vector<8x1xf32> to vector<8x16xf32>
    %39 = arith.addf %37, %38 : vector<8x16xf32>
    %c0_22 = arith.constant 0 : index
    %c0_23 = arith.constant 0 : index
    %c5 = arith.constant 5 : index
    %c0_24 = arith.constant 0 : index
    %40 = vector.load %arg5[%c0_22, %c0_23, %c5, %c0_24] : memref<1x8x16x16xf32, #tpu.memory_space<vmem>>, vector<1x8x1x16xf32>
    %41 = vector.shape_cast %40 : vector<1x8x1x16xf32> to vector<8x16xf32>
    %42 = vector.shape_cast %39 : vector<8x16xf32> to vector<1x8x1x16xf32>
    tpu.vector_store %arg5[%c0_22, %c0_23, %c5, %c0_24], %42 {strides = array<i32>} : memref<1x8x16x16xf32, #tpu.memory_space<vmem>>, vector<1x8x1x16xf32>,
    %43 = vector.extract_strided_slice %5 {offsets = [0, 156], sizes = [8, 16], strides = [1, 1]} : vector<8x416xf32> to vector<8x16xf32>
    %44 = vector.broadcast %6 : vector<8x1xf32> to vector<8x16xf32>
    %45 = arith.addf %43, %44 : vector<8x16xf32>
    %c0_25 = arith.constant 0 : index
    %c0_26 = arith.constant 0 : index
    %c6 = arith.constant 6 : index
    %c0_27 = arith.constant 0 : index
    %46 = vector.load %arg5[%c0_25, %c0_26, %c6, %c0_27] : memref<1x8x16x16xf32, #tpu.memory_space<vmem>>, vector<1x8x1x16xf32>
    %47 = vector.shape_cast %46 : vector<1x8x1x16xf32> to vector<8x16xf32>
    %48 = vector.shape_cast %45 : vector<8x16xf32> to vector<1x8x1x16xf32>
    tpu.vector_store %arg5[%c0_25, %c0_26, %c6, %c0_27], %48 {strides = array<i32>} : memref<1x8x16x16xf32, #tpu.memory_space<vmem>>, vector<1x8x1x16xf32>,
    %49 = vector.extract_strided_slice %5 {offsets = [0, 182], sizes = [8, 16], strides = [1, 1]} : vector<8x416xf32> to vector<8x16xf32>
    %50 = vector.broadcast %6 : vector<8x1xf32> to vector<8x16xf32>
    %51 = arith.addf %49, %50 : vector<8x16xf32>
    %c0_28 = arith.constant 0 : index
    %c0_29 = arith.constant 0 : index
    %c7 = arith.constant 7 : index
    %c0_30 = arith.constant 0 : index
    %52 = vector.load %arg5[%c0_28, %c0_29, %c7, %c0_30] : memref<1x8x16x16xf32, #tpu.memory_space<vmem>>, vector<1x8x1x16xf32>
    %53 = vector.shape_cast %52 : vector<1x8x1x16xf32> to vector<8x16xf32>
    %54 = vector.shape_cast %51 : vector<8x16xf32> to vector<1x8x1x16xf32>
    tpu.vector_store %arg5[%c0_28, %c0_29, %c7, %c0_30], %54 {strides = array<i32>} : memref<1x8x16x16xf32, #tpu.memory_space<vmem>>, vector<1x8x1x16xf32>,
    %55 = vector.extract_strided_slice %5 {offsets = [0, 208], sizes = [8, 16], strides = [1, 1]} : vector<8x416xf32> to vector<8x16xf32>
    %56 = vector.broadcast %6 : vector<8x1xf32> to vector<8x16xf32>
    %57 = arith.addf %55, %56 : vector<8x16xf32>
    %c0_31 = arith.constant 0 : index
    %c0_32 = arith.constant 0 : index
    %c8 = arith.constant 8 : index
    %c0_33 = arith.constant 0 : index
    %58 = vector.load %arg5[%c0_31, %c0_32, %c8, %c0_33] : memref<1x8x16x16xf32, #tpu.memory_space<vmem>>, vector<1x8x1x16xf32>
    %59 = vector.shape_cast %58 : vector<1x8x1x16xf32> to vector<8x16xf32>
    %60 = vector.shape_cast %57 : vector<8x16xf32> to vector<1x8x1x16xf32>
    tpu.vector_store %arg5[%c0_31, %c0_32, %c8, %c0_33], %60 {strides = array<i32>} : memref<1x8x16x16xf32, #tpu.memory_space<vmem>>, vector<1x8x1x16xf32>,
    %61 = vector.extract_strided_slice %5 {offsets = [0, 234], sizes = [8, 16], strides = [1, 1]} : vector<8x416xf32> to vector<8x16xf32>
    %62 = vector.broadcast %6 : vector<8x1xf32> to vector<8x16xf32>
    %63 = arith.addf %61, %62 : vector<8x16xf32>
    %c0_34 = arith.constant 0 : index
    %c0_35 = arith.constant 0 : index
    %c9 = arith.constant 9 : index
    %c0_36 = arith.constant 0 : index
    %64 = vector.load %arg5[%c0_34, %c0_35, %c9, %c0_36] : memref<1x8x16x16xf32, #tpu.memory_space<vmem>>, vector<1x8x1x16xf32>
    %65 = vector.shape_cast %64 : vector<1x8x1x16xf32> to vector<8x16xf32>
    %66 = vector.shape_cast %63 : vector<8x16xf32> to vector<1x8x1x16xf32>
    tpu.vector_store %arg5[%c0_34, %c0_35, %c9, %c0_36], %66 {strides = array<i32>} : memref<1x8x16x16xf32, #tpu.memory_space<vmem>>, vector<1x8x1x16xf32>,
    %67 = vector.extract_strided_slice %5 {offsets = [0, 260], sizes = [8, 16], strides = [1, 1]} : vector<8x416xf32> to vector<8x16xf32>
    %68 = vector.broadcast %6 : vector<8x1xf32> to vector<8x16xf32>
    %69 = arith.addf %67, %68 : vector<8x16xf32>
    %c0_37 = arith.constant 0 : index
    %c0_38 = arith.constant 0 : index
    %c10 = arith.constant 10 : index
    %c0_39 = arith.constant 0 : index
    %70 = vector.load %arg5[%c0_37, %c0_38, %c10, %c0_39] : memref<1x8x16x16xf32, #tpu.memory_space<vmem>>, vector<1x8x1x16xf32>
    %71 = vector.shape_cast %70 : vector<1x8x1x16xf32> to vector<8x16xf32>
    %72 = vector.shape_cast %69 : vector<8x16xf32> to vector<1x8x1x16xf32>
    tpu.vector_store %arg5[%c0_37, %c0_38, %c10, %c0_39], %72 {strides = array<i32>} : memref<1x8x16x16xf32, #tpu.memory_space<vmem>>, vector<1x8x1x16xf32>,
    %73 = vector.extract_strided_slice %5 {offsets = [0, 286], sizes = [8, 16], strides = [1, 1]} : vector<8x416xf32> to vector<8x16xf32>
    %74 = vector.broadcast %6 : vector<8x1xf32> to vector<8x16xf32>
    %75 = arith.addf %73, %74 : vector<8x16xf32>
    %c0_40 = arith.constant 0 : index
    %c0_41 = arith.constant 0 : index
    %c11 = arith.constant 11 : index
    %c0_42 = arith.constant 0 : index
    %76 = vector.load %arg5[%c0_40, %c0_41, %c11, %c0_42] : memref<1x8x16x16xf32, #tpu.memory_space<vmem>>, vector<1x8x1x16xf32>
    %77 = vector.shape_cast %76 : vector<1x8x1x16xf32> to vector<8x16xf32>
    %78 = vector.shape_cast %75 : vector<8x16xf32> to vector<1x8x1x16xf32>
    tpu.vector_store %arg5[%c0_40, %c0_41, %c11, %c0_42], %78 {strides = array<i32>} : memref<1x8x16x16xf32, #tpu.memory_space<vmem>>, vector<1x8x1x16xf32>,
    %79 = vector.extract_strided_slice %5 {offsets = [0, 312], sizes = [8, 16], strides = [1, 1]} : vector<8x416xf32> to vector<8x16xf32>
    %80 = vector.broadcast %6 : vector<8x1xf32> to vector<8x16xf32>
    %81 = arith.addf %79, %80 : vector<8x16xf32>
    %c0_43 = arith.constant 0 : index
    %c0_44 = arith.constant 0 : index
    %c12 = arith.constant 12 : index
    %c0_45 = arith.constant 0 : index
    %82 = vector.load %arg5[%c0_43, %c0_44, %c12, %c0_45] : memref<1x8x16x16xf32, #tpu.memory_space<vmem>>, vector<1x8x1x16xf32>
    %83 = vector.shape_cast %82 : vector<1x8x1x16xf32> to vector<8x16xf32>
    %84 = vector.shape_cast %81 : vector<8x16xf32> to vector<1x8x1x16xf32>
    tpu.vector_store %arg5[%c0_43, %c0_44, %c12, %c0_45], %84 {strides = array<i32>} : memref<1x8x16x16xf32, #tpu.memory_space<vmem>>, vector<1x8x1x16xf32>,
    %85 = vector.extract_strided_slice %5 {offsets = [0, 338], sizes = [8, 16], strides = [1, 1]} : vector<8x416xf32> to vector<8x16xf32>
    %86 = vector.broadcast %6 : vector<8x1xf32> to vector<8x16xf32>
    %87 = arith.addf %85, %86 : vector<8x16xf32>
    %c0_46 = arith.constant 0 : index
    %c0_47 = arith.constant 0 : index
    %c13 = arith.constant 13 : index
    %c0_48 = arith.constant 0 : index
    %88 = vector.load %arg5[%c0_46, %c0_47, %c13, %c0_48] : memref<1x8x16x16xf32, #tpu.memory_space<vmem>>, vector<1x8x1x16xf32>
    %89 = vector.shape_cast %88 : vector<1x8x1x16xf32> to vector<8x16xf32>
    %90 = vector.shape_cast %87 : vector<8x16xf32> to vector<1x8x1x16xf32>
    tpu.vector_store %arg5[%c0_46, %c0_47, %c13, %c0_48], %90 {strides = array<i32>} : memref<1x8x16x16xf32, #tpu.memory_space<vmem>>, vector<1x8x1x16xf32>,
    %91 = vector.extract_strided_slice %5 {offsets = [0, 364], sizes = [8, 16], strides = [1, 1]} : vector<8x416xf32> to vector<8x16xf32>
    %92 = vector.broadcast %6 : vector<8x1xf32> to vector<8x16xf32>
    %93 = arith.addf %91, %92 : vector<8x16xf32>
    %c0_49 = arith.constant 0 : index
    %c0_50 = arith.constant 0 : index
    %c14 = arith.constant 14 : index
    %c0_51 = arith.constant 0 : index
    %94 = vector.load %arg5[%c0_49, %c0_50, %c14, %c0_51] : memref<1x8x16x16xf32, #tpu.memory_space<vmem>>, vector<1x8x1x16xf32>
    %95 = vector.shape_cast %94 : vector<1x8x1x16xf32> to vector<8x16xf32>
    %96 = vector.shape_cast %93 : vector<8x16xf32> to vector<1x8x1x16xf32>
    tpu.vector_store %arg5[%c0_49, %c0_50, %c14, %c0_51], %96 {strides = array<i32>} : memref<1x8x16x16xf32, #tpu.memory_space<vmem>>, vector<1x8x1x16xf32>,
    %97 = vector.extract_strided_slice %5 {offsets = [0, 390], sizes = [8, 16], strides = [1, 1]} : vector<8x416xf32> to vector<8x16xf32>
    %98 = vector.broadcast %6 : vector<8x1xf32> to vector<8x16xf32>
    %99 = arith.addf %97, %98 : vector<8x16xf32>
    %c0_52 = arith.constant 0 : index
    %c0_53 = arith.constant 0 : index
    %c15 = arith.constant 15 : index
    %c0_54 = arith.constant 0 : index
    %100 = vector.load %arg5[%c0_52, %c0_53, %c15, %c0_54] : memref<1x8x16x16xf32, #tpu.memory_space<vmem>>, vector<1x8x1x16xf32>
    %101 = vector.shape_cast %100 : vector<1x8x1x16xf32> to vector<8x16xf32>
    %102 = vector.shape_cast %99 : vector<8x16xf32> to vector<1x8x1x16xf32>
    tpu.vector_store %arg5[%c0_52, %c0_53, %c15, %c0_54], %102 {strides = array<i32>} : memref<1x8x16x16xf32, #tpu.memory_space<vmem>>, vector<1x8x1x16xf32>,
    return
  }
  func.func @transform_0(%arg0: i32, %arg1: i32) -> (i32, i32, i32, i32) {
    %c0_i32 = arith.constant 0 : i32
    %c0_i32_0 = arith.constant 0 : i32
    %c0_i32_1 = arith.constant 0 : i32
    %c0_i32_2 = arith.constant 0 : i32
    return %arg0, %c0_i32, %c0_i32_0, %c0_i32_1 : i32, i32, i32, i32
  }
  func.func @transform_1(%arg0: i32, %arg1: i32) -> (i32, i32) {
    %c0_i32 = arith.constant 0 : i32
    %c0_i32_0 = arith.constant 0 : i32
    return %arg1, %c0_i32 : i32, i32
  }
  func.func @transform_2(%arg0: i32, %arg1: i32) -> (i32, i32) {
    %c0_i32 = arith.constant 0 : i32
    %c0_i32_0 = arith.constant 0 : i32
    return %arg1, %c0_i32 : i32, i32
  }
  func.func @transform_3(%arg0: i32, %arg1: i32) -> (i32, i32, i32, i32) {
    %c0_i32 = arith.constant 0 : i32
    %c0_i32_0 = arith.constant 0 : i32
    %c0_i32_1 = arith.constant 0 : i32
    return %arg0, %arg1, %c0_i32, %c0_i32_0 : i32, i32, i32, i32
  }
}

</mosaic_0001>

<llo_original>
// kernel: tpu_custom_call.1
$region0: #{tpu_custom_call.1}
  #allocation0 [shape = 'u32[]', space=smem, size = 0x4, offset = 0x4, fixed_abs, tag = 'smem constant byte address 0x4 - core index']
  #allocation1 [shape = 'u32[144,128]{1,0:T(1,128)}', space=vmem, size = 0x12000, scoped, tag = 'internal scratch']
  #allocation2 [shape = 'f32[8,686]{1,0:T(8,128)}', space=vmem, size = 0x6000, scoped, tag = 'scratch operand']
  #allocation3 [shape = 'f32[968,416]{1,0:T(8,128)}', space=vmem, size = 0x1e4000, scoped, tag = 'scratch operand']
  %s0 = inlined_call_operand.hbm [shape: f32[2,4,16,16], index: 0, kind: input, shape index: {}]
  %s1 = inlined_call_operand.hbm [shape: f32[8,968], index: 1, kind: input, shape index: {}]
  %s2 = inlined_call_operand.vmem [shape: f32[8,1], index: 2, kind: input, shape index: {}]
  %s3 = inlined_call_operand.hbm [shape: f32[2,8,16,16], index: 3, kind: output, shape index: {}]
  %s4 = sld [smem:[#allocation0]]
  $region57: #{tpu_custom_call.1} parent=0
    _
  %s6 = ssub.s32 1, %s4
  %s7 = scalar_select 0, %s6, %s4
  $region1: #{tpu_custom_call.1} parent=0
    #allocation4 [shape = 'u8[65536]{0}', space=vmem, size = 0x10000, scoped, tag = 'input window, operand 0']
    #allocation5 [shape = 's32[2]{0}', space=sflag, size = 0x8, scoped, tag = 'scoped memory for tpu_custom_call.1']
    #allocation6 [shape = 's32[2]{0}', space=sflag, size = 0x8, scoped, tag = 'scoped memory for tpu_custom_call.1']
    #allocation7 [shape = 'u8[32768]{0}', space=vmem, size = 0x8000, scoped, tag = 'input window, operand 1, single buffered']
    #allocation8 [shape = 's32[1]{0}', space=sflag, size = 0x4, scoped, tag = 'scoped memory for tpu_custom_call.1']
    #allocation9 [shape = 'u8[131072]{0}', space=vmem, size = 0x20000, scoped, tag = 'output window, operand 0']
    %8 = vsyncpa [#allocation5], 0
    %s9 = scalar_lea.sflag [#allocation5], 1
    %10 = vsyncpa %s9, 0
    %11 = vsyncpa [#allocation8], 0
    %12 = vsyncpa [#allocation6], 0
    %s13 = scalar_lea.sflag [#allocation6], 1
    %14 = vsyncpa %s13, 0
    loop: start=0, step=1, limit=4
    $region2: #{tpu_custom_call.1} parent=1 // loop_pre_header
      _
    $region3: #{tpu_custom_call.1} parent=1 // loop_header
      %s16 = sphi 0, %s20
      %p17 = scmp.ge.s32.totalorder %s16, 4
      %s23 = sphi 0, %s35
      %s24 = sphi 0, %s31
      %s25 = sphi 0, %s23
      %s26 = sphi 0, %s24
      %s27 = sphi 0, %s25
      %s28 = sphi 0, %s26
      %s38 = sphi 0, %s40
      %s41 = sphi 0, %s38
      %s42 = sphi 0, %s41
      %s58 = sphi 0, %s42
      %s64 = sphi 0, %s66
      %s67 = sphi 0, %s64
      %s68 = sphi 0, %s67
      %s84 = sphi 0, %s68
      %s90 = sphi 0, %s92
      %s93 = sphi 0, %s90
      %s94 = sphi 0, %s93
      %s110 = sphi 0, %s94
      %s118 = sphi 0, %s120
      %s121 = sphi 0, %s118
      %s122 = sphi 0, %s121
      %s138 = sphi 0, %s122
    $region4: #{tpu_custom_call.1} parent=1 // loop_header_branch
      %19 = sbr.rel (%p17) target = $region8
    $region5: #{tpu_custom_call.1} parent=1 // loop_body
      %s21 = ssub.s32 %s16, 1
      %s22 = ssub.s32 %s16, 2
      %s29 = sadd.s32 1, %s24
      %p30 = scmp.ge.s32.totalorder %s29, 1
      %s31 = scalar_select %p30, 0, %s29
      %s32 = sadd.s32 1, %s23
      %s33 = scalar_select %p30, %s32, %s23
      %p34 = scmp.ge.s32.totalorder %s33, 2
      %s35 = scalar_select %p34, 0, %s33
      %s36 = ssub.s32 %s23, %s35
      %p37 = scmp.eq.s32.totalorder %s36, 0
      %s39 = sadd.s32 %s38, 1
      %s40 = scalar_select %p37, %s38, %s39
      %p43 = pneg %p37
      %p44 = scmp.eq.s32.totalorder %s16, 1
      %p45 = por %p43, %p44
      %p46 = scmp.ne.s32.totalorder %s38, %s41
      %p47 = scmp.eq.s32.totalorder %s16, 0
      %p48 = por %p46, %p47
      %p49 = scmp.ne.s32.totalorder %s38, %s41
      %p50 = scmp.eq.s32.totalorder %s21, 1
      %p51 = por %p49, %p50
      %p52 = scmp.ne.s32.totalorder %s41, %s42
      %p53 = scmp.eq.s32.totalorder %s21, 0
      %p54 = por %p52, %p53
      %p55 = scmp.ne.s32.totalorder %s41, %s42
      %p56 = scmp.eq.s32.totalorder %s22, 1
      %p57 = por %p55, %p56
      %p59 = scmp.ne.s32.totalorder %s42, %s58
      %p60 = scmp.eq.s32.totalorder %s22, 0
      %p61 = por %p59, %p60
      %s62 = ssub.s32 %s24, %s31
      %p63 = scmp.eq.s32.totalorder %s62, 0
      %s65 = sadd.s32 %s64, 1
      %s66 = scalar_select %p63, %s64, %s65
      %p69 = pneg %p63
      %p70 = scmp.eq.s32.totalorder %s16, 1
      %p71 = por %p69, %p70
      %p72 = scmp.ne.s32.totalorder %s64, %s67
      %p73 = scmp.eq.s32.totalorder %s16, 0
      %p74 = por %p72, %p73
      %p75 = scmp.ne.s32.totalorder %s64, %s67
      %p76 = scmp.eq.s32.totalorder %s21, 1
      %p77 = por %p75, %p76
      %p78 = scmp.ne.s32.totalorder %s67, %s68
      %p79 = scmp.eq.s32.totalorder %s21, 0
      %p80 = por %p78, %p79
      %p81 = scmp.ne.s32.totalorder %s67, %s68
      %p82 = scmp.eq.s32.totalorder %s22, 1
      %p83 = por %p81, %p82
      %p85 = scmp.ne.s32.totalorder %s68, %s84
      %p86 = scmp.eq.s32.totalorder %s22, 0
      %p87 = por %p85, %p86
      %s88 = ssub.s32 %s24, %s31
      %p89 = scmp.eq.s32.totalorder %s88, 0
      %s91 = sadd.s32 %s90, 1
      %s92 = scalar_select %p89, %s90, %s91
      %p95 = pneg %p89
      %p96 = scmp.eq.s32.totalorder %s16, 1
      %p97 = por %p95, %p96
      %p98 = scmp.ne.s32.totalorder %s90, %s93
      %p99 = scmp.eq.s32.totalorder %s16, 0
      %p100 = por %p98, %p99
      %p101 = scmp.ne.s32.totalorder %s90, %s93
      %p102 = scmp.eq.s32.totalorder %s21, 1
      %p103 = por %p101, %p102
      %p104 = scmp.ne.s32.totalorder %s93, %s94
      %p105 = scmp.eq.s32.totalorder %s21, 0
      %p106 = por %p104, %p105
      %p107 = scmp.ne.s32.totalorder %s93, %s94
      %p108 = scmp.eq.s32.totalorder %s22, 1
      %p109 = por %p107, %p108
      %p111 = scmp.ne.s32.totalorder %s94, %s110
      %p112 = scmp.eq.s32.totalorder %s22, 0
      %p113 = por %p111, %p112
      %s114 = ssub.s32 %s23, %s35
      %s115 = ssub.s32 %s24, %s31
      %s116 = sor.u32 %s114, %s115
      %p117 = scmp.eq.s32.totalorder %s116, 0
      %s119 = sadd.s32 %s118, 1
      %s120 = scalar_select %p117, %s118, %s119
      %p123 = pneg %p117
      %p124 = scmp.eq.s32.totalorder %s16, 1
      %p125 = por %p123, %p124
      %p126 = scmp.ne.s32.totalorder %s118, %s121
      %p127 = scmp.eq.s32.totalorder %s16, 0
      %p128 = por %p126, %p127
      %p129 = scmp.ne.s32.totalorder %s118, %s121
      %p130 = scmp.eq.s32.totalorder %s21, 1
      %p131 = por %p129, %p130
      %p132 = scmp.ne.s32.totalorder %s121, %s122
      %p133 = scmp.eq.s32.totalorder %s21, 0
      %p134 = por %p132, %p133
      %p135 = scmp.ne.s32.totalorder %s121, %s122
      %p136 = scmp.eq.s32.totalorder %s22, 1
      %p137 = por %p135, %p136
      %p139 = scmp.ne.s32.totalorder %s122, %s138
      %p140 = scmp.eq.s32.totalorder %s22, 0
      %p141 = por %p139, %p140
      %p142 = scmp.le.s32.totalorder 1, %s16
      %p143 = scmp.lt.s32.totalorder %s16, 3
      %p144 = pnand %p142, %p143
      %p145 = pneg %p144
      // Predicated region
      $region9: #{tpu_custom_call.1} parent=5 // pred_check
        _
      $region10: #{tpu_custom_call.1} parent=5 // pred_check_branch
        %147 = sbr.rel (%p144) target = $region12
      $region11: #{tpu_custom_call.1} parent=5 // pred_region
        %s148 = ssub.s32 %s16, 1
        // Predicated region
        $region13: #{tpu_custom_call.1} parent=11 // pred_check
          %p149 = pneg %p80
        $region14: #{tpu_custom_call.1} parent=11 // pred_check_branch
          %151 = sbr.rel (%p149) target = $region16
        $region15: #{tpu_custom_call.1} parent=11 // pred_region
          %s153 = ssub.s32 1024, 1024
          %154 = vsyncadd [#allocation8], %s153
          %s155 = smul.addr %s26, 8
          %s156 = smul.addr %s155, 128
          %s157 = scalar_lea.hbm %s1, %s156
          %s159 = sshll.u32 [#allocation7], 4
          %s160 = int_to_ptr.vmem [resolvable:$true] %s159
          %162 = dma.hbm_to_vmem [thread:$0]  %s157, 1024, %s160, [#allocation8]
        $region16: #{tpu_custom_call.1} parent=11 // pred_fallthru
          _
        // Predicated region
        $region17: #{tpu_custom_call.1} parent=11 // pred_check
          %p163 = pneg %p106
        $region18: #{tpu_custom_call.1} parent=11 // pred_check_branch
          %165 = sbr.rel (%p163) target = $region20
        $region19: #{tpu_custom_call.1} parent=11 // pred_region
          %p166 = scmp.lt.s32.totalorder %s26, 0
          %s167 = scalar_select %p166, %s26, 0
          %s168 = smul.addr %s167, 8
          %s169 = scalar_lea.vmem %s2, %s168
        $region20: #{tpu_custom_call.1} parent=11 // pred_fallthru
          _
      $region12: #{tpu_custom_call.1} parent=5 // pred_fallthru
        _
      %p170 = scmp.lt.s32.totalorder %s16, 2
      // Predicated region
      $region21: #{tpu_custom_call.1} parent=5 // pred_check
        %p171 = pneg %p170
      $region22: #{tpu_custom_call.1} parent=5 // pred_check_branch
        %173 = sbr.rel (%p171) target = $region24
      $region23: #{tpu_custom_call.1} parent=5 // pred_region
        // Predicated region
        $region25: #{tpu_custom_call.1} parent=23 // pred_check
          %p174 = pneg %p48
        $region26: #{tpu_custom_call.1} parent=23 // pred_check_branch
          %176 = sbr.rel (%p174) target = $region28
        $region27: #{tpu_custom_call.1} parent=23 // pred_region
          %s177 = sand.u32 %s38, 1
          %s178 = scalar_lea.sflag [#allocation5], %s177
          %s179 = sand.u32 %s38, 1
          %s180 = smul.addr %s179, 64
          %s181 = scalar_lea.vmem [#allocation4], %s180
          %s183 = ssub.s32 1024, 1024
          %184 = vsyncadd %s178, %s183
          %s185 = smul.addr %s23, 8
          %s186 = smul.addr %s185, 128
          %s187 = scalar_lea.hbm %s0, %s186
          %s188 = sshll.u32 %s181, 4
          %s189 = int_to_ptr.vmem [resolvable:$true] %s188
          %194 = dma.hbm_to_vmem [thread:$0]  %s187, 1024, %s189, %s178, 128, 128, 8
        $region28: #{tpu_custom_call.1} parent=23 // pred_fallthru
          _
      $region24: #{tpu_custom_call.1} parent=5 // pred_fallthru
        _
      %p195 = scmp.le.s32.totalorder 1, %s16
      %p196 = scmp.lt.s32.totalorder %s16, 3
      %p197 = pnand %p195, %p196
      %p198 = pneg %p197
      // Predicated region
      $region29: #{tpu_custom_call.1} parent=5 // pred_check
        _
      $region30: #{tpu_custom_call.1} parent=5 // pred_check_branch
        %200 = sbr.rel (%p197) target = $region32
      $region31: #{tpu_custom_call.1} parent=5 // pred_region
        %s201 = ssub.s32 %s16, 1
        %s202 = sand.u32 %s41, 1
        %s203 = scalar_lea.sflag [#allocation5], %s202
        %s204 = sand.u32 %s41, 1
        %s205 = smul.addr %s204, 64
        %s206 = scalar_lea.vmem [#allocation4], %s205
        // Predicated region
        $region33: #{tpu_custom_call.1} parent=31 // pred_check
          %p207 = pneg %p54
        $region34: #{tpu_custom_call.1} parent=31 // pred_check_branch
          %209 = sbr.rel (%p207) target = $region36
        $region35: #{tpu_custom_call.1} parent=31 // pred_region
          %210 = dma.done %s203, 1024
        $region36: #{tpu_custom_call.1} parent=31 // pred_fallthru
          _
        // Predicated region
        $region37: #{tpu_custom_call.1} parent=31 // pred_check
          %p211 = pneg %p80
        $region38: #{tpu_custom_call.1} parent=31 // pred_check_branch
          %213 = sbr.rel (%p211) target = $region40
        $region39: #{tpu_custom_call.1} parent=31 // pred_region
          %214 = dma.done [#allocation8], 1024
        $region40: #{tpu_custom_call.1} parent=31 // pred_fallthru
          _
        %s215 = sand.u32 %s41, 1
        %s216 = scalar_lea.sflag [#allocation5], %s215
        %s217 = sand.u32 %s41, 1
        %s218 = smul.addr %s217, 64
        %s219 = scalar_lea.vmem [#allocation4], %s218
        %p220 = pneg %p54
        %p221 = pneg %p51
        %p222 = pneg %p80
        %p223 = pneg %p77
        %p224 = scmp.lt.s32.totalorder %s26, 0
        %s225 = scalar_select %p224, %s26, 0
        %s226 = smul.addr %s225, 8
        %s227 = scalar_lea.vmem %s2, %s226
        %p228 = pneg %p106
        %p229 = pneg %p103
        %p230 = pneg %p134
        %p231 = pneg %p131
        %s232 = sand.u32 %s121, 1
        %s233 = scalar_lea.sflag [#allocation6], %s232
        %s234 = sand.u32 %s121, 1
        %s235 = smul.addr %s234, 128
        %s236 = scalar_lea.vmem [#allocation9], %s235
        %p237 = scmp.lt.s32.totalorder %s26, 0
        %s238 = scalar_select %p237, %s26, 0
        %s239 = smul.addr %s238, 8
        %s240 = scalar_lea.vmem %s2, %s239
        %s241 = smul.u32 8, %s26
        %p242 = scmp.eq.s32.totalorder %s26, 0
        // Predicated region
        $region41: #{tpu_custom_call.1} parent=31 // pred_check
          %p243 = pneg %p242
        $region42: #{tpu_custom_call.1} parent=31 // pred_check_branch
          %245 = sbr.rel (%p243) target = $region44
        $region43: #{tpu_custom_call.1} parent=31 // pred_region
          %246 = vst [vmem:[#allocation2] sm:$0xff] 0.0
          %247 = vst [vmem:[#allocation2 + $0x8] sm:$0xff] 0.0
          %248 = vst [vmem:[#allocation2 + $0x10] sm:$0xff] 0.0
          %249 = vst [vmem:[#allocation2 + $0x18] sm:$0xff] 0.0
          %250 = vst [vmem:[#allocation2 + $0x20] sm:$0xff] 0.0
          %vm251 = vcmask 375808
          %252 = vst.msk [vmem:[#allocation2 + $0x28] sm:$0xff] %vm251, 0.0
          %v253 = vld [vmem:[%s206] sm:$0x1]
          %v254 = vld [vmem:[%s206 + $0x10] sm:$0x1]
          %v255 = vld [vmem:[%s206 + $0x20] sm:$0x1]
          %v256 = vld [vmem:[%s206 + $0x30] sm:$0x1]
          %v261 = vrot.slane %v254, 7
          %vm262 = vcmask 1041409
          %v263 = vsel %vm262, %v261, %v253
          %v264 = vrot.slane %v255, 6
          %vm265 = vcmask 1042434
          %v266 = vsel %vm265, %v264, %v263
          %v267 = vrot.slane %v256, 5
          %vm268 = vcmask 1043459
          %v269 = vsel %vm268, %v267, %v266
          %270 = vrot.lane.b32.xlu0 %v269, 7
          %v271 = vpop.permute.xlu0 %270
          %vm273 = vcmask 183352
          %274 = vst.msk [vmem:[#allocation2 + $0x8] sm:$0xf] %vm273, %v271
          %v275 = vld [vmem:[%s206 + $0x1] sm:$0x1]
          %v276 = vld [vmem:[%s206 + $0x11] sm:$0x1]
          %v277 = vld [vmem:[%s206 + $0x21] sm:$0x1]
          %v278 = vld [vmem:[%s206 + $0x31] sm:$0x1]
          %v283 = vrot.slane %v276, 7
          %v284 = vsel %vm262, %v283, %v275
          %v285 = vrot.slane %v277, 6
          %v286 = vsel %vm265, %v285, %v284
          %v287 = vrot.slane %v278, 5
          %v288 = vsel %vm268, %v287, %v286
          %289 = vrot.lane.b32.xlu0 %v288, 33
          %v290 = vpop.permute.xlu0 %289
          %vm292 = vcmask 396552
          %293 = vst.msk [vmem:[#allocation2 + $0x8] sm:$0xf] %vm292, %v290
          %v294 = vld [vmem:[%s206 + $0x2] sm:$0x1]
          %v295 = vld [vmem:[%s206 + $0x12] sm:$0x1]
          %v296 = vld [vmem:[%s206 + $0x22] sm:$0x1]
          %v297 = vld [vmem:[%s206 + $0x32] sm:$0x1]
          %v302 = vrot.slane %v295, 7
          %v303 = vsel %vm262, %v302, %v294
          %v304 = vrot.slane %v296, 6
          %v305 = vsel %vm265, %v304, %v303
          %v306 = vrot.slane %v297, 5
          %v307 = vsel %vm268, %v306, %v305
          %308 = vrot.lane.b32.xlu0 %v307, 59
          %v309 = vpop.permute.xlu0 %308
          %vm311 = vcmask 609752
          %312 = vst.msk [vmem:[#allocation2 + $0x8] sm:$0xf] %vm311, %v309
          %v313 = vld [vmem:[%s206 + $0x3] sm:$0x1]
          %v314 = vld [vmem:[%s206 + $0x13] sm:$0x1]
          %v315 = vld [vmem:[%s206 + $0x23] sm:$0x1]
          %v316 = vld [vmem:[%s206 + $0x33] sm:$0x1]
          %v321 = vrot.slane %v314, 7
          %v322 = vsel %vm262, %v321, %v313
          %v323 = vrot.slane %v315, 6
          %v324 = vsel %vm265, %v323, %v322
          %v325 = vrot.slane %v316, 5
          %v326 = vsel %vm268, %v325, %v324
          %327 = vrot.lane.b32.xlu0 %v326, 85
          %v328 = vpop.permute.xlu0 %327
          %vm330 = vcmask 822952
          %331 = vst.msk [vmem:[#allocation2 + $0x8] sm:$0xf] %vm330, %v328
          %v332 = vld [vmem:[%s206 + $0x4] sm:$0x1]
          %v333 = vld [vmem:[%s206 + $0x14] sm:$0x1]
          %v334 = vld [vmem:[%s206 + $0x24] sm:$0x1]
          %v335 = vld [vmem:[%s206 + $0x34] sm:$0x1]
          %v340 = vrot.slane %v333, 7
          %v341 = vsel %vm262, %v340, %v332
          %v342 = vrot.slane %v334, 6
          %v343 = vsel %vm265, %v342, %v341
          %v344 = vrot.slane %v335, 5
          %v345 = vsel %vm268, %v344, %v343
          %346 = vrot.lane.b32.xlu0 %v345, 111
          %v347 = vpop.permute.xlu0 %346
          %vm349 = vcmask 1036152
          %350 = vst.msk [vmem:[#allocation2 + $0x8] sm:$0xf] %vm349, %v347
          %v351 = vld [vmem:[%s206 + $0x5] sm:$0x1]
          %v352 = vld [vmem:[%s206 + $0x15] sm:$0x1]
          %v353 = vld [vmem:[%s206 + $0x25] sm:$0x1]
          %v354 = vld [vmem:[%s206 + $0x35] sm:$0x1]
          %v359 = vrot.slane %v352, 7
          %v360 = vsel %vm262, %v359, %v351
          %v361 = vrot.slane %v353, 6
          %v362 = vsel %vm265, %v361, %v360
          %v363 = vrot.slane %v354, 5
          %v364 = vsel %vm268, %v363, %v362
          %365 = vrot.lane.b32.xlu0 %v364, 9
          %v366 = vpop.permute.xlu0 %365
          %vm368 = vcmask 199752
          %369 = vst.msk [vmem:[#allocation2 + $0x10] sm:$0xf] %vm368, %v366
          %v370 = vld [vmem:[%s206 + $0x6] sm:$0x1]
          %v371 = vld [vmem:[%s206 + $0x16] sm:$0x1]
          %v372 = vld [vmem:[%s206 + $0x26] sm:$0x1]
          %v373 = vld [vmem:[%s206 + $0x36] sm:$0x1]
          %v378 = vrot.slane %v371, 7
          %v379 = vsel %vm262, %v378, %v370
          %v380 = vrot.slane %v372, 6
          %v381 = vsel %vm265, %v380, %v379
          %v382 = vrot.slane %v373, 5
          %v383 = vsel %vm268, %v382, %v381
          %384 = vrot.lane.b32.xlu0 %v383, 35
          %v385 = vpop.permute.xlu0 %384
          %vm387 = vcmask 412952
          %388 = vst.msk [vmem:[#allocation2 + $0x10] sm:$0xf] %vm387, %v385
          %v389 = vld [vmem:[%s206 + $0x7] sm:$0x1]
          %v390 = vld [vmem:[%s206 + $0x17] sm:$0x1]
          %v391 = vld [vmem:[%s206 + $0x27] sm:$0x1]
          %v392 = vld [vmem:[%s206 + $0x37] sm:$0x1]
          %v397 = vrot.slane %v390, 7
          %v398 = vsel %vm262, %v397, %v389
          %v399 = vrot.slane %v391, 6
          %v400 = vsel %vm265, %v399, %v398
          %v401 = vrot.slane %v392, 5
          %v402 = vsel %vm268, %v401, %v400
          %403 = vrot.lane.b32.xlu0 %v402, 61
          %v404 = vpop.permute.xlu0 %403
          %vm406 = vcmask 626152
          %407 = vst.msk [vmem:[#allocation2 + $0x10] sm:$0xf] %vm406, %v404
          %v408 = vld [vmem:[%s206 + $0x8] sm:$0x1]
          %v409 = vld [vmem:[%s206 + $0x18] sm:$0x1]
          %v410 = vld [vmem:[%s206 + $0x28] sm:$0x1]
          %v411 = vld [vmem:[%s206 + $0x38] sm:$0x1]
          %v416 = vrot.slane %v409, 7
          %v417 = vsel %vm262, %v416, %v408
          %v418 = vrot.slane %v410, 6
          %v419 = vsel %vm265, %v418, %v417
          %v420 = vrot.slane %v411, 5
          %v421 = vsel %vm268, %v420, %v419
          %422 = vrot.lane.b32.xlu0 %v421, 87
          %v423 = vpop.permute.xlu0 %422
          %vm425 = vcmask 839352
          %426 = vst.msk [vmem:[#allocation2 + $0x10] sm:$0xf] %vm425, %v423
          %v427 = vld [vmem:[%s206 + $0x9] sm:$0x1]
          %v428 = vld [vmem:[%s206 + $0x19] sm:$0x1]
          %v429 = vld [vmem:[%s206 + $0x29] sm:$0x1]
          %v430 = vld [vmem:[%s206 + $0x39] sm:$0x1]
          %v435 = vrot.slane %v428, 7
          %v436 = vsel %vm262, %v435, %v427
          %v437 = vrot.slane %v429, 6
          %v438 = vsel %vm265, %v437, %v436
          %v439 = vrot.slane %v430, 5
          %v440 = vsel %vm268, %v439, %v438
          %441 = vrot.lane.b32.xlu0 %v440, 113
          %v442 = vpop.permute.xlu0 %441
          %vm444 = vcmask 1044360
          %445 = vst.msk [vmem:[#allocation2 + $0x10] sm:$0xf] %vm444, %v442
          %vm446 = vcmask 3072
          %447 = vst.msk [vmem:[#allocation2 + $0x18] sm:$0xf] %vm446, %v442
          %v448 = vld [vmem:[%s206 + $0xa] sm:$0x1]
          %v449 = vld [vmem:[%s206 + $0x1a] sm:$0x1]
          %v450 = vld [vmem:[%s206 + $0x2a] sm:$0x1]
          %v451 = vld [vmem:[%s206 + $0x3a] sm:$0x1]
          %v456 = vrot.slane %v449, 7
          %v457 = vsel %vm262, %v456, %v448
          %v458 = vrot.slane %v450, 6
          %v459 = vsel %vm265, %v458, %v457
          %v460 = vrot.slane %v451, 5
          %v461 = vsel %vm268, %v460, %v459
          %462 = vrot.lane.b32.xlu0 %v461, 11
          %v463 = vpop.permute.xlu0 %462
          %vm465 = vcmask 216152
          %466 = vst.msk [vmem:[#allocation2 + $0x18] sm:$0xf] %vm465, %v463
          %v467 = vld [vmem:[%s206 + $0xb] sm:$0x1]
          %v468 = vld [vmem:[%s206 + $0x1b] sm:$0x1]
          %v469 = vld [vmem:[%s206 + $0x2b] sm:$0x1]
          %v470 = vld [vmem:[%s206 + $0x3b] sm:$0x1]
          %v475 = vrot.slane %v468, 7
          %v476 = vsel %vm262, %v475, %v467
          %v477 = vrot.slane %v469, 6
          %v478 = vsel %vm265, %v477, %v476
          %v479 = vrot.slane %v470, 5
          %v480 = vsel %vm268, %v479, %v478
          %481 = vrot.lane.b32.xlu0 %v480, 37
          %v482 = vpop.permute.xlu0 %481
          %vm484 = vcmask 429352
          %485 = vst.msk [vmem:[#allocation2 + $0x18] sm:$0xf] %vm484, %v482
          %v486 = vld [vmem:[%s206 + $0xc] sm:$0x1]
          %v487 = vld [vmem:[%s206 + $0x1c] sm:$0x1]
          %v488 = vld [vmem:[%s206 + $0x2c] sm:$0x1]
          %v489 = vld [vmem:[%s206 + $0x3c] sm:$0x1]
          %v494 = vrot.slane %v487, 7
          %v495 = vsel %vm262, %v494, %v486
          %v496 = vrot.slane %v488, 6
          %v497 = vsel %vm265, %v496, %v495
          %v498 = vrot.slane %v489, 5
          %v499 = vsel %vm268, %v498, %v497
          %500 = vrot.lane.b32.xlu0 %v499, 63
          %v501 = vpop.permute.xlu0 %500
          %vm503 = vcmask 642552
          %504 = vst.msk [vmem:[#allocation2 + $0x18] sm:$0xf] %vm503, %v501
          %v505 = vld [vmem:[%s206 + $0xd] sm:$0x1]
          %v506 = vld [vmem:[%s206 + $0x1d] sm:$0x1]
          %v507 = vld [vmem:[%s206 + $0x2d] sm:$0x1]
          %v508 = vld [vmem:[%s206 + $0x3d] sm:$0x1]
          %v513 = vrot.slane %v506, 7
          %v514 = vsel %vm262, %v513, %v505
          %v515 = vrot.slane %v507, 6
          %v516 = vsel %vm265, %v515, %v514
          %v517 = vrot.slane %v508, 5
          %v518 = vsel %vm268, %v517, %v516
          %519 = vrot.lane.b32.xlu0 %v518, 89
          %v520 = vpop.permute.xlu0 %519
          %vm522 = vcmask 855752
          %523 = vst.msk [vmem:[#allocation2 + $0x18] sm:$0xf] %vm522, %v520
          %v524 = vld [vmem:[%s206 + $0xe] sm:$0x1]
          %v525 = vld [vmem:[%s206 + $0x1e] sm:$0x1]
          %v526 = vld [vmem:[%s206 + $0x2e] sm:$0x1]
          %v527 = vld [vmem:[%s206 + $0x3e] sm:$0x1]
          %v532 = vrot.slane %v525, 7
          %v533 = vsel %vm262, %v532, %v524
          %v534 = vrot.slane %v526, 6
          %v535 = vsel %vm265, %v534, %v533
          %v536 = vrot.slane %v527, 5
          %v537 = vsel %vm268, %v536, %v535
          %538 = vrot.lane.b32.xlu0 %v537, 115
          %v539 = vpop.permute.xlu0 %538
          %vm541 = vcmask 1044376
          %542 = vst.msk [vmem:[#allocation2 + $0x18] sm:$0xf] %vm541, %v539
          %vm543 = vcmask 19456
          %544 = vst.msk [vmem:[#allocation2 + $0x20] sm:$0xf] %vm543, %v539
          %v545 = vld [vmem:[%s206 + $0xf] sm:$0x1]
          %v546 = vld [vmem:[%s206 + $0x1f] sm:$0x1]
          %v547 = vld [vmem:[%s206 + $0x2f] sm:$0x1]
          %v548 = vld [vmem:[%s206 + $0x3f] sm:$0x1]
          %v553 = vrot.slane %v546, 7
          %v554 = vsel %vm262, %v553, %v545
          %v555 = vrot.slane %v547, 6
          %v556 = vsel %vm265, %v555, %v554
          %v557 = vrot.slane %v548, 5
          %v558 = vsel %vm268, %v557, %v556
          %559 = vrot.lane.b32.xlu0 %v558, 13
          %v560 = vpop.permute.xlu0 %559
          %vm562 = vcmask 232552
          %563 = vst.msk [vmem:[#allocation2 + $0x20] sm:$0xf] %vm562, %v560
          %v564 = vld [vmem:[#allocation2] sm:$0xff]
          %v565 = vld [vmem:[#allocation2 + $0x8] sm:$0xff]
          %v566 = vld [vmem:[#allocation2 + $0x10] sm:$0xff]
          %v567 = vld [vmem:[#allocation2 + $0x18] sm:$0xff]
          %568 = vst [vmem:[#allocation3] sm:$0xff] %v564
          %569 = vst [vmem:[#allocation3 + $0x8] sm:$0xff] %v565
          %570 = vst [vmem:[#allocation3 + $0x10] sm:$0xff] %v566
          %vm571 = vcmask 261120
          %572 = vst.msk [vmem:[#allocation3 + $0x18] sm:$0xff] %vm571, %v567
          %v573 = vld [vmem:[#allocation2] sm:$0xff]
          %v574 = vld [vmem:[#allocation2 + $0x8] sm:$0xff]
          %v575 = vld [vmem:[#allocation2 + $0x10] sm:$0xff]
          %v576 = vld [vmem:[#allocation2 + $0x18] sm:$0xff]
          %581 = vrot.lane.b32.xlu0 %v573, 127
          %v582 = vpop.permute.xlu0 %581
          %583 = vrot.lane.b32.xlu0 %v574, 127
          %v584 = vpop.permute.xlu0 %583
          %585 = vrot.lane.b32.xlu0 %v575, 127
          %v586 = vpop.permute.xlu0 %585
          %587 = vrot.lane.b32.xlu0 %v576, 127
          %v588 = vpop.permute.xlu0 %587
          %vm589 = vcmask 1039360
          %v590 = vsel %vm589, %v582, %v584
          %v591 = vsel %vm589, %v584, %v586
          %v592 = vsel %vm589, %v586, %v588
          %597 = vst [vmem:[#allocation3 + $0x20] sm:$0xff] %v590
          %598 = vst [vmem:[#allocation3 + $0x28] sm:$0xff] %v591
          %599 = vst [vmem:[#allocation3 + $0x30] sm:$0xff] %v592
          %600 = vst.msk [vmem:[#allocation3 + $0x38] sm:$0xff] %vm571, %v588
          %v601 = vld [vmem:[#allocation2] sm:$0xff]
          %v602 = vld [vmem:[#allocation2 + $0x8] sm:$0xff]
          %v603 = vld [vmem:[#allocation2 + $0x10] sm:$0xff]
          %v604 = vld [vmem:[#allocation2 + $0x18] sm:$0xff]
          %609 = vrot.lane.b32.xlu0 %v601, 126
          %v610 = vpop.permute.xlu0 %609
          %611 = vrot.lane.b32.xlu0 %v602, 126
          %v612 = vpop.permute.xlu0 %611
          %613 = vrot.lane.b32.xlu0 %v603, 126
          %v614 = vpop.permute.xlu0 %613
          %615 = vrot.lane.b32.xlu0 %v604, 126
          %v616 = vpop.permute.xlu0 %615
          %vm617 = vcmask 1031168
          %v618 = vsel %vm617, %v610, %v612
          %v619 = vsel %vm617, %v612, %v614
          %v620 = vsel %vm617, %v614, %v616
          %625 = vst [vmem:[#allocation3 + $0x40] sm:$0xff] %v618
          %626 = vst [vmem:[#allocation3 + $0x48] sm:$0xff] %v619
          %627 = vst [vmem:[#allocation3 + $0x50] sm:$0xff] %v620
          %628 = vst.msk [vmem:[#allocation3 + $0x58] sm:$0xff] %vm571, %v616
          %v629 = vld [vmem:[#allocation2] sm:$0xff]
          %v630 = vld [vmem:[#allocation2 + $0x8] sm:$0xff]
          %v631 = vld [vmem:[#allocation2 + $0x10] sm:$0xff]
          %v632 = vld [vmem:[#allocation2 + $0x18] sm:$0xff]
          %637 = vrot.lane.b32.xlu0 %v629, 125
          %v638 = vpop.permute.xlu0 %637
          %639 = vrot.lane.b32.xlu0 %v630, 125
          %v640 = vpop.permute.xlu0 %639
          %641 = vrot.lane.b32.xlu0 %v631, 125
          %v642 = vpop.permute.xlu0 %641
          %643 = vrot.lane.b32.xlu0 %v632, 125
          %v644 = vpop.permute.xlu0 %643
          %vm645 = vcmask 1022976
          %v646 = vsel %vm645, %v638, %v640
          %v647 = vsel %vm645, %v640, %v642
          %v648 = vsel %vm645, %v642, %v644
          %653 = vst [vmem:[#allocation3 + $0x60] sm:$0xff] %v646
          %654 = vst [vmem:[#allocation3 + $0x68] sm:$0xff] %v647
          %655 = vst [vmem:[#allocation3 + $0x70] sm:$0xff] %v648
          %656 = vst.msk [vmem:[#allocation3 + $0x78] sm:$0xff] %vm571, %v644
          %v657 = vld [vmem:[#allocation2] sm:$0xff]
          %v658 = vld [vmem:[#allocation2 + $0x8] sm:$0xff]
          %v659 = vld [vmem:[#allocation2 + $0x10] sm:$0xff]
          %v660 = vld [vmem:[#allocation2 + $0x18] sm:$0xff]
          %665 = vrot.lane.b32.xlu0 %v657, 124
          %v666 = vpop.permute.xlu0 %665
          %667 = vrot.lane.b32.xlu0 %v658, 124
          %v668 = vpop.permute.xlu0 %667
          %669 = vrot.lane.b32.xlu0 %v659, 124
          %v670 = vpop.permute.xlu0 %669
          %671 = vrot.lane.b32.xlu0 %v660, 124
          %v672 = vpop.permute.xlu0 %671
          %vm673 = vcmask 1014784
          %v674 = vsel %vm673, %v666, %v668
          %v675 = vsel %vm673, %v668, %v670
          %v676 = vsel %vm673, %v670, %v672
          %681 = vst [vmem:[#allocation3 + $0x80] sm:$0xff] %v674
          %682 = vst [vmem:[#allocation3 + $0x88] sm:$0xff] %v675
          %683 = vst [vmem:[#allocation3 + $0x90] sm:$0xff] %v676
          %684 = vst.msk [vmem:[#allocation3 + $0x98] sm:$0xff] %vm571, %v672
          %v685 = vld [vmem:[#allocation2] sm:$0xff]
          %v686 = vld [vmem:[#allocation2 + $0x8] sm:$0xff]
          %v687 = vld [vmem:[#allocation2 + $0x10] sm:$0xff]
          %v688 = vld [vmem:[#allocation2 + $0x18] sm:$0xff]
          %693 = vrot.lane.b32.xlu0 %v685, 123
          %v694 = vpop.permute.xlu0 %693
          %695 = vrot.lane.b32.xlu0 %v686, 123
          %v696 = vpop.permute.xlu0 %695
          %697 = vrot.lane.b32.xlu0 %v687, 123
          %v698 = vpop.permute.xlu0 %697
          %699 = vrot.lane.b32.xlu0 %v688, 123
          %v700 = vpop.permute.xlu0 %699
          %vm701 = vcmask 1006592
          %v702 = vsel %vm701, %v694, %v696
          %v703 = vsel %vm701, %v696, %v698
          %v704 = vsel %vm701, %v698, %v700
          %709 = vst [vmem:[#allocation3 + $0xa0] sm:$0xff] %v702
          %710 = vst [vmem:[#allocation3 + $0xa8] sm:$0xff] %v703
          %711 = vst [vmem:[#allocation3 + $0xb0] sm:$0xff] %v704
          %712 = vst.msk [vmem:[#allocation3 + $0xb8] sm:$0xff] %vm571, %v700
          %v713 = vld [vmem:[#allocation2] sm:$0xff]
          %v714 = vld [vmem:[#allocation2 + $0x8] sm:$0xff]
          %v715 = vld [vmem:[#allocation2 + $0x10] sm:$0xff]
          %v716 = vld [vmem:[#allocation2 + $0x18] sm:$0xff]
          %721 = vrot.lane.b32.xlu0 %v713, 122
          %v722 = vpop.permute.xlu0 %721
          %723 = vrot.lane.b32.xlu0 %v714, 122
          %v724 = vpop.permute.xlu0 %723
          %725 = vrot.lane.b32.xlu0 %v715, 122
          %v726 = vpop.permute.xlu0 %725
          %727 = vrot.lane.b32.xlu0 %v716, 122
          %v728 = vpop.permute.xlu0 %727
          %vm729 = vcmask 998400
          %v730 = vsel %vm729, %v722, %v724
          %v731 = vsel %vm729, %v724, %v726
          %v732 = vsel %vm729, %v726, %v728
          %737 = vst [vmem:[#allocation3 + $0xc0] sm:$0xff] %v730
          %738 = vst [vmem:[#allocation3 + $0xc8] sm:$0xff] %v731
          %739 = vst [vmem:[#allocation3 + $0xd0] sm:$0xff] %v732
          %740 = vst.msk [vmem:[#allocation3 + $0xd8] sm:$0xff] %vm571, %v728
          %v741 = vld [vmem:[#allocation2] sm:$0xff]
          %v742 = vld [vmem:[#allocation2 + $0x8] sm:$0xff]
          %v743 = vld [vmem:[#allocation2 + $0x10] sm:$0xff]
          %v744 = vld [vmem:[#allocation2 + $0x18] sm:$0xff]
          %749 = vrot.lane.b32.xlu0 %v741, 121
          %v750 = vpop.permute.xlu0 %749
          %751 = vrot.lane.b32.xlu0 %v742, 121
          %v752 = vpop.permute.xlu0 %751
          %753 = vrot.lane.b32.xlu0 %v743, 121
          %v754 = vpop.permute.xlu0 %753
          %755 = vrot.lane.b32.xlu0 %v744, 121
          %v756 = vpop.permute.xlu0 %755
          %vm757 = vcmask 990208
          %v758 = vsel %vm757, %v750, %v752
          %v759 = vsel %vm757, %v752, %v754
          %v760 = vsel %vm757, %v754, %v756
          %765 = vst [vmem:[#allocation3 + $0xe0] sm:$0xff] %v758
          %766 = vst [vmem:[#allocation3 + $0xe8] sm:$0xff] %v759
          %767 = vst [vmem:[#allocation3 + $0xf0] sm:$0xff] %v760
          %768 = vst.msk [vmem:[#allocation3 + $0xf8] sm:$0xff] %vm571, %v756
          %v769 = vld [vmem:[#allocation2] sm:$0xff]
          %v770 = vld [vmem:[#allocation2 + $0x8] sm:$0xff]
          %v771 = vld [vmem:[#allocation2 + $0x10] sm:$0xff]
          %v772 = vld [vmem:[#allocation2 + $0x18] sm:$0xff]
          %777 = vrot.lane.b32.xlu0 %v769, 120
          %v778 = vpop.permute.xlu0 %777
          %779 = vrot.lane.b32.xlu0 %v770, 120
          %v780 = vpop.permute.xlu0 %779
          %781 = vrot.lane.b32.xlu0 %v771, 120
          %v782 = vpop.permute.xlu0 %781
          %783 = vrot.lane.b32.xlu0 %v772, 120
          %v784 = vpop.permute.xlu0 %783
          %vm785 = vcmask 982016
          %v786 = vsel %vm785, %v778, %v780
          %v787 = vsel %vm785, %v780, %v782
          %v788 = vsel %vm785, %v782, %v784
          %793 = vst [vmem:[#allocation3 + $0x100] sm:$0xff] %v786
          %794 = vst [vmem:[#allocation3 + $0x108] sm:$0xff] %v787
          %795 = vst [vmem:[#allocation3 + $0x110] sm:$0xff] %v788
          %796 = vst.msk [vmem:[#allocation3 + $0x118] sm:$0xff] %vm571, %v784
          %v797 = vld [vmem:[#allocation2] sm:$0xff]
          %v798 = vld [vmem:[#allocation2 + $0x8] sm:$0xff]
          %v799 = vld [vmem:[#allocation2 + $0x10] sm:$0xff]
          %v800 = vld [vmem:[#allocation2 + $0x18] sm:$0xff]
          %805 = vrot.lane.b32.xlu0 %v797, 119
          %v806 = vpop.permute.xlu0 %805
          %807 = vrot.lane.b32.xlu0 %v798, 119
          %v808 = vpop.permute.xlu0 %807
          %809 = vrot.lane.b32.xlu0 %v799, 119
          %v810 = vpop.permute.xlu0 %809
          %811 = vrot.lane.b32.xlu0 %v800, 119
          %v812 = vpop.permute.xlu0 %811
          %vm813 = vcmask 973824
          %v814 = vsel %vm813, %v806, %v808
          %v815 = vsel %vm813, %v808, %v810
          %v816 = vsel %vm813, %v810, %v812
          %821 = vst [vmem:[#allocation3 + $0x120] sm:$0xff] %v814
          %822 = vst [vmem:[#allocation3 + $0x128] sm:$0xff] %v815
          %823 = vst [vmem:[#allocation3 + $0x130] sm:$0xff] %v816
          %824 = vst.msk [vmem:[#allocation3 + $0x138] sm:$0xff] %vm571, %v812
          %v825 = vld [vmem:[#allocation2] sm:$0xff]
          %v826 = vld [vmem:[#allocation2 + $0x8] sm:$0xff]
          %v827 = vld [vmem:[#allocation2 + $0x10] sm:$0xff]
          %v828 = vld [vmem:[#allocation2 + $0x18] sm:$0xff]
          %833 = vrot.lane.b32.xlu0 %v825, 118
          %v834 = vpop.permute.xlu0 %833
          %835 = vrot.lane.b32.xlu0 %v826, 118
          %v836 = vpop.permute.xlu0 %835
          %837 = vrot.lane.b32.xlu0 %v827, 118
          %v838 = vpop.permute.xlu0 %837
          %839 = vrot.lane.b32.xlu0 %v828, 118
          %v840 = vpop.permute.xlu0 %839
          %vm841 = vcmask 965632
          %v842 = vsel %vm841, %v834, %v836
          %v843 = vsel %vm841, %v836, %v838
          %v844 = vsel %vm841, %v838, %v840
          %849 = vst [vmem:[#allocation3 + $0x140] sm:$0xff] %v842
          %850 = vst [vmem:[#allocation3 + $0x148] sm:$0xff] %v843
          %851 = vst [vmem:[#allocation3 + $0x150] sm:$0xff] %v844
          %852 = vst.msk [vmem:[#allocation3 + $0x158] sm:$0xff] %vm571, %v840
          %v853 = vld [vmem:[#allocation2] sm:$0xff]
          %v854 = vld [vmem:[#allocation2 + $0x8] sm:$0xff]
          %v855 = vld [vmem:[#allocation2 + $0x10] sm:$0xff]
          %v856 = vld [vmem:[#allocation2 + $0x18] sm:$0xff]
          %861 = vrot.lane.b32.xlu0 %v853, 102
          %v862 = vpop.permute.xlu0 %861
          %863 = vrot.lane.b32.xlu0 %v854, 102
          %v864 = vpop.permute.xlu0 %863
          %865 = vrot.lane.b32.xlu0 %v855, 102
          %v866 = vpop.permute.xlu0 %865
          %867 = vrot.lane.b32.xlu0 %v856, 102
          %v868 = vpop.permute.xlu0 %867
          %vm869 = vcmask 834560
          %v870 = vsel %vm869, %v862, %v864
          %v871 = vsel %vm869, %v864, %v866
          %v872 = vsel %vm869, %v866, %v868
          %877 = vst [vmem:[#allocation3 + $0x160] sm:$0xff] %v870
          %878 = vst [vmem:[#allocation3 + $0x168] sm:$0xff] %v871
          %879 = vst [vmem:[#allocation3 + $0x170] sm:$0xff] %v872
          %880 = vst.msk [vmem:[#allocation3 + $0x178] sm:$0xff] %vm571, %v868
          %v881 = vld [vmem:[#allocation2] sm:$0xff]
          %v882 = vld [vmem:[#allocation2 + $0x8] sm:$0xff]
          %v883 = vld [vmem:[#allocation2 + $0x10] sm:$0xff]
          %v884 = vld [vmem:[#allocation2 + $0x18] sm:$0xff]
          %889 = vrot.lane.b32.xlu0 %v881, 101
          %v890 = vpop.permute.xlu0 %889
          %891 = vrot.lane.b32.xlu0 %v882, 101
          %v892 = vpop.permute.xlu0 %891
          %893 = vrot.lane.b32.xlu0 %v883, 101
          %v894 = vpop.permute.xlu0 %893
          %895 = vrot.lane.b32.xlu0 %v884, 101
          %v896 = vpop.permute.xlu0 %895
          %vm897 = vcmask 826368
          %v898 = vsel %vm897, %v890, %v892
          %v899 = vsel %vm897, %v892, %v894
          %v900 = vsel %vm897, %v894, %v896
          %905 = vst [vmem:[#allocation3 + $0x180] sm:$0xff] %v898
          %906 = vst [vmem:[#allocation3 + $0x188] sm:$0xff] %v899
          %907 = vst [vmem:[#allocation3 + $0x190] sm:$0xff] %v900
          %908 = vst.msk [vmem:[#allocation3 + $0x198] sm:$0xff] %vm571, %v896
          %v909 = vld [vmem:[#allocation2] sm:$0xff]
          %v910 = vld [vmem:[#allocation2 + $0x8] sm:$0xff]
          %v911 = vld [vmem:[#allocation2 + $0x10] sm:$0xff]
          %v912 = vld [vmem:[#allocation2 + $0x18] sm:$0xff]
          %917 = vrot.lane.b32.xlu0 %v909, 100
          %v918 = vpop.permute.xlu0 %917
          %919 = vrot.lane.b32.xlu0 %v910, 100
          %v920 = vpop.permute.xlu0 %919
          %921 = vrot.lane.b32.xlu0 %v911, 100
          %v922 = vpop.permute.xlu0 %921
          %923 = vrot.lane.b32.xlu0 %v912, 100
          %v924 = vpop.permute.xlu0 %923
          %vm925 = vcmask 818176
          %v926 = vsel %vm925, %v918, %v920
          %v927 = vsel %vm925, %v920, %v922
          %v928 = vsel %vm925, %v922, %v924
          %933 = vst [vmem:[#allocation3 + $0x1a0] sm:$0xff] %v926
          %934 = vst [vmem:[#allocation3 + $0x1a8] sm:$0xff] %v927
          %935 = vst [vmem:[#allocation3 + $0x1b0] sm:$0xff] %v928
          %936 = vst.msk [vmem:[#allocation3 + $0x1b8] sm:$0xff] %vm571, %v924
          %v937 = vld [vmem:[#allocation2] sm:$0xff]
          %v938 = vld [vmem:[#allocation2 + $0x8] sm:$0xff]
          %v939 = vld [vmem:[#allocation2 + $0x10] sm:$0xff]
          %v940 = vld [vmem:[#allocation2 + $0x18] sm:$0xff]
          %945 = vrot.lane.b32.xlu0 %v937, 99
          %v946 = vpop.permute.xlu0 %945
          %947 = vrot.lane.b32.xlu0 %v938, 99
          %v948 = vpop.permute.xlu0 %947
          %949 = vrot.lane.b32.xlu0 %v939, 99
          %v950 = vpop.permute.xlu0 %949
          %951 = vrot.lane.b32.xlu0 %v940, 99
          %v952 = vpop.permute.xlu0 %951
          %vm953 = vcmask 809984
          %v954 = vsel %vm953, %v946, %v948
          %v955 = vsel %vm953, %v948, %v950
          %v956 = vsel %vm953, %v950, %v952
          %961 = vst [vmem:[#allocation3 + $0x1c0] sm:$0xff] %v954
          %962 = vst [vmem:[#allocation3 + $0x1c8] sm:$0xff] %v955
          %963 = vst [vmem:[#allocation3 + $0x1d0] sm:$0xff] %v956
          %964 = vst.msk [vmem:[#allocation3 + $0x1d8] sm:$0xff] %vm571, %v952
          %v965 = vld [vmem:[#allocation2] sm:$0xff]
          %v966 = vld [vmem:[#allocation2 + $0x8] sm:$0xff]
          %v967 = vld [vmem:[#allocation2 + $0x10] sm:$0xff]
          %v968 = vld [vmem:[#allocation2 + $0x18] sm:$0xff]
          %973 = vrot.lane.b32.xlu0 %v965, 98
          %v974 = vpop.permute.xlu0 %973
          %975 = vrot.lane.b32.xlu0 %v966, 98
          %v976 = vpop.permute.xlu0 %975
          %977 = vrot.lane.b32.xlu0 %v967, 98
          %v978 = vpop.permute.xlu0 %977
          %979 = vrot.lane.b32.xlu0 %v968, 98
          %v980 = vpop.permute.xlu0 %979
          %vm981 = vcmask 801792
          %v982 = vsel %vm981, %v974, %v976
          %v983 = vsel %vm981, %v976, %v978
          %v984 = vsel %vm981, %v978, %v980
          %989 = vst [vmem:[#allocation3 + $0x1e0] sm:$0xff] %v982
          %990 = vst [vmem:[#allocation3 + $0x1e8] sm:$0xff] %v983
          %991 = vst [vmem:[#allocation3 + $0x1f0] sm:$0xff] %v984
          %992 = vst.msk [vmem:[#allocation3 + $0x1f8] sm:$0xff] %vm571, %v980
          %v993 = vld [vmem:[#allocation2] sm:$0xff]
          %v994 = vld [vmem:[#allocation2 + $0x8] sm:$0xff]
          %v995 = vld [vmem:[#allocation2 + $0x10] sm:$0xff]
          %v996 = vld [vmem:[#allocation2 + $0x18] sm:$0xff]
          %1001 = vrot.lane.b32.xlu0 %v993, 97
          %v1002 = vpop.permute.xlu0 %1001
          %1003 = vrot.lane.b32.xlu0 %v994, 97
          %v1004 = vpop.permute.xlu0 %1003
          %1005 = vrot.lane.b32.xlu0 %v995, 97
          %v1006 = vpop.permute.xlu0 %1005
          %1007 = vrot.lane.b32.xlu0 %v996, 97
          %v1008 = vpop.permute.xlu0 %1007
          %vm1009 = vcmask 793600
          %v1010 = vsel %vm1009, %v1002, %v1004
          %v1011 = vsel %vm1009, %v1004, %v1006
          %v1012 = vsel %vm1009, %v1006, %v1008
          %1017 = vst [vmem:[#allocation3 + $0x200] sm:$0xff] %v1010
          %1018 = vst [vmem:[#allocation3 + $0x208] sm:$0xff] %v1011
          %1019 = vst [vmem:[#allocation3 + $0x210] sm:$0xff] %v1012
          %1020 = vst.msk [vmem:[#allocation3 + $0x218] sm:$0xff] %vm571, %v1008
          %v1021 = vld [vmem:[#allocation2] sm:$0xff]
          %v1022 = vld [vmem:[#allocation2 + $0x8] sm:$0xff]
          %v1023 = vld [vmem:[#allocation2 + $0x10] sm:$0xff]
          %v1024 = vld [vmem:[#allocation2 + $0x18] sm:$0xff]
          %1029 = vrot.lane.b32.xlu0 %v1021, 96
          %v1030 = vpop.permute.xlu0 %1029
          %1031 = vrot.lane.b32.xlu0 %v1022, 96
          %v1032 = vpop.permute.xlu0 %1031
          %1033 = vrot.lane.b32.xlu0 %v1023, 96
          %v1034 = vpop.permute.xlu0 %1033
          %1035 = vrot.lane.b32.xlu0 %v1024, 96
          %v1036 = vpop.permute.xlu0 %1035
          %vm1037 = vcmask 785408
          %v1038 = vsel %vm1037, %v1030, %v1032
          %v1039 = vsel %vm1037, %v1032, %v1034
          %v1040 = vsel %vm1037, %v1034, %v1036
          %1045 = vst [vmem:[#allocation3 + $0x220] sm:$0xff] %v1038
          %1046 = vst [vmem:[#allocation3 + $0x228] sm:$0xff] %v1039
          %1047 = vst [vmem:[#allocation3 + $0x230] sm:$0xff] %v1040
          %1048 = vst.msk [vmem:[#allocation3 + $0x238] sm:$0xff] %vm571, %v1036
          %v1049 = vld [vmem:[#allocation2] sm:$0xff]
          %v1050 = vld [vmem:[#allocation2 + $0x8] sm:$0xff]
          %v1051 = vld [vmem:[#allocation2 + $0x10] sm:$0xff]
          %v1052 = vld [vmem:[#allocation2 + $0x18] sm:$0xff]
          %1057 = vrot.lane.b32.xlu0 %v1049, 95
          %v1058 = vpop.permute.xlu0 %1057
          %1059 = vrot.lane.b32.xlu0 %v1050, 95
          %v1060 = vpop.permute.xlu0 %1059
          %1061 = vrot.lane.b32.xlu0 %v1051, 95
          %v1062 = vpop.permute.xlu0 %1061
          %1063 = vrot.lane.b32.xlu0 %v1052, 95
          %v1064 = vpop.permute.xlu0 %1063
          %vm1065 = vcmask 777216
          %v1066 = vsel %vm1065, %v1058, %v1060
          %v1067 = vsel %vm1065, %v1060, %v1062
          %v1068 = vsel %vm1065, %v1062, %v1064
          %1073 = vst [vmem:[#allocation3 + $0x240] sm:$0xff] %v1066
          %1074 = vst [vmem:[#allocation3 + $0x248] sm:$0xff] %v1067
          %1075 = vst [vmem:[#allocation3 + $0x250] sm:$0xff] %v1068
          %1076 = vst.msk [vmem:[#allocation3 + $0x258] sm:$0xff] %vm571, %v1064
          %v1077 = vld [vmem:[#allocation2] sm:$0xff]
          %v1078 = vld [vmem:[#allocation2 + $0x8] sm:$0xff]
          %v1079 = vld [vmem:[#allocation2 + $0x10] sm:$0xff]
          %v1080 = vld [vmem:[#allocation2 + $0x18] sm:$0xff]
          %1085 = vrot.lane.b32.xlu0 %v1077, 94
          %v1086 = vpop.permute.xlu0 %1085
          %1087 = vrot.lane.b32.xlu0 %v1078, 94
          %v1088 = vpop.permute.xlu0 %1087
          %1089 = vrot.lane.b32.xlu0 %v1079, 94
          %v1090 = vpop.permute.xlu0 %1089
          %1091 = vrot.lane.b32.xlu0 %v1080, 94
          %v1092 = vpop.permute.xlu0 %1091
          %vm1093 = vcmask 769024
          %v1094 = vsel %vm1093, %v1086, %v1088
          %v1095 = vsel %vm1093, %v1088, %v1090
          %v1096 = vsel %vm1093, %v1090, %v1092
          %1101 = vst [vmem:[#allocation3 + $0x260] sm:$0xff] %v1094
          %1102 = vst [vmem:[#allocation3 + $0x268] sm:$0xff] %v1095
          %1103 = vst [vmem:[#allocation3 + $0x270] sm:$0xff] %v1096
          %1104 = vst.msk [vmem:[#allocation3 + $0x278] sm:$0xff] %vm571, %v1092
          %v1105 = vld [vmem:[#allocation2] sm:$0xff]
          %v1106 = vld [vmem:[#allocation2 + $0x8] sm:$0xff]
          %v1107 = vld [vmem:[#allocation2 + $0x10] sm:$0xff]
          %v1108 = vld [vmem:[#allocation2 + $0x18] sm:$0xff]
          %1113 = vrot.lane.b32.xlu0 %v1105, 93
          %v1114 = vpop.permute.xlu0 %1113
          %1115 = vrot.lane.b32.xlu0 %v1106, 93
          %v1116 = vpop.permute.xlu0 %1115
          %1117 = vrot.lane.b32.xlu0 %v1107, 93
          %v1118 = vpop.permute.xlu0 %1117
          %1119 = vrot.lane.b32.xlu0 %v1108, 93
          %v1120 = vpop.permute.xlu0 %1119
          %vm1121 = vcmask 760832
          %v1122 = vsel %vm1121, %v1114, %v1116
          %v1123 = vsel %vm1121, %v1116, %v1118
          %v1124 = vsel %vm1121, %v1118, %v1120
          %1129 = vst [vmem:[#allocation3 + $0x280] sm:$0xff] %v1122
          %1130 = vst [vmem:[#allocation3 + $0x288] sm:$0xff] %v1123
          %1131 = vst [vmem:[#allocation3 + $0x290] sm:$0xff] %v1124
          %1132 = vst.msk [vmem:[#allocation3 + $0x298] sm:$0xff] %vm571, %v1120
          %v1133 = vld [vmem:[#allocation2] sm:$0xff]
          %v1134 = vld [vmem:[#allocation2 + $0x8] sm:$0xff]
          %v1135 = vld [vmem:[#allocation2 + $0x10] sm:$0xff]
          %v1136 = vld [vmem:[#allocation2 + $0x18] sm:$0xff]
          %1141 = vrot.lane.b32.xlu0 %v1133, 92
          %v1142 = vpop.permute.xlu0 %1141
          %1143 = vrot.lane.b32.xlu0 %v1134, 92
          %v1144 = vpop.permute.xlu0 %1143
          %1145 = vrot.lane.b32.xlu0 %v1135, 92
          %v1146 = vpop.permute.xlu0 %1145
          %1147 = vrot.lane.b32.xlu0 %v1136, 92
          %v1148 = vpop.permute.xlu0 %1147
          %vm1149 = vcmask 752640
          %v1150 = vsel %vm1149, %v1142, %v1144
          %v1151 = vsel %vm1149, %v1144, %v1146
          %v1152 = vsel %vm1149, %v1146, %v1148
          %1157 = vst [vmem:[#allocation3 + $0x2a0] sm:$0xff] %v1150
          %1158 = vst [vmem:[#allocation3 + $0x2a8] sm:$0xff] %v1151
          %1159 = vst [vmem:[#allocation3 + $0x2b0] sm:$0xff] %v1152
          %1160 = vst.msk [vmem:[#allocation3 + $0x2b8] sm:$0xff] %vm571, %v1148
          %v1161 = vld [vmem:[#allocation2] sm:$0xff]
          %v1162 = vld [vmem:[#allocation2 + $0x8] sm:$0xff]
          %v1163 = vld [vmem:[#allocation2 + $0x10] sm:$0xff]
          %v1164 = vld [vmem:[#allocation2 + $0x18] sm:$0xff]
          %1169 = vrot.lane.b32.xlu0 %v1161, 76
          %v1170 = vpop.permute.xlu0 %1169
          %1171 = vrot.lane.b32.xlu0 %v1162, 76
          %v1172 = vpop.permute.xlu0 %1171
          %1173 = vrot.lane.b32.xlu0 %v1163, 76
          %v1174 = vpop.permute.xlu0 %1173
          %1175 = vrot.lane.b32.xlu0 %v1164, 76
          %v1176 = vpop.permute.xlu0 %1175
          %vm1177 = vcmask 621568
          %v1178 = vsel %vm1177, %v1170, %v1172
          %v1179 = vsel %vm1177, %v1172, %v1174
          %v1180 = vsel %vm1177, %v1174, %v1176
          %1185 = vst [vmem:[#allocation3 + $0x2c0] sm:$0xff] %v1178
          %1186 = vst [vmem:[#allocation3 + $0x2c8] sm:$0xff] %v1179
          %1187 = vst [vmem:[#allocation3 + $0x2d0] sm:$0xff] %v1180
          %1188 = vst.msk [vmem:[#allocation3 + $0x2d8] sm:$0xff] %vm571, %v1176
          %v1189 = vld [vmem:[#allocation2] sm:$0xff]
          %v1190 = vld [vmem:[#allocation2 + $0x8] sm:$0xff]
          %v1191 = vld [vmem:[#allocation2 + $0x10] sm:$0xff]
          %v1192 = vld [vmem:[#allocation2 + $0x18] sm:$0xff]
          %1197 = vrot.lane.b32.xlu0 %v1189, 75
          %v1198 = vpop.permute.xlu0 %1197
          %1199 = vrot.lane.b32.xlu0 %v1190, 75
          %v1200 = vpop.permute.xlu0 %1199
          %1201 = vrot.lane.b32.xlu0 %v1191, 75
          %v1202 = vpop.permute.xlu0 %1201
          %1203 = vrot.lane.b32.xlu0 %v1192, 75
          %v1204 = vpop.permute.xlu0 %1203
          %vm1205 = vcmask 613376
          %v1206 = vsel %vm1205, %v1198, %v1200
          %v1207 = vsel %vm1205, %v1200, %v1202
          %v1208 = vsel %vm1205, %v1202, %v1204
          %1213 = vst [vmem:[#allocation3 + $0x2e0] sm:$0xff] %v1206
          %1214 = vst [vmem:[#allocation3 + $0x2e8] sm:$0xff] %v1207
          %1215 = vst [vmem:[#allocation3 + $0x2f0] sm:$0xff] %v1208
          %1216 = vst.msk [vmem:[#allocation3 + $0x2f8] sm:$0xff] %vm571, %v1204
          %v1217 = vld [vmem:[#allocation2] sm:$0xff]
          %v1218 = vld [vmem:[#allocation2 + $0x8] sm:$0xff]
          %v1219 = vld [vmem:[#allocation2 + $0x10] sm:$0xff]
          %v1220 = vld [vmem:[#allocation2 + $0x18] sm:$0xff]
          %1225 = vrot.lane.b32.xlu0 %v1217, 74
          %v1226 = vpop.permute.xlu0 %1225
          %1227 = vrot.lane.b32.xlu0 %v1218, 74
          %v1228 = vpop.permute.xlu0 %1227
          %1229 = vrot.lane.b32.xlu0 %v1219, 74
          %v1230 = vpop.permute.xlu0 %1229
          %1231 = vrot.lane.b32.xlu0 %v1220, 74
          %v1232 = vpop.permute.xlu0 %1231
          %vm1233 = vcmask 605184
          %v1234 = vsel %vm1233, %v1226, %v1228
          %v1235 = vsel %vm1233, %v1228, %v1230
          %v1236 = vsel %vm1233, %v1230, %v1232
          %1241 = vst [vmem:[#allocation3 + $0x300] sm:$0xff] %v1234
          %1242 = vst [vmem:[#allocation3 + $0x308] sm:$0xff] %v1235
          %1243 = vst [vmem:[#allocation3 + $0x310] sm:$0xff] %v1236
          %1244 = vst.msk [vmem:[#allocation3 + $0x318] sm:$0xff] %vm571, %v1232
          %v1245 = vld [vmem:[#allocation2] sm:$0xff]
          %v1246 = vld [vmem:[#allocation2 + $0x8] sm:$0xff]
          %v1247 = vld [vmem:[#allocation2 + $0x10] sm:$0xff]
          %v1248 = vld [vmem:[#allocation2 + $0x18] sm:$0xff]
          %1253 = vrot.lane.b32.xlu0 %v1245, 73
          %v1254 = vpop.permute.xlu0 %1253
          %1255 = vrot.lane.b32.xlu0 %v1246, 73
          %v1256 = vpop.permute.xlu0 %1255
          %1257 = vrot.lane.b32.xlu0 %v1247, 73
          %v1258 = vpop.permute.xlu0 %1257
          %1259 = vrot.lane.b32.xlu0 %v1248, 73
          %v1260 = vpop.permute.xlu0 %1259
          %vm1261 = vcmask 596992
          %v1262 = vsel %vm1261, %v1254, %v1256
          %v1263 = vsel %vm1261, %v1256, %v1258
          %v1264 = vsel %vm1261, %v1258, %v1260
          %1269 = vst [vmem:[#allocation3 + $0x320] sm:$0xff] %v1262
          %1270 = vst [vmem:[#allocation3 + $0x328] sm:$0xff] %v1263
          %1271 = vst [vmem:[#allocation3 + $0x330] sm:$0xff] %v1264
          %1272 = vst.msk [vmem:[#allocation3 + $0x338] sm:$0xff] %vm571, %v1260
          %v1273 = vld [vmem:[#allocation2] sm:$0xff]
          %v1274 = vld [vmem:[#allocation2 + $0x8] sm:$0xff]
          %v1275 = vld [vmem:[#allocation2 + $0x10] sm:$0xff]
          %v1276 = vld [vmem:[#allocation2 + $0x18] sm:$0xff]
          %1281 = vrot.lane.b32.xlu0 %v1273, 72
          %v1282 = vpop.permute.xlu0 %1281
          %1283 = vrot.lane.b32.xlu0 %v1274, 72
          %v1284 = vpop.permute.xlu0 %1283
          %1285 = vrot.lane.b32.xlu0 %v1275, 72
          %v1286 = vpop.permute.xlu0 %1285
          %1287 = vrot.lane.b32.xlu0 %v1276, 72
          %v1288 = vpop.permute.xlu0 %1287
          %vm1289 = vcmask 588800
          %v1290 = vsel %vm1289, %v1282, %v1284
          %v1291 = vsel %vm1289, %v1284, %v1286
          %v1292 = vsel %vm1289, %v1286, %v1288
          %1297 = vst [vmem:[#allocation3 + $0x340] sm:$0xff] %v1290
          %1298 = vst [vmem:[#allocation3 + $0x348] sm:$0xff] %v1291
          %1299 = vst [vmem:[#allocation3 + $0x350] sm:$0xff] %v1292
          %1300 = vst.msk [vmem:[#allocation3 + $0x358] sm:$0xff] %vm571, %v1288
          %v1301 = vld [vmem:[#allocation2] sm:$0xff]
          %v1302 = vld [vmem:[#allocation2 + $0x8] sm:$0xff]
          %v1303 = vld [vmem:[#allocation2 + $0x10] sm:$0xff]
          %v1304 = vld [vmem:[#allocation2 + $0x18] sm:$0xff]
          %1309 = vrot.lane.b32.xlu0 %v1301, 71
          %v1310 = vpop.permute.xlu0 %1309
          %1311 = vrot.lane.b32.xlu0 %v1302, 71
          %v1312 = vpop.permute.xlu0 %1311
          %1313 = vrot.lane.b32.xlu0 %v1303, 71
          %v1314 = vpop.permute.xlu0 %1313
          %1315 = vrot.lane.b32.xlu0 %v1304, 71
          %v1316 = vpop.permute.xlu0 %1315
          %vm1317 = vcmask 580608
          %v1318 = vsel %vm1317, %v1310, %v1312
          %v1319 = vsel %vm1317, %v1312, %v1314
          %v1320 = vsel %vm1317, %v1314, %v1316
          %1325 = vst [vmem:[#allocation3 + $0x360] sm:$0xff] %v1318
          %1326 = vst [vmem:[#allocation3 + $0x368] sm:$0xff] %v1319
          %1327 = vst [vmem:[#allocation3 + $0x370] sm:$0xff] %v1320
          %1328 = vst.msk [vmem:[#allocation3 + $0x378] sm:$0xff] %vm571, %v1316
          %v1329 = vld [vmem:[#allocation2] sm:$0xff]
          %v1330 = vld [vmem:[#allocation2 + $0x8] sm:$0xff]
          %v1331 = vld [vmem:[#allocation2 + $0x10] sm:$0xff]
          %v1332 = vld [vmem:[#allocation2 + $0x18] sm:$0xff]
          %1337 = vrot.lane.b32.xlu0 %v1329, 70
          %v1338 = vpop.permute.xlu0 %1337
          %1339 = vrot.lane.b32.xlu0 %v1330, 70
          %v1340 = vpop.permute.xlu0 %1339
          %1341 = vrot.lane.b32.xlu0 %v1331, 70
          %v1342 = vpop.permute.xlu0 %1341
          %1343 = vrot.lane.b32.xlu0 %v1332, 70
          %v1344 = vpop.permute.xlu0 %1343
          %vm1345 = vcmask 572416
          %v1346 = vsel %vm1345, %v1338, %v1340
          %v1347 = vsel %vm1345, %v1340, %v1342
          %v1348 = vsel %vm1345, %v1342, %v1344
          %1353 = vst [vmem:[#allocation3 + $0x380] sm:$0xff] %v1346
          %1354 = vst [vmem:[#allocation3 + $0x388] sm:$0xff] %v1347
          %1355 = vst [vmem:[#allocation3 + $0x390] sm:$0xff] %v1348
          %1356 = vst.msk [vmem:[#allocation3 + $0x398] sm:$0xff] %vm571, %v1344
          %v1357 = vld [vmem:[#allocation2] sm:$0xff]
          %v1358 = vld [vmem:[#allocation2 + $0x8] sm:$0xff]
          %v1359 = vld [vmem:[#allocation2 + $0x10] sm:$0xff]
          %v1360 = vld [vmem:[#allocation2 + $0x18] sm:$0xff]
          %1365 = vrot.lane.b32.xlu0 %v1357, 69
          %v1366 = vpop.permute.xlu0 %1365
          %1367 = vrot.lane.b32.xlu0 %v1358, 69
          %v1368 = vpop.permute.xlu0 %1367
          %1369 = vrot.lane.b32.xlu0 %v1359, 69
          %v1370 = vpop.permute.xlu0 %1369
          %1371 = vrot.lane.b32.xlu0 %v1360, 69
          %v1372 = vpop.permute.xlu0 %1371
          %vm1373 = vcmask 564224
          %v1374 = vsel %vm1373, %v1366, %v1368
          %v1375 = vsel %vm1373, %v1368, %v1370
          %v1376 = vsel %vm1373, %v1370, %v1372
          %1381 = vst [vmem:[#allocation3 + $0x3a0] sm:$0xff] %v1374
          %1382 = vst [vmem:[#allocation3 + $0x3a8] sm:$0xff] %v1375
          %1383 = vst [vmem:[#allocation3 + $0x3b0] sm:$0xff] %v1376
          %1384 = vst.msk [vmem:[#allocation3 + $0x3b8] sm:$0xff] %vm571, %v1372
          %v1385 = vld [vmem:[#allocation2] sm:$0xff]
          %v1386 = vld [vmem:[#allocation2 + $0x8] sm:$0xff]
          %v1387 = vld [vmem:[#allocation2 + $0x10] sm:$0xff]
          %v1388 = vld [vmem:[#allocation2 + $0x18] sm:$0xff]
          %1393 = vrot.lane.b32.xlu0 %v1385, 68
          %v1394 = vpop.permute.xlu0 %1393
          %1395 = vrot.lane.b32.xlu0 %v1386, 68
          %v1396 = vpop.permute.xlu0 %1395
          %1397 = vrot.lane.b32.xlu0 %v1387, 68
          %v1398 = vpop.permute.xlu0 %1397
          %1399 = vrot.lane.b32.xlu0 %v1388, 68
          %v1400 = vpop.permute.xlu0 %1399
          %vm1401 = vcmask 556032
          %v1402 = vsel %vm1401, %v1394, %v1396
          %v1403 = vsel %vm1401, %v1396, %v1398
          %v1404 = vsel %vm1401, %v1398, %v1400
          %1409 = vst [vmem:[#allocation3 + $0x3c0] sm:$0xff] %v1402
          %1410 = vst [vmem:[#allocation3 + $0x3c8] sm:$0xff] %v1403
          %1411 = vst [vmem:[#allocation3 + $0x3d0] sm:$0xff] %v1404
          %1412 = vst.msk [vmem:[#allocation3 + $0x3d8] sm:$0xff] %vm571, %v1400
          %v1413 = vld [vmem:[#allocation2] sm:$0xff]
          %v1414 = vld [vmem:[#allocation2 + $0x8] sm:$0xff]
          %v1415 = vld [vmem:[#allocation2 + $0x10] sm:$0xff]
          %v1416 = vld [vmem:[#allocation2 + $0x18] sm:$0xff]
          %1421 = vrot.lane.b32.xlu0 %v1413, 67
          %v1422 = vpop.permute.xlu0 %1421
          %1423 = vrot.lane.b32.xlu0 %v1414, 67
          %v1424 = vpop.permute.xlu0 %1423
          %1425 = vrot.lane.b32.xlu0 %v1415, 67
          %v1426 = vpop.permute.xlu0 %1425
          %1427 = vrot.lane.b32.xlu0 %v1416, 67
          %v1428 = vpop.permute.xlu0 %1427
          %vm1429 = vcmask 547840
          %v1430 = vsel %vm1429, %v1422, %v1424
          %v1431 = vsel %vm1429, %v1424, %v1426
          %v1432 = vsel %vm1429, %v1426, %v1428
          %1437 = vst [vmem:[#allocation3 + $0x3e0] sm:$0xff] %v1430
          %1438 = vst [vmem:[#allocation3 + $0x3e8] sm:$0xff] %v1431
          %1439 = vst [vmem:[#allocation3 + $0x3f0] sm:$0xff] %v1432
          %1440 = vst.msk [vmem:[#allocation3 + $0x3f8] sm:$0xff] %vm571, %v1428
          %v1441 = vld [vmem:[#allocation2] sm:$0xff]
          %v1442 = vld [vmem:[#allocation2 + $0x8] sm:$0xff]
          %v1443 = vld [vmem:[#allocation2 + $0x10] sm:$0xff]
          %v1444 = vld [vmem:[#allocation2 + $0x18] sm:$0xff]
          %1449 = vrot.lane.b32.xlu0 %v1441, 66
          %v1450 = vpop.permute.xlu0 %1449
          %1451 = vrot.lane.b32.xlu0 %v1442, 66
          %v1452 = vpop.permute.xlu0 %1451
          %1453 = vrot.lane.b32.xlu0 %v1443, 66
          %v1454 = vpop.permute.xlu0 %1453
          %1455 = vrot.lane.b32.xlu0 %v1444, 66
          %v1456 = vpop.permute.xlu0 %1455
          %vm1457 = vcmask 539648
          %v1458 = vsel %vm1457, %v1450, %v1452
          %v1459 = vsel %vm1457, %v1452, %v1454
          %v1460 = vsel %vm1457, %v1454, %v1456
          %1465 = vst [vmem:[#allocation3 + $0x400] sm:$0xff] %v1458
          %1466 = vst [vmem:[#allocation3 + $0x408] sm:$0xff] %v1459
          %1467 = vst [vmem:[#allocation3 + $0x410] sm:$0xff] %v1460
          %1468 = vst.msk [vmem:[#allocation3 + $0x418] sm:$0xff] %vm571, %v1456
          %v1469 = vld [vmem:[#allocation2] sm:$0xff]
          %v1470 = vld [vmem:[#allocation2 + $0x8] sm:$0xff]
          %v1471 = vld [vmem:[#allocation2 + $0x10] sm:$0xff]
          %v1472 = vld [vmem:[#allocation2 + $0x18] sm:$0xff]
          %1477 = vrot.lane.b32.xlu0 %v1469, 50
          %v1478 = vpop.permute.xlu0 %1477
          %1479 = vrot.lane.b32.xlu0 %v1470, 50
          %v1480 = vpop.permute.xlu0 %1479
          %1481 = vrot.lane.b32.xlu0 %v1471, 50
          %v1482 = vpop.permute.xlu0 %1481
          %1483 = vrot.lane.b32.xlu0 %v1472, 50
          %v1484 = vpop.permute.xlu0 %1483
          %vm1485 = vcmask 408576
          %v1486 = vsel %vm1485, %v1478, %v1480
          %v1487 = vsel %vm1485, %v1480, %v1482
          %v1488 = vsel %vm1485, %v1482, %v1484
          %1493 = vst [vmem:[#allocation3 + $0x420] sm:$0xff] %v1486
          %1494 = vst [vmem:[#allocation3 + $0x428] sm:$0xff] %v1487
          %1495 = vst [vmem:[#allocation3 + $0x430] sm:$0xff] %v1488
          %1496 = vst.msk [vmem:[#allocation3 + $0x438] sm:$0xff] %vm571, %v1484
          %v1497 = vld [vmem:[#allocation2] sm:$0xff]
          %v1498 = vld [vmem:[#allocation2 + $0x8] sm:$0xff]
          %v1499 = vld [vmem:[#allocation2 + $0x10] sm:$0xff]
          %v1500 = vld [vmem:[#allocation2 + $0x18] sm:$0xff]
          %1505 = vrot.lane.b32.xlu0 %v1497, 49
          %v1506 = vpop.permute.xlu0 %1505
          %1507 = vrot.lane.b32.xlu0 %v1498, 49
          %v1508 = vpop.permute.xlu0 %1507
          %1509 = vrot.lane.b32.xlu0 %v1499, 49
          %v1510 = vpop.permute.xlu0 %1509
          %1511 = vrot.lane.b32.xlu0 %v1500, 49
          %v1512 = vpop.permute.xlu0 %1511
          %vm1513 = vcmask 400384
          %v1514 = vsel %vm1513, %v1506, %v1508
          %v1515 = vsel %vm1513, %v1508, %v1510
          %v1516 = vsel %vm1513, %v1510, %v1512
          %1521 = vst [vmem:[#allocation3 + $0x440] sm:$0xff] %v1514
          %1522 = vst [vmem:[#allocation3 + $0x448] sm:$0xff] %v1515
          %1523 = vst [vmem:[#allocation3 + $0x450] sm:$0xff] %v1516
          %1524 = vst.msk [vmem:[#allocation3 + $0x458] sm:$0xff] %vm571, %v1512
          %v1525 = vld [vmem:[#allocation2] sm:$0xff]
          %v1526 = vld [vmem:[#allocation2 + $0x8] sm:$0xff]
          %v1527 = vld [vmem:[#allocation2 + $0x10] sm:$0xff]
          %v1528 = vld [vmem:[#allocation2 + $0x18] sm:$0xff]
          %1533 = vrot.lane.b32.xlu0 %v1525, 48
          %v1534 = vpop.permute.xlu0 %1533
          %1535 = vrot.lane.b32.xlu0 %v1526, 48
          %v1536 = vpop.permute.xlu0 %1535
          %1537 = vrot.lane.b32.xlu0 %v1527, 48
          %v1538 = vpop.permute.xlu0 %1537
          %1539 = vrot.lane.b32.xlu0 %v1528, 48
          %v1540 = vpop.permute.xlu0 %1539
          %vm1541 = vcmask 392192
          %v1542 = vsel %vm1541, %v1534, %v1536
          %v1543 = vsel %vm1541, %v1536, %v1538
          %v1544 = vsel %vm1541, %v1538, %v1540
          %1549 = vst [vmem:[#allocation3 + $0x460] sm:$0xff] %v1542
          %1550 = vst [vmem:[#allocation3 + $0x468] sm:$0xff] %v1543
          %1551 = vst [vmem:[#allocation3 + $0x470] sm:$0xff] %v1544
          %1552 = vst.msk [vmem:[#allocation3 + $0x478] sm:$0xff] %vm571, %v1540
          %v1553 = vld [vmem:[#allocation2] sm:$0xff]
          %v1554 = vld [vmem:[#allocation2 + $0x8] sm:$0xff]
          %v1555 = vld [vmem:[#allocation2 + $0x10] sm:$0xff]
          %v1556 = vld [vmem:[#allocation2 + $0x18] sm:$0xff]
          %1561 = vrot.lane.b32.xlu0 %v1553, 47
          %v1562 = vpop.permute.xlu0 %1561
          %1563 = vrot.lane.b32.xlu0 %v1554, 47
          %v1564 = vpop.permute.xlu0 %1563
          %1565 = vrot.lane.b32.xlu0 %v1555, 47
          %v1566 = vpop.permute.xlu0 %1565
          %1567 = vrot.lane.b32.xlu0 %v1556, 47
          %v1568 = vpop.permute.xlu0 %1567
          %vm1569 = vcmask 384000
          %v1570 = vsel %vm1569, %v1562, %v1564
          %v1571 = vsel %vm1569, %v1564, %v1566
          %v1572 = vsel %vm1569, %v1566, %v1568
          %1577 = vst [vmem:[#allocation3 + $0x480] sm:$0xff] %v1570
          %1578 = vst [vmem:[#allocation3 + $0x488] sm:$0xff] %v1571
          %1579 = vst [vmem:[#allocation3 + $0x490] sm:$0xff] %v1572
          %1580 = vst.msk [vmem:[#allocation3 + $0x498] sm:$0xff] %vm571, %v1568
          %v1581 = vld [vmem:[#allocation2] sm:$0xff]
          %v1582 = vld [vmem:[#allocation2 + $0x8] sm:$0xff]
          %v1583 = vld [vmem:[#allocation2 + $0x10] sm:$0xff]
          %v1584 = vld [vmem:[#allocation2 + $0x18] sm:$0xff]
          %1589 = vrot.lane.b32.xlu0 %v1581, 46
          %v1590 = vpop.permute.xlu0 %1589
          %1591 = vrot.lane.b32.xlu0 %v1582, 46
          %v1592 = vpop.permute.xlu0 %1591
          %1593 = vrot.lane.b32.xlu0 %v1583, 46
          %v1594 = vpop.permute.xlu0 %1593
          %1595 = vrot.lane.b32.xlu0 %v1584, 46
          %v1596 = vpop.permute.xlu0 %1595
          %v1597 = vsel %vm251, %v1590, %v1592
          %v1598 = vsel %vm251, %v1592, %v1594
          %v1599 = vsel %vm251, %v1594, %v1596
          %1604 = vst [vmem:[#allocation3 + $0x4a0] sm:$0xff] %v1597
          %1605 = vst [vmem:[#allocation3 + $0x4a8] sm:$0xff] %v1598
          %1606 = vst [vmem:[#allocation3 + $0x4b0] sm:$0xff] %v1599
          %1607 = vst.msk [vmem:[#allocation3 + $0x4b8] sm:$0xff] %vm571, %v1596
          %v1608 = vld [vmem:[#allocation2] sm:$0xff]
          %v1609 = vld [vmem:[#allocation2 + $0x8] sm:$0xff]
          %v1610 = vld [vmem:[#allocation2 + $0x10] sm:$0xff]
          %v1611 = vld [vmem:[#allocation2 + $0x18] sm:$0xff]
          %1616 = vrot.lane.b32.xlu0 %v1608, 45
          %v1617 = vpop.permute.xlu0 %1616
          %1618 = vrot.lane.b32.xlu0 %v1609, 45
          %v1619 = vpop.permute.xlu0 %1618
          %1620 = vrot.lane.b32.xlu0 %v1610, 45
          %v1621 = vpop.permute.xlu0 %1620
          %1622 = vrot.lane.b32.xlu0 %v1611, 45
          %v1623 = vpop.permute.xlu0 %1622
          %vm1624 = vcmask 367616
          %v1625 = vsel %vm1624, %v1617, %v1619
          %v1626 = vsel %vm1624, %v1619, %v1621
          %v1627 = vsel %vm1624, %v1621, %v1623
          %1632 = vst [vmem:[#allocation3 + $0x4c0] sm:$0xff] %v1625
          %1633 = vst [vmem:[#allocation3 + $0x4c8] sm:$0xff] %v1626
          %1634 = vst [vmem:[#allocation3 + $0x4d0] sm:$0xff] %v1627
          %1635 = vst.msk [vmem:[#allocation3 + $0x4d8] sm:$0xff] %vm571, %v1623
          %v1636 = vld [vmem:[#allocation2] sm:$0xff]
          %v1637 = vld [vmem:[#allocation2 + $0x8] sm:$0xff]
          %v1638 = vld [vmem:[#allocation2 + $0x10] sm:$0xff]
          %v1639 = vld [vmem:[#allocation2 + $0x18] sm:$0xff]
          %1644 = vrot.lane.b32.xlu0 %v1636, 44
          %v1645 = vpop.permute.xlu0 %1644
          %1646 = vrot.lane.b32.xlu0 %v1637, 44
          %v1647 = vpop.permute.xlu0 %1646
          %1648 = vrot.lane.b32.xlu0 %v1638, 44
          %v1649 = vpop.permute.xlu0 %1648
          %1650 = vrot.lane.b32.xlu0 %v1639, 44
          %v1651 = vpop.permute.xlu0 %1650
          %vm1652 = vcmask 359424
          %v1653 = vsel %vm1652, %v1645, %v1647
          %v1654 = vsel %vm1652, %v1647, %v1649
          %v1655 = vsel %vm1652, %v1649, %v1651
          %1660 = vst [vmem:[#allocation3 + $0x4e0] sm:$0xff] %v1653
          %1661 = vst [vmem:[#allocation3 + $0x4e8] sm:$0xff] %v1654
          %1662 = vst [vmem:[#allocation3 + $0x4f0] sm:$0xff] %v1655
          %1663 = vst.msk [vmem:[#allocation3 + $0x4f8] sm:$0xff] %vm571, %v1651
          %v1664 = vld [vmem:[#allocation2] sm:$0xff]
          %v1665 = vld [vmem:[#allocation2 + $0x8] sm:$0xff]
          %v1666 = vld [vmem:[#allocation2 + $0x10] sm:$0xff]
          %v1667 = vld [vmem:[#allocation2 + $0x18] sm:$0xff]
          %1672 = vrot.lane.b32.xlu0 %v1664, 43
          %v1673 = vpop.permute.xlu0 %1672
          %1674 = vrot.lane.b32.xlu0 %v1665, 43
          %v1675 = vpop.permute.xlu0 %1674
          %1676 = vrot.lane.b32.xlu0 %v1666, 43
          %v1677 = vpop.permute.xlu0 %1676
          %1678 = vrot.lane.b32.xlu0 %v1667, 43
          %v1679 = vpop.permute.xlu0 %1678
          %vm1680 = vcmask 351232
          %v1681 = vsel %vm1680, %v1673, %v1675
          %v1682 = vsel %vm1680, %v1675, %v1677
          %v1683 = vsel %vm1680, %v1677, %v1679
          %1688 = vst [vmem:[#allocation3 + $0x500] sm:$0xff] %v1681
          %1689 = vst [vmem:[#allocation3 + $0x508] sm:$0xff] %v1682
          %1690 = vst [vmem:[#allocation3 + $0x510] sm:$0xff] %v1683
          %1691 = vst.msk [vmem:[#allocation3 + $0x518] sm:$0xff] %vm571, %v1679
          %v1692 = vld [vmem:[#allocation2] sm:$0xff]
          %v1693 = vld [vmem:[#allocation2 + $0x8] sm:$0xff]
          %v1694 = vld [vmem:[#allocation2 + $0x10] sm:$0xff]
          %v1695 = vld [vmem:[#allocation2 + $0x18] sm:$0xff]
          %1700 = vrot.lane.b32.xlu0 %v1692, 42
          %v1701 = vpop.permute.xlu0 %1700
          %1702 = vrot.lane.b32.xlu0 %v1693, 42
          %v1703 = vpop.permute.xlu0 %1702
          %1704 = vrot.lane.b32.xlu0 %v1694, 42
          %v1705 = vpop.permute.xlu0 %1704
          %1706 = vrot.lane.b32.xlu0 %v1695, 42
          %v1707 = vpop.permute.xlu0 %1706
          %vm1708 = vcmask 343040
          %v1709 = vsel %vm1708, %v1701, %v1703
          %v1710 = vsel %vm1708, %v1703, %v1705
          %v1711 = vsel %vm1708, %v1705, %v1707
          %1716 = vst [vmem:[#allocation3 + $0x520] sm:$0xff] %v1709
          %1717 = vst [vmem:[#allocation3 + $0x528] sm:$0xff] %v1710
          %1718 = vst [vmem:[#allocation3 + $0x530] sm:$0xff] %v1711
          %1719 = vst.msk [vmem:[#allocation3 + $0x538] sm:$0xff] %vm571, %v1707
          %v1720 = vld [vmem:[#allocation2] sm:$0xff]
          %v1721 = vld [vmem:[#allocation2 + $0x8] sm:$0xff]
          %v1722 = vld [vmem:[#allocation2 + $0x10] sm:$0xff]
          %v1723 = vld [vmem:[#allocation2 + $0x18] sm:$0xff]
          %1728 = vrot.lane.b32.xlu0 %v1720, 41
          %v1729 = vpop.permute.xlu0 %1728
          %1730 = vrot.lane.b32.xlu0 %v1721, 41
          %v1731 = vpop.permute.xlu0 %1730
          %1732 = vrot.lane.b32.xlu0 %v1722, 41
          %v1733 = vpop.permute.xlu0 %1732
          %1734 = vrot.lane.b32.xlu0 %v1723, 41
          %v1735 = vpop.permute.xlu0 %1734
          %vm1736 = vcmask 334848
          %v1737 = vsel %vm1736, %v1729, %v1731
          %v1738 = vsel %vm1736, %v1731, %v1733
          %v1739 = vsel %vm1736, %v1733, %v1735
          %1744 = vst [vmem:[#allocation3 + $0x540] sm:$0xff] %v1737
          %1745 = vst [vmem:[#allocation3 + $0x548] sm:$0xff] %v1738
          %1746 = vst [vmem:[#allocation3 + $0x550] sm:$0xff] %v1739
          %1747 = vst.msk [vmem:[#allocation3 + $0x558] sm:$0xff] %vm571, %v1735
          %v1748 = vld [vmem:[#allocation2] sm:$0xff]
          %v1749 = vld [vmem:[#allocation2 + $0x8] sm:$0xff]
          %v1750 = vld [vmem:[#allocation2 + $0x10] sm:$0xff]
          %v1751 = vld [vmem:[#allocation2 + $0x18] sm:$0xff]
          %1756 = vrot.lane.b32.xlu0 %v1748, 40
          %v1757 = vpop.permute.xlu0 %1756
          %1758 = vrot.lane.b32.xlu0 %v1749, 40
          %v1759 = vpop.permute.xlu0 %1758
          %1760 = vrot.lane.b32.xlu0 %v1750, 40
          %v1761 = vpop.permute.xlu0 %1760
          %1762 = vrot.lane.b32.xlu0 %v1751, 40
          %v1763 = vpop.permute.xlu0 %1762
          %vm1764 = vcmask 326656
          %v1765 = vsel %vm1764, %v1757, %v1759
          %v1766 = vsel %vm1764, %v1759, %v1761
          %v1767 = vsel %vm1764, %v1761, %v1763
          %1772 = vst [vmem:[#allocation3 + $0x560] sm:$0xff] %v1765
          %1773 = vst [vmem:[#allocation3 + $0x568] sm:$0xff] %v1766
          %1774 = vst [vmem:[#allocation3 + $0x570] sm:$0xff] %v1767
          %1775 = vst.msk [vmem:[#allocation3 + $0x578] sm:$0xff] %vm571, %v1763
          %v1776 = vld [vmem:[#allocation2] sm:$0xff]
          %v1777 = vld [vmem:[#allocation2 + $0x8] sm:$0xff]
          %v1778 = vld [vmem:[#allocation2 + $0x10] sm:$0xff]
          %v1779 = vld [vmem:[#allocation2 + $0x18] sm:$0xff]
          %v1780 = vld [vmem:[#allocation2 + $0x20] sm:$0xff]
          %1786 = vrot.lane.b32.xlu0 %v1776, 24
          %v1787 = vpop.permute.xlu0 %1786
          %1788 = vrot.lane.b32.xlu0 %v1777, 24
          %v1789 = vpop.permute.xlu0 %1788
          %1790 = vrot.lane.b32.xlu0 %v1778, 24
          %v1791 = vpop.permute.xlu0 %1790
          %1792 = vrot.lane.b32.xlu0 %v1779, 24
          %v1793 = vpop.permute.xlu0 %1792
          %1794 = vrot.lane.b32.xlu0 %v1780, 24
          %v1795 = vpop.permute.xlu0 %1794
          %vm1796 = vcmask 195584
          %v1797 = vsel %vm1796, %v1787, %v1789
          %v1798 = vsel %vm1796, %v1789, %v1791
          %v1799 = vsel %vm1796, %v1791, %v1793
          %v1800 = vsel %vm1796, %v1793, %v1795
          %1805 = vst [vmem:[#allocation3 + $0x580] sm:$0xff] %v1797
          %1806 = vst [vmem:[#allocation3 + $0x588] sm:$0xff] %v1798
          %1807 = vst [vmem:[#allocation3 + $0x590] sm:$0xff] %v1799
          %1808 = vst.msk [vmem:[#allocation3 + $0x598] sm:$0xff] %vm571, %v1800
          %v1809 = vld [vmem:[#allocation2] sm:$0xff]
          %v1810 = vld [vmem:[#allocation2 + $0x8] sm:$0xff]
          %v1811 = vld [vmem:[#allocation2 + $0x10] sm:$0xff]
          %v1812 = vld [vmem:[#allocation2 + $0x18] sm:$0xff]
          %v1813 = vld [vmem:[#allocation2 + $0x20] sm:$0xff]
          %1819 = vrot.lane.b32.xlu0 %v1809, 23
          %v1820 = vpop.permute.xlu0 %1819
          %1821 = vrot.lane.b32.xlu0 %v1810, 23
          %v1822 = vpop.permute.xlu0 %1821
          %1823 = vrot.lane.b32.xlu0 %v1811, 23
          %v1824 = vpop.permute.xlu0 %1823
          %1825 = vrot.lane.b32.xlu0 %v1812, 23
          %v1826 = vpop.permute.xlu0 %1825
          %1827 = vrot.lane.b32.xlu0 %v1813, 23
          %v1828 = vpop.permute.xlu0 %1827
          %vm1829 = vcmask 187392
          %v1830 = vsel %vm1829, %v1820, %v1822
          %v1831 = vsel %vm1829, %v1822, %v1824
          %v1832 = vsel %vm1829, %v1824, %v1826
          %v1833 = vsel %vm1829, %v1826, %v1828
          %1838 = vst [vmem:[#allocation3 + $0x5a0] sm:$0xff] %v1830
          %1839 = vst [vmem:[#allocation3 + $0x5a8] sm:$0xff] %v1831
          %1840 = vst [vmem:[#allocation3 + $0x5b0] sm:$0xff] %v1832
          %1841 = vst.msk [vmem:[#allocation3 + $0x5b8] sm:$0xff] %vm571, %v1833
          %v1842 = vld [vmem:[#allocation2] sm:$0xff]
          %v1843 = vld [vmem:[#allocation2 + $0x8] sm:$0xff]
          %v1844 = vld [vmem:[#allocation2 + $0x10] sm:$0xff]
          %v1845 = vld [vmem:[#allocation2 + $0x18] sm:$0xff]
          %v1846 = vld [vmem:[#allocation2 + $0x20] sm:$0xff]
          %1852 = vrot.lane.b32.xlu0 %v1842, 22
          %v1853 = vpop.permute.xlu0 %1852
          %1854 = vrot.lane.b32.xlu0 %v1843, 22
          %v1855 = vpop.permute.xlu0 %1854
          %1856 = vrot.lane.b32.xlu0 %v1844, 22
          %v1857 = vpop.permute.xlu0 %1856
          %1858 = vrot.lane.b32.xlu0 %v1845, 22
          %v1859 = vpop.permute.xlu0 %1858
          %1860 = vrot.lane.b32.xlu0 %v1846, 22
          %v1861 = vpop.permute.xlu0 %1860
          %vm1862 = vcmask 179200
          %v1863 = vsel %vm1862, %v1853, %v1855
          %v1864 = vsel %vm1862, %v1855, %v1857
          %v1865 = vsel %vm1862, %v1857, %v1859
          %v1866 = vsel %vm1862, %v1859, %v1861
          %1871 = vst [vmem:[#allocation3 + $0x5c0] sm:$0xff] %v1863
          %1872 = vst [vmem:[#allocation3 + $0x5c8] sm:$0xff] %v1864
          %1873 = vst [vmem:[#allocation3 + $0x5d0] sm:$0xff] %v1865
          %1874 = vst.msk [vmem:[#allocation3 + $0x5d8] sm:$0xff] %vm571, %v1866
          %v1875 = vld [vmem:[#allocation2] sm:$0xff]
          %v1876 = vld [vmem:[#allocation2 + $0x8] sm:$0xff]
          %v1877 = vld [vmem:[#allocation2 + $0x10] sm:$0xff]
          %v1878 = vld [vmem:[#allocation2 + $0x18] sm:$0xff]
          %v1879 = vld [vmem:[#allocation2 + $0x20] sm:$0xff]
          %1885 = vrot.lane.b32.xlu0 %v1875, 21
          %v1886 = vpop.permute.xlu0 %1885
          %1887 = vrot.lane.b32.xlu0 %v1876, 21
          %v1888 = vpop.permute.xlu0 %1887
          %1889 = vrot.lane.b32.xlu0 %v1877, 21
          %v1890 = vpop.permute.xlu0 %1889
          %1891 = vrot.lane.b32.xlu0 %v1878, 21
          %v1892 = vpop.permute.xlu0 %1891
          %1893 = vrot.lane.b32.xlu0 %v1879, 21
          %v1894 = vpop.permute.xlu0 %1893
          %vm1895 = vcmask 171008
          %v1896 = vsel %vm1895, %v1886, %v1888
          %v1897 = vsel %vm1895, %v1888, %v1890
          %v1898 = vsel %vm1895, %v1890, %v1892
          %v1899 = vsel %vm1895, %v1892, %v1894
          %1904 = vst [vmem:[#allocation3 + $0x5e0] sm:$0xff] %v1896
          %1905 = vst [vmem:[#allocation3 + $0x5e8] sm:$0xff] %v1897
          %1906 = vst [vmem:[#allocation3 + $0x5f0] sm:$0xff] %v1898
          %1907 = vst.msk [vmem:[#allocation3 + $0x5f8] sm:$0xff] %vm571, %v1899
          %v1908 = vld [vmem:[#allocation2] sm:$0xff]
          %v1909 = vld [vmem:[#allocation2 + $0x8] sm:$0xff]
          %v1910 = vld [vmem:[#allocation2 + $0x10] sm:$0xff]
          %v1911 = vld [vmem:[#allocation2 + $0x18] sm:$0xff]
          %v1912 = vld [vmem:[#allocation2 + $0x20] sm:$0xff]
          %1918 = vrot.lane.b32.xlu0 %v1908, 20
          %v1919 = vpop.permute.xlu0 %1918
          %1920 = vrot.lane.b32.xlu0 %v1909, 20
          %v1921 = vpop.permute.xlu0 %1920
          %1922 = vrot.lane.b32.xlu0 %v1910, 20
          %v1923 = vpop.permute.xlu0 %1922
          %1924 = vrot.lane.b32.xlu0 %v1911, 20
          %v1925 = vpop.permute.xlu0 %1924
          %1926 = vrot.lane.b32.xlu0 %v1912, 20
          %v1927 = vpop.permute.xlu0 %1926
          %vm1928 = vcmask 162816
          %v1929 = vsel %vm1928, %v1919, %v1921
          %v1930 = vsel %vm1928, %v1921, %v1923
          %v1931 = vsel %vm1928, %v1923, %v1925
          %v1932 = vsel %vm1928, %v1925, %v1927
          %1937 = vst [vmem:[#allocation3 + $0x600] sm:$0xff] %v1929
          %1938 = vst [vmem:[#allocation3 + $0x608] sm:$0xff] %v1930
          %1939 = vst [vmem:[#allocation3 + $0x610] sm:$0xff] %v1931
          %1940 = vst.msk [vmem:[#allocation3 + $0x618] sm:$0xff] %vm571, %v1932
          %v1941 = vld [vmem:[#allocation2] sm:$0xff]
          %v1942 = vld [vmem:[#allocation2 + $0x8] sm:$0xff]
          %v1943 = vld [vmem:[#allocation2 + $0x10] sm:$0xff]
          %v1944 = vld [vmem:[#allocation2 + $0x18] sm:$0xff]
          %v1945 = vld [vmem:[#allocation2 + $0x20] sm:$0xff]
          %1951 = vrot.lane.b32.xlu0 %v1941, 19
          %v1952 = vpop.permute.xlu0 %1951
          %1953 = vrot.lane.b32.xlu0 %v1942, 19
          %v1954 = vpop.permute.xlu0 %1953
          %1955 = vrot.lane.b32.xlu0 %v1943, 19
          %v1956 = vpop.permute.xlu0 %1955
          %1957 = vrot.lane.b32.xlu0 %v1944, 19
          %v1958 = vpop.permute.xlu0 %1957
          %1959 = vrot.lane.b32.xlu0 %v1945, 19
          %v1960 = vpop.permute.xlu0 %1959
          %vm1961 = vcmask 154624
          %v1962 = vsel %vm1961, %v1952, %v1954
          %v1963 = vsel %vm1961, %v1954, %v1956
          %v1964 = vsel %vm1961, %v1956, %v1958
          %v1965 = vsel %vm1961, %v1958, %v1960
          %1970 = vst [vmem:[#allocation3 + $0x620] sm:$0xff] %v1962
          %1971 = vst [vmem:[#allocation3 + $0x628] sm:$0xff] %v1963
          %1972 = vst [vmem:[#allocation3 + $0x630] sm:$0xff] %v1964
          %1973 = vst.msk [vmem:[#allocation3 + $0x638] sm:$0xff] %vm571, %v1965
          %v1974 = vld [vmem:[#allocation2] sm:$0xff]
          %v1975 = vld [vmem:[#allocation2 + $0x8] sm:$0xff]
          %v1976 = vld [vmem:[#allocation2 + $0x10] sm:$0xff]
          %v1977 = vld [vmem:[#allocation2 + $0x18] sm:$0xff]
          %v1978 = vld [vmem:[#allocation2 + $0x20] sm:$0xff]
          %1984 = vrot.lane.b32.xlu0 %v1974, 18
          %v1985 = vpop.permute.xlu0 %1984
          %1986 = vrot.lane.b32.xlu0 %v1975, 18
          %v1987 = vpop.permute.xlu0 %1986
          %1988 = vrot.lane.b32.xlu0 %v1976, 18
          %v1989 = vpop.permute.xlu0 %1988
          %1990 = vrot.lane.b32.xlu0 %v1977, 18
          %v1991 = vpop.permute.xlu0 %1990
          %1992 = vrot.lane.b32.xlu0 %v1978, 18
          %v1993 = vpop.permute.xlu0 %1992
          %vm1994 = vcmask 146432
          %v1995 = vsel %vm1994, %v1985, %v1987
          %v1996 = vsel %vm1994, %v1987, %v1989
          %v1997 = vsel %vm1994, %v1989, %v1991
          %v1998 = vsel %vm1994, %v1991, %v1993
          %2003 = vst [vmem:[#allocation3 + $0x640] sm:$0xff] %v1995
          %2004 = vst [vmem:[#allocation3 + $0x648] sm:$0xff] %v1996
          %2005 = vst [vmem:[#allocation3 + $0x650] sm:$0xff] %v1997
          %2006 = vst.msk [vmem:[#allocation3 + $0x658] sm:$0xff] %vm571, %v1998
          %v2007 = vld [vmem:[#allocation2] sm:$0xff]
          %v2008 = vld [vmem:[#allocation2 + $0x8] sm:$0xff]
          %v2009 = vld [vmem:[#allocation2 + $0x10] sm:$0xff]
          %v2010 = vld [vmem:[#allocation2 + $0x18] sm:$0xff]
          %v2011 = vld [vmem:[#allocation2 + $0x20] sm:$0xff]
          %2017 = vrot.lane.b32.xlu0 %v2007, 17
          %v2018 = vpop.permute.xlu0 %2017
          %2019 = vrot.lane.b32.xlu0 %v2008, 17
          %v2020 = vpop.permute.xlu0 %2019
          %2021 = vrot.lane.b32.xlu0 %v2009, 17
          %v2022 = vpop.permute.xlu0 %2021
          %2023 = vrot.lane.b32.xlu0 %v2010, 17
          %v2024 = vpop.permute.xlu0 %2023
          %2025 = vrot.lane.b32.xlu0 %v2011, 17
          %v2026 = vpop.permute.xlu0 %2025
          %vm2027 = vcmask 138240
          %v2028 = vsel %vm2027, %v2018, %v2020
          %v2029 = vsel %vm2027, %v2020, %v2022
          %v2030 = vsel %vm2027, %v2022, %v2024
          %v2031 = vsel %vm2027, %v2024, %v2026
          %2036 = vst [vmem:[#allocation3 + $0x660] sm:$0xff] %v2028
          %2037 = vst [vmem:[#allocation3 + $0x668] sm:$0xff] %v2029
          %2038 = vst [vmem:[#allocation3 + $0x670] sm:$0xff] %v2030
          %2039 = vst.msk [vmem:[#allocation3 + $0x678] sm:$0xff] %vm571, %v2031
          %v2040 = vld [vmem:[#allocation2] sm:$0xff]
          %v2041 = vld [vmem:[#allocation2 + $0x8] sm:$0xff]
          %v2042 = vld [vmem:[#allocation2 + $0x10] sm:$0xff]
          %v2043 = vld [vmem:[#allocation2 + $0x18] sm:$0xff]
          %v2044 = vld [vmem:[#allocation2 + $0x20] sm:$0xff]
          %2050 = vrot.lane.b32.xlu0 %v2040, 16
          %v2051 = vpop.permute.xlu0 %2050
          %2052 = vrot.lane.b32.xlu0 %v2041, 16
          %v2053 = vpop.permute.xlu0 %2052
          %2054 = vrot.lane.b32.xlu0 %v2042, 16
          %v2055 = vpop.permute.xlu0 %2054
          %2056 = vrot.lane.b32.xlu0 %v2043, 16
          %v2057 = vpop.permute.xlu0 %2056
          %2058 = vrot.lane.b32.xlu0 %v2044, 16
          %v2059 = vpop.permute.xlu0 %2058
          %vm2060 = vcmask 130048
          %v2061 = vsel %vm2060, %v2051, %v2053
          %v2062 = vsel %vm2060, %v2053, %v2055
          %v2063 = vsel %vm2060, %v2055, %v2057
          %v2064 = vsel %vm2060, %v2057, %v2059
          %2069 = vst [vmem:[#allocation3 + $0x680] sm:$0xff] %v2061
          %2070 = vst [vmem:[#allocation3 + $0x688] sm:$0xff] %v2062
          %2071 = vst [vmem:[#allocation3 + $0x690] sm:$0xff] %v2063
          %2072 = vst.msk [vmem:[#allocation3 + $0x698] sm:$0xff] %vm571, %v2064
          %v2073 = vld [vmem:[#allocation2] sm:$0xff]
          %v2074 = vld [vmem:[#allocation2 + $0x8] sm:$0xff]
          %v2075 = vld [vmem:[#allocation2 + $0x10] sm:$0xff]
          %v2076 = vld [vmem:[#allocation2 + $0x18] sm:$0xff]
          %v2077 = vld [vmem:[#allocation2 + $0x20] sm:$0xff]
          %2083 = vrot.lane.b32.xlu0 %v2073, 15
          %v2084 = vpop.permute.xlu0 %2083
          %2085 = vrot.lane.b32.xlu0 %v2074, 15
          %v2086 = vpop.permute.xlu0 %2085
          %2087 = vrot.lane.b32.xlu0 %v2075, 15
          %v2088 = vpop.permute.xlu0 %2087
          %2089 = vrot.lane.b32.xlu0 %v2076, 15
          %v2090 = vpop.permute.xlu0 %2089
          %2091 = vrot.lane.b32.xlu0 %v2077, 15
          %v2092 = vpop.permute.xlu0 %2091
          %vm2093 = vcmask 121856
          %v2094 = vsel %vm2093, %v2084, %v2086
          %v2095 = vsel %vm2093, %v2086, %v2088
          %v2096 = vsel %vm2093, %v2088, %v2090
          %v2097 = vsel %vm2093, %v2090, %v2092
          %2102 = vst [vmem:[#allocation3 + $0x6a0] sm:$0xff] %v2094
          %2103 = vst [vmem:[#allocation3 + $0x6a8] sm:$0xff] %v2095
          %2104 = vst [vmem:[#allocation3 + $0x6b0] sm:$0xff] %v2096
          %2105 = vst.msk [vmem:[#allocation3 + $0x6b8] sm:$0xff] %vm571, %v2097
          %v2106 = vld [vmem:[#allocation2] sm:$0xff]
          %v2107 = vld [vmem:[#allocation2 + $0x8] sm:$0xff]
          %v2108 = vld [vmem:[#allocation2 + $0x10] sm:$0xff]
          %v2109 = vld [vmem:[#allocation2 + $0x18] sm:$0xff]
          %v2110 = vld [vmem:[#allocation2 + $0x20] sm:$0xff]
          %2116 = vrot.lane.b32.xlu0 %v2106, 14
          %v2117 = vpop.permute.xlu0 %2116
          %2118 = vrot.lane.b32.xlu0 %v2107, 14
          %v2119 = vpop.permute.xlu0 %2118
          %2120 = vrot.lane.b32.xlu0 %v2108, 14
          %v2121 = vpop.permute.xlu0 %2120
          %2122 = vrot.lane.b32.xlu0 %v2109, 14
          %v2123 = vpop.permute.xlu0 %2122
          %2124 = vrot.lane.b32.xlu0 %v2110, 14
          %v2125 = vpop.permute.xlu0 %2124
          %vm2126 = vcmask 113664
          %v2127 = vsel %vm2126, %v2117, %v2119
          %v2128 = vsel %vm2126, %v2119, %v2121
          %v2129 = vsel %vm2126, %v2121, %v2123
          %v2130 = vsel %vm2126, %v2123, %v2125
          %2135 = vst [vmem:[#allocation3 + $0x6c0] sm:$0xff] %v2127
          %2136 = vst [vmem:[#allocation3 + $0x6c8] sm:$0xff] %v2128
          %2137 = vst [vmem:[#allocation3 + $0x6d0] sm:$0xff] %v2129
          %2138 = vst.msk [vmem:[#allocation3 + $0x6d8] sm:$0xff] %vm571, %v2130
          %v2139 = vld [vmem:[#allocation2 + $0x8] sm:$0xff]
          %v2140 = vld [vmem:[#allocation2 + $0x10] sm:$0xff]
          %v2141 = vld [vmem:[#allocation2 + $0x18] sm:$0xff]
          %v2142 = vld [vmem:[#allocation2 + $0x20] sm:$0xff]
          %2147 = vrot.lane.b32.xlu0 %v2139, 126
          %v2148 = vpop.permute.xlu0 %2147
          %2149 = vrot.lane.b32.xlu0 %v2140, 126
          %v2150 = vpop.permute.xlu0 %2149
          %2151 = vrot.lane.b32.xlu0 %v2141, 126
          %v2152 = vpop.permute.xlu0 %2151
          %2153 = vrot.lane.b32.xlu0 %v2142, 126
          %v2154 = vpop.permute.xlu0 %2153
          %v2155 = vsel %vm617, %v2148, %v2150
          %v2156 = vsel %vm617, %v2150, %v2152
          %v2157 = vsel %vm617, %v2152, %v2154
          %2162 = vst [vmem:[#allocation3 + $0x6e0] sm:$0xff] %v2155
          %2163 = vst [vmem:[#allocation3 + $0x6e8] sm:$0xff] %v2156
          %2164 = vst [vmem:[#allocation3 + $0x6f0] sm:$0xff] %v2157
          %2165 = vst.msk [vmem:[#allocation3 + $0x6f8] sm:$0xff] %vm571, %v2154
          %v2166 = vld [vmem:[#allocation2 + $0x8] sm:$0xff]
          %v2167 = vld [vmem:[#allocation2 + $0x10] sm:$0xff]
          %v2168 = vld [vmem:[#allocation2 + $0x18] sm:$0xff]
          %v2169 = vld [vmem:[#allocation2 + $0x20] sm:$0xff]
          %2174 = vrot.lane.b32.xlu0 %v2166, 125
          %v2175 = vpop.permute.xlu0 %2174
          %2176 = vrot.lane.b32.xlu0 %v2167, 125
          %v2177 = vpop.permute.xlu0 %2176
          %2178 = vrot.lane.b32.xlu0 %v2168, 125
          %v2179 = vpop.permute.xlu0 %2178
          %2180 = vrot.lane.b32.xlu0 %v2169, 125
          %v2181 = vpop.permute.xlu0 %2180
          %v2182 = vsel %vm645, %v2175, %v2177
          %v2183 = vsel %vm645, %v2177, %v2179
          %v2184 = vsel %vm645, %v2179, %v2181
          %2189 = vst [vmem:[#allocation3 + $0x700] sm:$0xff] %v2182
          %2190 = vst [vmem:[#allocation3 + $0x708] sm:$0xff] %v2183
          %2191 = vst [vmem:[#allocation3 + $0x710] sm:$0xff] %v2184
          %2192 = vst.msk [vmem:[#allocation3 + $0x718] sm:$0xff] %vm571, %v2181
          %v2193 = vld [vmem:[#allocation2 + $0x8] sm:$0xff]
          %v2194 = vld [vmem:[#allocation2 + $0x10] sm:$0xff]
          %v2195 = vld [vmem:[#allocation2 + $0x18] sm:$0xff]
          %v2196 = vld [vmem:[#allocation2 + $0x20] sm:$0xff]
          %2201 = vrot.lane.b32.xlu0 %v2193, 124
          %v2202 = vpop.permute.xlu0 %2201
          %2203 = vrot.lane.b32.xlu0 %v2194, 124
          %v2204 = vpop.permute.xlu0 %2203
          %2205 = vrot.lane.b32.xlu0 %v2195, 124
          %v2206 = vpop.permute.xlu0 %2205
          %2207 = vrot.lane.b32.xlu0 %v2196, 124
          %v2208 = vpop.permute.xlu0 %2207
          %v2209 = vsel %vm673, %v2202, %v2204
          %v2210 = vsel %vm673, %v2204, %v2206
          %v2211 = vsel %vm673, %v2206, %v2208
          %2216 = vst [vmem:[#allocation3 + $0x720] sm:$0xff] %v2209
          %2217 = vst [vmem:[#allocation3 + $0x728] sm:$0xff] %v2210
          %2218 = vst [vmem:[#allocation3 + $0x730] sm:$0xff] %v2211
          %2219 = vst.msk [vmem:[#allocation3 + $0x738] sm:$0xff] %vm571, %v2208
          %v2220 = vld [vmem:[#allocation2 + $0x8] sm:$0xff]
          %v2221 = vld [vmem:[#allocation2 + $0x10] sm:$0xff]
          %v2222 = vld [vmem:[#allocation2 + $0x18] sm:$0xff]
          %v2223 = vld [vmem:[#allocation2 + $0x20] sm:$0xff]
          %2228 = vrot.lane.b32.xlu0 %v2220, 123
          %v2229 = vpop.permute.xlu0 %2228
          %2230 = vrot.lane.b32.xlu0 %v2221, 123
          %v2231 = vpop.permute.xlu0 %2230
          %2232 = vrot.lane.b32.xlu0 %v2222, 123
          %v2233 = vpop.permute.xlu0 %2232
          %2234 = vrot.lane.b32.xlu0 %v2223, 123
          %v2235 = vpop.permute.xlu0 %2234
          %v2236 = vsel %vm701, %v2229, %v2231
          %v2237 = vsel %vm701, %v2231, %v2233
          %v2238 = vsel %vm701, %v2233, %v2235
          %2243 = vst [vmem:[#allocation3 + $0x740] sm:$0xff] %v2236
          %2244 = vst [vmem:[#allocation3 + $0x748] sm:$0xff] %v2237
          %2245 = vst [vmem:[#allocation3 + $0x750] sm:$0xff] %v2238
          %2246 = vst.msk [vmem:[#allocation3 + $0x758] sm:$0xff] %vm571, %v2235
          %v2247 = vld [vmem:[#allocation2 + $0x8] sm:$0xff]
          %v2248 = vld [vmem:[#allocation2 + $0x10] sm:$0xff]
          %v2249 = vld [vmem:[#allocation2 + $0x18] sm:$0xff]
          %v2250 = vld [vmem:[#allocation2 + $0x20] sm:$0xff]
          %2255 = vrot.lane.b32.xlu0 %v2247, 122
          %v2256 = vpop.permute.xlu0 %2255
          %2257 = vrot.lane.b32.xlu0 %v2248, 122
          %v2258 = vpop.permute.xlu0 %2257
          %2259 = vrot.lane.b32.xlu0 %v2249, 122
          %v2260 = vpop.permute.xlu0 %2259
          %2261 = vrot.lane.b32.xlu0 %v2250, 122
          %v2262 = vpop.permute.xlu0 %2261
          %v2263 = vsel %vm729, %v2256, %v2258
          %v2264 = vsel %vm729, %v2258, %v2260
          %v2265 = vsel %vm729, %v2260, %v2262
          %2270 = vst [vmem:[#allocation3 + $0x760] sm:$0xff] %v2263
          %2271 = vst [vmem:[#allocation3 + $0x768] sm:$0xff] %v2264
          %2272 = vst [vmem:[#allocation3 + $0x770] sm:$0xff] %v2265
          %2273 = vst.msk [vmem:[#allocation3 + $0x778] sm:$0xff] %vm571, %v2262
          %v2274 = vld [vmem:[#allocation2 + $0x8] sm:$0xff]
          %v2275 = vld [vmem:[#allocation2 + $0x10] sm:$0xff]
          %v2276 = vld [vmem:[#allocation2 + $0x18] sm:$0xff]
          %v2277 = vld [vmem:[#allocation2 + $0x20] sm:$0xff]
          %2282 = vrot.lane.b32.xlu0 %v2274, 121
          %v2283 = vpop.permute.xlu0 %2282
          %2284 = vrot.lane.b32.xlu0 %v2275, 121
          %v2285 = vpop.permute.xlu0 %2284
          %2286 = vrot.lane.b32.xlu0 %v2276, 121
          %v2287 = vpop.permute.xlu0 %2286
          %2288 = vrot.lane.b32.xlu0 %v2277, 121
          %v2289 = vpop.permute.xlu0 %2288
          %v2290 = vsel %vm757, %v2283, %v2285
          %v2291 = vsel %vm757, %v2285, %v2287
          %v2292 = vsel %vm757, %v2287, %v2289
          %2297 = vst [vmem:[#allocation3 + $0x780] sm:$0xff] %v2290
          %2298 = vst [vmem:[#allocation3 + $0x788] sm:$0xff] %v2291
          %2299 = vst [vmem:[#allocation3 + $0x790] sm:$0xff] %v2292
          %2300 = vst.msk [vmem:[#allocation3 + $0x798] sm:$0xff] %vm571, %v2289
          %v2301 = vld [vmem:[#allocation2 + $0x8] sm:$0xff]
          %v2302 = vld [vmem:[#allocation2 + $0x10] sm:$0xff]
          %v2303 = vld [vmem:[#allocation2 + $0x18] sm:$0xff]
          %v2304 = vld [vmem:[#allocation2 + $0x20] sm:$0xff]
          %2309 = vrot.lane.b32.xlu0 %v2301, 120
          %v2310 = vpop.permute.xlu0 %2309
          %2311 = vrot.lane.b32.xlu0 %v2302, 120
          %v2312 = vpop.permute.xlu0 %2311
          %2313 = vrot.lane.b32.xlu0 %v2303, 120
          %v2314 = vpop.permute.xlu0 %2313
          %2315 = vrot.lane.b32.xlu0 %v2304, 120
          %v2316 = vpop.permute.xlu0 %2315
          %v2317 = vsel %vm785, %v2310, %v2312
          %v2318 = vsel %vm785, %v2312, %v2314
          %v2319 = vsel %vm785, %v2314, %v2316
          %2324 = vst [vmem:[#allocation3 + $0x7a0] sm:$0xff] %v2317
          %2325 = vst [vmem:[#allocation3 + $0x7a8] sm:$0xff] %v2318
          %2326 = vst [vmem:[#allocation3 + $0x7b0] sm:$0xff] %v2319
          %2327 = vst.msk [vmem:[#allocation3 + $0x7b8] sm:$0xff] %vm571, %v2316
          %v2328 = vld [vmem:[#allocation2 + $0x8] sm:$0xff]
          %v2329 = vld [vmem:[#allocation2 + $0x10] sm:$0xff]
          %v2330 = vld [vmem:[#allocation2 + $0x18] sm:$0xff]
          %v2331 = vld [vmem:[#allocation2 + $0x20] sm:$0xff]
          %2336 = vrot.lane.b32.xlu0 %v2328, 119
          %v2337 = vpop.permute.xlu0 %2336
          %2338 = vrot.lane.b32.xlu0 %v2329, 119
          %v2339 = vpop.permute.xlu0 %2338
          %2340 = vrot.lane.b32.xlu0 %v2330, 119
          %v2341 = vpop.permute.xlu0 %2340
          %2342 = vrot.lane.b32.xlu0 %v2331, 119
          %v2343 = vpop.permute.xlu0 %2342
          %v2344 = vsel %vm813, %v2337, %v2339
          %v2345 = vsel %vm813, %v2339, %v2341
          %v2346 = vsel %vm813, %v2341, %v2343
          %2351 = vst [vmem:[#allocation3 + $0x7c0] sm:$0xff] %v2344
          %2352 = vst [vmem:[#allocation3 + $0x7c8] sm:$0xff] %v2345
          %2353 = vst [vmem:[#allocation3 + $0x7d0] sm:$0xff] %v2346
          %2354 = vst.msk [vmem:[#allocation3 + $0x7d8] sm:$0xff] %vm571, %v2343
          %v2355 = vld [vmem:[#allocation2 + $0x8] sm:$0xff]
          %v2356 = vld [vmem:[#allocation2 + $0x10] sm:$0xff]
          %v2357 = vld [vmem:[#allocation2 + $0x18] sm:$0xff]
          %v2358 = vld [vmem:[#allocation2 + $0x20] sm:$0xff]
          %2363 = vrot.lane.b32.xlu0 %v2355, 118
          %v2364 = vpop.permute.xlu0 %2363
          %2365 = vrot.lane.b32.xlu0 %v2356, 118
          %v2366 = vpop.permute.xlu0 %2365
          %2367 = vrot.lane.b32.xlu0 %v2357, 118
          %v2368 = vpop.permute.xlu0 %2367
          %2369 = vrot.lane.b32.xlu0 %v2358, 118
          %v2370 = vpop.permute.xlu0 %2369
          %v2371 = vsel %vm841, %v2364, %v2366
          %v2372 = vsel %vm841, %v2366, %v2368
          %v2373 = vsel %vm841, %v2368, %v2370
          %2378 = vst [vmem:[#allocation3 + $0x7e0] sm:$0xff] %v2371
          %2379 = vst [vmem:[#allocation3 + $0x7e8] sm:$0xff] %v2372
          %2380 = vst [vmem:[#allocation3 + $0x7f0] sm:$0xff] %v2373
          %2381 = vst.msk [vmem:[#allocation3 + $0x7f8] sm:$0xff] %vm571, %v2370
          %v2382 = vld [vmem:[#allocation2 + $0x8] sm:$0xff]
          %v2383 = vld [vmem:[#allocation2 + $0x10] sm:$0xff]
          %v2384 = vld [vmem:[#allocation2 + $0x18] sm:$0xff]
          %v2385 = vld [vmem:[#allocation2 + $0x20] sm:$0xff]
          %2390 = vrot.lane.b32.xlu0 %v2382, 117
          %v2391 = vpop.permute.xlu0 %2390
          %2392 = vrot.lane.b32.xlu0 %v2383, 117
          %v2393 = vpop.permute.xlu0 %2392
          %2394 = vrot.lane.b32.xlu0 %v2384, 117
          %v2395 = vpop.permute.xlu0 %2394
          %2396 = vrot.lane.b32.xlu0 %v2385, 117
          %v2397 = vpop.permute.xlu0 %2396
          %vm2398 = vcmask 957440
          %v2399 = vsel %vm2398, %v2391, %v2393
          %v2400 = vsel %vm2398, %v2393, %v2395
          %v2401 = vsel %vm2398, %v2395, %v2397
          %2406 = vst [vmem:[#allocation3 + $0x800] sm:$0xff] %v2399
          %2407 = vst [vmem:[#allocation3 + $0x808] sm:$0xff] %v2400
          %2408 = vst [vmem:[#allocation3 + $0x810] sm:$0xff] %v2401
          %2409 = vst.msk [vmem:[#allocation3 + $0x818] sm:$0xff] %vm571, %v2397
          %v2410 = vld [vmem:[#allocation2 + $0x8] sm:$0xff]
          %v2411 = vld [vmem:[#allocation2 + $0x10] sm:$0xff]
          %v2412 = vld [vmem:[#allocation2 + $0x18] sm:$0xff]
          %v2413 = vld [vmem:[#allocation2 + $0x20] sm:$0xff]
          %2418 = vrot.lane.b32.xlu0 %v2410, 116
          %v2419 = vpop.permute.xlu0 %2418
          %2420 = vrot.lane.b32.xlu0 %v2411, 116
          %v2421 = vpop.permute.xlu0 %2420
          %2422 = vrot.lane.b32.xlu0 %v2412, 116
          %v2423 = vpop.permute.xlu0 %2422
          %2424 = vrot.lane.b32.xlu0 %v2413, 116
          %v2425 = vpop.permute.xlu0 %2424
          %vm2426 = vcmask 949248
          %v2427 = vsel %vm2426, %v2419, %v2421
          %v2428 = vsel %vm2426, %v2421, %v2423
          %v2429 = vsel %vm2426, %v2423, %v2425
          %2434 = vst [vmem:[#allocation3 + $0x820] sm:$0xff] %v2427
          %2435 = vst [vmem:[#allocation3 + $0x828] sm:$0xff] %v2428
          %2436 = vst [vmem:[#allocation3 + $0x830] sm:$0xff] %v2429
          %2437 = vst.msk [vmem:[#allocation3 + $0x838] sm:$0xff] %vm571, %v2425
          %v2438 = vld [vmem:[#allocation2 + $0x8] sm:$0xff]
          %v2439 = vld [vmem:[#allocation2 + $0x10] sm:$0xff]
          %v2440 = vld [vmem:[#allocation2 + $0x18] sm:$0xff]
          %v2441 = vld [vmem:[#allocation2 + $0x20] sm:$0xff]
          %2446 = vrot.lane.b32.xlu0 %v2438, 100
          %v2447 = vpop.permute.xlu0 %2446
          %2448 = vrot.lane.b32.xlu0 %v2439, 100
          %v2449 = vpop.permute.xlu0 %2448
          %2450 = vrot.lane.b32.xlu0 %v2440, 100
          %v2451 = vpop.permute.xlu0 %2450
          %2452 = vrot.lane.b32.xlu0 %v2441, 100
          %v2453 = vpop.permute.xlu0 %2452
          %v2454 = vsel %vm925, %v2447, %v2449
          %v2455 = vsel %vm925, %v2449, %v2451
          %v2456 = vsel %vm925, %v2451, %v2453
          %2461 = vst [vmem:[#allocation3 + $0x840] sm:$0xff] %v2454
          %2462 = vst [vmem:[#allocation3 + $0x848] sm:$0xff] %v2455
          %2463 = vst [vmem:[#allocation3 + $0x850] sm:$0xff] %v2456
          %2464 = vst.msk [vmem:[#allocation3 + $0x858] sm:$0xff] %vm571, %v2453
          %v2465 = vld [vmem:[#allocation2 + $0x8] sm:$0xff]
          %v2466 = vld [vmem:[#allocation2 + $0x10] sm:$0xff]
          %v2467 = vld [vmem:[#allocation2 + $0x18] sm:$0xff]
          %v2468 = vld [vmem:[#allocation2 + $0x20] sm:$0xff]
          %2473 = vrot.lane.b32.xlu0 %v2465, 99
          %v2474 = vpop.permute.xlu0 %2473
          %2475 = vrot.lane.b32.xlu0 %v2466, 99
          %v2476 = vpop.permute.xlu0 %2475
          %2477 = vrot.lane.b32.xlu0 %v2467, 99
          %v2478 = vpop.permute.xlu0 %2477
          %2479 = vrot.lane.b32.xlu0 %v2468, 99
          %v2480 = vpop.permute.xlu0 %2479
          %v2481 = vsel %vm953, %v2474, %v2476
          %v2482 = vsel %vm953, %v2476, %v2478
          %v2483 = vsel %vm953, %v2478, %v2480
          %2488 = vst [vmem:[#allocation3 + $0x860] sm:$0xff] %v2481
          %2489 = vst [vmem:[#allocation3 + $0x868] sm:$0xff] %v2482
          %2490 = vst [vmem:[#allocation3 + $0x870] sm:$0xff] %v2483
          %2491 = vst.msk [vmem:[#allocation3 + $0x878] sm:$0xff] %vm571, %v2480
          %v2492 = vld [vmem:[#allocation2 + $0x8] sm:$0xff]
          %v2493 = vld [vmem:[#allocation2 + $0x10] sm:$0xff]
          %v2494 = vld [vmem:[#allocation2 + $0x18] sm:$0xff]
          %v2495 = vld [vmem:[#allocation2 + $0x20] sm:$0xff]
          %2500 = vrot.lane.b32.xlu0 %v2492, 98
          %v2501 = vpop.permute.xlu0 %2500
          %2502 = vrot.lane.b32.xlu0 %v2493, 98
          %v2503 = vpop.permute.xlu0 %2502
          %2504 = vrot.lane.b32.xlu0 %v2494, 98
          %v2505 = vpop.permute.xlu0 %2504
          %2506 = vrot.lane.b32.xlu0 %v2495, 98
          %v2507 = vpop.permute.xlu0 %2506
          %v2508 = vsel %vm981, %v2501, %v2503
          %v2509 = vsel %vm981, %v2503, %v2505
          %v2510 = vsel %vm981, %v2505, %v2507
          %2515 = vst [vmem:[#allocation3 + $0x880] sm:$0xff] %v2508
          %2516 = vst [vmem:[#allocation3 + $0x888] sm:$0xff] %v2509
          %2517 = vst [vmem:[#allocation3 + $0x890] sm:$0xff] %v2510
          %2518 = vst.msk [vmem:[#allocation3 + $0x898] sm:$0xff] %vm571, %v2507
          %v2519 = vld [vmem:[#allocation2 + $0x8] sm:$0xff]
          %v2520 = vld [vmem:[#allocation2 + $0x10] sm:$0xff]
          %v2521 = vld [vmem:[#allocation2 + $0x18] sm:$0xff]
          %v2522 = vld [vmem:[#allocation2 + $0x20] sm:$0xff]
          %2527 = vrot.lane.b32.xlu0 %v2519, 97
          %v2528 = vpop.permute.xlu0 %2527
          %2529 = vrot.lane.b32.xlu0 %v2520, 97
          %v2530 = vpop.permute.xlu0 %2529
          %2531 = vrot.lane.b32.xlu0 %v2521, 97
          %v2532 = vpop.permute.xlu0 %2531
          %2533 = vrot.lane.b32.xlu0 %v2522, 97
          %v2534 = vpop.permute.xlu0 %2533
          %v2535 = vsel %vm1009, %v2528, %v2530
          %v2536 = vsel %vm1009, %v2530, %v2532
          %v2537 = vsel %vm1009, %v2532, %v2534
          %2542 = vst [vmem:[#allocation3 + $0x8a0] sm:$0xff] %v2535
          %2543 = vst [vmem:[#allocation3 + $0x8a8] sm:$0xff] %v2536
          %2544 = vst [vmem:[#allocation3 + $0x8b0] sm:$0xff] %v2537
          %2545 = vst.msk [vmem:[#allocation3 + $0x8b8] sm:$0xff] %vm571, %v2534
          %v2546 = vld [vmem:[#allocation2 + $0x8] sm:$0xff]
          %v2547 = vld [vmem:[#allocation2 + $0x10] sm:$0xff]
          %v2548 = vld [vmem:[#allocation2 + $0x18] sm:$0xff]
          %v2549 = vld [vmem:[#allocation2 + $0x20] sm:$0xff]
          %2554 = vrot.lane.b32.xlu0 %v2546, 96
          %v2555 = vpop.permute.xlu0 %2554
          %2556 = vrot.lane.b32.xlu0 %v2547, 96
          %v2557 = vpop.permute.xlu0 %2556
          %2558 = vrot.lane.b32.xlu0 %v2548, 96
          %v2559 = vpop.permute.xlu0 %2558
          %2560 = vrot.lane.b32.xlu0 %v2549, 96
          %v2561 = vpop.permute.xlu0 %2560
          %v2562 = vsel %vm1037, %v2555, %v2557
          %v2563 = vsel %vm1037, %v2557, %v2559
          %v2564 = vsel %vm1037, %v2559, %v2561
          %2569 = vst [vmem:[#allocation3 + $0x8c0] sm:$0xff] %v2562
          %2570 = vst [vmem:[#allocation3 + $0x8c8] sm:$0xff] %v2563
          %2571 = vst [vmem:[#allocation3 + $0x8d0] sm:$0xff] %v2564
          %2572 = vst.msk [vmem:[#allocation3 + $0x8d8] sm:$0xff] %vm571, %v2561
          %v2573 = vld [vmem:[#allocation2 + $0x8] sm:$0xff]
          %v2574 = vld [vmem:[#allocation2 + $0x10] sm:$0xff]
          %v2575 = vld [vmem:[#allocation2 + $0x18] sm:$0xff]
          %v2576 = vld [vmem:[#allocation2 + $0x20] sm:$0xff]
          %2581 = vrot.lane.b32.xlu0 %v2573, 95
          %v2582 = vpop.permute.xlu0 %2581
          %2583 = vrot.lane.b32.xlu0 %v2574, 95
          %v2584 = vpop.permute.xlu0 %2583
          %2585 = vrot.lane.b32.xlu0 %v2575, 95
          %v2586 = vpop.permute.xlu0 %2585
          %2587 = vrot.lane.b32.xlu0 %v2576, 95
          %v2588 = vpop.permute.xlu0 %2587
          %v2589 = vsel %vm1065, %v2582, %v2584
          %v2590 = vsel %vm1065, %v2584, %v2586
          %v2591 = vsel %vm1065, %v2586, %v2588
          %2596 = vst [vmem:[#allocation3 + $0x8e0] sm:$0xff] %v2589
          %2597 = vst [vmem:[#allocation3 + $0x8e8] sm:$0xff] %v2590
          %2598 = vst [vmem:[#allocation3 + $0x8f0] sm:$0xff] %v2591
          %2599 = vst.msk [vmem:[#allocation3 + $0x8f8] sm:$0xff] %vm571, %v2588
          %v2600 = vld [vmem:[#allocation2 + $0x8] sm:$0xff]
          %v2601 = vld [vmem:[#allocation2 + $0x10] sm:$0xff]
          %v2602 = vld [vmem:[#allocation2 + $0x18] sm:$0xff]
          %v2603 = vld [vmem:[#allocation2 + $0x20] sm:$0xff]
          %2608 = vrot.lane.b32.xlu0 %v2600, 94
          %v2609 = vpop.permute.xlu0 %2608
          %2610 = vrot.lane.b32.xlu0 %v2601, 94
          %v2611 = vpop.permute.xlu0 %2610
          %2612 = vrot.lane.b32.xlu0 %v2602, 94
          %v2613 = vpop.permute.xlu0 %2612
          %2614 = vrot.lane.b32.xlu0 %v2603, 94
          %v2615 = vpop.permute.xlu0 %2614
          %v2616 = vsel %vm1093, %v2609, %v2611
          %v2617 = vsel %vm1093, %v2611, %v2613
          %v2618 = vsel %vm1093, %v2613, %v2615
          %2623 = vst [vmem:[#allocation3 + $0x900] sm:$0xff] %v2616
          %2624 = vst [vmem:[#allocation3 + $0x908] sm:$0xff] %v2617
          %2625 = vst [vmem:[#allocation3 + $0x910] sm:$0xff] %v2618
          %2626 = vst.msk [vmem:[#allocation3 + $0x918] sm:$0xff] %vm571, %v2615
          %v2627 = vld [vmem:[#allocation2 + $0x8] sm:$0xff]
          %v2628 = vld [vmem:[#allocation2 + $0x10] sm:$0xff]
          %v2629 = vld [vmem:[#allocation2 + $0x18] sm:$0xff]
          %v2630 = vld [vmem:[#allocation2 + $0x20] sm:$0xff]
          %2635 = vrot.lane.b32.xlu0 %v2627, 93
          %v2636 = vpop.permute.xlu0 %2635
          %2637 = vrot.lane.b32.xlu0 %v2628, 93
          %v2638 = vpop.permute.xlu0 %2637
          %2639 = vrot.lane.b32.xlu0 %v2629, 93
          %v2640 = vpop.permute.xlu0 %2639
          %2641 = vrot.lane.b32.xlu0 %v2630, 93
          %v2642 = vpop.permute.xlu0 %2641
          %v2643 = vsel %vm1121, %v2636, %v2638
          %v2644 = vsel %vm1121, %v2638, %v2640
          %v2645 = vsel %vm1121, %v2640, %v2642
          %2650 = vst [vmem:[#allocation3 + $0x920] sm:$0xff] %v2643
          %2651 = vst [vmem:[#allocation3 + $0x928] sm:$0xff] %v2644
          %2652 = vst [vmem:[#allocation3 + $0x930] sm:$0xff] %v2645
          %2653 = vst.msk [vmem:[#allocation3 + $0x938] sm:$0xff] %vm571, %v2642
          %v2654 = vld [vmem:[#allocation2 + $0x8] sm:$0xff]
          %v2655 = vld [vmem:[#allocation2 + $0x10] sm:$0xff]
          %v2656 = vld [vmem:[#allocation2 + $0x18] sm:$0xff]
          %v2657 = vld [vmem:[#allocation2 + $0x20] sm:$0xff]
          %2662 = vrot.lane.b32.xlu0 %v2654, 92
          %v2663 = vpop.permute.xlu0 %2662
          %2664 = vrot.lane.b32.xlu0 %v2655, 92
          %v2665 = vpop.permute.xlu0 %2664
          %2666 = vrot.lane.b32.xlu0 %v2656, 92
          %v2667 = vpop.permute.xlu0 %2666
          %2668 = vrot.lane.b32.xlu0 %v2657, 92
          %v2669 = vpop.permute.xlu0 %2668
          %v2670 = vsel %vm1149, %v2663, %v2665
          %v2671 = vsel %vm1149, %v2665, %v2667
          %v2672 = vsel %vm1149, %v2667, %v2669
          %2677 = vst [vmem:[#allocation3 + $0x940] sm:$0xff] %v2670
          %2678 = vst [vmem:[#allocation3 + $0x948] sm:$0xff] %v2671
          %2679 = vst [vmem:[#allocation3 + $0x950] sm:$0xff] %v2672
          %2680 = vst.msk [vmem:[#allocation3 + $0x958] sm:$0xff] %vm571, %v2669
          %v2681 = vld [vmem:[#allocation2 + $0x8] sm:$0xff]
          %v2682 = vld [vmem:[#allocation2 + $0x10] sm:$0xff]
          %v2683 = vld [vmem:[#allocation2 + $0x18] sm:$0xff]
          %v2684 = vld [vmem:[#allocation2 + $0x20] sm:$0xff]
          %2689 = vrot.lane.b32.xlu0 %v2681, 91
          %v2690 = vpop.permute.xlu0 %2689
          %2691 = vrot.lane.b32.xlu0 %v2682, 91
          %v2692 = vpop.permute.xlu0 %2691
          %2693 = vrot.lane.b32.xlu0 %v2683, 91
          %v2694 = vpop.permute.xlu0 %2693
          %2695 = vrot.lane.b32.xlu0 %v2684, 91
          %v2696 = vpop.permute.xlu0 %2695
          %vm2697 = vcmask 744448
          %v2698 = vsel %vm2697, %v2690, %v2692
          %v2699 = vsel %vm2697, %v2692, %v2694
          %v2700 = vsel %vm2697, %v2694, %v2696
          %2705 = vst [vmem:[#allocation3 + $0x960] sm:$0xff] %v2698
          %2706 = vst [vmem:[#allocation3 + $0x968] sm:$0xff] %v2699
          %2707 = vst [vmem:[#allocation3 + $0x970] sm:$0xff] %v2700
          %2708 = vst.msk [vmem:[#allocation3 + $0x978] sm:$0xff] %vm571, %v2696
          %v2709 = vld [vmem:[#allocation2 + $0x8] sm:$0xff]
          %v2710 = vld [vmem:[#allocation2 + $0x10] sm:$0xff]
          %v2711 = vld [vmem:[#allocation2 + $0x18] sm:$0xff]
          %v2712 = vld [vmem:[#allocation2 + $0x20] sm:$0xff]
          %2717 = vrot.lane.b32.xlu0 %v2709, 90
          %v2718 = vpop.permute.xlu0 %2717
          %2719 = vrot.lane.b32.xlu0 %v2710, 90
          %v2720 = vpop.permute.xlu0 %2719
          %2721 = vrot.lane.b32.xlu0 %v2711, 90
          %v2722 = vpop.permute.xlu0 %2721
          %2723 = vrot.lane.b32.xlu0 %v2712, 90
          %v2724 = vpop.permute.xlu0 %2723
          %vm2725 = vcmask 736256
          %v2726 = vsel %vm2725, %v2718, %v2720
          %v2727 = vsel %vm2725, %v2720, %v2722
          %v2728 = vsel %vm2725, %v2722, %v2724
          %2733 = vst [vmem:[#allocation3 + $0x980] sm:$0xff] %v2726
          %2734 = vst [vmem:[#allocation3 + $0x988] sm:$0xff] %v2727
          %2735 = vst [vmem:[#allocation3 + $0x990] sm:$0xff] %v2728
          %2736 = vst.msk [vmem:[#allocation3 + $0x998] sm:$0xff] %vm571, %v2724
          %v2737 = vld [vmem:[#allocation2 + $0x8] sm:$0xff]
          %v2738 = vld [vmem:[#allocation2 + $0x10] sm:$0xff]
          %v2739 = vld [vmem:[#allocation2 + $0x18] sm:$0xff]
          %v2740 = vld [vmem:[#allocation2 + $0x20] sm:$0xff]
          %2745 = vrot.lane.b32.xlu0 %v2737, 74
          %v2746 = vpop.permute.xlu0 %2745
          %2747 = vrot.lane.b32.xlu0 %v2738, 74
          %v2748 = vpop.permute.xlu0 %2747
          %2749 = vrot.lane.b32.xlu0 %v2739, 74
          %v2750 = vpop.permute.xlu0 %2749
          %2751 = vrot.lane.b32.xlu0 %v2740, 74
          %v2752 = vpop.permute.xlu0 %2751
          %v2753 = vsel %vm1233, %v2746, %v2748
          %v2754 = vsel %vm1233, %v2748, %v2750
          %v2755 = vsel %vm1233, %v2750, %v2752
          %2760 = vst [vmem:[#allocation3 + $0x9a0] sm:$0xff] %v2753
          %2761 = vst [vmem:[#allocation3 + $0x9a8] sm:$0xff] %v2754
          %2762 = vst [vmem:[#allocation3 + $0x9b0] sm:$0xff] %v2755
          %2763 = vst.msk [vmem:[#allocation3 + $0x9b8] sm:$0xff] %vm571, %v2752
          %v2764 = vld [vmem:[#allocation2 + $0x8] sm:$0xff]
          %v2765 = vld [vmem:[#allocation2 + $0x10] sm:$0xff]
          %v2766 = vld [vmem:[#allocation2 + $0x18] sm:$0xff]
          %v2767 = vld [vmem:[#allocation2 + $0x20] sm:$0xff]
          %2772 = vrot.lane.b32.xlu0 %v2764, 73
          %v2773 = vpop.permute.xlu0 %2772
          %2774 = vrot.lane.b32.xlu0 %v2765, 73
          %v2775 = vpop.permute.xlu0 %2774
          %2776 = vrot.lane.b32.xlu0 %v2766, 73
          %v2777 = vpop.permute.xlu0 %2776
          %2778 = vrot.lane.b32.xlu0 %v2767, 73
          %v2779 = vpop.permute.xlu0 %2778
          %v2780 = vsel %vm1261, %v2773, %v2775
          %v2781 = vsel %vm1261, %v2775, %v2777
          %v2782 = vsel %vm1261, %v2777, %v2779
          %2787 = vst [vmem:[#allocation3 + $0x9c0] sm:$0xff] %v2780
          %2788 = vst [vmem:[#allocation3 + $0x9c8] sm:$0xff] %v2781
          %2789 = vst [vmem:[#allocation3 + $0x9d0] sm:$0xff] %v2782
          %2790 = vst.msk [vmem:[#allocation3 + $0x9d8] sm:$0xff] %vm571, %v2779
          %v2791 = vld [vmem:[#allocation2 + $0x8] sm:$0xff]
          %v2792 = vld [vmem:[#allocation2 + $0x10] sm:$0xff]
          %v2793 = vld [vmem:[#allocation2 + $0x18] sm:$0xff]
          %v2794 = vld [vmem:[#allocation2 + $0x20] sm:$0xff]
          %2799 = vrot.lane.b32.xlu0 %v2791, 72
          %v2800 = vpop.permute.xlu0 %2799
          %2801 = vrot.lane.b32.xlu0 %v2792, 72
          %v2802 = vpop.permute.xlu0 %2801
          %2803 = vrot.lane.b32.xlu0 %v2793, 72
          %v2804 = vpop.permute.xlu0 %2803
          %2805 = vrot.lane.b32.xlu0 %v2794, 72
          %v2806 = vpop.permute.xlu0 %2805
          %v2807 = vsel %vm1289, %v2800, %v2802
          %v2808 = vsel %vm1289, %v2802, %v2804
          %v2809 = vsel %vm1289, %v2804, %v2806
          %2814 = vst [vmem:[#allocation3 + $0x9e0] sm:$0xff] %v2807
          %2815 = vst [vmem:[#allocation3 + $0x9e8] sm:$0xff] %v2808
          %2816 = vst [vmem:[#allocation3 + $0x9f0] sm:$0xff] %v2809
          %2817 = vst.msk [vmem:[#allocation3 + $0x9f8] sm:$0xff] %vm571, %v2806
          %v2818 = vld [vmem:[#allocation2 + $0x8] sm:$0xff]
          %v2819 = vld [vmem:[#allocation2 + $0x10] sm:$0xff]
          %v2820 = vld [vmem:[#allocation2 + $0x18] sm:$0xff]
          %v2821 = vld [vmem:[#allocation2 + $0x20] sm:$0xff]
          %2826 = vrot.lane.b32.xlu0 %v2818, 71
          %v2827 = vpop.permute.xlu0 %2826
          %2828 = vrot.lane.b32.xlu0 %v2819, 71
          %v2829 = vpop.permute.xlu0 %2828
          %2830 = vrot.lane.b32.xlu0 %v2820, 71
          %v2831 = vpop.permute.xlu0 %2830
          %2832 = vrot.lane.b32.xlu0 %v2821, 71
          %v2833 = vpop.permute.xlu0 %2832
          %v2834 = vsel %vm1317, %v2827, %v2829
          %v2835 = vsel %vm1317, %v2829, %v2831
          %v2836 = vsel %vm1317, %v2831, %v2833
          %2841 = vst [vmem:[#allocation3 + $0xa00] sm:$0xff] %v2834
          %2842 = vst [vmem:[#allocation3 + $0xa08] sm:$0xff] %v2835
          %2843 = vst [vmem:[#allocation3 + $0xa10] sm:$0xff] %v2836
          %2844 = vst.msk [vmem:[#allocation3 + $0xa18] sm:$0xff] %vm571, %v2833
          %v2845 = vld [vmem:[#allocation2 + $0x8] sm:$0xff]
          %v2846 = vld [vmem:[#allocation2 + $0x10] sm:$0xff]
          %v2847 = vld [vmem:[#allocation2 + $0x18] sm:$0xff]
          %v2848 = vld [vmem:[#allocation2 + $0x20] sm:$0xff]
          %2853 = vrot.lane.b32.xlu0 %v2845, 70
          %v2854 = vpop.permute.xlu0 %2853
          %2855 = vrot.lane.b32.xlu0 %v2846, 70
          %v2856 = vpop.permute.xlu0 %2855
          %2857 = vrot.lane.b32.xlu0 %v2847, 70
          %v2858 = vpop.permute.xlu0 %2857
          %2859 = vrot.lane.b32.xlu0 %v2848, 70
          %v2860 = vpop.permute.xlu0 %2859
          %v2861 = vsel %vm1345, %v2854, %v2856
          %v2862 = vsel %vm1345, %v2856, %v2858
          %v2863 = vsel %vm1345, %v2858, %v2860
          %2868 = vst [vmem:[#allocation3 + $0xa20] sm:$0xff] %v2861
          %2869 = vst [vmem:[#allocation3 + $0xa28] sm:$0xff] %v2862
          %2870 = vst [vmem:[#allocation3 + $0xa30] sm:$0xff] %v2863
          %2871 = vst.msk [vmem:[#allocation3 + $0xa38] sm:$0xff] %vm571, %v2860
          %v2872 = vld [vmem:[#allocation2 + $0x8] sm:$0xff]
          %v2873 = vld [vmem:[#allocation2 + $0x10] sm:$0xff]
          %v2874 = vld [vmem:[#allocation2 + $0x18] sm:$0xff]
          %v2875 = vld [vmem:[#allocation2 + $0x20] sm:$0xff]
          %2880 = vrot.lane.b32.xlu0 %v2872, 69
          %v2881 = vpop.permute.xlu0 %2880
          %2882 = vrot.lane.b32.xlu0 %v2873, 69
          %v2883 = vpop.permute.xlu0 %2882
          %2884 = vrot.lane.b32.xlu0 %v2874, 69
          %v2885 = vpop.permute.xlu0 %2884
          %2886 = vrot.lane.b32.xlu0 %v2875, 69
          %v2887 = vpop.permute.xlu0 %2886
          %v2888 = vsel %vm1373, %v2881, %v2883
          %v2889 = vsel %vm1373, %v2883, %v2885
          %v2890 = vsel %vm1373, %v2885, %v2887
          %2895 = vst [vmem:[#allocation3 + $0xa40] sm:$0xff] %v2888
          %2896 = vst [vmem:[#allocation3 + $0xa48] sm:$0xff] %v2889
          %2897 = vst [vmem:[#allocation3 + $0xa50] sm:$0xff] %v2890
          %2898 = vst.msk [vmem:[#allocation3 + $0xa58] sm:$0xff] %vm571, %v2887
          %v2899 = vld [vmem:[#allocation2 + $0x8] sm:$0xff]
          %v2900 = vld [vmem:[#allocation2 + $0x10] sm:$0xff]
          %v2901 = vld [vmem:[#allocation2 + $0x18] sm:$0xff]
          %v2902 = vld [vmem:[#allocation2 + $0x20] sm:$0xff]
          %2907 = vrot.lane.b32.xlu0 %v2899, 68
          %v2908 = vpop.permute.xlu0 %2907
          %2909 = vrot.lane.b32.xlu0 %v2900, 68
          %v2910 = vpop.permute.xlu0 %2909
          %2911 = vrot.lane.b32.xlu0 %v2901, 68
          %v2912 = vpop.permute.xlu0 %2911
          %2913 = vrot.lane.b32.xlu0 %v2902, 68
          %v2914 = vpop.permute.xlu0 %2913
          %v2915 = vsel %vm1401, %v2908, %v2910
          %v2916 = vsel %vm1401, %v2910, %v2912
          %v2917 = vsel %vm1401, %v2912, %v2914
          %2922 = vst [vmem:[#allocation3 + $0xa60] sm:$0xff] %v2915
          %2923 = vst [vmem:[#allocation3 + $0xa68] sm:$0xff] %v2916
          %2924 = vst [vmem:[#allocation3 + $0xa70] sm:$0xff] %v2917
          %2925 = vst.msk [vmem:[#allocation3 + $0xa78] sm:$0xff] %vm571, %v2914
          %v2926 = vld [vmem:[#allocation2 + $0x8] sm:$0xff]
          %v2927 = vld [vmem:[#allocation2 + $0x10] sm:$0xff]
          %v2928 = vld [vmem:[#allocation2 + $0x18] sm:$0xff]
          %v2929 = vld [vmem:[#allocation2 + $0x20] sm:$0xff]
          %2934 = vrot.lane.b32.xlu0 %v2926, 67
          %v2935 = vpop.permute.xlu0 %2934
          %2936 = vrot.lane.b32.xlu0 %v2927, 67
          %v2937 = vpop.permute.xlu0 %2936
          %2938 = vrot.lane.b32.xlu0 %v2928, 67
          %v2939 = vpop.permute.xlu0 %2938
          %2940 = vrot.lane.b32.xlu0 %v2929, 67
          %v2941 = vpop.permute.xlu0 %2940
          %v2942 = vsel %vm1429, %v2935, %v2937
          %v2943 = vsel %vm1429, %v2937, %v2939
          %v2944 = vsel %vm1429, %v2939, %v2941
          %2949 = vst [vmem:[#allocation3 + $0xa80] sm:$0xff] %v2942
          %2950 = vst [vmem:[#allocation3 + $0xa88] sm:$0xff] %v2943
          %2951 = vst [vmem:[#allocation3 + $0xa90] sm:$0xff] %v2944
          %2952 = vst.msk [vmem:[#allocation3 + $0xa98] sm:$0xff] %vm571, %v2941
          %v2953 = vld [vmem:[#allocation2 + $0x8] sm:$0xff]
          %v2954 = vld [vmem:[#allocation2 + $0x10] sm:$0xff]
          %v2955 = vld [vmem:[#allocation2 + $0x18] sm:$0xff]
          %v2956 = vld [vmem:[#allocation2 + $0x20] sm:$0xff]
          %2961 = vrot.lane.b32.xlu0 %v2953, 66
          %v2962 = vpop.permute.xlu0 %2961
          %2963 = vrot.lane.b32.xlu0 %v2954, 66
          %v2964 = vpop.permute.xlu0 %2963
          %2965 = vrot.lane.b32.xlu0 %v2955, 66
          %v2966 = vpop.permute.xlu0 %2965
          %2967 = vrot.lane.b32.xlu0 %v2956, 66
          %v2968 = vpop.permute.xlu0 %2967
          %v2969 = vsel %vm1457, %v2962, %v2964
          %v2970 = vsel %vm1457, %v2964, %v2966
          %v2971 = vsel %vm1457, %v2966, %v2968
          %2976 = vst [vmem:[#allocation3 + $0xaa0] sm:$0xff] %v2969
          %2977 = vst [vmem:[#allocation3 + $0xaa8] sm:$0xff] %v2970
          %2978 = vst [vmem:[#allocation3 + $0xab0] sm:$0xff] %v2971
          %2979 = vst.msk [vmem:[#allocation3 + $0xab8] sm:$0xff] %vm571, %v2968
          %v2980 = vld [vmem:[#allocation2 + $0x8] sm:$0xff]
          %v2981 = vld [vmem:[#allocation2 + $0x10] sm:$0xff]
          %v2982 = vld [vmem:[#allocation2 + $0x18] sm:$0xff]
          %v2983 = vld [vmem:[#allocation2 + $0x20] sm:$0xff]
          %2988 = vrot.lane.b32.xlu0 %v2980, 65
          %v2989 = vpop.permute.xlu0 %2988
          %2990 = vrot.lane.b32.xlu0 %v2981, 65
          %v2991 = vpop.permute.xlu0 %2990
          %2992 = vrot.lane.b32.xlu0 %v2982, 65
          %v2993 = vpop.permute.xlu0 %2992
          %2994 = vrot.lane.b32.xlu0 %v2983, 65
          %v2995 = vpop.permute.xlu0 %2994
          %vm2996 = vcmask 531456
          %v2997 = vsel %vm2996, %v2989, %v2991
          %v2998 = vsel %vm2996, %v2991, %v2993
          %v2999 = vsel %vm2996, %v2993, %v2995
          %3004 = vst [vmem:[#allocation3 + $0xac0] sm:$0xff] %v2997
          %3005 = vst [vmem:[#allocation3 + $0xac8] sm:$0xff] %v2998
          %3006 = vst [vmem:[#allocation3 + $0xad0] sm:$0xff] %v2999
          %3007 = vst.msk [vmem:[#allocation3 + $0xad8] sm:$0xff] %vm571, %v2995
          %v3008 = vld [vmem:[#allocation2 + $0x8] sm:$0xff]
          %v3009 = vld [vmem:[#allocation2 + $0x10] sm:$0xff]
          %v3010 = vld [vmem:[#allocation2 + $0x18] sm:$0xff]
          %v3011 = vld [vmem:[#allocation2 + $0x20] sm:$0xff]
          %3016 = vrot.lane.b32.xlu0 %v3008, 64
          %v3017 = vpop.permute.xlu0 %3016
          %3018 = vrot.lane.b32.xlu0 %v3009, 64
          %v3019 = vpop.permute.xlu0 %3018
          %3020 = vrot.lane.b32.xlu0 %v3010, 64
          %v3021 = vpop.permute.xlu0 %3020
          %3022 = vrot.lane.b32.xlu0 %v3011, 64
          %v3023 = vpop.permute.xlu0 %3022
          %vm3024 = vcmask 523264
          %v3025 = vsel %vm3024, %v3017, %v3019
          %v3026 = vsel %vm3024, %v3019, %v3021
          %v3027 = vsel %vm3024, %v3021, %v3023
          %3032 = vst [vmem:[#allocation3 + $0xae0] sm:$0xff] %v3025
          %3033 = vst [vmem:[#allocation3 + $0xae8] sm:$0xff] %v3026
          %3034 = vst [vmem:[#allocation3 + $0xaf0] sm:$0xff] %v3027
          %3035 = vst.msk [vmem:[#allocation3 + $0xaf8] sm:$0xff] %vm571, %v3023
          %v3036 = vld [vmem:[#allocation2 + $0x8] sm:$0xff]
          %v3037 = vld [vmem:[#allocation2 + $0x10] sm:$0xff]
          %v3038 = vld [vmem:[#allocation2 + $0x18] sm:$0xff]
          %v3039 = vld [vmem:[#allocation2 + $0x20] sm:$0xff]
          %3044 = vrot.lane.b32.xlu0 %v3036, 48
          %v3045 = vpop.permute.xlu0 %3044
          %3046 = vrot.lane.b32.xlu0 %v3037, 48
          %v3047 = vpop.permute.xlu0 %3046
          %3048 = vrot.lane.b32.xlu0 %v3038, 48
          %v3049 = vpop.permute.xlu0 %3048
          %3050 = vrot.lane.b32.xlu0 %v3039, 48
          %v3051 = vpop.permute.xlu0 %3050
          %v3052 = vsel %vm1541, %v3045, %v3047
          %v3053 = vsel %vm1541, %v3047, %v3049
          %v3054 = vsel %vm1541, %v3049, %v3051
          %3059 = vst [vmem:[#allocation3 + $0xb00] sm:$0xff] %v3052
          %3060 = vst [vmem:[#allocation3 + $0xb08] sm:$0xff] %v3053
          %3061 = vst [vmem:[#allocation3 + $0xb10] sm:$0xff] %v3054
          %3062 = vst.msk [vmem:[#allocation3 + $0xb18] sm:$0xff] %vm571, %v3051
          %v3063 = vld [vmem:[#allocation2 + $0x8] sm:$0xff]
          %v3064 = vld [vmem:[#allocation2 + $0x10] sm:$0xff]
          %v3065 = vld [vmem:[#allocation2 + $0x18] sm:$0xff]
          %v3066 = vld [vmem:[#allocation2 + $0x20] sm:$0xff]
          %3071 = vrot.lane.b32.xlu0 %v3063, 47
          %v3072 = vpop.permute.xlu0 %3071
          %3073 = vrot.lane.b32.xlu0 %v3064, 47
          %v3074 = vpop.permute.xlu0 %3073
          %3075 = vrot.lane.b32.xlu0 %v3065, 47
          %v3076 = vpop.permute.xlu0 %3075
          %3077 = vrot.lane.b32.xlu0 %v3066, 47
          %v3078 = vpop.permute.xlu0 %3077
          %v3079 = vsel %vm1569, %v3072, %v3074
          %v3080 = vsel %vm1569, %v3074, %v3076
          %v3081 = vsel %vm1569, %v3076, %v3078
          %3086 = vst [vmem:[#allocation3 + $0xb20] sm:$0xff] %v3079
          %3087 = vst [vmem:[#allocation3 + $0xb28] sm:$0xff] %v3080
          %3088 = vst [vmem:[#allocation3 + $0xb30] sm:$0xff] %v3081
          %3089 = vst.msk [vmem:[#allocation3 + $0xb38] sm:$0xff] %vm571, %v3078
          %v3090 = vld [vmem:[#allocation2 + $0x8] sm:$0xff]
          %v3091 = vld [vmem:[#allocation2 + $0x10] sm:$0xff]
          %v3092 = vld [vmem:[#allocation2 + $0x18] sm:$0xff]
          %v3093 = vld [vmem:[#allocation2 + $0x20] sm:$0xff]
          %3098 = vrot.lane.b32.xlu0 %v3090, 46
          %v3099 = vpop.permute.xlu0 %3098
          %3100 = vrot.lane.b32.xlu0 %v3091, 46
          %v3101 = vpop.permute.xlu0 %3100
          %3102 = vrot.lane.b32.xlu0 %v3092, 46
          %v3103 = vpop.permute.xlu0 %3102
          %3104 = vrot.lane.b32.xlu0 %v3093, 46
          %v3105 = vpop.permute.xlu0 %3104
          %v3106 = vsel %vm251, %v3099, %v3101
          %v3107 = vsel %vm251, %v3101, %v3103
          %v3108 = vsel %vm251, %v3103, %v3105
          %3113 = vst [vmem:[#allocation3 + $0xb40] sm:$0xff] %v3106
          %3114 = vst [vmem:[#allocation3 + $0xb48] sm:$0xff] %v3107
          %3115 = vst [vmem:[#allocation3 + $0xb50] sm:$0xff] %v3108
          %3116 = vst.msk [vmem:[#allocation3 + $0xb58] sm:$0xff] %vm571, %v3105
          %v3117 = vld [vmem:[#allocation2 + $0x8] sm:$0xff]
          %v3118 = vld [vmem:[#allocation2 + $0x10] sm:$0xff]
          %v3119 = vld [vmem:[#allocation2 + $0x18] sm:$0xff]
          %v3120 = vld [vmem:[#allocation2 + $0x20] sm:$0xff]
          %3125 = vrot.lane.b32.xlu0 %v3117, 45
          %v3126 = vpop.permute.xlu0 %3125
          %3127 = vrot.lane.b32.xlu0 %v3118, 45
          %v3128 = vpop.permute.xlu0 %3127
          %3129 = vrot.lane.b32.xlu0 %v3119, 45
          %v3130 = vpop.permute.xlu0 %3129
          %3131 = vrot.lane.b32.xlu0 %v3120, 45
          %v3132 = vpop.permute.xlu0 %3131
          %v3133 = vsel %vm1624, %v3126, %v3128
          %v3134 = vsel %vm1624, %v3128, %v3130
          %v3135 = vsel %vm1624, %v3130, %v3132
          %3140 = vst [vmem:[#allocation3 + $0xb60] sm:$0xff] %v3133
          %3141 = vst [vmem:[#allocation3 + $0xb68] sm:$0xff] %v3134
          %3142 = vst [vmem:[#allocation3 + $0xb70] sm:$0xff] %v3135
          %3143 = vst.msk [vmem:[#allocation3 + $0xb78] sm:$0xff] %vm571, %v3132
          %v3144 = vld [vmem:[#allocation2 + $0x8] sm:$0xff]
          %v3145 = vld [vmem:[#allocation2 + $0x10] sm:$0xff]
          %v3146 = vld [vmem:[#allocation2 + $0x18] sm:$0xff]
          %v3147 = vld [vmem:[#allocation2 + $0x20] sm:$0xff]
          %3152 = vrot.lane.b32.xlu0 %v3144, 44
          %v3153 = vpop.permute.xlu0 %3152
          %3154 = vrot.lane.b32.xlu0 %v3145, 44
          %v3155 = vpop.permute.xlu0 %3154
          %3156 = vrot.lane.b32.xlu0 %v3146, 44
          %v3157 = vpop.permute.xlu0 %3156
          %3158 = vrot.lane.b32.xlu0 %v3147, 44
          %v3159 = vpop.permute.xlu0 %3158
          %v3160 = vsel %vm1652, %v3153, %v3155
          %v3161 = vsel %vm1652, %v3155, %v3157
          %v3162 = vsel %vm1652, %v3157, %v3159
          %3167 = vst [vmem:[#allocation3 + $0xb80] sm:$0xff] %v3160
          %3168 = vst [vmem:[#allocation3 + $0xb88] sm:$0xff] %v3161
          %3169 = vst [vmem:[#allocation3 + $0xb90] sm:$0xff] %v3162
          %3170 = vst.msk [vmem:[#allocation3 + $0xb98] sm:$0xff] %vm571, %v3159
          %v3171 = vld [vmem:[#allocation2 + $0x8] sm:$0xff]
          %v3172 = vld [vmem:[#allocation2 + $0x10] sm:$0xff]
          %v3173 = vld [vmem:[#allocation2 + $0x18] sm:$0xff]
          %v3174 = vld [vmem:[#allocation2 + $0x20] sm:$0xff]
          %3179 = vrot.lane.b32.xlu0 %v3171, 43
          %v3180 = vpop.permute.xlu0 %3179
          %3181 = vrot.lane.b32.xlu0 %v3172, 43
          %v3182 = vpop.permute.xlu0 %3181
          %3183 = vrot.lane.b32.xlu0 %v3173, 43
          %v3184 = vpop.permute.xlu0 %3183
          %3185 = vrot.lane.b32.xlu0 %v3174, 43
          %v3186 = vpop.permute.xlu0 %3185
          %v3187 = vsel %vm1680, %v3180, %v3182
          %v3188 = vsel %vm1680, %v3182, %v3184
          %v3189 = vsel %vm1680, %v3184, %v3186
          %3194 = vst [vmem:[#allocation3 + $0xba0] sm:$0xff] %v3187
          %3195 = vst [vmem:[#allocation3 + $0xba8] sm:$0xff] %v3188
          %3196 = vst [vmem:[#allocation3 + $0xbb0] sm:$0xff] %v3189
          %3197 = vst.msk [vmem:[#allocation3 + $0xbb8] sm:$0xff] %vm571, %v3186
          %v3198 = vld [vmem:[#allocation2 + $0x8] sm:$0xff]
          %v3199 = vld [vmem:[#allocation2 + $0x10] sm:$0xff]
          %v3200 = vld [vmem:[#allocation2 + $0x18] sm:$0xff]
          %v3201 = vld [vmem:[#allocation2 + $0x20] sm:$0xff]
          %3206 = vrot.lane.b32.xlu0 %v3198, 42
          %v3207 = vpop.permute.xlu0 %3206
          %3208 = vrot.lane.b32.xlu0 %v3199, 42
          %v3209 = vpop.permute.xlu0 %3208
          %3210 = vrot.lane.b32.xlu0 %v3200, 42
          %v3211 = vpop.permute.xlu0 %3210
          %3212 = vrot.lane.b32.xlu0 %v3201, 42
          %v3213 = vpop.permute.xlu0 %3212
          %v3214 = vsel %vm1708, %v3207, %v3209
          %v3215 = vsel %vm1708, %v3209, %v3211
          %v3216 = vsel %vm1708, %v3211, %v3213
          %3221 = vst [vmem:[#allocation3 + $0xbc0] sm:$0xff] %v3214
          %3222 = vst [vmem:[#allocation3 + $0xbc8] sm:$0xff] %v3215
          %3223 = vst [vmem:[#allocation3 + $0xbd0] sm:$0xff] %v3216
          %3224 = vst.msk [vmem:[#allocation3 + $0xbd8] sm:$0xff] %vm571, %v3213
          %v3225 = vld [vmem:[#allocation2 + $0x8] sm:$0xff]
          %v3226 = vld [vmem:[#allocation2 + $0x10] sm:$0xff]
          %v3227 = vld [vmem:[#allocation2 + $0x18] sm:$0xff]
          %v3228 = vld [vmem:[#allocation2 + $0x20] sm:$0xff]
          %3233 = vrot.lane.b32.xlu0 %v3225, 41
          %v3234 = vpop.permute.xlu0 %3233
          %3235 = vrot.lane.b32.xlu0 %v3226, 41
          %v3236 = vpop.permute.xlu0 %3235
          %3237 = vrot.lane.b32.xlu0 %v3227, 41
          %v3238 = vpop.permute.xlu0 %3237
          %3239 = vrot.lane.b32.xlu0 %v3228, 41
          %v3240 = vpop.permute.xlu0 %3239
          %v3241 = vsel %vm1736, %v3234, %v3236
          %v3242 = vsel %vm1736, %v3236, %v3238
          %v3243 = vsel %vm1736, %v3238, %v3240
          %3248 = vst [vmem:[#allocation3 + $0xbe0] sm:$0xff] %v3241
          %3249 = vst [vmem:[#allocation3 + $0xbe8] sm:$0xff] %v3242
          %3250 = vst [vmem:[#allocation3 + $0xbf0] sm:$0xff] %v3243
          %3251 = vst.msk [vmem:[#allocation3 + $0xbf8] sm:$0xff] %vm571, %v3240
          %v3252 = vld [vmem:[#allocation2 + $0x8] sm:$0xff]
          %v3253 = vld [vmem:[#allocation2 + $0x10] sm:$0xff]
          %v3254 = vld [vmem:[#allocation2 + $0x18] sm:$0xff]
          %v3255 = vld [vmem:[#allocation2 + $0x20] sm:$0xff]
          %3260 = vrot.lane.b32.xlu0 %v3252, 40
          %v3261 = vpop.permute.xlu0 %3260
          %3262 = vrot.lane.b32.xlu0 %v3253, 40
          %v3263 = vpop.permute.xlu0 %3262
          %3264 = vrot.lane.b32.xlu0 %v3254, 40
          %v3265 = vpop.permute.xlu0 %3264
          %3266 = vrot.lane.b32.xlu0 %v3255, 40
          %v3267 = vpop.permute.xlu0 %3266
          %v3268 = vsel %vm1764, %v3261, %v3263
          %v3269 = vsel %vm1764, %v3263, %v3265
          %v3270 = vsel %vm1764, %v3265, %v3267
          %3275 = vst [vmem:[#allocation3 + $0xc00] sm:$0xff] %v3268
          %3276 = vst [vmem:[#allocation3 + $0xc08] sm:$0xff] %v3269
          %3277 = vst [vmem:[#allocation3 + $0xc10] sm:$0xff] %v3270
          %3278 = vst.msk [vmem:[#allocation3 + $0xc18] sm:$0xff] %vm571, %v3267
          %v3279 = vld [vmem:[#allocation2 + $0x8] sm:$0xff]
          %v3280 = vld [vmem:[#allocation2 + $0x10] sm:$0xff]
          %v3281 = vld [vmem:[#allocation2 + $0x18] sm:$0xff]
          %v3282 = vld [vmem:[#allocation2 + $0x20] sm:$0xff]
          %3287 = vrot.lane.b32.xlu0 %v3279, 39
          %v3288 = vpop.permute.xlu0 %3287
          %3289 = vrot.lane.b32.xlu0 %v3280, 39
          %v3290 = vpop.permute.xlu0 %3289
          %3291 = vrot.lane.b32.xlu0 %v3281, 39
          %v3292 = vpop.permute.xlu0 %3291
          %3293 = vrot.lane.b32.xlu0 %v3282, 39
          %v3294 = vpop.permute.xlu0 %3293
          %vm3295 = vcmask 318464
          %v3296 = vsel %vm3295, %v3288, %v3290
          %v3297 = vsel %vm3295, %v3290, %v3292
          %v3298 = vsel %vm3295, %v3292, %v3294
          %3303 = vst [vmem:[#allocation3 + $0xc20] sm:$0xff] %v3296
          %3304 = vst [vmem:[#allocation3 + $0xc28] sm:$0xff] %v3297
          %3305 = vst [vmem:[#allocation3 + $0xc30] sm:$0xff] %v3298
          %3306 = vst.msk [vmem:[#allocation3 + $0xc38] sm:$0xff] %vm571, %v3294
          %v3307 = vld [vmem:[#allocation2 + $0x8] sm:$0xff]
          %v3308 = vld [vmem:[#allocation2 + $0x10] sm:$0xff]
          %v3309 = vld [vmem:[#allocation2 + $0x18] sm:$0xff]
          %v3310 = vld [vmem:[#allocation2 + $0x20] sm:$0xff]
          %3315 = vrot.lane.b32.xlu0 %v3307, 38
          %v3316 = vpop.permute.xlu0 %3315
          %3317 = vrot.lane.b32.xlu0 %v3308, 38
          %v3318 = vpop.permute.xlu0 %3317
          %3319 = vrot.lane.b32.xlu0 %v3309, 38
          %v3320 = vpop.permute.xlu0 %3319
          %3321 = vrot.lane.b32.xlu0 %v3310, 38
          %v3322 = vpop.permute.xlu0 %3321
          %vm3323 = vcmask 310272
          %v3324 = vsel %vm3323, %v3316, %v3318
          %v3325 = vsel %vm3323, %v3318, %v3320
          %v3326 = vsel %vm3323, %v3320, %v3322
          %3331 = vst [vmem:[#allocation3 + $0xc40] sm:$0xff] %v3324
          %3332 = vst [vmem:[#allocation3 + $0xc48] sm:$0xff] %v3325
          %3333 = vst [vmem:[#allocation3 + $0xc50] sm:$0xff] %v3326
          %3334 = vst.msk [vmem:[#allocation3 + $0xc58] sm:$0xff] %vm571, %v3322
          %v3335 = vld [vmem:[#allocation2 + $0x8] sm:$0xff]
          %v3336 = vld [vmem:[#allocation2 + $0x10] sm:$0xff]
          %v3337 = vld [vmem:[#allocation2 + $0x18] sm:$0xff]
          %v3338 = vld [vmem:[#allocation2 + $0x20] sm:$0xff]
          %v3339 = vld [vmem:[#allocation2 + $0x28] sm:$0xff]
          %3345 = vrot.lane.b32.xlu0 %v3335, 22
          %v3346 = vpop.permute.xlu0 %3345
          %3347 = vrot.lane.b32.xlu0 %v3336, 22
          %v3348 = vpop.permute.xlu0 %3347
          %3349 = vrot.lane.b32.xlu0 %v3337, 22
          %v3350 = vpop.permute.xlu0 %3349
          %3351 = vrot.lane.b32.xlu0 %v3338, 22
          %v3352 = vpop.permute.xlu0 %3351
          %3353 = vrot.lane.b32.xlu0 %v3339, 22
          %v3354 = vpop.permute.xlu0 %3353
          %v3355 = vsel %vm1862, %v3346, %v3348
          %v3356 = vsel %vm1862, %v3348, %v3350
          %v3357 = vsel %vm1862, %v3350, %v3352
          %v3358 = vsel %vm1862, %v3352, %v3354
          %3363 = vst [vmem:[#allocation3 + $0xc60] sm:$0xff] %v3355
          %3364 = vst [vmem:[#allocation3 + $0xc68] sm:$0xff] %v3356
          %3365 = vst [vmem:[#allocation3 + $0xc70] sm:$0xff] %v3357
          %3366 = vst.msk [vmem:[#allocation3 + $0xc78] sm:$0xff] %vm571, %v3358
          %v3367 = vld [vmem:[#allocation2 + $0x8] sm:$0xff]
          %v3368 = vld [vmem:[#allocation2 + $0x10] sm:$0xff]
          %v3369 = vld [vmem:[#allocation2 + $0x18] sm:$0xff]
          %v3370 = vld [vmem:[#allocation2 + $0x20] sm:$0xff]
          %v3371 = vld [vmem:[#allocation2 + $0x28] sm:$0xff]
          %3377 = vrot.lane.b32.xlu0 %v3367, 21
          %v3378 = vpop.permute.xlu0 %3377
          %3379 = vrot.lane.b32.xlu0 %v3368, 21
          %v3380 = vpop.permute.xlu0 %3379
          %3381 = vrot.lane.b32.xlu0 %v3369, 21
          %v3382 = vpop.permute.xlu0 %3381
          %3383 = vrot.lane.b32.xlu0 %v3370, 21
          %v3384 = vpop.permute.xlu0 %3383
          %3385 = vrot.lane.b32.xlu0 %v3371, 21
          %v3386 = vpop.permute.xlu0 %3385
          %v3387 = vsel %vm1895, %v3378, %v3380
          %v3388 = vsel %vm1895, %v3380, %v3382
          %v3389 = vsel %vm1895, %v3382, %v3384
          %v3390 = vsel %vm1895, %v3384, %v3386
          %3395 = vst [vmem:[#allocation3 + $0xc80] sm:$0xff] %v3387
          %3396 = vst [vmem:[#allocation3 + $0xc88] sm:$0xff] %v3388
          %3397 = vst [vmem:[#allocation3 + $0xc90] sm:$0xff] %v3389
          %3398 = vst.msk [vmem:[#allocation3 + $0xc98] sm:$0xff] %vm571, %v3390
          %v3399 = vld [vmem:[#allocation2 + $0x8] sm:$0xff]
          %v3400 = vld [vmem:[#allocation2 + $0x10] sm:$0xff]
          %v3401 = vld [vmem:[#allocation2 + $0x18] sm:$0xff]
          %v3402 = vld [vmem:[#allocation2 + $0x20] sm:$0xff]
          %v3403 = vld [vmem:[#allocation2 + $0x28] sm:$0xff]
          %3409 = vrot.lane.b32.xlu0 %v3399, 20
          %v3410 = vpop.permute.xlu0 %3409
          %3411 = vrot.lane.b32.xlu0 %v3400, 20
          %v3412 = vpop.permute.xlu0 %3411
          %3413 = vrot.lane.b32.xlu0 %v3401, 20
          %v3414 = vpop.permute.xlu0 %3413
          %3415 = vrot.lane.b32.xlu0 %v3402, 20
          %v3416 = vpop.permute.xlu0 %3415
          %3417 = vrot.lane.b32.xlu0 %v3403, 20
          %v3418 = vpop.permute.xlu0 %3417
          %v3419 = vsel %vm1928, %v3410, %v3412
          %v3420 = vsel %vm1928, %v3412, %v3414
          %v3421 = vsel %vm1928, %v3414, %v3416
          %v3422 = vsel %vm1928, %v3416, %v3418
          %3427 = vst [vmem:[#allocation3 + $0xca0] sm:$0xff] %v3419
          %3428 = vst [vmem:[#allocation3 + $0xca8] sm:$0xff] %v3420
          %3429 = vst [vmem:[#allocation3 + $0xcb0] sm:$0xff] %v3421
          %3430 = vst.msk [vmem:[#allocation3 + $0xcb8] sm:$0xff] %vm571, %v3422
          %v3431 = vld [vmem:[#allocation2 + $0x8] sm:$0xff]
          %v3432 = vld [vmem:[#allocation2 + $0x10] sm:$0xff]
          %v3433 = vld [vmem:[#allocation2 + $0x18] sm:$0xff]
          %v3434 = vld [vmem:[#allocation2 + $0x20] sm:$0xff]
          %v3435 = vld [vmem:[#allocation2 + $0x28] sm:$0xff]
          %3441 = vrot.lane.b32.xlu0 %v3431, 19
          %v3442 = vpop.permute.xlu0 %3441
          %3443 = vrot.lane.b32.xlu0 %v3432, 19
          %v3444 = vpop.permute.xlu0 %3443
          %3445 = vrot.lane.b32.xlu0 %v3433, 19
          %v3446 = vpop.permute.xlu0 %3445
          %3447 = vrot.lane.b32.xlu0 %v3434, 19
          %v3448 = vpop.permute.xlu0 %3447
          %3449 = vrot.lane.b32.xlu0 %v3435, 19
          %v3450 = vpop.permute.xlu0 %3449
          %v3451 = vsel %vm1961, %v3442, %v3444
          %v3452 = vsel %vm1961, %v3444, %v3446
          %v3453 = vsel %vm1961, %v3446, %v3448
          %v3454 = vsel %vm1961, %v3448, %v3450
          %3459 = vst [vmem:[#allocation3 + $0xcc0] sm:$0xff] %v3451
          %3460 = vst [vmem:[#allocation3 + $0xcc8] sm:$0xff] %v3452
          %3461 = vst [vmem:[#allocation3 + $0xcd0] sm:$0xff] %v3453
          %3462 = vst.msk [vmem:[#allocation3 + $0xcd8] sm:$0xff] %vm571, %v3454
          %v3463 = vld [vmem:[#allocation2 + $0x8] sm:$0xff]
          %v3464 = vld [vmem:[#allocation2 + $0x10] sm:$0xff]
          %v3465 = vld [vmem:[#allocation2 + $0x18] sm:$0xff]
          %v3466 = vld [vmem:[#allocation2 + $0x20] sm:$0xff]
          %v3467 = vld [vmem:[#allocation2 + $0x28] sm:$0xff]
          %3473 = vrot.lane.b32.xlu0 %v3463, 18
          %v3474 = vpop.permute.xlu0 %3473
          %3475 = vrot.lane.b32.xlu0 %v3464, 18
          %v3476 = vpop.permute.xlu0 %3475
          %3477 = vrot.lane.b32.xlu0 %v3465, 18
          %v3478 = vpop.permute.xlu0 %3477
          %3479 = vrot.lane.b32.xlu0 %v3466, 18
          %v3480 = vpop.permute.xlu0 %3479
          %3481 = vrot.lane.b32.xlu0 %v3467, 18
          %v3482 = vpop.permute.xlu0 %3481
          %v3483 = vsel %vm1994, %v3474, %v3476
          %v3484 = vsel %vm1994, %v3476, %v3478
          %v3485 = vsel %vm1994, %v3478, %v3480
          %v3486 = vsel %vm1994, %v3480, %v3482
          %3491 = vst [vmem:[#allocation3 + $0xce0] sm:$0xff] %v3483
          %3492 = vst [vmem:[#allocation3 + $0xce8] sm:$0xff] %v3484
          %3493 = vst [vmem:[#allocation3 + $0xcf0] sm:$0xff] %v3485
          %3494 = vst.msk [vmem:[#allocation3 + $0xcf8] sm:$0xff] %vm571, %v3486
          %v3495 = vld [vmem:[#allocation2 + $0x8] sm:$0xff]
          %v3496 = vld [vmem:[#allocation2 + $0x10] sm:$0xff]
          %v3497 = vld [vmem:[#allocation2 + $0x18] sm:$0xff]
          %v3498 = vld [vmem:[#allocation2 + $0x20] sm:$0xff]
          %v3499 = vld [vmem:[#allocation2 + $0x28] sm:$0xff]
          %3505 = vrot.lane.b32.xlu0 %v3495, 17
          %v3506 = vpop.permute.xlu0 %3505
          %3507 = vrot.lane.b32.xlu0 %v3496, 17
          %v3508 = vpop.permute.xlu0 %3507
          %3509 = vrot.lane.b32.xlu0 %v3497, 17
          %v3510 = vpop.permute.xlu0 %3509
          %3511 = vrot.lane.b32.xlu0 %v3498, 17
          %v3512 = vpop.permute.xlu0 %3511
          %3513 = vrot.lane.b32.xlu0 %v3499, 17
          %v3514 = vpop.permute.xlu0 %3513
          %v3515 = vsel %vm2027, %v3506, %v3508
          %v3516 = vsel %vm2027, %v3508, %v3510
          %v3517 = vsel %vm2027, %v3510, %v3512
          %v3518 = vsel %vm2027, %v3512, %v3514
          %3523 = vst [vmem:[#allocation3 + $0xd00] sm:$0xff] %v3515
          %3524 = vst [vmem:[#allocation3 + $0xd08] sm:$0xff] %v3516
          %3525 = vst [vmem:[#allocation3 + $0xd10] sm:$0xff] %v3517
          %3526 = vst.msk [vmem:[#allocation3 + $0xd18] sm:$0xff] %vm571, %v3518
          %v3527 = vld [vmem:[#allocation2 + $0x8] sm:$0xff]
          %v3528 = vld [vmem:[#allocation2 + $0x10] sm:$0xff]
          %v3529 = vld [vmem:[#allocation2 + $0x18] sm:$0xff]
          %v3530 = vld [vmem:[#allocation2 + $0x20] sm:$0xff]
          %v3531 = vld [vmem:[#allocation2 + $0x28] sm:$0xff]
          %3537 = vrot.lane.b32.xlu0 %v3527, 16
          %v3538 = vpop.permute.xlu0 %3537
          %3539 = vrot.lane.b32.xlu0 %v3528, 16
          %v3540 = vpop.permute.xlu0 %3539
          %3541 = vrot.lane.b32.xlu0 %v3529, 16
          %v3542 = vpop.permute.xlu0 %3541
          %3543 = vrot.lane.b32.xlu0 %v3530, 16
          %v3544 = vpop.permute.xlu0 %3543
          %3545 = vrot.lane.b32.xlu0 %v3531, 16
          %v3546 = vpop.permute.xlu0 %3545
          %v3547 = vsel %vm2060, %v3538, %v3540
          %v3548 = vsel %vm2060, %v3540, %v3542
          %v3549 = vsel %vm2060, %v3542, %v3544
          %v3550 = vsel %vm2060, %v3544, %v3546
          %3555 = vst [vmem:[#allocation3 + $0xd20] sm:$0xff] %v3547
          %3556 = vst [vmem:[#allocation3 + $0xd28] sm:$0xff] %v3548
          %3557 = vst [vmem:[#allocation3 + $0xd30] sm:$0xff] %v3549
          %3558 = vst.msk [vmem:[#allocation3 + $0xd38] sm:$0xff] %vm571, %v3550
          %v3559 = vld [vmem:[#allocation2 + $0x8] sm:$0xff]
          %v3560 = vld [vmem:[#allocation2 + $0x10] sm:$0xff]
          %v3561 = vld [vmem:[#allocation2 + $0x18] sm:$0xff]
          %v3562 = vld [vmem:[#allocation2 + $0x20] sm:$0xff]
          %v3563 = vld [vmem:[#allocation2 + $0x28] sm:$0xff]
          %3569 = vrot.lane.b32.xlu0 %v3559, 15
          %v3570 = vpop.permute.xlu0 %3569
          %3571 = vrot.lane.b32.xlu0 %v3560, 15
          %v3572 = vpop.permute.xlu0 %3571
          %3573 = vrot.lane.b32.xlu0 %v3561, 15
          %v3574 = vpop.permute.xlu0 %3573
          %3575 = vrot.lane.b32.xlu0 %v3562, 15
          %v3576 = vpop.permute.xlu0 %3575
          %3577 = vrot.lane.b32.xlu0 %v3563, 15
          %v3578 = vpop.permute.xlu0 %3577
          %v3579 = vsel %vm2093, %v3570, %v3572
          %v3580 = vsel %vm2093, %v3572, %v3574
          %v3581 = vsel %vm2093, %v3574, %v3576
          %v3582 = vsel %vm2093, %v3576, %v3578
          %3587 = vst [vmem:[#allocation3 + $0xd40] sm:$0xff] %v3579
          %3588 = vst [vmem:[#allocation3 + $0xd48] sm:$0xff] %v3580
          %3589 = vst [vmem:[#allocation3 + $0xd50] sm:$0xff] %v3581
          %3590 = vst.msk [vmem:[#allocation3 + $0xd58] sm:$0xff] %vm571, %v3582
          %v3591 = vld [vmem:[#allocation2 + $0x8] sm:$0xff]
          %v3592 = vld [vmem:[#allocation2 + $0x10] sm:$0xff]
          %v3593 = vld [vmem:[#allocation2 + $0x18] sm:$0xff]
          %v3594 = vld [vmem:[#allocation2 + $0x20] sm:$0xff]
          %v3595 = vld [vmem:[#allocation2 + $0x28] sm:$0xff]
          %3601 = vrot.lane.b32.xlu0 %v3591, 14
          %v3602 = vpop.permute.xlu0 %3601
          %3603 = vrot.lane.b32.xlu0 %v3592, 14
          %v3604 = vpop.permute.xlu0 %3603
          %3605 = vrot.lane.b32.xlu0 %v3593, 14
          %v3606 = vpop.permute.xlu0 %3605
          %3607 = vrot.lane.b32.xlu0 %v3594, 14
          %v3608 = vpop.permute.xlu0 %3607
          %3609 = vrot.lane.b32.xlu0 %v3595, 14
          %v3610 = vpop.permute.xlu0 %3609
          %v3611 = vsel %vm2126, %v3602, %v3604
          %v3612 = vsel %vm2126, %v3604, %v3606
          %v3613 = vsel %vm2126, %v3606, %v3608
          %v3614 = vsel %vm2126, %v3608, %v3610
          %3619 = vst [vmem:[#allocation3 + $0xd60] sm:$0xff] %v3611
          %3620 = vst [vmem:[#allocation3 + $0xd68] sm:$0xff] %v3612
          %3621 = vst [vmem:[#allocation3 + $0xd70] sm:$0xff] %v3613
          %3622 = vst.msk [vmem:[#allocation3 + $0xd78] sm:$0xff] %vm571, %v3614
          %v3623 = vld [vmem:[#allocation2 + $0x8] sm:$0xff]
          %v3624 = vld [vmem:[#allocation2 + $0x10] sm:$0xff]
          %v3625 = vld [vmem:[#allocation2 + $0x18] sm:$0xff]
          %v3626 = vld [vmem:[#allocation2 + $0x20] sm:$0xff]
          %v3627 = vld [vmem:[#allocation2 + $0x28] sm:$0xff]
          %3633 = vrot.lane.b32.xlu0 %v3623, 13
          %v3634 = vpop.permute.xlu0 %3633
          %3635 = vrot.lane.b32.xlu0 %v3624, 13
          %v3636 = vpop.permute.xlu0 %3635
          %3637 = vrot.lane.b32.xlu0 %v3625, 13
          %v3638 = vpop.permute.xlu0 %3637
          %3639 = vrot.lane.b32.xlu0 %v3626, 13
          %v3640 = vpop.permute.xlu0 %3639
          %3641 = vrot.lane.b32.xlu0 %v3627, 13
          %v3642 = vpop.permute.xlu0 %3641
          %vm3643 = vcmask 105472
          %v3644 = vsel %vm3643, %v3634, %v3636
          %v3645 = vsel %vm3643, %v3636, %v3638
          %v3646 = vsel %vm3643, %v3638, %v3640
          %v3647 = vsel %vm3643, %v3640, %v3642
          %3652 = vst [vmem:[#allocation3 + $0xd80] sm:$0xff] %v3644
          %3653 = vst [vmem:[#allocation3 + $0xd88] sm:$0xff] %v3645
          %3654 = vst [vmem:[#allocation3 + $0xd90] sm:$0xff] %v3646
          %3655 = vst.msk [vmem:[#allocation3 + $0xd98] sm:$0xff] %vm571, %v3647
          %v3656 = vld [vmem:[#allocation2 + $0x8] sm:$0xff]
          %v3657 = vld [vmem:[#allocation2 + $0x10] sm:$0xff]
          %v3658 = vld [vmem:[#allocation2 + $0x18] sm:$0xff]
          %v3659 = vld [vmem:[#allocation2 + $0x20] sm:$0xff]
          %v3660 = vld [vmem:[#allocation2 + $0x28] sm:$0xff]
          %3666 = vrot.lane.b32.xlu0 %v3656, 12
          %v3667 = vpop.permute.xlu0 %3666
          %3668 = vrot.lane.b32.xlu0 %v3657, 12
          %v3669 = vpop.permute.xlu0 %3668
          %3670 = vrot.lane.b32.xlu0 %v3658, 12
          %v3671 = vpop.permute.xlu0 %3670
          %3672 = vrot.lane.b32.xlu0 %v3659, 12
          %v3673 = vpop.permute.xlu0 %3672
          %3674 = vrot.lane.b32.xlu0 %v3660, 12
          %v3675 = vpop.permute.xlu0 %3674
          %vm3676 = vcmask 97280
          %v3677 = vsel %vm3676, %v3667, %v3669
          %v3678 = vsel %vm3676, %v3669, %v3671
          %v3679 = vsel %vm3676, %v3671, %v3673
          %v3680 = vsel %vm3676, %v3673, %v3675
          %3685 = vst [vmem:[#allocation3 + $0xda0] sm:$0xff] %v3677
          %3686 = vst [vmem:[#allocation3 + $0xda8] sm:$0xff] %v3678
          %3687 = vst [vmem:[#allocation3 + $0xdb0] sm:$0xff] %v3679
          %3688 = vst.msk [vmem:[#allocation3 + $0xdb8] sm:$0xff] %vm571, %v3680
          %v3689 = vld [vmem:[#allocation2 + $0x10] sm:$0xff]
          %v3690 = vld [vmem:[#allocation2 + $0x18] sm:$0xff]
          %v3691 = vld [vmem:[#allocation2 + $0x20] sm:$0xff]
          %v3692 = vld [vmem:[#allocation2 + $0x28] sm:$0xff]
          %3697 = vrot.lane.b32.xlu0 %v3689, 124
          %v3698 = vpop.permute.xlu0 %3697
          %3699 = vrot.lane.b32.xlu0 %v3690, 124
          %v3700 = vpop.permute.xlu0 %3699
          %3701 = vrot.lane.b32.xlu0 %v3691, 124
          %v3702 = vpop.permute.xlu0 %3701
          %3703 = vrot.lane.b32.xlu0 %v3692, 124
          %v3704 = vpop.permute.xlu0 %3703
          %v3705 = vsel %vm673, %v3698, %v3700
          %v3706 = vsel %vm673, %v3700, %v3702
          %v3707 = vsel %vm673, %v3702, %v3704
          %3712 = vst [vmem:[#allocation3 + $0xdc0] sm:$0xff] %v3705
          %3713 = vst [vmem:[#allocation3 + $0xdc8] sm:$0xff] %v3706
          %3714 = vst [vmem:[#allocation3 + $0xdd0] sm:$0xff] %v3707
          %3715 = vst.msk [vmem:[#allocation3 + $0xdd8] sm:$0xff] %vm571, %v3704
          %v3716 = vld [vmem:[#allocation2 + $0x10] sm:$0xff]
          %v3717 = vld [vmem:[#allocation2 + $0x18] sm:$0xff]
          %v3718 = vld [vmem:[#allocation2 + $0x20] sm:$0xff]
          %v3719 = vld [vmem:[#allocation2 + $0x28] sm:$0xff]
          %3724 = vrot.lane.b32.xlu0 %v3716, 123
          %v3725 = vpop.permute.xlu0 %3724
          %3726 = vrot.lane.b32.xlu0 %v3717, 123
          %v3727 = vpop.permute.xlu0 %3726
          %3728 = vrot.lane.b32.xlu0 %v3718, 123
          %v3729 = vpop.permute.xlu0 %3728
          %3730 = vrot.lane.b32.xlu0 %v3719, 123
          %v3731 = vpop.permute.xlu0 %3730
          %v3732 = vsel %vm701, %v3725, %v3727
          %v3733 = vsel %vm701, %v3727, %v3729
          %v3734 = vsel %vm701, %v3729, %v3731
          %3739 = vst [vmem:[#allocation3 + $0xde0] sm:$0xff] %v3732
          %3740 = vst [vmem:[#allocation3 + $0xde8] sm:$0xff] %v3733
          %3741 = vst [vmem:[#allocation3 + $0xdf0] sm:$0xff] %v3734
          %3742 = vst.msk [vmem:[#allocation3 + $0xdf8] sm:$0xff] %vm571, %v3731
          %v3743 = vld [vmem:[#allocation2 + $0x10] sm:$0xff]
          %v3744 = vld [vmem:[#allocation2 + $0x18] sm:$0xff]
          %v3745 = vld [vmem:[#allocation2 + $0x20] sm:$0xff]
          %v3746 = vld [vmem:[#allocation2 + $0x28] sm:$0xff]
          %3751 = vrot.lane.b32.xlu0 %v3743, 122
          %v3752 = vpop.permute.xlu0 %3751
          %3753 = vrot.lane.b32.xlu0 %v3744, 122
          %v3754 = vpop.permute.xlu0 %3753
          %3755 = vrot.lane.b32.xlu0 %v3745, 122
          %v3756 = vpop.permute.xlu0 %3755
          %3757 = vrot.lane.b32.xlu0 %v3746, 122
          %v3758 = vpop.permute.xlu0 %3757
          %v3759 = vsel %vm729, %v3752, %v3754
          %v3760 = vsel %vm729, %v3754, %v3756
          %v3761 = vsel %vm729, %v3756, %v3758
          %3766 = vst [vmem:[#allocation3 + $0xe00] sm:$0xff] %v3759
          %3767 = vst [vmem:[#allocation3 + $0xe08] sm:$0xff] %v3760
          %3768 = vst [vmem:[#allocation3 + $0xe10] sm:$0xff] %v3761
          %3769 = vst.msk [vmem:[#allocation3 + $0xe18] sm:$0xff] %vm571, %v3758
          %v3770 = vld [vmem:[#allocation2 + $0x10] sm:$0xff]
          %v3771 = vld [vmem:[#allocation2 + $0x18] sm:$0xff]
          %v3772 = vld [vmem:[#allocation2 + $0x20] sm:$0xff]
          %v3773 = vld [vmem:[#allocation2 + $0x28] sm:$0xff]
          %3778 = vrot.lane.b32.xlu0 %v3770, 121
          %v3779 = vpop.permute.xlu0 %3778
          %3780 = vrot.lane.b32.xlu0 %v3771, 121
          %v3781 = vpop.permute.xlu0 %3780
          %3782 = vrot.lane.b32.xlu0 %v3772, 121
          %v3783 = vpop.permute.xlu0 %3782
          %3784 = vrot.lane.b32.xlu0 %v3773, 121
          %v3785 = vpop.permute.xlu0 %3784
          %v3786 = vsel %vm757, %v3779, %v3781
          %v3787 = vsel %vm757, %v3781, %v3783
          %v3788 = vsel %vm757, %v3783, %v3785
          %3793 = vst [vmem:[#allocation3 + $0xe20] sm:$0xff] %v3786
          %3794 = vst [vmem:[#allocation3 + $0xe28] sm:$0xff] %v3787
          %3795 = vst [vmem:[#allocation3 + $0xe30] sm:$0xff] %v3788
          %3796 = vst.msk [vmem:[#allocation3 + $0xe38] sm:$0xff] %vm571, %v3785
          %v3797 = vld [vmem:[#allocation2 + $0x10] sm:$0xff]
          %v3798 = vld [vmem:[#allocation2 + $0x18] sm:$0xff]
          %v3799 = vld [vmem:[#allocation2 + $0x20] sm:$0xff]
          %v3800 = vld [vmem:[#allocation2 + $0x28] sm:$0xff]
          %3805 = vrot.lane.b32.xlu0 %v3797, 120
          %v3806 = vpop.permute.xlu0 %3805
          %3807 = vrot.lane.b32.xlu0 %v3798, 120
          %v3808 = vpop.permute.xlu0 %3807
          %3809 = vrot.lane.b32.xlu0 %v3799, 120
          %v3810 = vpop.permute.xlu0 %3809
          %3811 = vrot.lane.b32.xlu0 %v3800, 120
          %v3812 = vpop.permute.xlu0 %3811
          %v3813 = vsel %vm785, %v3806, %v3808
          %v3814 = vsel %vm785, %v3808, %v3810
          %v3815 = vsel %vm785, %v3810, %v3812
          %3820 = vst [vmem:[#allocation3 + $0xe40] sm:$0xff] %v3813
          %3821 = vst [vmem:[#allocation3 + $0xe48] sm:$0xff] %v3814
          %3822 = vst [vmem:[#allocation3 + $0xe50] sm:$0xff] %v3815
          %3823 = vst.msk [vmem:[#allocation3 + $0xe58] sm:$0xff] %vm571, %v3812
          %v3824 = vld [vmem:[#allocation2 + $0x10] sm:$0xff]
          %v3825 = vld [vmem:[#allocation2 + $0x18] sm:$0xff]
          %v3826 = vld [vmem:[#allocation2 + $0x20] sm:$0xff]
          %v3827 = vld [vmem:[#allocation2 + $0x28] sm:$0xff]
          %3832 = vrot.lane.b32.xlu0 %v3824, 119
          %v3833 = vpop.permute.xlu0 %3832
          %3834 = vrot.lane.b32.xlu0 %v3825, 119
          %v3835 = vpop.permute.xlu0 %3834
          %3836 = vrot.lane.b32.xlu0 %v3826, 119
          %v3837 = vpop.permute.xlu0 %3836
          %3838 = vrot.lane.b32.xlu0 %v3827, 119
          %v3839 = vpop.permute.xlu0 %3838
          %v3840 = vsel %vm813, %v3833, %v3835
          %v3841 = vsel %vm813, %v3835, %v3837
          %v3842 = vsel %vm813, %v3837, %v3839
          %3847 = vst [vmem:[#allocation3 + $0xe60] sm:$0xff] %v3840
          %3848 = vst [vmem:[#allocation3 + $0xe68] sm:$0xff] %v3841
          %3849 = vst [vmem:[#allocation3 + $0xe70] sm:$0xff] %v3842
          %3850 = vst.msk [vmem:[#allocation3 + $0xe78] sm:$0xff] %vm571, %v3839
          %v3851 = vld [vmem:[#allocation2 + $0x10] sm:$0xff]
          %v3852 = vld [vmem:[#allocation2 + $0x18] sm:$0xff]
          %v3853 = vld [vmem:[#allocation2 + $0x20] sm:$0xff]
          %v3854 = vld [vmem:[#allocation2 + $0x28] sm:$0xff]
          %3859 = vrot.lane.b32.xlu0 %v3851, 118
          %v3860 = vpop.permute.xlu0 %3859
          %3861 = vrot.lane.b32.xlu0 %v3852, 118
          %v3862 = vpop.permute.xlu0 %3861
          %3863 = vrot.lane.b32.xlu0 %v3853, 118
          %v3864 = vpop.permute.xlu0 %3863
          %3865 = vrot.lane.b32.xlu0 %v3854, 118
          %v3866 = vpop.permute.xlu0 %3865
          %v3867 = vsel %vm841, %v3860, %v3862
          %v3868 = vsel %vm841, %v3862, %v3864
          %v3869 = vsel %vm841, %v3864, %v3866
          %3874 = vst [vmem:[#allocation3 + $0xe80] sm:$0xff] %v3867
          %3875 = vst [vmem:[#allocation3 + $0xe88] sm:$0xff] %v3868
          %3876 = vst [vmem:[#allocation3 + $0xe90] sm:$0xff] %v3869
          %3877 = vst.msk [vmem:[#allocation3 + $0xe98] sm:$0xff] %vm571, %v3866
          %v3878 = vld [vmem:[#allocation2 + $0x10] sm:$0xff]
          %v3879 = vld [vmem:[#allocation2 + $0x18] sm:$0xff]
          %v3880 = vld [vmem:[#allocation2 + $0x20] sm:$0xff]
          %v3881 = vld [vmem:[#allocation2 + $0x28] sm:$0xff]
          %3886 = vrot.lane.b32.xlu0 %v3878, 117
          %v3887 = vpop.permute.xlu0 %3886
          %3888 = vrot.lane.b32.xlu0 %v3879, 117
          %v3889 = vpop.permute.xlu0 %3888
          %3890 = vrot.lane.b32.xlu0 %v3880, 117
          %v3891 = vpop.permute.xlu0 %3890
          %3892 = vrot.lane.b32.xlu0 %v3881, 117
          %v3893 = vpop.permute.xlu0 %3892
          %v3894 = vsel %vm2398, %v3887, %v3889
          %v3895 = vsel %vm2398, %v3889, %v3891
          %v3896 = vsel %vm2398, %v3891, %v3893
          %3901 = vst [vmem:[#allocation3 + $0xea0] sm:$0xff] %v3894
          %3902 = vst [vmem:[#allocation3 + $0xea8] sm:$0xff] %v3895
          %3903 = vst [vmem:[#allocation3 + $0xeb0] sm:$0xff] %v3896
          %3904 = vst.msk [vmem:[#allocation3 + $0xeb8] sm:$0xff] %vm571, %v3893
          %v3905 = vld [vmem:[#allocation2 + $0x10] sm:$0xff]
          %v3906 = vld [vmem:[#allocation2 + $0x18] sm:$0xff]
          %v3907 = vld [vmem:[#allocation2 + $0x20] sm:$0xff]
          %v3908 = vld [vmem:[#allocation2 + $0x28] sm:$0xff]
          %3913 = vrot.lane.b32.xlu0 %v3905, 116
          %v3914 = vpop.permute.xlu0 %3913
          %3915 = vrot.lane.b32.xlu0 %v3906, 116
          %v3916 = vpop.permute.xlu0 %3915
          %3917 = vrot.lane.b32.xlu0 %v3907, 116
          %v3918 = vpop.permute.xlu0 %3917
          %3919 = vrot.lane.b32.xlu0 %v3908, 116
          %v3920 = vpop.permute.xlu0 %3919
          %v3921 = vsel %vm2426, %v3914, %v3916
          %v3922 = vsel %vm2426, %v3916, %v3918
          %v3923 = vsel %vm2426, %v3918, %v3920
          %3928 = vst [vmem:[#allocation3 + $0xec0] sm:$0xff] %v3921
          %3929 = vst [vmem:[#allocation3 + $0xec8] sm:$0xff] %v3922
          %3930 = vst [vmem:[#allocation3 + $0xed0] sm:$0xff] %v3923
          %3931 = vst.msk [vmem:[#allocation3 + $0xed8] sm:$0xff] %vm571, %v3920
          %v3932 = vld [vmem:[#allocation2 + $0x10] sm:$0xff]
          %v3933 = vld [vmem:[#allocation2 + $0x18] sm:$0xff]
          %v3934 = vld [vmem:[#allocation2 + $0x20] sm:$0xff]
          %v3935 = vld [vmem:[#allocation2 + $0x28] sm:$0xff]
          %3940 = vrot.lane.b32.xlu0 %v3932, 115
          %v3941 = vpop.permute.xlu0 %3940
          %3942 = vrot.lane.b32.xlu0 %v3933, 115
          %v3943 = vpop.permute.xlu0 %3942
          %3944 = vrot.lane.b32.xlu0 %v3934, 115
          %v3945 = vpop.permute.xlu0 %3944
          %3946 = vrot.lane.b32.xlu0 %v3935, 115
          %v3947 = vpop.permute.xlu0 %3946
          %vm3948 = vcmask 941056
          %v3949 = vsel %vm3948, %v3941, %v3943
          %v3950 = vsel %vm3948, %v3943, %v3945
          %v3951 = vsel %vm3948, %v3945, %v3947
          %3956 = vst [vmem:[#allocation3 + $0xee0] sm:$0xff] %v3949
          %3957 = vst [vmem:[#allocation3 + $0xee8] sm:$0xff] %v3950
          %3958 = vst [vmem:[#allocation3 + $0xef0] sm:$0xff] %v3951
          %3959 = vst.msk [vmem:[#allocation3 + $0xef8] sm:$0xff] %vm571, %v3947
          %v3960 = vld [vmem:[#allocation2 + $0x10] sm:$0xff]
          %v3961 = vld [vmem:[#allocation2 + $0x18] sm:$0xff]
          %v3962 = vld [vmem:[#allocation2 + $0x20] sm:$0xff]
          %v3963 = vld [vmem:[#allocation2 + $0x28] sm:$0xff]
          %3968 = vrot.lane.b32.xlu0 %v3960, 114
          %v3969 = vpop.permute.xlu0 %3968
          %3970 = vrot.lane.b32.xlu0 %v3961, 114
          %v3971 = vpop.permute.xlu0 %3970
          %3972 = vrot.lane.b32.xlu0 %v3962, 114
          %v3973 = vpop.permute.xlu0 %3972
          %3974 = vrot.lane.b32.xlu0 %v3963, 114
          %v3975 = vpop.permute.xlu0 %3974
          %vm3976 = vcmask 932864
          %v3977 = vsel %vm3976, %v3969, %v3971
          %v3978 = vsel %vm3976, %v3971, %v3973
          %v3979 = vsel %vm3976, %v3973, %v3975
          %3984 = vst [vmem:[#allocation3 + $0xf00] sm:$0xff] %v3977
          %3985 = vst [vmem:[#allocation3 + $0xf08] sm:$0xff] %v3978
          %3986 = vst [vmem:[#allocation3 + $0xf10] sm:$0xff] %v3979
          %3987 = vst.msk [vmem:[#allocation3 + $0xf18] sm:$0xff] %vm571, %v3975
        $region44: #{tpu_custom_call.1} parent=31 // pred_fallthru
          _
        %v3988 = vld [vmem:[#allocation7] sm:$0xff]
        %v3989 = vld [vmem:[#allocation7 + $0x8] sm:$0xff]
        %v3990 = vld [vmem:[#allocation7 + $0x10] sm:$0xff]
        %v3991 = vld [vmem:[#allocation7 + $0x18] sm:$0xff]
        %v3992 = vld [vmem:[#allocation7 + $0x20] sm:$0xff]
        %v3993 = vld [vmem:[#allocation7 + $0x28] sm:$0xff]
        %v3994 = vld [vmem:[#allocation7 + $0x30] sm:$0xff]
        %v3995 = vld [vmem:[#allocation7 + $0x38] sm:$0xff]
        %v3996 = vld [vmem:[#allocation3] sm:$0xff]
        %v3997 = vld [vmem:[#allocation3 + $0x8] sm:$0xff]
        %v3998 = vld [vmem:[#allocation3 + $0x10] sm:$0xff]
        %v3999 = vld [vmem:[#allocation3 + $0x18] sm:$0xff]
        %v4000 = vld [vmem:[#allocation3 + $0x20] sm:$0xff]
        %v4001 = vld [vmem:[#allocation3 + $0x28] sm:$0xff]
        %v4002 = vld [vmem:[#allocation3 + $0x30] sm:$0xff]
        %v4003 = vld [vmem:[#allocation3 + $0x38] sm:$0xff]
        %v4004 = vld [vmem:[#allocation3 + $0x40] sm:$0xff]
        %v4005 = vld [vmem:[#allocation3 + $0x48] sm:$0xff]
        %v4006 = vld [vmem:[#allocation3 + $0x50] sm:$0xff]
        %v4007 = vld [vmem:[#allocation3 + $0x58] sm:$0xff]
        %v4008 = vld [vmem:[#allocation3 + $0x60] sm:$0xff]
        %v4009 = vld [vmem:[#allocation3 + $0x68] sm:$0xff]
        %v4010 = vld [vmem:[#allocation3 + $0x70] sm:$0xff]
        %v4011 = vld [vmem:[#allocation3 + $0x78] sm:$0xff]
        %v4012 = vld [vmem:[#allocation3 + $0x80] sm:$0xff]
        %v4013 = vld [vmem:[#allocation3 + $0x88] sm:$0xff]
        %v4014 = vld [vmem:[#allocation3 + $0x90] sm:$0xff]
        %v4015 = vld [vmem:[#allocation3 + $0x98] sm:$0xff]
        %v4016 = vld [vmem:[#allocation3 + $0xa0] sm:$0xff]
        %v4017 = vld [vmem:[#allocation3 + $0xa8] sm:$0xff]
        %v4018 = vld [vmem:[#allocation3 + $0xb0] sm:$0xff]
        %v4019 = vld [vmem:[#allocation3 + $0xb8] sm:$0xff]
        %v4020 = vld [vmem:[#allocation3 + $0xc0] sm:$0xff]
        %v4021 = vld [vmem:[#allocation3 + $0xc8] sm:$0xff]
        %v4022 = vld [vmem:[#allocation3 + $0xd0] sm:$0xff]
        %v4023 = vld [vmem:[#allocation3 + $0xd8] sm:$0xff]
        %v4024 = vld [vmem:[#allocation3 + $0xe0] sm:$0xff]
        %v4025 = vld [vmem:[#allocation3 + $0xe8] sm:$0xff]
        %v4026 = vld [vmem:[#allocation3 + $0xf0] sm:$0xff]
        %v4027 = vld [vmem:[#allocation3 + $0xf8] sm:$0xff]
        %v4028 = vld [vmem:[#allocation3 + $0x100] sm:$0xff]
        %v4029 = vld [vmem:[#allocation3 + $0x108] sm:$0xff]
        %v4030 = vld [vmem:[#allocation3 + $0x110] sm:$0xff]
        %v4031 = vld [vmem:[#allocation3 + $0x118] sm:$0xff]
        %v4032 = vld [vmem:[#allocation3 + $0x120] sm:$0xff]
        %v4033 = vld [vmem:[#allocation3 + $0x128] sm:$0xff]
        %v4034 = vld [vmem:[#allocation3 + $0x130] sm:$0xff]
        %v4035 = vld [vmem:[#allocation3 + $0x138] sm:$0xff]
        %v4036 = vld [vmem:[#allocation3 + $0x140] sm:$0xff]
        %v4037 = vld [vmem:[#allocation3 + $0x148] sm:$0xff]
        %v4038 = vld [vmem:[#allocation3 + $0x150] sm:$0xff]
        %v4039 = vld [vmem:[#allocation3 + $0x158] sm:$0xff]
        %v4040 = vld [vmem:[#allocation3 + $0x160] sm:$0xff]
        %v4041 = vld [vmem:[#allocation3 + $0x168] sm:$0xff]
        %v4042 = vld [vmem:[#allocation3 + $0x170] sm:$0xff]
        %v4043 = vld [vmem:[#allocation3 + $0x178] sm:$0xff]
        %v4044 = vld [vmem:[#allocation3 + $0x180] sm:$0xff]
        %v4045 = vld [vmem:[#allocation3 + $0x188] sm:$0xff]
        %v4046 = vld [vmem:[#allocation3 + $0x190] sm:$0xff]
        %v4047 = vld [vmem:[#allocation3 + $0x198] sm:$0xff]
        %v4048 = vld [vmem:[#allocation3 + $0x1a0] sm:$0xff]
        %v4049 = vld [vmem:[#allocation3 + $0x1a8] sm:$0xff]
        %v4050 = vld [vmem:[#allocation3 + $0x1b0] sm:$0xff]
        %v4051 = vld [vmem:[#allocation3 + $0x1b8] sm:$0xff]
        %v4052 = vld [vmem:[#allocation3 + $0x1c0] sm:$0xff]
        %v4053 = vld [vmem:[#allocation3 + $0x1c8] sm:$0xff]
        %v4054 = vld [vmem:[#allocation3 + $0x1d0] sm:$0xff]
        %v4055 = vld [vmem:[#allocation3 + $0x1d8] sm:$0xff]
        %v4056 = vld [vmem:[#allocation3 + $0x1e0] sm:$0xff]
        %v4057 = vld [vmem:[#allocation3 + $0x1e8] sm:$0xff]
        %v4058 = vld [vmem:[#allocation3 + $0x1f0] sm:$0xff]
        %v4059 = vld [vmem:[#allocation3 + $0x1f8] sm:$0xff]
        %v4060 = vld [vmem:[#allocation3 + $0x200] sm:$0xff]
        %v4061 = vld [vmem:[#allocation3 + $0x208] sm:$0xff]
        %v4062 = vld [vmem:[#allocation3 + $0x210] sm:$0xff]
        %v4063 = vld [vmem:[#allocation3 + $0x218] sm:$0xff]
        %v4064 = vld [vmem:[#allocation3 + $0x220] sm:$0xff]
        %v4065 = vld [vmem:[#allocation3 + $0x228] sm:$0xff]
        %v4066 = vld [vmem:[#allocation3 + $0x230] sm:$0xff]
        %v4067 = vld [vmem:[#allocation3 + $0x238] sm:$0xff]
        %v4068 = vld [vmem:[#allocation3 + $0x240] sm:$0xff]
        %v4069 = vld [vmem:[#allocation3 + $0x248] sm:$0xff]
        %v4070 = vld [vmem:[#allocation3 + $0x250] sm:$0xff]
        %v4071 = vld [vmem:[#allocation3 + $0x258] sm:$0xff]
        %v4072 = vld [vmem:[#allocation3 + $0x260] sm:$0xff]
        %v4073 = vld [vmem:[#allocation3 + $0x268] sm:$0xff]
        %v4074 = vld [vmem:[#allocation3 + $0x270] sm:$0xff]
        %v4075 = vld [vmem:[#allocation3 + $0x278] sm:$0xff]
        %v4076 = vld [vmem:[#allocation3 + $0x280] sm:$0xff]
        %v4077 = vld [vmem:[#allocation3 + $0x288] sm:$0xff]
        %v4078 = vld [vmem:[#allocation3 + $0x290] sm:$0xff]
        %v4079 = vld [vmem:[#allocation3 + $0x298] sm:$0xff]
        %v4080 = vld [vmem:[#allocation3 + $0x2a0] sm:$0xff]
        %v4081 = vld [vmem:[#allocation3 + $0x2a8] sm:$0xff]
        %v4082 = vld [vmem:[#allocation3 + $0x2b0] sm:$0xff]
        %v4083 = vld [vmem:[#allocation3 + $0x2b8] sm:$0xff]
        %v4084 = vld [vmem:[#allocation3 + $0x2c0] sm:$0xff]
        %v4085 = vld [vmem:[#allocation3 + $0x2c8] sm:$0xff]
        %v4086 = vld [vmem:[#allocation3 + $0x2d0] sm:$0xff]
        %v4087 = vld [vmem:[#allocation3 + $0x2d8] sm:$0xff]
        %v4088 = vld [vmem:[#allocation3 + $0x2e0] sm:$0xff]
        %v4089 = vld [vmem:[#allocation3 + $0x2e8] sm:$0xff]
        %v4090 = vld [vmem:[#allocation3 + $0x2f0] sm:$0xff]
        %v4091 = vld [vmem:[#allocation3 + $0x2f8] sm:$0xff]
        %v4092 = vld [vmem:[#allocation3 + $0x300] sm:$0xff]
        %v4093 = vld [vmem:[#allocation3 + $0x308] sm:$0xff]
        %v4094 = vld [vmem:[#allocation3 + $0x310] sm:$0xff]
        %v4095 = vld [vmem:[#allocation3 + $0x318] sm:$0xff]
        %v4096 = vld [vmem:[#allocation3 + $0x320] sm:$0xff]
        %v4097 = vld [vmem:[#allocation3 + $0x328] sm:$0xff]
        %v4098 = vld [vmem:[#allocation3 + $0x330] sm:$0xff]
        %v4099 = vld [vmem:[#allocation3 + $0x338] sm:$0xff]
        %v4100 = vld [vmem:[#allocation3 + $0x340] sm:$0xff]
        %v4101 = vld [vmem:[#allocation3 + $0x348] sm:$0xff]
        %v4102 = vld [vmem:[#allocation3 + $0x350] sm:$0xff]
        %v4103 = vld [vmem:[#allocation3 + $0x358] sm:$0xff]
        %v4104 = vld [vmem:[#allocation3 + $0x360] sm:$0xff]
        %v4105 = vld [vmem:[#allocation3 + $0x368] sm:$0xff]
        %v4106 = vld [vmem:[#allocation3 + $0x370] sm:$0xff]
        %v4107 = vld [vmem:[#allocation3 + $0x378] sm:$0xff]
        %v4108 = vld [vmem:[#allocation3 + $0x380] sm:$0xff]
        %v4109 = vld [vmem:[#allocation3 + $0x388] sm:$0xff]
        %v4110 = vld [vmem:[#allocation3 + $0x390] sm:$0xff]
        %v4111 = vld [vmem:[#allocation3 + $0x398] sm:$0xff]
        %v4112 = vld [vmem:[#allocation3 + $0x3a0] sm:$0xff]
        %v4113 = vld [vmem:[#allocation3 + $0x3a8] sm:$0xff]
        %v4114 = vld [vmem:[#allocation3 + $0x3b0] sm:$0xff]
        %v4115 = vld [vmem:[#allocation3 + $0x3b8] sm:$0xff]
        %v4116 = vld [vmem:[#allocation3 + $0x3c0] sm:$0xff]
        %v4117 = vld [vmem:[#allocation3 + $0x3c8] sm:$0xff]
        %v4118 = vld [vmem:[#allocation3 + $0x3d0] sm:$0xff]
        %v4119 = vld [vmem:[#allocation3 + $0x3d8] sm:$0xff]
        %v4120 = vld [vmem:[#allocation3 + $0x3e0] sm:$0xff]
        %v4121 = vld [vmem:[#allocation3 + $0x3e8] sm:$0xff]
        %v4122 = vld [vmem:[#allocation3 + $0x3f0] sm:$0xff]
        %v4123 = vld [vmem:[#allocation3 + $0x3f8] sm:$0xff]
        %v4124 = vld [vmem:[#allocation3 + $0x400] sm:$0xff]
        %v4125 = vld [vmem:[#allocation3 + $0x408] sm:$0xff]
        %v4126 = vld [vmem:[#allocation3 + $0x410] sm:$0xff]
        %v4127 = vld [vmem:[#allocation3 + $0x418] sm:$0xff]
        %v4128 = vld [vmem:[#allocation3 + $0x420] sm:$0xff]
        %v4129 = vld [vmem:[#allocation3 + $0x428] sm:$0xff]
        %v4130 = vld [vmem:[#allocation3 + $0x430] sm:$0xff]
        %v4131 = vld [vmem:[#allocation3 + $0x438] sm:$0xff]
        %v4132 = vld [vmem:[#allocation3 + $0x440] sm:$0xff]
        %v4133 = vld [vmem:[#allocation3 + $0x448] sm:$0xff]
        %v4134 = vld [vmem:[#allocation3 + $0x450] sm:$0xff]
        %v4135 = vld [vmem:[#allocation3 + $0x458] sm:$0xff]
        %v4136 = vld [vmem:[#allocation3 + $0x460] sm:$0xff]
        %v4137 = vld [vmem:[#allocation3 + $0x468] sm:$0xff]
        %v4138 = vld [vmem:[#allocation3 + $0x470] sm:$0xff]
        %v4139 = vld [vmem:[#allocation3 + $0x478] sm:$0xff]
        %v4140 = vld [vmem:[#allocation3 + $0x480] sm:$0xff]
        %v4141 = vld [vmem:[#allocation3 + $0x488] sm:$0xff]
        %v4142 = vld [vmem:[#allocation3 + $0x490] sm:$0xff]
        %v4143 = vld [vmem:[#allocation3 + $0x498] sm:$0xff]
        %v4144 = vld [vmem:[#allocation3 + $0x4a0] sm:$0xff]
        %v4145 = vld [vmem:[#allocation3 + $0x4a8] sm:$0xff]
        %v4146 = vld [vmem:[#allocation3 + $0x4b0] sm:$0xff]
        %v4147 = vld [vmem:[#allocation3 + $0x4b8] sm:$0xff]
        %v4148 = vld [vmem:[#allocation3 + $0x4c0] sm:$0xff]
        %v4149 = vld [vmem:[#allocation3 + $0x4c8] sm:$0xff]
        %v4150 = vld [vmem:[#allocation3 + $0x4d0] sm:$0xff]
        %v4151 = vld [vmem:[#allocation3 + $0x4d8] sm:$0xff]
        %v4152 = vld [vmem:[#allocation3 + $0x4e0] sm:$0xff]
        %v4153 = vld [vmem:[#allocation3 + $0x4e8] sm:$0xff]
        %v4154 = vld [vmem:[#allocation3 + $0x4f0] sm:$0xff]
        %v4155 = vld [vmem:[#allocation3 + $0x4f8] sm:$0xff]
        %v4156 = vld [vmem:[#allocation3 + $0x500] sm:$0xff]
        %v4157 = vld [vmem:[#allocation3 + $0x508] sm:$0xff]
        %v4158 = vld [vmem:[#allocation3 + $0x510] sm:$0xff]
        %v4159 = vld [vmem:[#allocation3 + $0x518] sm:$0xff]
        %v4160 = vld [vmem:[#allocation3 + $0x520] sm:$0xff]
        %v4161 = vld [vmem:[#allocation3 + $0x528] sm:$0xff]
        %v4162 = vld [vmem:[#allocation3 + $0x530] sm:$0xff]
        %v4163 = vld [vmem:[#allocation3 + $0x538] sm:$0xff]
        %v4164 = vld [vmem:[#allocation3 + $0x540] sm:$0xff]
        %v4165 = vld [vmem:[#allocation3 + $0x548] sm:$0xff]
        %v4166 = vld [vmem:[#allocation3 + $0x550] sm:$0xff]
        %v4167 = vld [vmem:[#allocation3 + $0x558] sm:$0xff]
        %v4168 = vld [vmem:[#allocation3 + $0x560] sm:$0xff]
        %v4169 = vld [vmem:[#allocation3 + $0x568] sm:$0xff]
        %v4170 = vld [vmem:[#allocation3 + $0x570] sm:$0xff]
        %v4171 = vld [vmem:[#allocation3 + $0x578] sm:$0xff]
        %v4172 = vld [vmem:[#allocation3 + $0x580] sm:$0xff]
        %v4173 = vld [vmem:[#allocation3 + $0x588] sm:$0xff]
        %v4174 = vld [vmem:[#allocation3 + $0x590] sm:$0xff]
        %v4175 = vld [vmem:[#allocation3 + $0x598] sm:$0xff]
        %v4176 = vld [vmem:[#allocation3 + $0x5a0] sm:$0xff]
        %v4177 = vld [vmem:[#allocation3 + $0x5a8] sm:$0xff]
        %v4178 = vld [vmem:[#allocation3 + $0x5b0] sm:$0xff]
        %v4179 = vld [vmem:[#allocation3 + $0x5b8] sm:$0xff]
        %v4180 = vld [vmem:[#allocation3 + $0x5c0] sm:$0xff]
        %v4181 = vld [vmem:[#allocation3 + $0x5c8] sm:$0xff]
        %v4182 = vld [vmem:[#allocation3 + $0x5d0] sm:$0xff]
        %v4183 = vld [vmem:[#allocation3 + $0x5d8] sm:$0xff]
        %v4184 = vld [vmem:[#allocation3 + $0x5e0] sm:$0xff]
        %v4185 = vld [vmem:[#allocation3 + $0x5e8] sm:$0xff]
        %v4186 = vld [vmem:[#allocation3 + $0x5f0] sm:$0xff]
        %v4187 = vld [vmem:[#allocation3 + $0x5f8] sm:$0xff]
        %v4188 = vld [vmem:[#allocation3 + $0x600] sm:$0xff]
        %v4189 = vld [vmem:[#allocation3 + $0x608] sm:$0xff]
        %v4190 = vld [vmem:[#allocation3 + $0x610] sm:$0xff]
        %v4191 = vld [vmem:[#allocation3 + $0x618] sm:$0xff]
        %v4192 = vld [vmem:[#allocation3 + $0x620] sm:$0xff]
        %v4193 = vld [vmem:[#allocation3 + $0x628] sm:$0xff]
        %v4194 = vld [vmem:[#allocation3 + $0x630] sm:$0xff]
        %v4195 = vld [vmem:[#allocation3 + $0x638] sm:$0xff]
        %v4196 = vld [vmem:[#allocation3 + $0x640] sm:$0xff]
        %v4197 = vld [vmem:[#allocation3 + $0x648] sm:$0xff]
        %v4198 = vld [vmem:[#allocation3 + $0x650] sm:$0xff]
        %v4199 = vld [vmem:[#allocation3 + $0x658] sm:$0xff]
        %v4200 = vld [vmem:[#allocation3 + $0x660] sm:$0xff]
        %v4201 = vld [vmem:[#allocation3 + $0x668] sm:$0xff]
        %v4202 = vld [vmem:[#allocation3 + $0x670] sm:$0xff]
        %v4203 = vld [vmem:[#allocation3 + $0x678] sm:$0xff]
        %v4204 = vld [vmem:[#allocation3 + $0x680] sm:$0xff]
        %v4205 = vld [vmem:[#allocation3 + $0x688] sm:$0xff]
        %v4206 = vld [vmem:[#allocation3 + $0x690] sm:$0xff]
        %v4207 = vld [vmem:[#allocation3 + $0x698] sm:$0xff]
        %v4208 = vld [vmem:[#allocation3 + $0x6a0] sm:$0xff]
        %v4209 = vld [vmem:[#allocation3 + $0x6a8] sm:$0xff]
        %v4210 = vld [vmem:[#allocation3 + $0x6b0] sm:$0xff]
        %v4211 = vld [vmem:[#allocation3 + $0x6b8] sm:$0xff]
        %v4212 = vld [vmem:[#allocation3 + $0x6c0] sm:$0xff]
        %v4213 = vld [vmem:[#allocation3 + $0x6c8] sm:$0xff]
        %v4214 = vld [vmem:[#allocation3 + $0x6d0] sm:$0xff]
        %v4215 = vld [vmem:[#allocation3 + $0x6d8] sm:$0xff]
        %v4216 = vld [vmem:[#allocation3 + $0x6e0] sm:$0xff]
        %v4217 = vld [vmem:[#allocation3 + $0x6e8] sm:$0xff]
        %v4218 = vld [vmem:[#allocation3 + $0x6f0] sm:$0xff]
        %v4219 = vld [vmem:[#allocation3 + $0x6f8] sm:$0xff]
        %v4220 = vld [vmem:[#allocation3 + $0x700] sm:$0xff]
        %v4221 = vld [vmem:[#allocation3 + $0x708] sm:$0xff]
        %v4222 = vld [vmem:[#allocation3 + $0x710] sm:$0xff]
        %v4223 = vld [vmem:[#allocation3 + $0x718] sm:$0xff]
        %v4224 = vld [vmem:[#allocation3 + $0x720] sm:$0xff]
        %v4225 = vld [vmem:[#allocation3 + $0x728] sm:$0xff]
        %v4226 = vld [vmem:[#allocation3 + $0x730] sm:$0xff]
        %v4227 = vld [vmem:[#allocation3 + $0x738] sm:$0xff]
        %v4228 = vld [vmem:[#allocation3 + $0x740] sm:$0xff]
        %v4229 = vld [vmem:[#allocation3 + $0x748] sm:$0xff]
        %v4230 = vld [vmem:[#allocation3 + $0x750] sm:$0xff]
        %v4231 = vld [vmem:[#allocation3 + $0x758] sm:$0xff]
        %v4232 = vld [vmem:[#allocation3 + $0x760] sm:$0xff]
        %v4233 = vld [vmem:[#allocation3 + $0x768] sm:$0xff]
        %v4234 = vld [vmem:[#allocation3 + $0x770] sm:$0xff]
        %v4235 = vld [vmem:[#allocation3 + $0x778] sm:$0xff]
        %v4236 = vld [vmem:[#allocation3 + $0x780] sm:$0xff]
        %v4237 = vld [vmem:[#allocation3 + $0x788] sm:$0xff]
        %v4238 = vld [vmem:[#allocation3 + $0x790] sm:$0xff]
        %v4239 = vld [vmem:[#allocation3 + $0x798] sm:$0xff]
        %v4240 = vld [vmem:[#allocation3 + $0x7a0] sm:$0xff]
        %v4241 = vld [vmem:[#allocation3 + $0x7a8] sm:$0xff]
        %v4242 = vld [vmem:[#allocation3 + $0x7b0] sm:$0xff]
        %v4243 = vld [vmem:[#allocation3 + $0x7b8] sm:$0xff]
        %v4244 = vld [vmem:[#allocation3 + $0x7c0] sm:$0xff]
        %v4245 = vld [vmem:[#allocation3 + $0x7c8] sm:$0xff]
        %v4246 = vld [vmem:[#allocation3 + $0x7d0] sm:$0xff]
        %v4247 = vld [vmem:[#allocation3 + $0x7d8] sm:$0xff]
        %v4248 = vld [vmem:[#allocation3 + $0x7e0] sm:$0xff]
        %v4249 = vld [vmem:[#allocation3 + $0x7e8] sm:$0xff]
        %v4250 = vld [vmem:[#allocation3 + $0x7f0] sm:$0xff]
        %v4251 = vld [vmem:[#allocation3 + $0x7f8] sm:$0xff]
        %v4252 = vld [vmem:[#allocation3 + $0x800] sm:$0xff]
        %v4253 = vld [vmem:[#allocation3 + $0x808] sm:$0xff]
        %v4254 = vld [vmem:[#allocation3 + $0x810] sm:$0xff]
        %v4255 = vld [vmem:[#allocation3 + $0x818] sm:$0xff]
        %v4256 = vld [vmem:[#allocation3 + $0x820] sm:$0xff]
        %v4257 = vld [vmem:[#allocation3 + $0x828] sm:$0xff]
        %v4258 = vld [vmem:[#allocation3 + $0x830] sm:$0xff]
        %v4259 = vld [vmem:[#allocation3 + $0x838] sm:$0xff]
        %v4260 = vld [vmem:[#allocation3 + $0x840] sm:$0xff]
        %v4261 = vld [vmem:[#allocation3 + $0x848] sm:$0xff]
        %v4262 = vld [vmem:[#allocation3 + $0x850] sm:$0xff]
        %v4263 = vld [vmem:[#allocation3 + $0x858] sm:$0xff]
        %v4264 = vld [vmem:[#allocation3 + $0x860] sm:$0xff]
        %v4265 = vld [vmem:[#allocation3 + $0x868] sm:$0xff]
        %v4266 = vld [vmem:[#allocation3 + $0x870] sm:$0xff]
        %v4267 = vld [vmem:[#allocation3 + $0x878] sm:$0xff]
        %v4268 = vld [vmem:[#allocation3 + $0x880] sm:$0xff]
        %v4269 = vld [vmem:[#allocation3 + $0x888] sm:$0xff]
        %v4270 = vld [vmem:[#allocation3 + $0x890] sm:$0xff]
        %v4271 = vld [vmem:[#allocation3 + $0x898] sm:$0xff]
        %v4272 = vld [vmem:[#allocation3 + $0x8a0] sm:$0xff]
        %v4273 = vld [vmem:[#allocation3 + $0x8a8] sm:$0xff]
        %v4274 = vld [vmem:[#allocation3 + $0x8b0] sm:$0xff]
        %v4275 = vld [vmem:[#allocation3 + $0x8b8] sm:$0xff]
        %v4276 = vld [vmem:[#allocation3 + $0x8c0] sm:$0xff]
        %v4277 = vld [vmem:[#allocation3 + $0x8c8] sm:$0xff]
        %v4278 = vld [vmem:[#allocation3 + $0x8d0] sm:$0xff]
        %v4279 = vld [vmem:[#allocation3 + $0x8d8] sm:$0xff]
        %v4280 = vld [vmem:[#allocation3 + $0x8e0] sm:$0xff]
        %v4281 = vld [vmem:[#allocation3 + $0x8e8] sm:$0xff]
        %v4282 = vld [vmem:[#allocation3 + $0x8f0] sm:$0xff]
        %v4283 = vld [vmem:[#allocation3 + $0x8f8] sm:$0xff]
        %v4284 = vld [vmem:[#allocation3 + $0x900] sm:$0xff]
        %v4285 = vld [vmem:[#allocation3 + $0x908] sm:$0xff]
        %v4286 = vld [vmem:[#allocation3 + $0x910] sm:$0xff]
        %v4287 = vld [vmem:[#allocation3 + $0x918] sm:$0xff]
        %v4288 = vld [vmem:[#allocation3 + $0x920] sm:$0xff]
        %v4289 = vld [vmem:[#allocation3 + $0x928] sm:$0xff]
        %v4290 = vld [vmem:[#allocation3 + $0x930] sm:$0xff]
        %v4291 = vld [vmem:[#allocation3 + $0x938] sm:$0xff]
        %v4292 = vld [vmem:[#allocation3 + $0x940] sm:$0xff]
        %v4293 = vld [vmem:[#allocation3 + $0x948] sm:$0xff]
        %v4294 = vld [vmem:[#allocation3 + $0x950] sm:$0xff]
        %v4295 = vld [vmem:[#allocation3 + $0x958] sm:$0xff]
        %v4296 = vld [vmem:[#allocation3 + $0x960] sm:$0xff]
        %v4297 = vld [vmem:[#allocation3 + $0x968] sm:$0xff]
        %v4298 = vld [vmem:[#allocation3 + $0x970] sm:$0xff]
        %v4299 = vld [vmem:[#allocation3 + $0x978] sm:$0xff]
        %v4300 = vld [vmem:[#allocation3 + $0x980] sm:$0xff]
        %v4301 = vld [vmem:[#allocation3 + $0x988] sm:$0xff]
        %v4302 = vld [vmem:[#allocation3 + $0x990] sm:$0xff]
        %v4303 = vld [vmem:[#allocation3 + $0x998] sm:$0xff]
        %v4304 = vld [vmem:[#allocation3 + $0x9a0] sm:$0xff]
        %v4305 = vld [vmem:[#allocation3 + $0x9a8] sm:$0xff]
        %v4306 = vld [vmem:[#allocation3 + $0x9b0] sm:$0xff]
        %v4307 = vld [vmem:[#allocation3 + $0x9b8] sm:$0xff]
        %v4308 = vld [vmem:[#allocation3 + $0x9c0] sm:$0xff]
        %v4309 = vld [vmem:[#allocation3 + $0x9c8] sm:$0xff]
        %v4310 = vld [vmem:[#allocation3 + $0x9d0] sm:$0xff]
        %v4311 = vld [vmem:[#allocation3 + $0x9d8] sm:$0xff]
        %v4312 = vld [vmem:[#allocation3 + $0x9e0] sm:$0xff]
        %v4313 = vld [vmem:[#allocation3 + $0x9e8] sm:$0xff]
        %v4314 = vld [vmem:[#allocation3 + $0x9f0] sm:$0xff]
        %v4315 = vld [vmem:[#allocation3 + $0x9f8] sm:$0xff]
        %v4316 = vld [vmem:[#allocation3 + $0xa00] sm:$0xff]
        %v4317 = vld [vmem:[#allocation3 + $0xa08] sm:$0xff]
        %v4318 = vld [vmem:[#allocation3 + $0xa10] sm:$0xff]
        %v4319 = vld [vmem:[#allocation3 + $0xa18] sm:$0xff]
        %v4320 = vld [vmem:[#allocation3 + $0xa20] sm:$0xff]
        %v4321 = vld [vmem:[#allocation3 + $0xa28] sm:$0xff]
        %v4322 = vld [vmem:[#allocation3 + $0xa30] sm:$0xff]
        %v4323 = vld [vmem:[#allocation3 + $0xa38] sm:$0xff]
        %v4324 = vld [vmem:[#allocation3 + $0xa40] sm:$0xff]
        %v4325 = vld [vmem:[#allocation3 + $0xa48] sm:$0xff]
        %v4326 = vld [vmem:[#allocation3 + $0xa50] sm:$0xff]
        %v4327 = vld [vmem:[#allocation3 + $0xa58] sm:$0xff]
        %v4328 = vld [vmem:[#allocation3 + $0xa60] sm:$0xff]
        %v4329 = vld [vmem:[#allocation3 + $0xa68] sm:$0xff]
        %v4330 = vld [vmem:[#allocation3 + $0xa70] sm:$0xff]
        %v4331 = vld [vmem:[#allocation3 + $0xa78] sm:$0xff]
        %v4332 = vld [vmem:[#allocation3 + $0xa80] sm:$0xff]
        %v4333 = vld [vmem:[#allocation3 + $0xa88] sm:$0xff]
        %v4334 = vld [vmem:[#allocation3 + $0xa90] sm:$0xff]
        %v4335 = vld [vmem:[#allocation3 + $0xa98] sm:$0xff]
        %v4336 = vld [vmem:[#allocation3 + $0xaa0] sm:$0xff]
        %v4337 = vld [vmem:[#allocation3 + $0xaa8] sm:$0xff]
        %v4338 = vld [vmem:[#allocation3 + $0xab0] sm:$0xff]
        %v4339 = vld [vmem:[#allocation3 + $0xab8] sm:$0xff]
        %v4340 = vld [vmem:[#allocation3 + $0xac0] sm:$0xff]
        %v4341 = vld [vmem:[#allocation3 + $0xac8] sm:$0xff]
        %v4342 = vld [vmem:[#allocation3 + $0xad0] sm:$0xff]
        %v4343 = vld [vmem:[#allocation3 + $0xad8] sm:$0xff]
        %v4344 = vld [vmem:[#allocation3 + $0xae0] sm:$0xff]
        %v4345 = vld [vmem:[#allocation3 + $0xae8] sm:$0xff]
        %v4346 = vld [vmem:[#allocation3 + $0xaf0] sm:$0xff]
        %v4347 = vld [vmem:[#allocation3 + $0xaf8] sm:$0xff]
        %v4348 = vld [vmem:[#allocation3 + $0xb00] sm:$0xff]
        %v4349 = vld [vmem:[#allocation3 + $0xb08] sm:$0xff]
        %v4350 = vld [vmem:[#allocation3 + $0xb10] sm:$0xff]
        %v4351 = vld [vmem:[#allocation3 + $0xb18] sm:$0xff]
        %v4352 = vld [vmem:[#allocation3 + $0xb20] sm:$0xff]
        %v4353 = vld [vmem:[#allocation3 + $0xb28] sm:$0xff]
        %v4354 = vld [vmem:[#allocation3 + $0xb30] sm:$0xff]
        %v4355 = vld [vmem:[#allocation3 + $0xb38] sm:$0xff]
        %v4356 = vld [vmem:[#allocation3 + $0xb40] sm:$0xff]
        %v4357 = vld [vmem:[#allocation3 + $0xb48] sm:$0xff]
        %v4358 = vld [vmem:[#allocation3 + $0xb50] sm:$0xff]
        %v4359 = vld [vmem:[#allocation3 + $0xb58] sm:$0xff]
        %v4360 = vld [vmem:[#allocation3 + $0xb60] sm:$0xff]
        %v4361 = vld [vmem:[#allocation3 + $0xb68] sm:$0xff]
        %v4362 = vld [vmem:[#allocation3 + $0xb70] sm:$0xff]
        %v4363 = vld [vmem:[#allocation3 + $0xb78] sm:$0xff]
        %v4364 = vld [vmem:[#allocation3 + $0xb80] sm:$0xff]
        %v4365 = vld [vmem:[#allocation3 + $0xb88] sm:$0xff]
        %v4366 = vld [vmem:[#allocation3 + $0xb90] sm:$0xff]
        %v4367 = vld [vmem:[#allocation3 + $0xb98] sm:$0xff]
        %v4368 = vld [vmem:[#allocation3 + $0xba0] sm:$0xff]
        %v4369 = vld [vmem:[#allocation3 + $0xba8] sm:$0xff]
        %v4370 = vld [vmem:[#allocation3 + $0xbb0] sm:$0xff]
        %v4371 = vld [vmem:[#allocation3 + $0xbb8] sm:$0xff]
        %v4372 = vld [vmem:[#allocation3 + $0xbc0] sm:$0xff]
        %v4373 = vld [vmem:[#allocation3 + $0xbc8] sm:$0xff]
        %v4374 = vld [vmem:[#allocation3 + $0xbd0] sm:$0xff]
        %v4375 = vld [vmem:[#allocation3 + $0xbd8] sm:$0xff]
        %v4376 = vld [vmem:[#allocation3 + $0xbe0] sm:$0xff]
        %v4377 = vld [vmem:[#allocation3 + $0xbe8] sm:$0xff]
        %v4378 = vld [vmem:[#allocation3 + $0xbf0] sm:$0xff]
        %v4379 = vld [vmem:[#allocation3 + $0xbf8] sm:$0xff]
        %v4380 = vld [vmem:[#allocation3 + $0xc00] sm:$0xff]
        %v4381 = vld [vmem:[#allocation3 + $0xc08] sm:$0xff]
        %v4382 = vld [vmem:[#allocation3 + $0xc10] sm:$0xff]
        %v4383 = vld [vmem:[#allocation3 + $0xc18] sm:$0xff]
        %v4384 = vld [vmem:[#allocation3 + $0xc20] sm:$0xff]
        %v4385 = vld [vmem:[#allocation3 + $0xc28] sm:$0xff]
        %v4386 = vld [vmem:[#allocation3 + $0xc30] sm:$0xff]
        %v4387 = vld [vmem:[#allocation3 + $0xc38] sm:$0xff]
        %v4388 = vld [vmem:[#allocation3 + $0xc40] sm:$0xff]
        %v4389 = vld [vmem:[#allocation3 + $0xc48] sm:$0xff]
        %v4390 = vld [vmem:[#allocation3 + $0xc50] sm:$0xff]
        %v4391 = vld [vmem:[#allocation3 + $0xc58] sm:$0xff]
        %v4392 = vld [vmem:[#allocation3 + $0xc60] sm:$0xff]
        %v4393 = vld [vmem:[#allocation3 + $0xc68] sm:$0xff]
        %v4394 = vld [vmem:[#allocation3 + $0xc70] sm:$0xff]
        %v4395 = vld [vmem:[#allocation3 + $0xc78] sm:$0xff]
        %v4396 = vld [vmem:[#allocation3 + $0xc80] sm:$0xff]
        %v4397 = vld [vmem:[#allocation3 + $0xc88] sm:$0xff]
        %v4398 = vld [vmem:[#allocation3 + $0xc90] sm:$0xff]
        %v4399 = vld [vmem:[#allocation3 + $0xc98] sm:$0xff]
        %v4400 = vld [vmem:[#allocation3 + $0xca0] sm:$0xff]
        %v4401 = vld [vmem:[#allocation3 + $0xca8] sm:$0xff]
        %v4402 = vld [vmem:[#allocation3 + $0xcb0] sm:$0xff]
        %v4403 = vld [vmem:[#allocation3 + $0xcb8] sm:$0xff]
        %v4404 = vld [vmem:[#allocation3 + $0xcc0] sm:$0xff]
        %v4405 = vld [vmem:[#allocation3 + $0xcc8] sm:$0xff]
        %v4406 = vld [vmem:[#allocation3 + $0xcd0] sm:$0xff]
        %v4407 = vld [vmem:[#allocation3 + $0xcd8] sm:$0xff]
        %v4408 = vld [vmem:[#allocation3 + $0xce0] sm:$0xff]
        %v4409 = vld [vmem:[#allocation3 + $0xce8] sm:$0xff]
        %v4410 = vld [vmem:[#allocation3 + $0xcf0] sm:$0xff]
        %v4411 = vld [vmem:[#allocation3 + $0xcf8] sm:$0xff]
        %v4412 = vld [vmem:[#allocation3 + $0xd00] sm:$0xff]
        %v4413 = vld [vmem:[#allocation3 + $0xd08] sm:$0xff]
        %v4414 = vld [vmem:[#allocation3 + $0xd10] sm:$0xff]
        %v4415 = vld [vmem:[#allocation3 + $0xd18] sm:$0xff]
        %v4416 = vld [vmem:[#allocation3 + $0xd20] sm:$0xff]
        %v4417 = vld [vmem:[#allocation3 + $0xd28] sm:$0xff]
        %v4418 = vld [vmem:[#allocation3 + $0xd30] sm:$0xff]
        %v4419 = vld [vmem:[#allocation3 + $0xd38] sm:$0xff]
        %v4420 = vld [vmem:[#allocation3 + $0xd40] sm:$0xff]
        %v4421 = vld [vmem:[#allocation3 + $0xd48] sm:$0xff]
        %v4422 = vld [vmem:[#allocation3 + $0xd50] sm:$0xff]
        %v4423 = vld [vmem:[#allocation3 + $0xd58] sm:$0xff]
        %v4424 = vld [vmem:[#allocation3 + $0xd60] sm:$0xff]
        %v4425 = vld [vmem:[#allocation3 + $0xd68] sm:$0xff]
        %v4426 = vld [vmem:[#allocation3 + $0xd70] sm:$0xff]
        %v4427 = vld [vmem:[#allocation3 + $0xd78] sm:$0xff]
        %v4428 = vld [vmem:[#allocation3 + $0xd80] sm:$0xff]
        %v4429 = vld [vmem:[#allocation3 + $0xd88] sm:$0xff]
        %v4430 = vld [vmem:[#allocation3 + $0xd90] sm:$0xff]
        %v4431 = vld [vmem:[#allocation3 + $0xd98] sm:$0xff]
        %v4432 = vld [vmem:[#allocation3 + $0xda0] sm:$0xff]
        %v4433 = vld [vmem:[#allocation3 + $0xda8] sm:$0xff]
        %v4434 = vld [vmem:[#allocation3 + $0xdb0] sm:$0xff]
        %v4435 = vld [vmem:[#allocation3 + $0xdb8] sm:$0xff]
        %v4436 = vld [vmem:[#allocation3 + $0xdc0] sm:$0xff]
        %v4437 = vld [vmem:[#allocation3 + $0xdc8] sm:$0xff]
        %v4438 = vld [vmem:[#allocation3 + $0xdd0] sm:$0xff]
        %v4439 = vld [vmem:[#allocation3 + $0xdd8] sm:$0xff]
        %v4440 = vld [vmem:[#allocation3 + $0xde0] sm:$0xff]
        %v4441 = vld [vmem:[#allocation3 + $0xde8] sm:$0xff]
        %v4442 = vld [vmem:[#allocation3 + $0xdf0] sm:$0xff]
        %v4443 = vld [vmem:[#allocation3 + $0xdf8] sm:$0xff]
        %v4444 = vld [vmem:[#allocation3 + $0xe00] sm:$0xff]
        %v4445 = vld [vmem:[#allocation3 + $0xe08] sm:$0xff]
        %v4446 = vld [vmem:[#allocation3 + $0xe10] sm:$0xff]
        %v4447 = vld [vmem:[#allocation3 + $0xe18] sm:$0xff]
        %v4448 = vld [vmem:[#allocation3 + $0xe20] sm:$0xff]
        %v4449 = vld [vmem:[#allocation3 + $0xe28] sm:$0xff]
        %v4450 = vld [vmem:[#allocation3 + $0xe30] sm:$0xff]
        %v4451 = vld [vmem:[#allocation3 + $0xe38] sm:$0xff]
        %v4452 = vld [vmem:[#allocation3 + $0xe40] sm:$0xff]
        %v4453 = vld [vmem:[#allocation3 + $0xe48] sm:$0xff]
        %v4454 = vld [vmem:[#allocation3 + $0xe50] sm:$0xff]
        %v4455 = vld [vmem:[#allocation3 + $0xe58] sm:$0xff]
        %v4456 = vld [vmem:[#allocation3 + $0xe60] sm:$0xff]
        %v4457 = vld [vmem:[#allocation3 + $0xe68] sm:$0xff]
        %v4458 = vld [vmem:[#allocation3 + $0xe70] sm:$0xff]
        %v4459 = vld [vmem:[#allocation3 + $0xe78] sm:$0xff]
        %v4460 = vld [vmem:[#allocation3 + $0xe80] sm:$0xff]
        %v4461 = vld [vmem:[#allocation3 + $0xe88] sm:$0xff]
        %v4462 = vld [vmem:[#allocation3 + $0xe90] sm:$0xff]
        %v4463 = vld [vmem:[#allocation3 + $0xe98] sm:$0xff]
        %v4464 = vld [vmem:[#allocation3 + $0xea0] sm:$0xff]
        %v4465 = vld [vmem:[#allocation3 + $0xea8] sm:$0xff]
        %v4466 = vld [vmem:[#allocation3 + $0xeb0] sm:$0xff]
        %v4467 = vld [vmem:[#allocation3 + $0xeb8] sm:$0xff]
        %v4468 = vld [vmem:[#allocation3 + $0xec0] sm:$0xff]
        %v4469 = vld [vmem:[#allocation3 + $0xec8] sm:$0xff]
        %v4470 = vld [vmem:[#allocation3 + $0xed0] sm:$0xff]
        %v4471 = vld [vmem:[#allocation3 + $0xed8] sm:$0xff]
        %v4472 = vld [vmem:[#allocation3 + $0xee0] sm:$0xff]
        %v4473 = vld [vmem:[#allocation3 + $0xee8] sm:$0xff]
        %v4474 = vld [vmem:[#allocation3 + $0xef0] sm:$0xff]
        %v4475 = vld [vmem:[#allocation3 + $0xef8] sm:$0xff]
        %v4476 = vld [vmem:[#allocation3 + $0xf00] sm:$0xff]
        %v4477 = vld [vmem:[#allocation3 + $0xf08] sm:$0xff]
        %v4478 = vld [vmem:[#allocation3 + $0xf10] sm:$0xff]
        %v4479 = vld [vmem:[#allocation3 + $0xf18] sm:$0xff]
        %vm4480 = vcmask 588800
        %v4482 = vsel %vm4480, %v3995, 0
        %4484 = vmatprep.subr.mxu0 %v3997
        %4485 = vmatpush1.msra.mxu0 %v3996
        %4486 = vmatprep.subr.mxu0 %v4001
        %4487 = vmatpush1.msra.mxu0 %v4000
        %4488 = vmatprep.subr.mxu0 %v4005
        %4489 = vmatpush1.msra.mxu0 %v4004
        %4490 = vmatprep.subr.mxu0 %v4009
        %4491 = vmatpush1.msra.mxu0 %v4008
        %4492 = vmatprep.subr.mxu0 %v4013
        %4493 = vmatpush1.msra.mxu0 %v4012
        %4494 = vmatprep.subr.mxu0 %v4017
        %4495 = vmatpush1.msra.mxu0 %v4016
        %4496 = vmatprep.subr.mxu0 %v4021
        %4497 = vmatpush1.msra.mxu0 %v4020
        %4498 = vmatprep.subr.mxu0 %v4025
        %4499 = vmatpush1.msra.mxu0 %v4024
        %4500 = vmatprep.subr.mxu0 %v4029
        %4501 = vmatpush1.msra.mxu0 %v4028
        %4502 = vmatprep.subr.mxu0 %v4033
        %4503 = vmatpush1.msra.mxu0 %v4032
        %4504 = vmatprep.subr.mxu0 %v4037
        %4505 = vmatpush1.msra.mxu0 %v4036
        %4506 = vmatprep.subr.mxu0 %v4041
        %4507 = vmatpush1.msra.mxu0 %v4040
        %4508 = vmatprep.subr.mxu0 %v4045
        %4509 = vmatpush1.msra.mxu0 %v4044
        %4510 = vmatprep.subr.mxu0 %v4049
        %4511 = vmatpush1.msra.mxu0 %v4048
        %4512 = vmatprep.subr.mxu0 %v4053
        %4513 = vmatpush1.msra.mxu0 %v4052
        %4514 = vmatprep.subr.mxu0 %v4057
        %4515 = vmatpush1.msra.mxu0 %v4056
        %4516 = vmatprep.subr.mxu0 %v4061
        %4517 = vmatpush1.msra.mxu0 %v4060
        %4518 = vmatprep.subr.mxu0 %v4065
        %4519 = vmatpush1.msra.mxu0 %v4064
        %4520 = vmatprep.subr.mxu0 %v4069
        %4521 = vmatpush1.msra.mxu0 %v4068
        %4522 = vmatprep.subr.mxu0 %v4073
        %4523 = vmatpush1.msra.mxu0 %v4072
        %4524 = vmatprep.subr.mxu0 %v4077
        %4525 = vmatpush1.msra.mxu0 %v4076
        %4526 = vmatprep.subr.mxu0 %v4081
        %4527 = vmatpush1.msra.mxu0 %v4080
        %4528 = vmatprep.subr.mxu0 %v4085
        %4529 = vmatpush1.msra.mxu0 %v4084
        %4530 = vmatprep.subr.mxu0 %v4089
        %4531 = vmatpush1.msra.mxu0 %v4088
        %4532 = vmatprep.subr.mxu0 %v4093
        %4533 = vmatpush1.msra.mxu0 %v4092
        %4534 = vmatprep.subr.mxu0 %v4097
        %4535 = vmatpush1.msra.mxu0 %v4096
        %4536 = vmatprep.subr.mxu0 %v4101
        %4537 = vmatpush1.msra.mxu0 %v4100
        %4538 = vmatprep.subr.mxu0 %v4105
        %4539 = vmatpush1.msra.mxu0 %v4104
        %4540 = vmatprep.subr.mxu0 %v4109
        %4541 = vmatpush1.msra.mxu0 %v4108
        %4542 = vmatprep.subr.mxu0 %v4113
        %4543 = vmatpush1.msra.mxu0 %v4112
        %4544 = vmatprep.subr.mxu0 %v4117
        %4545 = vmatpush1.msra.mxu0 %v4116
        %4546 = vmatprep.subr.mxu0 %v4121
        %4547 = vmatpush1.msra.mxu0 %v4120
        %4548 = vmatprep.mubr.f32.mxu0 %v3989
        %4549 = vmatmul.mubr.f32.gmra.mrb[0].mxu0 %v3988
        %v4550 = vpop.f32.mrb[0].mxu0
        %v4551 = vadd.f32 0.0, %v4550
        %v4552 = vpop.f32.mrb[0].mxu0
        %v4553 = vadd.f32 0.0, %v4552
        %4554 = vdwg.mxu0
        %4555 = vmatprep.subr.mxu0 %v4125
        %4556 = vmatpush1.msra.mxu0 %v4124
        %4557 = vmatprep.subr.mxu0 %v4129
        %4558 = vmatpush1.msra.mxu0 %v4128
        %4559 = vmatprep.subr.mxu0 %v4133
        %4560 = vmatpush1.msra.mxu0 %v4132
        %4561 = vmatprep.subr.mxu0 %v4137
        %4562 = vmatpush1.msra.mxu0 %v4136
        %4563 = vmatprep.subr.mxu0 %v4141
        %4564 = vmatpush1.msra.mxu0 %v4140
        %4565 = vmatprep.subr.mxu0 %v4145
        %4566 = vmatpush1.msra.mxu0 %v4144
        %4567 = vmatprep.subr.mxu0 %v4149
        %4568 = vmatpush1.msra.mxu0 %v4148
        %4569 = vmatprep.subr.mxu0 %v4153
        %4570 = vmatpush1.msra.mxu0 %v4152
        %4571 = vmatprep.subr.mxu0 %v4157
        %4572 = vmatpush1.msra.mxu0 %v4156
        %4573 = vmatprep.subr.mxu0 %v4161
        %4574 = vmatpush1.msra.mxu0 %v4160
        %4575 = vmatprep.subr.mxu0 %v4165
        %4576 = vmatpush1.msra.mxu0 %v4164
        %4577 = vmatprep.subr.mxu0 %v4169
        %4578 = vmatpush1.msra.mxu0 %v4168
        %4579 = vmatprep.subr.mxu0 %v4173
        %4580 = vmatpush1.msra.mxu0 %v4172
        %4581 = vmatprep.subr.mxu0 %v4177
        %4582 = vmatpush1.msra.mxu0 %v4176
        %4583 = vmatprep.subr.mxu0 %v4181
        %4584 = vmatpush1.msra.mxu0 %v4180
        %4585 = vmatprep.subr.mxu0 %v4185
        %4586 = vmatpush1.msra.mxu0 %v4184
        %4587 = vmatprep.subr.mxu0 %v4189
        %4588 = vmatpush1.msra.mxu0 %v4188
        %4589 = vmatprep.subr.mxu0 %v4193
        %4590 = vmatpush1.msra.mxu0 %v4192
        %4591 = vmatprep.subr.mxu0 %v4197
        %4592 = vmatpush1.msra.mxu0 %v4196
        %4593 = vmatprep.subr.mxu0 %v4201
        %4594 = vmatpush1.msra.mxu0 %v4200
        %4595 = vmatprep.subr.mxu0 %v4205
        %4596 = vmatpush1.msra.mxu0 %v4204
        %4597 = vmatprep.subr.mxu0 %v4209
        %4598 = vmatpush1.msra.mxu0 %v4208
        %4599 = vmatprep.subr.mxu0 %v4213
        %4600 = vmatpush1.msra.mxu0 %v4212
        %4601 = vmatprep.subr.mxu0 %v4217
        %4602 = vmatpush1.msra.mxu0 %v4216
        %4603 = vmatprep.subr.mxu0 %v4221
        %4604 = vmatpush1.msra.mxu0 %v4220
        %4605 = vmatprep.subr.mxu0 %v4225
        %4606 = vmatpush1.msra.mxu0 %v4224
        %4607 = vmatprep.subr.mxu0 %v4229
        %4608 = vmatpush1.msra.mxu0 %v4228
        %4609 = vmatprep.subr.mxu0 %v4233
        %4610 = vmatpush1.msra.mxu0 %v4232
        %4611 = vmatprep.subr.mxu0 %v4237
        %4612 = vmatpush1.msra.mxu0 %v4236
        %4613 = vmatprep.subr.mxu0 %v4241
        %4614 = vmatpush1.msra.mxu0 %v4240
        %4615 = vmatprep.subr.mxu0 %v4245
        %4616 = vmatpush1.msra.mxu0 %v4244
        %4617 = vmatprep.subr.mxu0 %v4249
        %4618 = vmatpush1.msra.mxu0 %v4248
        %4619 = vmatprep.mubr.f32.mxu0 %v3991
        %4620 = vmatmul.mubr.f32.gmra.mrb[0].mxu0 %v3990
        %v4621 = vpop.f32.mrb[0].mxu0
        %v4622 = vadd.f32 %v4551, %v4621
        %v4623 = vpop.f32.mrb[0].mxu0
        %v4624 = vadd.f32 %v4553, %v4623
        %4625 = vdwg.mxu0
        %4626 = vmatprep.subr.mxu0 %v4253
        %4627 = vmatpush1.msra.mxu0 %v4252
        %4628 = vmatprep.subr.mxu0 %v4257
        %4629 = vmatpush1.msra.mxu0 %v4256
        %4630 = vmatprep.subr.mxu0 %v4261
        %4631 = vmatpush1.msra.mxu0 %v4260
        %4632 = vmatprep.subr.mxu0 %v4265
        %4633 = vmatpush1.msra.mxu0 %v4264
        %4634 = vmatprep.subr.mxu0 %v4269
        %4635 = vmatpush1.msra.mxu0 %v4268
        %4636 = vmatprep.subr.mxu0 %v4273
        %4637 = vmatpush1.msra.mxu0 %v4272
        %4638 = vmatprep.subr.mxu0 %v4277
        %4639 = vmatpush1.msra.mxu0 %v4276
        %4640 = vmatprep.subr.mxu0 %v4281
        %4641 = vmatpush1.msra.mxu0 %v4280
        %4642 = vmatprep.subr.mxu0 %v4285
        %4643 = vmatpush1.msra.mxu0 %v4284
        %4644 = vmatprep.subr.mxu0 %v4289
        %4645 = vmatpush1.msra.mxu0 %v4288
        %4646 = vmatprep.subr.mxu0 %v4293
        %4647 = vmatpush1.msra.mxu0 %v4292
        %4648 = vmatprep.subr.mxu0 %v4297
        %4649 = vmatpush1.msra.mxu0 %v4296
        %4650 = vmatprep.subr.mxu0 %v4301
        %4651 = vmatpush1.msra.mxu0 %v4300
        %4652 = vmatprep.subr.mxu0 %v4305
        %4653 = vmatpush1.msra.mxu0 %v4304
        %4654 = vmatprep.subr.mxu0 %v4309
        %4655 = vmatpush1.msra.mxu0 %v4308
        %4656 = vmatprep.subr.mxu0 %v4313
        %4657 = vmatpush1.msra.mxu0 %v4312
        %4658 = vmatprep.subr.mxu0 %v4317
        %4659 = vmatpush1.msra.mxu0 %v4316
        %4660 = vmatprep.subr.mxu0 %v4321
        %4661 = vmatpush1.msra.mxu0 %v4320
        %4662 = vmatprep.subr.mxu0 %v4325
        %4663 = vmatpush1.msra.mxu0 %v4324
        %4664 = vmatprep.subr.mxu0 %v4329
        %4665 = vmatpush1.msra.mxu0 %v4328
        %4666 = vmatprep.subr.mxu0 %v4333
        %4667 = vmatpush1.msra.mxu0 %v4332
        %4668 = vmatprep.subr.mxu0 %v4337
        %4669 = vmatpush1.msra.mxu0 %v4336
        %4670 = vmatprep.subr.mxu0 %v4341
        %4671 = vmatpush1.msra.mxu0 %v4340
        %4672 = vmatprep.subr.mxu0 %v4345
        %4673 = vmatpush1.msra.mxu0 %v4344
        %4674 = vmatprep.subr.mxu0 %v4349
        %4675 = vmatpush1.msra.mxu0 %v4348
        %4676 = vmatprep.subr.mxu0 %v4353
        %4677 = vmatpush1.msra.mxu0 %v4352
        %4678 = vmatprep.subr.mxu0 %v4357
        %4679 = vmatpush1.msra.mxu0 %v4356
        %4680 = vmatprep.subr.mxu0 %v4361
        %4681 = vmatpush1.msra.mxu0 %v4360
        %4682 = vmatprep.subr.mxu0 %v4365
        %4683 = vmatpush1.msra.mxu0 %v4364
        %4684 = vmatprep.subr.mxu0 %v4369
        %4685 = vmatpush1.msra.mxu0 %v4368
        %4686 = vmatprep.subr.mxu0 %v4373
        %4687 = vmatpush1.msra.mxu0 %v4372
        %4688 = vmatprep.subr.mxu0 %v4377
        %4689 = vmatpush1.msra.mxu0 %v4376
        %4690 = vmatprep.mubr.f32.mxu0 %v3993
        %4691 = vmatmul.mubr.f32.gmra.mrb[0].mxu0 %v3992
        %v4692 = vpop.f32.mrb[0].mxu0
        %v4693 = vadd.f32 %v4622, %v4692
        %v4694 = vpop.f32.mrb[0].mxu0
        %v4695 = vadd.f32 %v4624, %v4694
        %4696 = vdwg.mxu0
        %4697 = vmatprep.subr.mxu0 %v4381
        %4698 = vmatpush1.msra.mxu0 %v4380
        %4699 = vmatprep.subr.mxu0 %v4385
        %4700 = vmatpush1.msra.mxu0 %v4384
        %4701 = vmatprep.subr.mxu0 %v4389
        %4702 = vmatpush1.msra.mxu0 %v4388
        %4703 = vmatprep.subr.mxu0 %v4393
        %4704 = vmatpush1.msra.mxu0 %v4392
        %4705 = vmatprep.subr.mxu0 %v4397
        %4706 = vmatpush1.msra.mxu0 %v4396
        %4707 = vmatprep.subr.mxu0 %v4401
        %4708 = vmatpush1.msra.mxu0 %v4400
        %4709 = vmatprep.subr.mxu0 %v4405
        %4710 = vmatpush1.msra.mxu0 %v4404
        %4711 = vmatprep.subr.mxu0 %v4409
        %4712 = vmatpush1.msra.mxu0 %v4408
        %4713 = vmatprep.subr.mxu0 %v4413
        %4714 = vmatpush1.msra.mxu0 %v4412
        %4715 = vmatprep.subr.mxu0 %v4417
        %4716 = vmatpush1.msra.mxu0 %v4416
        %4717 = vmatprep.subr.mxu0 %v4421
        %4718 = vmatpush1.msra.mxu0 %v4420
        %4719 = vmatprep.subr.mxu0 %v4425
        %4720 = vmatpush1.msra.mxu0 %v4424
        %4721 = vmatprep.subr.mxu0 %v4429
        %4722 = vmatpush1.msra.mxu0 %v4428
        %4723 = vmatprep.subr.mxu0 %v4433
        %4724 = vmatpush1.msra.mxu0 %v4432
        %4725 = vmatprep.subr.mxu0 %v4437
        %4726 = vmatpush1.msra.mxu0 %v4436
        %4727 = vmatprep.subr.mxu0 %v4441
        %4728 = vmatpush1.msra.mxu0 %v4440
        %4729 = vmatprep.subr.mxu0 %v4445
        %4730 = vmatpush1.msra.mxu0 %v4444
        %4731 = vmatprep.subr.mxu0 %v4449
        %4732 = vmatpush1.msra.mxu0 %v4448
        %4733 = vmatprep.subr.mxu0 %v4453
        %4734 = vmatpush1.msra.mxu0 %v4452
        %4735 = vmatprep.subr.mxu0 %v4457
        %4736 = vmatpush1.msra.mxu0 %v4456
        %4737 = vmatprep.subr.mxu0 %v4461
        %4738 = vmatpush1.msra.mxu0 %v4460
        %4739 = vmatprep.subr.mxu0 %v4465
        %4740 = vmatpush1.msra.mxu0 %v4464
        %4741 = vmatprep.subr.mxu0 %v4469
        %4742 = vmatpush1.msra.mxu0 %v4468
        %4743 = vmatprep.subr.mxu0 %v4473
        %4744 = vmatpush1.msra.mxu0 %v4472
        %4745 = vmatprep.subr.mxu0 %v4477
        %4746 = vmatpush1.msra.mxu0 %v4476
        %4747 = vmatprep.subr.mxu0 0.0
        %4748 = vmatpush1.msra.mxu0 0.0
        %4749 = vmatprep.subr.mxu0 0.0
        %4750 = vmatpush1.msra.mxu0 0.0
        %4751 = vmatprep.subr.mxu0 0.0
        %4752 = vmatpush1.msra.mxu0 0.0
        %4753 = vmatprep.subr.mxu0 0.0
        %4754 = vmatpush1.msra.mxu0 0.0
        %4755 = vmatprep.subr.mxu0 0.0
        %4756 = vmatpush1.msra.mxu0 0.0
        %4757 = vmatprep.subr.mxu0 0.0
        %4758 = vmatpush1.msra.mxu0 0.0
        %4759 = vmatprep.subr.mxu0 0.0
        %4760 = vmatpush1.msra.mxu0 0.0
        %4761 = vmatprep.mubr.f32.mxu0 %v4482
        %4762 = vmatmul.mubr.f32.gmra.mrb[0].mxu0 %v3994
        %v4763 = vpop.f32.mrb[0].mxu0
        %v4764 = vadd.f32 %v4693, %v4763
        %v4765 = vpop.f32.mrb[0].mxu0
        %v4766 = vadd.f32 %v4695, %v4765
        %4767 = vdwg.mxu0
        %4768 = vmatprep.subr.mxu0 %v3999
        %4769 = vmatpush1.msra.mxu0 %v3998
        %4770 = vmatprep.subr.mxu0 %v4003
        %4771 = vmatpush1.msra.mxu0 %v4002
        %4772 = vmatprep.subr.mxu0 %v4007
        %4773 = vmatpush1.msra.mxu0 %v4006
        %4774 = vmatprep.subr.mxu0 %v4011
        %4775 = vmatpush1.msra.mxu0 %v4010
        %4776 = vmatprep.subr.mxu0 %v4015
        %4777 = vmatpush1.msra.mxu0 %v4014
        %4778 = vmatprep.subr.mxu0 %v4019
        %4779 = vmatpush1.msra.mxu0 %v4018
        %4780 = vmatprep.subr.mxu0 %v4023
        %4781 = vmatpush1.msra.mxu0 %v4022
        %4782 = vmatprep.subr.mxu0 %v4027
        %4783 = vmatpush1.msra.mxu0 %v4026
        %4784 = vmatprep.subr.mxu0 %v4031
        %4785 = vmatpush1.msra.mxu0 %v4030
        %4786 = vmatprep.subr.mxu0 %v4035
        %4787 = vmatpush1.msra.mxu0 %v4034
        %4788 = vmatprep.subr.mxu0 %v4039
        %4789 = vmatpush1.msra.mxu0 %v4038
        %4790 = vmatprep.subr.mxu0 %v4043
        %4791 = vmatpush1.msra.mxu0 %v4042
        %4792 = vmatprep.subr.mxu0 %v4047
        %4793 = vmatpush1.msra.mxu0 %v4046
        %4794 = vmatprep.subr.mxu0 %v4051
        %4795 = vmatpush1.msra.mxu0 %v4050
        %4796 = vmatprep.subr.mxu0 %v4055
        %4797 = vmatpush1.msra.mxu0 %v4054
        %4798 = vmatprep.subr.mxu0 %v4059
        %4799 = vmatpush1.msra.mxu0 %v4058
        %4800 = vmatprep.subr.mxu0 %v4063
        %4801 = vmatpush1.msra.mxu0 %v4062
        %4802 = vmatprep.subr.mxu0 %v4067
        %4803 = vmatpush1.msra.mxu0 %v4066
        %4804 = vmatprep.subr.mxu0 %v4071
        %4805 = vmatpush1.msra.mxu0 %v4070
        %4806 = vmatprep.subr.mxu0 %v4075
        %4807 = vmatpush1.msra.mxu0 %v4074
        %4808 = vmatprep.subr.mxu0 %v4079
        %4809 = vmatpush1.msra.mxu0 %v4078
        %4810 = vmatprep.subr.mxu0 %v4083
        %4811 = vmatpush1.msra.mxu0 %v4082
        %4812 = vmatprep.subr.mxu0 %v4087
        %4813 = vmatpush1.msra.mxu0 %v4086
        %4814 = vmatprep.subr.mxu0 %v4091
        %4815 = vmatpush1.msra.mxu0 %v4090
        %4816 = vmatprep.subr.mxu0 %v4095
        %4817 = vmatpush1.msra.mxu0 %v4094
        %4818 = vmatprep.subr.mxu0 %v4099
        %4819 = vmatpush1.msra.mxu0 %v4098
        %4820 = vmatprep.subr.mxu0 %v4103
        %4821 = vmatpush1.msra.mxu0 %v4102
        %4822 = vmatprep.subr.mxu0 %v4107
        %4823 = vmatpush1.msra.mxu0 %v4106
        %4824 = vmatprep.subr.mxu0 %v4111
        %4825 = vmatpush1.msra.mxu0 %v4110
        %4826 = vmatprep.subr.mxu0 %v4115
        %4827 = vmatpush1.msra.mxu0 %v4114
        %4828 = vmatprep.subr.mxu0 %v4119
        %4829 = vmatpush1.msra.mxu0 %v4118
        %4830 = vmatprep.subr.mxu0 %v4123
        %4831 = vmatpush1.msra.mxu0 %v4122
        %4832 = vmatprep.mubr.f32.mxu0 %v3989
        %4833 = vmatmul.mubr.f32.gmra.mrb[0].mxu0 %v3988
        %v4834 = vpop.f32.mrb[0].mxu0
        %v4835 = vadd.f32 0.0, %v4834
        %v4836 = vpop.f32.mrb[0].mxu0
        %v4837 = vadd.f32 0.0, %v4836
        %4838 = vdwg.mxu0
        %4839 = vmatprep.subr.mxu0 %v4127
        %4840 = vmatpush1.msra.mxu0 %v4126
        %4841 = vmatprep.subr.mxu0 %v4131
        %4842 = vmatpush1.msra.mxu0 %v4130
        %4843 = vmatprep.subr.mxu0 %v4135
        %4844 = vmatpush1.msra.mxu0 %v4134
        %4845 = vmatprep.subr.mxu0 %v4139
        %4846 = vmatpush1.msra.mxu0 %v4138
        %4847 = vmatprep.subr.mxu0 %v4143
        %4848 = vmatpush1.msra.mxu0 %v4142
        %4849 = vmatprep.subr.mxu0 %v4147
        %4850 = vmatpush1.msra.mxu0 %v4146
        %4851 = vmatprep.subr.mxu0 %v4151
        %4852 = vmatpush1.msra.mxu0 %v4150
        %4853 = vmatprep.subr.mxu0 %v4155
        %4854 = vmatpush1.msra.mxu0 %v4154
        %4855 = vmatprep.subr.mxu0 %v4159
        %4856 = vmatpush1.msra.mxu0 %v4158
        %4857 = vmatprep.subr.mxu0 %v4163
        %4858 = vmatpush1.msra.mxu0 %v4162
        %4859 = vmatprep.subr.mxu0 %v4167
        %4860 = vmatpush1.msra.mxu0 %v4166
        %4861 = vmatprep.subr.mxu0 %v4171
        %4862 = vmatpush1.msra.mxu0 %v4170
        %4863 = vmatprep.subr.mxu0 %v4175
        %4864 = vmatpush1.msra.mxu0 %v4174
        %4865 = vmatprep.subr.mxu0 %v4179
        %4866 = vmatpush1.msra.mxu0 %v4178
        %4867 = vmatprep.subr.mxu0 %v4183
        %4868 = vmatpush1.msra.mxu0 %v4182
        %4869 = vmatprep.subr.mxu0 %v4187
        %4870 = vmatpush1.msra.mxu0 %v4186
        %4871 = vmatprep.subr.mxu0 %v4191
        %4872 = vmatpush1.msra.mxu0 %v4190
        %4873 = vmatprep.subr.mxu0 %v4195
        %4874 = vmatpush1.msra.mxu0 %v4194
        %4875 = vmatprep.subr.mxu0 %v4199
        %4876 = vmatpush1.msra.mxu0 %v4198
        %4877 = vmatprep.subr.mxu0 %v4203
        %4878 = vmatpush1.msra.mxu0 %v4202
        %4879 = vmatprep.subr.mxu0 %v4207
        %4880 = vmatpush1.msra.mxu0 %v4206
        %4881 = vmatprep.subr.mxu0 %v4211
        %4882 = vmatpush1.msra.mxu0 %v4210
        %4883 = vmatprep.subr.mxu0 %v4215
        %4884 = vmatpush1.msra.mxu0 %v4214
        %4885 = vmatprep.subr.mxu0 %v4219
        %4886 = vmatpush1.msra.mxu0 %v4218
        %4887 = vmatprep.subr.mxu0 %v4223
        %4888 = vmatpush1.msra.mxu0 %v4222
        %4889 = vmatprep.subr.mxu0 %v4227
        %4890 = vmatpush1.msra.mxu0 %v4226
        %4891 = vmatprep.subr.mxu0 %v4231
        %4892 = vmatpush1.msra.mxu0 %v4230
        %4893 = vmatprep.subr.mxu0 %v4235
        %4894 = vmatpush1.msra.mxu0 %v4234
        %4895 = vmatprep.subr.mxu0 %v4239
        %4896 = vmatpush1.msra.mxu0 %v4238
        %4897 = vmatprep.subr.mxu0 %v4243
        %4898 = vmatpush1.msra.mxu0 %v4242
        %4899 = vmatprep.subr.mxu0 %v4247
        %4900 = vmatpush1.msra.mxu0 %v4246
        %4901 = vmatprep.subr.mxu0 %v4251
        %4902 = vmatpush1.msra.mxu0 %v4250
        %4903 = vmatprep.mubr.f32.mxu0 %v3991
        %4904 = vmatmul.mubr.f32.gmra.mrb[0].mxu0 %v3990
        %v4905 = vpop.f32.mrb[0].mxu0
        %v4906 = vadd.f32 %v4835, %v4905
        %v4907 = vpop.f32.mrb[0].mxu0
        %v4908 = vadd.f32 %v4837, %v4907
        %4909 = vdwg.mxu0
        %4910 = vmatprep.subr.mxu0 %v4255
        %4911 = vmatpush1.msra.mxu0 %v4254
        %4912 = vmatprep.subr.mxu0 %v4259
        %4913 = vmatpush1.msra.mxu0 %v4258
        %4914 = vmatprep.subr.mxu0 %v4263
        %4915 = vmatpush1.msra.mxu0 %v4262
        %4916 = vmatprep.subr.mxu0 %v4267
        %4917 = vmatpush1.msra.mxu0 %v4266
        %4918 = vmatprep.subr.mxu0 %v4271
        %4919 = vmatpush1.msra.mxu0 %v4270
        %4920 = vmatprep.subr.mxu0 %v4275
        %4921 = vmatpush1.msra.mxu0 %v4274
        %4922 = vmatprep.subr.mxu0 %v4279
        %4923 = vmatpush1.msra.mxu0 %v4278
        %4924 = vmatprep.subr.mxu0 %v4283
        %4925 = vmatpush1.msra.mxu0 %v4282
        %4926 = vmatprep.subr.mxu0 %v4287
        %4927 = vmatpush1.msra.mxu0 %v4286
        %4928 = vmatprep.subr.mxu0 %v4291
        %4929 = vmatpush1.msra.mxu0 %v4290
        %4930 = vmatprep.subr.mxu0 %v4295
        %4931 = vmatpush1.msra.mxu0 %v4294
        %4932 = vmatprep.subr.mxu0 %v4299
        %4933 = vmatpush1.msra.mxu0 %v4298
        %4934 = vmatprep.subr.mxu0 %v4303
        %4935 = vmatpush1.msra.mxu0 %v4302
        %4936 = vmatprep.subr.mxu0 %v4307
        %4937 = vmatpush1.msra.mxu0 %v4306
        %4938 = vmatprep.subr.mxu0 %v4311
        %4939 = vmatpush1.msra.mxu0 %v4310
        %4940 = vmatprep.subr.mxu0 %v4315
        %4941 = vmatpush1.msra.mxu0 %v4314
        %4942 = vmatprep.subr.mxu0 %v4319
        %4943 = vmatpush1.msra.mxu0 %v4318
        %4944 = vmatprep.subr.mxu0 %v4323
        %4945 = vmatpush1.msra.mxu0 %v4322
        %4946 = vmatprep.subr.mxu0 %v4327
        %4947 = vmatpush1.msra.mxu0 %v4326
        %4948 = vmatprep.subr.mxu0 %v4331
        %4949 = vmatpush1.msra.mxu0 %v4330
        %4950 = vmatprep.subr.mxu0 %v4335
        %4951 = vmatpush1.msra.mxu0 %v4334
        %4952 = vmatprep.subr.mxu0 %v4339
        %4953 = vmatpush1.msra.mxu0 %v4338
        %4954 = vmatprep.subr.mxu0 %v4343
        %4955 = vmatpush1.msra.mxu0 %v4342
        %4956 = vmatprep.subr.mxu0 %v4347
        %4957 = vmatpush1.msra.mxu0 %v4346
        %4958 = vmatprep.subr.mxu0 %v4351
        %4959 = vmatpush1.msra.mxu0 %v4350
        %4960 = vmatprep.subr.mxu0 %v4355
        %4961 = vmatpush1.msra.mxu0 %v4354
        %4962 = vmatprep.subr.mxu0 %v4359
        %4963 = vmatpush1.msra.mxu0 %v4358
        %4964 = vmatprep.subr.mxu0 %v4363
        %4965 = vmatpush1.msra.mxu0 %v4362
        %4966 = vmatprep.subr.mxu0 %v4367
        %4967 = vmatpush1.msra.mxu0 %v4366
        %4968 = vmatprep.subr.mxu0 %v4371
        %4969 = vmatpush1.msra.mxu0 %v4370
        %4970 = vmatprep.subr.mxu0 %v4375
        %4971 = vmatpush1.msra.mxu0 %v4374
        %4972 = vmatprep.subr.mxu0 %v4379
        %4973 = vmatpush1.msra.mxu0 %v4378
        %4974 = vmatprep.mubr.f32.mxu0 %v3993
        %4975 = vmatmul.mubr.f32.gmra.mrb[0].mxu0 %v3992
        %v4976 = vpop.f32.mrb[0].mxu0
        %v4977 = vadd.f32 %v4906, %v4976
        %v4978 = vpop.f32.mrb[0].mxu0
        %v4979 = vadd.f32 %v4908, %v4978
        %4980 = vdwg.mxu0
        %4981 = vmatprep.subr.mxu0 %v4383
        %4982 = vmatpush1.msra.mxu0 %v4382
        %4983 = vmatprep.subr.mxu0 %v4387
        %4984 = vmatpush1.msra.mxu0 %v4386
        %4985 = vmatprep.subr.mxu0 %v4391
        %4986 = vmatpush1.msra.mxu0 %v4390
        %4987 = vmatprep.subr.mxu0 %v4395
        %4988 = vmatpush1.msra.mxu0 %v4394
        %4989 = vmatprep.subr.mxu0 %v4399
        %4990 = vmatpush1.msra.mxu0 %v4398
        %4991 = vmatprep.subr.mxu0 %v4403
        %4992 = vmatpush1.msra.mxu0 %v4402
        %4993 = vmatprep.subr.mxu0 %v4407
        %4994 = vmatpush1.msra.mxu0 %v4406
        %4995 = vmatprep.subr.mxu0 %v4411
        %4996 = vmatpush1.msra.mxu0 %v4410
        %4997 = vmatprep.subr.mxu0 %v4415
        %4998 = vmatpush1.msra.mxu0 %v4414
        %4999 = vmatprep.subr.mxu0 %v4419
        %5000 = vmatpush1.msra.mxu0 %v4418
        %5001 = vmatprep.subr.mxu0 %v4423
        %5002 = vmatpush1.msra.mxu0 %v4422
        %5003 = vmatprep.subr.mxu0 %v4427
        %5004 = vmatpush1.msra.mxu0 %v4426
        %5005 = vmatprep.subr.mxu0 %v4431
        %5006 = vmatpush1.msra.mxu0 %v4430
        %5007 = vmatprep.subr.mxu0 %v4435
        %5008 = vmatpush1.msra.mxu0 %v4434
        %5009 = vmatprep.subr.mxu0 %v4439
        %5010 = vmatpush1.msra.mxu0 %v4438
        %5011 = vmatprep.subr.mxu0 %v4443
        %5012 = vmatpush1.msra.mxu0 %v4442
        %5013 = vmatprep.subr.mxu0 %v4447
        %5014 = vmatpush1.msra.mxu0 %v4446
        %5015 = vmatprep.subr.mxu0 %v4451
        %5016 = vmatpush1.msra.mxu0 %v4450
        %5017 = vmatprep.subr.mxu0 %v4455
        %5018 = vmatpush1.msra.mxu0 %v4454
        %5019 = vmatprep.subr.mxu0 %v4459
        %5020 = vmatpush1.msra.mxu0 %v4458
        %5021 = vmatprep.subr.mxu0 %v4463
        %5022 = vmatpush1.msra.mxu0 %v4462
        %5023 = vmatprep.subr.mxu0 %v4467
        %5024 = vmatpush1.msra.mxu0 %v4466
        %5025 = vmatprep.subr.mxu0 %v4471
        %5026 = vmatpush1.msra.mxu0 %v4470
        %5027 = vmatprep.subr.mxu0 %v4475
        %5028 = vmatpush1.msra.mxu0 %v4474
        %5029 = vmatprep.subr.mxu0 %v4479
        %5030 = vmatpush1.msra.mxu0 %v4478
        %5031 = vmatprep.subr.mxu0 0.0
        %5032 = vmatpush1.msra.mxu0 0.0
        %5033 = vmatprep.subr.mxu0 0.0
        %5034 = vmatpush1.msra.mxu0 0.0
        %5035 = vmatprep.subr.mxu0 0.0
        %5036 = vmatpush1.msra.mxu0 0.0
        %5037 = vmatprep.subr.mxu0 0.0
        %5038 = vmatpush1.msra.mxu0 0.0
        %5039 = vmatprep.subr.mxu0 0.0
        %5040 = vmatpush1.msra.mxu0 0.0
        %5041 = vmatprep.subr.mxu0 0.0
        %5042 = vmatpush1.msra.mxu0 0.0
        %5043 = vmatprep.subr.mxu0 0.0
        %5044 = vmatpush1.msra.mxu0 0.0
        %5045 = vmatprep.mubr.f32.mxu0 %v4482
        %5046 = vmatmul.mubr.f32.gmra.mrb[0].mxu0 %v3994
        %v5047 = vpop.f32.mrb[0].mxu0
        %v5048 = vadd.f32 %v4977, %v5047
        %v5049 = vpop.f32.mrb[0].mxu0
        %v5050 = vadd.f32 %v4979, %v5049
        %5051 = vdwg.mxu0
        %v5052 = vld [vmem:[%s240] sm:$0xff]
        %5054 = vset.pattern.permute.xlu0 0
        %5055 = vperm.xlu0 %5054, %v5052
        %v5056 = vpop.permute.xlu0 %5055
        %v5058 = vadd.f32 %v4764, %v5056
        %v5060 = vcombine.high %v5058, %v5058
        %v5062 = vunpack.c.l.s4 1966171168
        %v5063 = vunpack.c.0.s8 %v5062
        %v5064 = vlaneseq
        %v5065 = vshrl.u32 %v5064, 7
        %v5066 = vsub.s32 %v5063, %v5065
        %v5067 = vrot.slane %v5058, %v5066
        %v5069 = vunpack.c.l.s4 1966171168
        %v5070 = vunpack.c.0.s8 %v5069
        %v5071 = vlaneseq
        %v5072 = vshrl.u32 %v5071, 7
        %v5073 = vsub.s32 %v5070, %v5072
        %v5074 = vrot.slane %v5060, %v5073
        %v5075 = vcombine.high %v5067, %v5067
        %v5076 = vcombine.high %v5074, %v5074
        %v5078 = vunpack.c.l.s4 1966171168
        %v5079 = vunpack.c.0.s8 %v5078
        %v5080 = vlaneseq
        %v5081 = vshrl.u32 %v5080, 7
        %v5082 = vsub.s32 %v5079, %v5081
        %v5083 = vrot.slane %v5067, %v5082
        %v5085 = vunpack.c.l.s4 1966171168
        %v5086 = vunpack.c.0.s8 %v5085
        %v5087 = vlaneseq
        %v5088 = vshrl.u32 %v5087, 7
        %v5089 = vsub.s32 %v5086, %v5088
        %v5090 = vrot.slane %v5074, %v5089
        %v5092 = vunpack.c.l.s4 1966171168
        %v5093 = vunpack.c.0.s8 %v5092
        %v5094 = vlaneseq
        %v5095 = vshrl.u32 %v5094, 7
        %v5096 = vsub.s32 %v5093, %v5095
        %v5097 = vrot.slane %v5075, %v5096
        %v5099 = vunpack.c.l.s4 1966171168
        %v5100 = vunpack.c.0.s8 %v5099
        %v5101 = vlaneseq
        %v5102 = vshrl.u32 %v5101, 7
        %v5103 = vsub.s32 %v5100, %v5102
        %v5104 = vrot.slane %v5076, %v5103
        %v5105 = vcombine.high %v5083, %v5083
        %v5106 = vcombine.high %v5090, %v5090
        %v5107 = vcombine.high %v5097, %v5097
        %v5108 = vcombine.high %v5104, %v5104
        %vm5117 = vcmask 122880
        %5118 = vst.msk [vmem:[%s236] sm:$0x1] %vm5117, %v5083
        %5119 = vst.msk [vmem:[%s236 + $0x10] sm:$0x1] %vm5117, %v5097
        %5120 = vst.msk [vmem:[%s236 + $0x20] sm:$0x1] %vm5117, %v5105
        %5121 = vst.msk [vmem:[%s236 + $0x30] sm:$0x1] %vm5117, %v5107
        %5122 = vst.msk [vmem:[%s236 + $0x40] sm:$0x1] %vm5117, %v5090
        %5123 = vst.msk [vmem:[%s236 + $0x50] sm:$0x1] %vm5117, %v5104
        %5124 = vst.msk [vmem:[%s236 + $0x60] sm:$0x1] %vm5117, %v5106
        %5125 = vst.msk [vmem:[%s236 + $0x70] sm:$0x1] %vm5117, %v5108
        %v5126 = vlaneseq
        %v5127 = vshrl.u32 %v5126, 7
        %v5128 = vsub.s32 0, %v5127
        %v5129 = vrot.slane %v5083, %v5128
        %v5130 = vlaneseq
        %v5131 = vshrl.u32 %v5130, 7
        %v5132 = vsub.s32 0, %v5131
        %v5133 = vrot.slane %v5097, %v5132
        %v5134 = vlaneseq
        %v5135 = vshrl.u32 %v5134, 7
        %v5136 = vsub.s32 0, %v5135
        %v5137 = vrot.slane %v5105, %v5136
        %v5138 = vlaneseq
        %v5139 = vshrl.u32 %v5138, 7
        %v5140 = vsub.s32 0, %v5139
        %v5141 = vrot.slane %v5107, %v5140
        %v5142 = vlaneseq
        %v5143 = vshrl.u32 %v5142, 7
        %v5144 = vsub.s32 0, %v5143
        %v5145 = vrot.slane %v5090, %v5144
        %v5146 = vlaneseq
        %v5147 = vshrl.u32 %v5146, 7
        %v5148 = vsub.s32 0, %v5147
        %v5149 = vrot.slane %v5104, %v5148
        %v5150 = vlaneseq
        %v5151 = vshrl.u32 %v5150, 7
        %v5152 = vsub.s32 0, %v5151
        %v5153 = vrot.slane %v5106, %v5152
        %v5154 = vlaneseq
        %v5155 = vshrl.u32 %v5154, 7
        %v5156 = vsub.s32 0, %v5155
        %v5157 = vrot.slane %v5108, %v5156
        %5158 = vrot.lane.b32.xlu0 %v5129, 102
        %v5159 = vpop.permute.xlu0 %5158
        %5160 = vrot.lane.b32.xlu0 %v5133, 102
        %v5161 = vpop.permute.xlu0 %5160
        %5162 = vrot.lane.b32.xlu0 %v5137, 102
        %v5163 = vpop.permute.xlu0 %5162
        %5164 = vrot.lane.b32.xlu0 %v5141, 102
        %v5165 = vpop.permute.xlu0 %5164
        %5166 = vrot.lane.b32.xlu0 %v5145, 102
        %v5167 = vpop.permute.xlu0 %5166
        %5168 = vrot.lane.b32.xlu0 %v5149, 102
        %v5169 = vpop.permute.xlu0 %5168
        %5170 = vrot.lane.b32.xlu0 %v5153, 102
        %v5171 = vpop.permute.xlu0 %5170
        %5172 = vrot.lane.b32.xlu0 %v5157, 102
        %v5173 = vpop.permute.xlu0 %5172
        %5182 = vst.msk [vmem:[%s236 + $0x1] sm:$0x1] %vm5117, %v5159
        %5183 = vst.msk [vmem:[%s236 + $0x11] sm:$0x1] %vm5117, %v5161
        %5184 = vst.msk [vmem:[%s236 + $0x21] sm:$0x1] %vm5117, %v5163
        %5185 = vst.msk [vmem:[%s236 + $0x31] sm:$0x1] %vm5117, %v5165
        %5186 = vst.msk [vmem:[%s236 + $0x41] sm:$0x1] %vm5117, %v5167
        %5187 = vst.msk [vmem:[%s236 + $0x51] sm:$0x1] %vm5117, %v5169
        %5188 = vst.msk [vmem:[%s236 + $0x61] sm:$0x1] %vm5117, %v5171
        %5189 = vst.msk [vmem:[%s236 + $0x71] sm:$0x1] %vm5117, %v5173
        %5190 = vrot.lane.b32.xlu0 %v5129, 76
        %v5191 = vpop.permute.xlu0 %5190
        %5192 = vrot.lane.b32.xlu0 %v5133, 76
        %v5193 = vpop.permute.xlu0 %5192
        %5194 = vrot.lane.b32.xlu0 %v5137, 76
        %v5195 = vpop.permute.xlu0 %5194
        %5196 = vrot.lane.b32.xlu0 %v5141, 76
        %v5197 = vpop.permute.xlu0 %5196
        %5198 = vrot.lane.b32.xlu0 %v5145, 76
        %v5199 = vpop.permute.xlu0 %5198
        %5200 = vrot.lane.b32.xlu0 %v5149, 76
        %v5201 = vpop.permute.xlu0 %5200
        %5202 = vrot.lane.b32.xlu0 %v5153, 76
        %v5203 = vpop.permute.xlu0 %5202
        %5204 = vrot.lane.b32.xlu0 %v5157, 76
        %v5205 = vpop.permute.xlu0 %5204
        %5214 = vst.msk [vmem:[%s236 + $0x2] sm:$0x1] %vm5117, %v5191
        %5215 = vst.msk [vmem:[%s236 + $0x12] sm:$0x1] %vm5117, %v5193
        %5216 = vst.msk [vmem:[%s236 + $0x22] sm:$0x1] %vm5117, %v5195
        %5217 = vst.msk [vmem:[%s236 + $0x32] sm:$0x1] %vm5117, %v5197
        %5218 = vst.msk [vmem:[%s236 + $0x42] sm:$0x1] %vm5117, %v5199
        %5219 = vst.msk [vmem:[%s236 + $0x52] sm:$0x1] %vm5117, %v5201
        %5220 = vst.msk [vmem:[%s236 + $0x62] sm:$0x1] %vm5117, %v5203
        %5221 = vst.msk [vmem:[%s236 + $0x72] sm:$0x1] %vm5117, %v5205
        %5222 = vrot.lane.b32.xlu0 %v5129, 50
        %v5223 = vpop.permute.xlu0 %5222
        %5224 = vrot.lane.b32.xlu0 %v5133, 50
        %v5225 = vpop.permute.xlu0 %5224
        %5226 = vrot.lane.b32.xlu0 %v5137, 50
        %v5227 = vpop.permute.xlu0 %5226
        %5228 = vrot.lane.b32.xlu0 %v5141, 50
        %v5229 = vpop.permute.xlu0 %5228
        %5230 = vrot.lane.b32.xlu0 %v5145, 50
        %v5231 = vpop.permute.xlu0 %5230
        %5232 = vrot.lane.b32.xlu0 %v5149, 50
        %v5233 = vpop.permute.xlu0 %5232
        %5234 = vrot.lane.b32.xlu0 %v5153, 50
        %v5235 = vpop.permute.xlu0 %5234
        %5236 = vrot.lane.b32.xlu0 %v5157, 50
        %v5237 = vpop.permute.xlu0 %5236
        %5246 = vst.msk [vmem:[%s236 + $0x3] sm:$0x1] %vm5117, %v5223
        %5247 = vst.msk [vmem:[%s236 + $0x13] sm:$0x1] %vm5117, %v5225
        %5248 = vst.msk [vmem:[%s236 + $0x23] sm:$0x1] %vm5117, %v5227
        %5249 = vst.msk [vmem:[%s236 + $0x33] sm:$0x1] %vm5117, %v5229
        %5250 = vst.msk [vmem:[%s236 + $0x43] sm:$0x1] %vm5117, %v5231
        %5251 = vst.msk [vmem:[%s236 + $0x53] sm:$0x1] %vm5117, %v5233
        %5252 = vst.msk [vmem:[%s236 + $0x63] sm:$0x1] %vm5117, %v5235
        %5253 = vst.msk [vmem:[%s236 + $0x73] sm:$0x1] %vm5117, %v5237
        %5254 = vrot.lane.b32.xlu0 %v5129, 24
        %v5255 = vpop.permute.xlu0 %5254
        %5256 = vrot.lane.b32.xlu0 %v5133, 24
        %v5257 = vpop.permute.xlu0 %5256
        %5258 = vrot.lane.b32.xlu0 %v5137, 24
        %v5259 = vpop.permute.xlu0 %5258
        %5260 = vrot.lane.b32.xlu0 %v5141, 24
        %v5261 = vpop.permute.xlu0 %5260
        %5262 = vrot.lane.b32.xlu0 %v5145, 24
        %v5263 = vpop.permute.xlu0 %5262
        %5264 = vrot.lane.b32.xlu0 %v5149, 24
        %v5265 = vpop.permute.xlu0 %5264
        %5266 = vrot.lane.b32.xlu0 %v5153, 24
        %v5267 = vpop.permute.xlu0 %5266
        %5268 = vrot.lane.b32.xlu0 %v5157, 24
        %v5269 = vpop.permute.xlu0 %5268
        %5278 = vst.msk [vmem:[%s236 + $0x4] sm:$0x1] %vm5117, %v5255
        %5279 = vst.msk [vmem:[%s236 + $0x14] sm:$0x1] %vm5117, %v5257
        %5280 = vst.msk [vmem:[%s236 + $0x24] sm:$0x1] %vm5117, %v5259
        %5281 = vst.msk [vmem:[%s236 + $0x34] sm:$0x1] %vm5117, %v5261
        %5282 = vst.msk [vmem:[%s236 + $0x44] sm:$0x1] %vm5117, %v5263
        %5283 = vst.msk [vmem:[%s236 + $0x54] sm:$0x1] %vm5117, %v5265
        %5284 = vst.msk [vmem:[%s236 + $0x64] sm:$0x1] %vm5117, %v5267
        %5285 = vst.msk [vmem:[%s236 + $0x74] sm:$0x1] %vm5117, %v5269
        %v5286 = vadd.f32 %v4766, %v5056
        %v5288 = vcombine.high %v5286, %v5286
        %v5290 = vunpack.c.l.s4 1966171168
        %v5291 = vunpack.c.0.s8 %v5290
        %v5292 = vlaneseq
        %v5293 = vshrl.u32 %v5292, 7
        %v5294 = vsub.s32 %v5291, %v5293
        %v5295 = vrot.slane %v5286, %v5294
        %v5297 = vunpack.c.l.s4 1966171168
        %v5298 = vunpack.c.0.s8 %v5297
        %v5299 = vlaneseq
        %v5300 = vshrl.u32 %v5299, 7
        %v5301 = vsub.s32 %v5298, %v5300
        %v5302 = vrot.slane %v5288, %v5301
        %v5303 = vcombine.high %v5295, %v5295
        %v5304 = vcombine.high %v5302, %v5302
        %v5306 = vunpack.c.l.s4 1966171168
        %v5307 = vunpack.c.0.s8 %v5306
        %v5308 = vlaneseq
        %v5309 = vshrl.u32 %v5308, 7
        %v5310 = vsub.s32 %v5307, %v5309
        %v5311 = vrot.slane %v5295, %v5310
        %v5313 = vunpack.c.l.s4 1966171168
        %v5314 = vunpack.c.0.s8 %v5313
        %v5315 = vlaneseq
        %v5316 = vshrl.u32 %v5315, 7
        %v5317 = vsub.s32 %v5314, %v5316
        %v5318 = vrot.slane %v5302, %v5317
        %v5320 = vunpack.c.l.s4 1966171168
        %v5321 = vunpack.c.0.s8 %v5320
        %v5322 = vlaneseq
        %v5323 = vshrl.u32 %v5322, 7
        %v5324 = vsub.s32 %v5321, %v5323
        %v5325 = vrot.slane %v5303, %v5324
        %v5327 = vunpack.c.l.s4 1966171168
        %v5328 = vunpack.c.0.s8 %v5327
        %v5329 = vlaneseq
        %v5330 = vshrl.u32 %v5329, 7
        %v5331 = vsub.s32 %v5328, %v5330
        %v5332 = vrot.slane %v5304, %v5331
        %v5333 = vcombine.high %v5311, %v5311
        %v5334 = vcombine.high %v5318, %v5318
        %v5335 = vcombine.high %v5325, %v5325
        %v5336 = vcombine.high %v5332, %v5332
        %v5337 = vlaneseq
        %v5338 = vshrl.u32 %v5337, 7
        %v5339 = vsub.s32 0, %v5338
        %v5340 = vrot.slane %v5311, %v5339
        %v5341 = vlaneseq
        %v5342 = vshrl.u32 %v5341, 7
        %v5343 = vsub.s32 0, %v5342
        %v5344 = vrot.slane %v5325, %v5343
        %v5345 = vlaneseq
        %v5346 = vshrl.u32 %v5345, 7
        %v5347 = vsub.s32 0, %v5346
        %v5348 = vrot.slane %v5333, %v5347
        %v5349 = vlaneseq
        %v5350 = vshrl.u32 %v5349, 7
        %v5351 = vsub.s32 0, %v5350
        %v5352 = vrot.slane %v5335, %v5351
        %v5353 = vlaneseq
        %v5354 = vshrl.u32 %v5353, 7
        %v5355 = vsub.s32 0, %v5354
        %v5356 = vrot.slane %v5318, %v5355
        %v5357 = vlaneseq
        %v5358 = vshrl.u32 %v5357, 7
        %v5359 = vsub.s32 0, %v5358
        %v5360 = vrot.slane %v5332, %v5359
        %v5361 = vlaneseq
        %v5362 = vshrl.u32 %v5361, 7
        %v5363 = vsub.s32 0, %v5362
        %v5364 = vrot.slane %v5334, %v5363
        %v5365 = vlaneseq
        %v5366 = vshrl.u32 %v5365, 7
        %v5367 = vsub.s32 0, %v5366
        %v5368 = vrot.slane %v5336, %v5367
        %5369 = vrot.lane.b32.xlu0 %v5340, 126
        %v5370 = vpop.permute.xlu0 %5369
        %5371 = vrot.lane.b32.xlu0 %v5344, 126
        %v5372 = vpop.permute.xlu0 %5371
        %5373 = vrot.lane.b32.xlu0 %v5348, 126
        %v5374 = vpop.permute.xlu0 %5373
        %5375 = vrot.lane.b32.xlu0 %v5352, 126
        %v5376 = vpop.permute.xlu0 %5375
        %5377 = vrot.lane.b32.xlu0 %v5356, 126
        %v5378 = vpop.permute.xlu0 %5377
        %5379 = vrot.lane.b32.xlu0 %v5360, 126
        %v5380 = vpop.permute.xlu0 %5379
        %5381 = vrot.lane.b32.xlu0 %v5364, 126
        %v5382 = vpop.permute.xlu0 %5381
        %5383 = vrot.lane.b32.xlu0 %v5368, 126
        %v5384 = vpop.permute.xlu0 %5383
        %5393 = vst.msk [vmem:[%s236 + $0x5] sm:$0x1] %vm5117, %v5370
        %5394 = vst.msk [vmem:[%s236 + $0x15] sm:$0x1] %vm5117, %v5372
        %5395 = vst.msk [vmem:[%s236 + $0x25] sm:$0x1] %vm5117, %v5374
        %5396 = vst.msk [vmem:[%s236 + $0x35] sm:$0x1] %vm5117, %v5376
        %5397 = vst.msk [vmem:[%s236 + $0x45] sm:$0x1] %vm5117, %v5378
        %5398 = vst.msk [vmem:[%s236 + $0x55] sm:$0x1] %vm5117, %v5380
        %5399 = vst.msk [vmem:[%s236 + $0x65] sm:$0x1] %vm5117, %v5382
        %5400 = vst.msk [vmem:[%s236 + $0x75] sm:$0x1] %vm5117, %v5384
        %5401 = vrot.lane.b32.xlu0 %v5340, 100
        %v5402 = vpop.permute.xlu0 %5401
        %5403 = vrot.lane.b32.xlu0 %v5344, 100
        %v5404 = vpop.permute.xlu0 %5403
        %5405 = vrot.lane.b32.xlu0 %v5348, 100
        %v5406 = vpop.permute.xlu0 %5405
        %5407 = vrot.lane.b32.xlu0 %v5352, 100
        %v5408 = vpop.permute.xlu0 %5407
        %5409 = vrot.lane.b32.xlu0 %v5356, 100
        %v5410 = vpop.permute.xlu0 %5409
        %5411 = vrot.lane.b32.xlu0 %v5360, 100
        %v5412 = vpop.permute.xlu0 %5411
        %5413 = vrot.lane.b32.xlu0 %v5364, 100
        %v5414 = vpop.permute.xlu0 %5413
        %5415 = vrot.lane.b32.xlu0 %v5368, 100
        %v5416 = vpop.permute.xlu0 %5415
        %5425 = vst.msk [vmem:[%s236 + $0x6] sm:$0x1] %vm5117, %v5402
        %5426 = vst.msk [vmem:[%s236 + $0x16] sm:$0x1] %vm5117, %v5404
        %5427 = vst.msk [vmem:[%s236 + $0x26] sm:$0x1] %vm5117, %v5406
        %5428 = vst.msk [vmem:[%s236 + $0x36] sm:$0x1] %vm5117, %v5408
        %5429 = vst.msk [vmem:[%s236 + $0x46] sm:$0x1] %vm5117, %v5410
        %5430 = vst.msk [vmem:[%s236 + $0x56] sm:$0x1] %vm5117, %v5412
        %5431 = vst.msk [vmem:[%s236 + $0x66] sm:$0x1] %vm5117, %v5414
        %5432 = vst.msk [vmem:[%s236 + $0x76] sm:$0x1] %vm5117, %v5416
        %5433 = vrot.lane.b32.xlu0 %v5340, 74
        %v5434 = vpop.permute.xlu0 %5433
        %5435 = vrot.lane.b32.xlu0 %v5344, 74
        %v5436 = vpop.permute.xlu0 %5435
        %5437 = vrot.lane.b32.xlu0 %v5348, 74
        %v5438 = vpop.permute.xlu0 %5437
        %5439 = vrot.lane.b32.xlu0 %v5352, 74
        %v5440 = vpop.permute.xlu0 %5439
        %5441 = vrot.lane.b32.xlu0 %v5356, 74
        %v5442 = vpop.permute.xlu0 %5441
        %5443 = vrot.lane.b32.xlu0 %v5360, 74
        %v5444 = vpop.permute.xlu0 %5443
        %5445 = vrot.lane.b32.xlu0 %v5364, 74
        %v5446 = vpop.permute.xlu0 %5445
        %5447 = vrot.lane.b32.xlu0 %v5368, 74
        %v5448 = vpop.permute.xlu0 %5447
        %5457 = vst.msk [vmem:[%s236 + $0x7] sm:$0x1] %vm5117, %v5434
        %5458 = vst.msk [vmem:[%s236 + $0x17] sm:$0x1] %vm5117, %v5436
        %5459 = vst.msk [vmem:[%s236 + $0x27] sm:$0x1] %vm5117, %v5438
        %5460 = vst.msk [vmem:[%s236 + $0x37] sm:$0x1] %vm5117, %v5440
        %5461 = vst.msk [vmem:[%s236 + $0x47] sm:$0x1] %vm5117, %v5442
        %5462 = vst.msk [vmem:[%s236 + $0x57] sm:$0x1] %vm5117, %v5444
        %5463 = vst.msk [vmem:[%s236 + $0x67] sm:$0x1] %vm5117, %v5446
        %5464 = vst.msk [vmem:[%s236 + $0x77] sm:$0x1] %vm5117, %v5448
        %5465 = vrot.lane.b32.xlu0 %v5340, 48
        %v5466 = vpop.permute.xlu0 %5465
        %5467 = vrot.lane.b32.xlu0 %v5344, 48
        %v5468 = vpop.permute.xlu0 %5467
        %5469 = vrot.lane.b32.xlu0 %v5348, 48
        %v5470 = vpop.permute.xlu0 %5469
        %5471 = vrot.lane.b32.xlu0 %v5352, 48
        %v5472 = vpop.permute.xlu0 %5471
        %5473 = vrot.lane.b32.xlu0 %v5356, 48
        %v5474 = vpop.permute.xlu0 %5473
        %5475 = vrot.lane.b32.xlu0 %v5360, 48
        %v5476 = vpop.permute.xlu0 %5475
        %5477 = vrot.lane.b32.xlu0 %v5364, 48
        %v5478 = vpop.permute.xlu0 %5477
        %5479 = vrot.lane.b32.xlu0 %v5368, 48
        %v5480 = vpop.permute.xlu0 %5479
        %5489 = vst.msk [vmem:[%s236 + $0x8] sm:$0x1] %vm5117, %v5466
        %5490 = vst.msk [vmem:[%s236 + $0x18] sm:$0x1] %vm5117, %v5468
        %5491 = vst.msk [vmem:[%s236 + $0x28] sm:$0x1] %vm5117, %v5470
        %5492 = vst.msk [vmem:[%s236 + $0x38] sm:$0x1] %vm5117, %v5472
        %5493 = vst.msk [vmem:[%s236 + $0x48] sm:$0x1] %vm5117, %v5474
        %5494 = vst.msk [vmem:[%s236 + $0x58] sm:$0x1] %vm5117, %v5476
        %5495 = vst.msk [vmem:[%s236 + $0x68] sm:$0x1] %vm5117, %v5478
        %5496 = vst.msk [vmem:[%s236 + $0x78] sm:$0x1] %vm5117, %v5480
        %5497 = vrot.lane.b32.xlu0 %v5340, 22
        %v5498 = vpop.permute.xlu0 %5497
        %5499 = vrot.lane.b32.xlu0 %v5344, 22
        %v5500 = vpop.permute.xlu0 %5499
        %5501 = vrot.lane.b32.xlu0 %v5348, 22
        %v5502 = vpop.permute.xlu0 %5501
        %5503 = vrot.lane.b32.xlu0 %v5352, 22
        %v5504 = vpop.permute.xlu0 %5503
        %5505 = vrot.lane.b32.xlu0 %v5356, 22
        %v5506 = vpop.permute.xlu0 %5505
        %5507 = vrot.lane.b32.xlu0 %v5360, 22
        %v5508 = vpop.permute.xlu0 %5507
        %5509 = vrot.lane.b32.xlu0 %v5364, 22
        %v5510 = vpop.permute.xlu0 %5509
        %5511 = vrot.lane.b32.xlu0 %v5368, 22
        %v5512 = vpop.permute.xlu0 %5511
        %5521 = vst.msk [vmem:[%s236 + $0x9] sm:$0x1] %vm5117, %v5498
        %5522 = vst.msk [vmem:[%s236 + $0x19] sm:$0x1] %vm5117, %v5500
        %5523 = vst.msk [vmem:[%s236 + $0x29] sm:$0x1] %vm5117, %v5502
        %5524 = vst.msk [vmem:[%s236 + $0x39] sm:$0x1] %vm5117, %v5504
        %5525 = vst.msk [vmem:[%s236 + $0x49] sm:$0x1] %vm5117, %v5506
        %5526 = vst.msk [vmem:[%s236 + $0x59] sm:$0x1] %vm5117, %v5508
        %5527 = vst.msk [vmem:[%s236 + $0x69] sm:$0x1] %vm5117, %v5510
        %5528 = vst.msk [vmem:[%s236 + $0x79] sm:$0x1] %vm5117, %v5512
        %v5529 = vadd.f32 %v5048, %v5056
        %v5531 = vcombine.high %v5529, %v5529
        %v5533 = vunpack.c.l.s4 1966171168
        %v5534 = vunpack.c.0.s8 %v5533
        %v5535 = vlaneseq
        %v5536 = vshrl.u32 %v5535, 7
        %v5537 = vsub.s32 %v5534, %v5536
        %v5538 = vrot.slane %v5529, %v5537
        %v5540 = vunpack.c.l.s4 1966171168
        %v5541 = vunpack.c.0.s8 %v5540
        %v5542 = vlaneseq
        %v5543 = vshrl.u32 %v5542, 7
        %v5544 = vsub.s32 %v5541, %v5543
        %v5545 = vrot.slane %v5531, %v5544
        %v5546 = vcombine.high %v5538, %v5538
        %v5547 = vcombine.high %v5545, %v5545
        %v5549 = vunpack.c.l.s4 1966171168
        %v5550 = vunpack.c.0.s8 %v5549
        %v5551 = vlaneseq
        %v5552 = vshrl.u32 %v5551, 7
        %v5553 = vsub.s32 %v5550, %v5552
        %v5554 = vrot.slane %v5538, %v5553
        %v5556 = vunpack.c.l.s4 1966171168
        %v5557 = vunpack.c.0.s8 %v5556
        %v5558 = vlaneseq
        %v5559 = vshrl.u32 %v5558, 7
        %v5560 = vsub.s32 %v5557, %v5559
        %v5561 = vrot.slane %v5545, %v5560
        %v5563 = vunpack.c.l.s4 1966171168
        %v5564 = vunpack.c.0.s8 %v5563
        %v5565 = vlaneseq
        %v5566 = vshrl.u32 %v5565, 7
        %v5567 = vsub.s32 %v5564, %v5566
        %v5568 = vrot.slane %v5546, %v5567
        %v5570 = vunpack.c.l.s4 1966171168
        %v5571 = vunpack.c.0.s8 %v5570
        %v5572 = vlaneseq
        %v5573 = vshrl.u32 %v5572, 7
        %v5574 = vsub.s32 %v5571, %v5573
        %v5575 = vrot.slane %v5547, %v5574
        %v5576 = vcombine.high %v5554, %v5554
        %v5577 = vcombine.high %v5561, %v5561
        %v5578 = vcombine.high %v5568, %v5568
        %v5579 = vcombine.high %v5575, %v5575
        %v5580 = vlaneseq
        %v5581 = vshrl.u32 %v5580, 7
        %v5582 = vsub.s32 0, %v5581
        %v5583 = vrot.slane %v5554, %v5582
        %v5584 = vlaneseq
        %v5585 = vshrl.u32 %v5584, 7
        %v5586 = vsub.s32 0, %v5585
        %v5587 = vrot.slane %v5568, %v5586
        %v5588 = vlaneseq
        %v5589 = vshrl.u32 %v5588, 7
        %v5590 = vsub.s32 0, %v5589
        %v5591 = vrot.slane %v5576, %v5590
        %v5592 = vlaneseq
        %v5593 = vshrl.u32 %v5592, 7
        %v5594 = vsub.s32 0, %v5593
        %v5595 = vrot.slane %v5578, %v5594
        %v5596 = vlaneseq
        %v5597 = vshrl.u32 %v5596, 7
        %v5598 = vsub.s32 0, %v5597
        %v5599 = vrot.slane %v5561, %v5598
        %v5600 = vlaneseq
        %v5601 = vshrl.u32 %v5600, 7
        %v5602 = vsub.s32 0, %v5601
        %v5603 = vrot.slane %v5575, %v5602
        %v5604 = vlaneseq
        %v5605 = vshrl.u32 %v5604, 7
        %v5606 = vsub.s32 0, %v5605
        %v5607 = vrot.slane %v5577, %v5606
        %v5608 = vlaneseq
        %v5609 = vshrl.u32 %v5608, 7
        %v5610 = vsub.s32 0, %v5609
        %v5611 = vrot.slane %v5579, %v5610
        %5612 = vrot.lane.b32.xlu0 %v5583, 124
        %v5613 = vpop.permute.xlu0 %5612
        %5614 = vrot.lane.b32.xlu0 %v5587, 124
        %v5615 = vpop.permute.xlu0 %5614
        %5616 = vrot.lane.b32.xlu0 %v5591, 124
        %v5617 = vpop.permute.xlu0 %5616
        %5618 = vrot.lane.b32.xlu0 %v5595, 124
        %v5619 = vpop.permute.xlu0 %5618
        %5620 = vrot.lane.b32.xlu0 %v5599, 124
        %v5621 = vpop.permute.xlu0 %5620
        %5622 = vrot.lane.b32.xlu0 %v5603, 124
        %v5623 = vpop.permute.xlu0 %5622
        %5624 = vrot.lane.b32.xlu0 %v5607, 124
        %v5625 = vpop.permute.xlu0 %5624
        %5626 = vrot.lane.b32.xlu0 %v5611, 124
        %v5627 = vpop.permute.xlu0 %5626
        %5636 = vst.msk [vmem:[%s236 + $0xa] sm:$0x1] %vm5117, %v5613
        %5637 = vst.msk [vmem:[%s236 + $0x1a] sm:$0x1] %vm5117, %v5615
        %5638 = vst.msk [vmem:[%s236 + $0x2a] sm:$0x1] %vm5117, %v5617
        %5639 = vst.msk [vmem:[%s236 + $0x3a] sm:$0x1] %vm5117, %v5619
        %5640 = vst.msk [vmem:[%s236 + $0x4a] sm:$0x1] %vm5117, %v5621
        %5641 = vst.msk [vmem:[%s236 + $0x5a] sm:$0x1] %vm5117, %v5623
        %5642 = vst.msk [vmem:[%s236 + $0x6a] sm:$0x1] %vm5117, %v5625
        %5643 = vst.msk [vmem:[%s236 + $0x7a] sm:$0x1] %vm5117, %v5627
        %5644 = vrot.lane.b32.xlu0 %v5583, 98
        %v5645 = vpop.permute.xlu0 %5644
        %5646 = vrot.lane.b32.xlu0 %v5587, 98
        %v5647 = vpop.permute.xlu0 %5646
        %5648 = vrot.lane.b32.xlu0 %v5591, 98
        %v5649 = vpop.permute.xlu0 %5648
        %5650 = vrot.lane.b32.xlu0 %v5595, 98
        %v5651 = vpop.permute.xlu0 %5650
        %5652 = vrot.lane.b32.xlu0 %v5599, 98
        %v5653 = vpop.permute.xlu0 %5652
        %5654 = vrot.lane.b32.xlu0 %v5603, 98
        %v5655 = vpop.permute.xlu0 %5654
        %5656 = vrot.lane.b32.xlu0 %v5607, 98
        %v5657 = vpop.permute.xlu0 %5656
        %5658 = vrot.lane.b32.xlu0 %v5611, 98
        %v5659 = vpop.permute.xlu0 %5658
        %5668 = vst.msk [vmem:[%s236 + $0xb] sm:$0x1] %vm5117, %v5645
        %5669 = vst.msk [vmem:[%s236 + $0x1b] sm:$0x1] %vm5117, %v5647
        %5670 = vst.msk [vmem:[%s236 + $0x2b] sm:$0x1] %vm5117, %v5649
        %5671 = vst.msk [vmem:[%s236 + $0x3b] sm:$0x1] %vm5117, %v5651
        %5672 = vst.msk [vmem:[%s236 + $0x4b] sm:$0x1] %vm5117, %v5653
        %5673 = vst.msk [vmem:[%s236 + $0x5b] sm:$0x1] %vm5117, %v5655
        %5674 = vst.msk [vmem:[%s236 + $0x6b] sm:$0x1] %vm5117, %v5657
        %5675 = vst.msk [vmem:[%s236 + $0x7b] sm:$0x1] %vm5117, %v5659
        %5676 = vrot.lane.b32.xlu0 %v5583, 72
        %v5677 = vpop.permute.xlu0 %5676
        %5678 = vrot.lane.b32.xlu0 %v5587, 72
        %v5679 = vpop.permute.xlu0 %5678
        %5680 = vrot.lane.b32.xlu0 %v5591, 72
        %v5681 = vpop.permute.xlu0 %5680
        %5682 = vrot.lane.b32.xlu0 %v5595, 72
        %v5683 = vpop.permute.xlu0 %5682
        %5684 = vrot.lane.b32.xlu0 %v5599, 72
        %v5685 = vpop.permute.xlu0 %5684
        %5686 = vrot.lane.b32.xlu0 %v5603, 72
        %v5687 = vpop.permute.xlu0 %5686
        %5688 = vrot.lane.b32.xlu0 %v5607, 72
        %v5689 = vpop.permute.xlu0 %5688
        %5690 = vrot.lane.b32.xlu0 %v5611, 72
        %v5691 = vpop.permute.xlu0 %5690
        %5700 = vst.msk [vmem:[%s236 + $0xc] sm:$0x1] %vm5117, %v5677
        %5701 = vst.msk [vmem:[%s236 + $0x1c] sm:$0x1] %vm5117, %v5679
        %5702 = vst.msk [vmem:[%s236 + $0x2c] sm:$0x1] %vm5117, %v5681
        %5703 = vst.msk [vmem:[%s236 + $0x3c] sm:$0x1] %vm5117, %v5683
        %5704 = vst.msk [vmem:[%s236 + $0x4c] sm:$0x1] %vm5117, %v5685
        %5705 = vst.msk [vmem:[%s236 + $0x5c] sm:$0x1] %vm5117, %v5687
        %5706 = vst.msk [vmem:[%s236 + $0x6c] sm:$0x1] %vm5117, %v5689
        %5707 = vst.msk [vmem:[%s236 + $0x7c] sm:$0x1] %vm5117, %v5691
        %5708 = vrot.lane.b32.xlu0 %v5583, 46
        %v5709 = vpop.permute.xlu0 %5708
        %5710 = vrot.lane.b32.xlu0 %v5587, 46
        %v5711 = vpop.permute.xlu0 %5710
        %5712 = vrot.lane.b32.xlu0 %v5591, 46
        %v5713 = vpop.permute.xlu0 %5712
        %5714 = vrot.lane.b32.xlu0 %v5595, 46
        %v5715 = vpop.permute.xlu0 %5714
        %5716 = vrot.lane.b32.xlu0 %v5599, 46
        %v5717 = vpop.permute.xlu0 %5716
        %5718 = vrot.lane.b32.xlu0 %v5603, 46
        %v5719 = vpop.permute.xlu0 %5718
        %5720 = vrot.lane.b32.xlu0 %v5607, 46
        %v5721 = vpop.permute.xlu0 %5720
        %5722 = vrot.lane.b32.xlu0 %v5611, 46
        %v5723 = vpop.permute.xlu0 %5722
        %5732 = vst.msk [vmem:[%s236 + $0xd] sm:$0x1] %vm5117, %v5709
        %5733 = vst.msk [vmem:[%s236 + $0x1d] sm:$0x1] %vm5117, %v5711
        %5734 = vst.msk [vmem:[%s236 + $0x2d] sm:$0x1] %vm5117, %v5713
        %5735 = vst.msk [vmem:[%s236 + $0x3d] sm:$0x1] %vm5117, %v5715
        %5736 = vst.msk [vmem:[%s236 + $0x4d] sm:$0x1] %vm5117, %v5717
        %5737 = vst.msk [vmem:[%s236 + $0x5d] sm:$0x1] %vm5117, %v5719
        %5738 = vst.msk [vmem:[%s236 + $0x6d] sm:$0x1] %vm5117, %v5721
        %5739 = vst.msk [vmem:[%s236 + $0x7d] sm:$0x1] %vm5117, %v5723
        %5740 = vrot.lane.b32.xlu0 %v5583, 20
        %v5741 = vpop.permute.xlu0 %5740
        %5742 = vrot.lane.b32.xlu0 %v5587, 20
        %v5743 = vpop.permute.xlu0 %5742
        %5744 = vrot.lane.b32.xlu0 %v5591, 20
        %v5745 = vpop.permute.xlu0 %5744
        %5746 = vrot.lane.b32.xlu0 %v5595, 20
        %v5747 = vpop.permute.xlu0 %5746
        %5748 = vrot.lane.b32.xlu0 %v5599, 20
        %v5749 = vpop.permute.xlu0 %5748
        %5750 = vrot.lane.b32.xlu0 %v5603, 20
        %v5751 = vpop.permute.xlu0 %5750
        %5752 = vrot.lane.b32.xlu0 %v5607, 20
        %v5753 = vpop.permute.xlu0 %5752
        %5754 = vrot.lane.b32.xlu0 %v5611, 20
        %v5755 = vpop.permute.xlu0 %5754
        %5764 = vst.msk [vmem:[%s236 + $0xe] sm:$0x1] %vm5117, %v5741
        %5765 = vst.msk [vmem:[%s236 + $0x1e] sm:$0x1] %vm5117, %v5743
        %5766 = vst.msk [vmem:[%s236 + $0x2e] sm:$0x1] %vm5117, %v5745
        %5767 = vst.msk [vmem:[%s236 + $0x3e] sm:$0x1] %vm5117, %v5747
        %5768 = vst.msk [vmem:[%s236 + $0x4e] sm:$0x1] %vm5117, %v5749
        %5769 = vst.msk [vmem:[%s236 + $0x5e] sm:$0x1] %vm5117, %v5751
        %5770 = vst.msk [vmem:[%s236 + $0x6e] sm:$0x1] %vm5117, %v5753
        %5771 = vst.msk [vmem:[%s236 + $0x7e] sm:$0x1] %vm5117, %v5755
        %v5772 = vadd.f32 %v5050, %v5056
        %v5774 = vcombine.high %v5772, %v5772
        %v5776 = vunpack.c.l.s4 1966171168
        %v5777 = vunpack.c.0.s8 %v5776
        %v5778 = vlaneseq
        %v5779 = vshrl.u32 %v5778, 7
        %v5780 = vsub.s32 %v5777, %v5779
        %v5781 = vrot.slane %v5772, %v5780
        %v5783 = vunpack.c.l.s4 1966171168
        %v5784 = vunpack.c.0.s8 %v5783
        %v5785 = vlaneseq
        %v5786 = vshrl.u32 %v5785, 7
        %v5787 = vsub.s32 %v5784, %v5786
        %v5788 = vrot.slane %v5774, %v5787
        %v5789 = vcombine.high %v5781, %v5781
        %v5790 = vcombine.high %v5788, %v5788
        %v5792 = vunpack.c.l.s4 1966171168
        %v5793 = vunpack.c.0.s8 %v5792
        %v5794 = vlaneseq
        %v5795 = vshrl.u32 %v5794, 7
        %v5796 = vsub.s32 %v5793, %v5795
        %v5797 = vrot.slane %v5781, %v5796
        %v5799 = vunpack.c.l.s4 1966171168
        %v5800 = vunpack.c.0.s8 %v5799
        %v5801 = vlaneseq
        %v5802 = vshrl.u32 %v5801, 7
        %v5803 = vsub.s32 %v5800, %v5802
        %v5804 = vrot.slane %v5788, %v5803
        %v5806 = vunpack.c.l.s4 1966171168
        %v5807 = vunpack.c.0.s8 %v5806
        %v5808 = vlaneseq
        %v5809 = vshrl.u32 %v5808, 7
        %v5810 = vsub.s32 %v5807, %v5809
        %v5811 = vrot.slane %v5789, %v5810
        %v5813 = vunpack.c.l.s4 1966171168
        %v5814 = vunpack.c.0.s8 %v5813
        %v5815 = vlaneseq
        %v5816 = vshrl.u32 %v5815, 7
        %v5817 = vsub.s32 %v5814, %v5816
        %v5818 = vrot.slane %v5790, %v5817
        %v5819 = vcombine.high %v5797, %v5797
        %v5820 = vcombine.high %v5804, %v5804
        %v5821 = vcombine.high %v5811, %v5811
        %v5822 = vcombine.high %v5818, %v5818
        %v5823 = vlaneseq
        %v5824 = vshrl.u32 %v5823, 7
        %v5825 = vsub.s32 0, %v5824
        %v5826 = vrot.slane %v5797, %v5825
        %v5827 = vlaneseq
        %v5828 = vshrl.u32 %v5827, 7
        %v5829 = vsub.s32 0, %v5828
        %v5830 = vrot.slane %v5811, %v5829
        %v5831 = vlaneseq
        %v5832 = vshrl.u32 %v5831, 7
        %v5833 = vsub.s32 0, %v5832
        %v5834 = vrot.slane %v5819, %v5833
        %v5835 = vlaneseq
        %v5836 = vshrl.u32 %v5835, 7
        %v5837 = vsub.s32 0, %v5836
        %v5838 = vrot.slane %v5821, %v5837
        %v5839 = vlaneseq
        %v5840 = vshrl.u32 %v5839, 7
        %v5841 = vsub.s32 0, %v5840
        %v5842 = vrot.slane %v5804, %v5841
        %v5843 = vlaneseq
        %v5844 = vshrl.u32 %v5843, 7
        %v5845 = vsub.s32 0, %v5844
        %v5846 = vrot.slane %v5818, %v5845
        %v5847 = vlaneseq
        %v5848 = vshrl.u32 %v5847, 7
        %v5849 = vsub.s32 0, %v5848
        %v5850 = vrot.slane %v5820, %v5849
        %v5851 = vlaneseq
        %v5852 = vshrl.u32 %v5851, 7
        %v5853 = vsub.s32 0, %v5852
        %v5854 = vrot.slane %v5822, %v5853
        %5855 = vrot.lane.b32.xlu0 %v5826, 122
        %v5856 = vpop.permute.xlu0 %5855
        %5857 = vrot.lane.b32.xlu0 %v5830, 122
        %v5858 = vpop.permute.xlu0 %5857
        %5859 = vrot.lane.b32.xlu0 %v5834, 122
        %v5860 = vpop.permute.xlu0 %5859
        %5861 = vrot.lane.b32.xlu0 %v5838, 122
        %v5862 = vpop.permute.xlu0 %5861
        %5863 = vrot.lane.b32.xlu0 %v5842, 122
        %v5864 = vpop.permute.xlu0 %5863
        %5865 = vrot.lane.b32.xlu0 %v5846, 122
        %v5866 = vpop.permute.xlu0 %5865
        %5867 = vrot.lane.b32.xlu0 %v5850, 122
        %v5868 = vpop.permute.xlu0 %5867
        %5869 = vrot.lane.b32.xlu0 %v5854, 122
        %v5870 = vpop.permute.xlu0 %5869
        %5879 = vst.msk [vmem:[%s236 + $0xf] sm:$0x1] %vm5117, %v5856
        %5880 = vst.msk [vmem:[%s236 + $0x1f] sm:$0x1] %vm5117, %v5858
        %5881 = vst.msk [vmem:[%s236 + $0x2f] sm:$0x1] %vm5117, %v5860
        %5882 = vst.msk [vmem:[%s236 + $0x3f] sm:$0x1] %vm5117, %v5862
        %5883 = vst.msk [vmem:[%s236 + $0x4f] sm:$0x1] %vm5117, %v5864
        %5884 = vst.msk [vmem:[%s236 + $0x5f] sm:$0x1] %vm5117, %v5866
        %5885 = vst.msk [vmem:[%s236 + $0x6f] sm:$0x1] %vm5117, %v5868
        %5886 = vst.msk [vmem:[%s236 + $0x7f] sm:$0x1] %vm5117, %v5870
        %s5887 = sand.u32 %s121, 1
        %s5888 = scalar_lea.sflag [#allocation6], %s5887
        %s5889 = sand.u32 %s121, 1
        %s5890 = smul.addr %s5889, 128
        %s5891 = scalar_lea.vmem [#allocation9], %s5890
        // Predicated region
        $region45: #{tpu_custom_call.1} parent=31 // pred_check
          %p5892 = pneg %p131
        $region46: #{tpu_custom_call.1} parent=31 // pred_check_branch
          %5894 = sbr.rel (%p5892) target = $region48
        $region47: #{tpu_custom_call.1} parent=31 // pred_region
          %s5895 = smul.u32 8, %s26
          %s5897 = ssub.s32 2048, 2048
          %5898 = vsyncadd %s5888, %s5897
          %s5899 = smul.addr %s5895, 2
          %s5900 = smul.addr %s25, 16
          %s5901 = sadd.s32 %s5899, %s5900
          %s5902 = smul.addr %s5901, 128
          %s5903 = scalar_lea.hbm %s3, %s5902
          %s5904 = sshll.u32 %s5891, 4
          %s5905 = int_to_ptr.vmem [resolvable:$true] %s5904
          %5910 = dma.vmem_to_hbm [thread:$0]  %s5905, 2048, %s5903, %s5888, 128, 128, 8
        $region48: #{tpu_custom_call.1} parent=31 // pred_fallthru
          _
      $region32: #{tpu_custom_call.1} parent=5 // pred_fallthru
        _
      %p5911 = scmp.le.s32.totalorder 2, %s16
      // Predicated region
      $region49: #{tpu_custom_call.1} parent=5 // pred_check
        %p5912 = pneg %p5911
      $region50: #{tpu_custom_call.1} parent=5 // pred_check_branch
        %5914 = sbr.rel (%p5912) target = $region52
      $region51: #{tpu_custom_call.1} parent=5 // pred_region
        %s5915 = ssub.s32 %s16, 2
        // Predicated region
        $region53: #{tpu_custom_call.1} parent=51 // pred_check
          %p5916 = pneg %p137
        $region54: #{tpu_custom_call.1} parent=51 // pred_check_branch
          %5918 = sbr.rel (%p5916) target = $region56
        $region55: #{tpu_custom_call.1} parent=51 // pred_region
          %s5919 = sand.u32 %s122, 1
          %s5920 = scalar_lea.sflag [#allocation6], %s5919
          %s5921 = sand.u32 %s122, 1
          %s5922 = smul.addr %s5921, 128
          %s5923 = scalar_lea.vmem [#allocation9], %s5922
          %5924 = dma.done %s5920, 2048
        $region56: #{tpu_custom_call.1} parent=51 // pred_fallthru
          _
      $region52: #{tpu_custom_call.1} parent=5 // pred_fallthru
        _
    $region6: #{tpu_custom_call.1} parent=1 // loop_footer
      %s20 = sadd.s32 1, %s16
    $region7: #{tpu_custom_call.1} parent=1 // loop_footer_branch
      %15 = sbr.rel target = $region3
    $region8: #{tpu_custom_call.1} parent=1 // loop_exit
      _
    %5925 = vsyncpa [#allocation5], 1
    %s5926 = scalar_lea.sflag [#allocation5], 1
    %5927 = vsyncpa %s5926, 1
    %5928 = vsyncpa [#allocation8], 1
    %5929 = vsyncpa [#allocation6], 1
    %s5930 = scalar_lea.sflag [#allocation6], 1
    %5931 = vsyncpa %s5930, 1

</llo_original>
